<compile_context>
chip_gen: v5e
topology: v5e:2x2
jax: 0.10.0
libtpu: 0.0.40
codegen_flags: <defaults>
</compile_context>

<pallas_src>
import functools

import jax
import jax.numpy as jnp
from jax.experimental import pallas as pl
from jax.experimental.pallas import tpu as pltpu


def _round_up(x, m):
    return (x + m - 1) // m * m


# ---------------------------------------------------------------------------
# Generic fused matmul + bias + activation Pallas kernel (row-tiled).
# ---------------------------------------------------------------------------

def _matmul_bias_act_kernel(x_ref, w_ref, b_ref, o_ref, *, act):
    y = jnp.dot(x_ref[...], w_ref[...], preferred_element_type=jnp.float32)
    y = y + b_ref[...]
    if act == "relu":
        y = jnp.maximum(y, 0.0)
    elif act == "sigmoid":
        y = jax.nn.sigmoid(y)
    o_ref[...] = y


def matmul_bias_act(x, w, b, act=None, tm=512):
    """(M, K) @ (K, N) + b with optional activation; rows tiled over a 1-D grid."""
    M, K = x.shape
    N = w.shape[1]
    TM = tm if M >= tm else _round_up(M, 8)
    Mp = _round_up(M, TM)
    if Mp != M:
        x = jnp.pad(x, ((0, Mp - M), (0, 0)))
    out = pl.pallas_call(
        functools.partial(_matmul_bias_act_kernel, act=act),
        out_shape=jax.ShapeDtypeStruct((Mp, N), jnp.float32),
        grid=(Mp // TM,),
        in_specs=[
            pl.BlockSpec((TM, K), lambda i: (i, 0)),
            pl.BlockSpec((K, N), lambda i: (0, 0)),   # weights stay VMEM-resident
            pl.BlockSpec((1, N), lambda i: (0, 0)),
        ],
        out_specs=pl.BlockSpec((TM, N), lambda i: (i, 0)),
        compiler_params=pltpu.CompilerParams(dimension_semantics=("parallel",)),
    )(x, w, b)
    if Mp != M:
        out = out[:M]
    return out


# ---------------------------------------------------------------------------
# LSTM: fused-over-time recurrence for one (layer, direction).
# ---------------------------------------------------------------------------

def _lstm_scan_kernel(pre_ref, whh_ref, o_ref, h_scr, c_scr, *, hidden):
    t = pl.program_id(0)

    @pl.when(t == 0)
    def _():
        h_scr[...] = jnp.zeros_like(h_scr)
        c_scr[...] = jnp.zeros_like(c_scr)

    # Input projection was hoisted out of the recurrence; only h @ W_hh remains here.
    gates = pre_ref[0] + jnp.dot(h_scr[...], whh_ref[...],
                                 preferred_element_type=jnp.float32)
    # PyTorch gate order i, f, g, o; hidden=128 keeps splits on 128-lane edges.
    i_g = jax.nn.sigmoid(gates[:, 0 * hidden:1 * hidden])
    f_g = jax.nn.sigmoid(gates[:, 1 * hidden:2 * hidden])
    g_g = jnp.tanh(gates[:, 2 * hidden:3 * hidden])
    o_g = jax.nn.sigmoid(gates[:, 3 * hidden:4 * hidden])
    c_new = f_g * c_scr[...] + i_g * g_g
    h_new = o_g * jnp.tanh(c_new)
    h_scr[...] = h_new
    c_scr[...] = c_new
    o_ref[0] = h_new


def lstm_direction(pregates, w_hh, reverse):
    """Run one direction of one LSTM layer over the whole sequence in ONE pallas_call.

    pregates: (S, B, 4H) = x @ W_ih + (b_ih + b_hh), precomputed for all timesteps.
    w_hh:     (H, 4H)
    Returns (S, B, H). For reverse=True the time reversal is handled by the
    index_maps, so the output is already written at the true time index.
    """
    S, B, G = pregates.shape
    H = G // 4
    if reverse:
        idx = lambda t: (S - 1 - t, 0, 0)
    else:
        idx = lambda t: (t, 0, 0)
    return pl.pallas_call(
        functools.partial(_lstm_scan_kernel, hidden=H),
        out_shape=jax.ShapeDtypeStruct((S, B, H), jnp.float32),
        grid=(S,),
        in_specs=[
            pl.BlockSpec((1, B, G), idx),
            pl.BlockSpec((H, G), lambda t: (0, 0)),   # W_hh resident for all steps
        ],
        out_specs=pl.BlockSpec((1, B, H), idx),
        scratch_shapes=[pltpu.VMEM((B, H), jnp.float32),   # h carry
                        pltpu.VMEM((B, H), jnp.float32)],  # c carry
        compiler_params=pltpu.CompilerParams(dimension_semantics=("arbitrary",)),
    )(pregates, w_hh)


# ---------------------------------------------------------------------------
# CNN encoder helpers (im2col / pooling are JAX glue; compute is Pallas).
# ---------------------------------------------------------------------------

def _im2col(x, k=3, stride=2, pad=1):
    # x: (N, H, W, C) -> (N, Ho, Wo, k*k*C), ordering (di, dj) major / channel minor,
    # matching a weight laid out as (k, k, Cin, Cout).reshape(k*k*Cin, Cout).
    N, H, W, C = x.shape
    xp = jnp.pad(x, ((0, 0), (pad, pad), (pad, pad), (0, 0)))
    Ho = (H + 2 * pad - k) // stride + 1
    Wo = (W + 2 * pad - k) // stride + 1
    cols = []
    for di in range(k):
        for dj in range(k):
            cols.append(xp[:, di:di + stride * Ho:stride,
                           dj:dj + stride * Wo:stride, :])
    return jnp.concatenate(cols, axis=-1)


def conv_relu(x, w, b):
    # x: (N, H, W, Cin); w: (k*k*Cin, Cout); b: (1, Cout)
    patches = _im2col(x)
    N, Ho, Wo, K = patches.shape
    y = matmul_bias_act(patches.reshape(N * Ho * Wo, K), w, b, act="relu")
    return y.reshape(N, Ho, Wo, -1)


def avg_pool_2x2(x):
    # AvgPool2d(kernel_size=2, stride=2) on NHWC with even spatial dims.
    N, H, W, C = x.shape
    return x.reshape(N, H // 2, 2, W // 2, 2, C).mean(axis=(2, 4))


# ---------------------------------------------------------------------------
# Parameters
# ---------------------------------------------------------------------------

_CNN_CHANNELS = [(2, 32), (32, 32), (32, 64), (64, 64), (64, 128), (128, 128)]


def init_params(key, lstm_input_dim=128, lstm_hidden_dim=128, num_layers=4):
    keys = iter(jax.random.split(key, 4 * len(_CNN_CHANNELS) + 8 * num_layers + 8))

    def nrm(shape, fan_in):
        return jax.random.normal(next(keys), shape, jnp.float32) / jnp.sqrt(float(fan_in))

    k = 3
    cnn = [{"w": nrm((k * k * cin, cout), k * k * cin),
            "b": nrm((1, cout), k * k * cin)}
           for cin, cout in _CNN_CHANNELS]

    H = lstm_hidden_dim
    lstm = []
    for l in range(num_layers):
        din = lstm_input_dim if l == 0 else 2 * H
        w_ih_f = nrm((din, 4 * H), din)
        w_ih_b = nrm((din, 4 * H), din)
        lstm.append({
            # fwd/bwd input projections packed along the output dim: one wide matmul
            # per layer produces both directions' pre-gates.
            "w_ih_fb": jnp.concatenate([w_ih_f, w_ih_b], axis=1),                 # (din, 8H)
            "b_fb": jnp.concatenate([nrm((1, 4 * H), H), nrm((1, 4 * H), H)], 1), # bias_ih+bias_hh
            "w_hh_f": nrm((H, 4 * H), H),
            "w_hh_b": nrm((H, 4 * H), H),
        })

    linear = {"w": nrm((2 * H, 2), 2 * H), "b": nrm((1, 2), 2 * H)}
    return {"cnn": cnn, "lstm": lstm, "linear": linear}


# ---------------------------------------------------------------------------
# Forward
# ---------------------------------------------------------------------------

def trace_lstm_forward(params, x, coords, target_type="ball"):
    # x: (B, S, C, H, W); `coords` is accepted but unused, matching the PyTorch forward.
    del coords
    B, S, C, H, W = x.shape
    pitch_size = jnp.asarray([H, W], jnp.float32)

    # ---- CNN encoder: 6x (conv3x3 s2 p1 + ReLU) then AvgPool2d(2,2) ----
    feats = x.reshape(B * S, C, H, W).transpose(0, 2, 3, 1)   # NHWC
    for layer in params["cnn"]:
        feats = conv_relu(feats, layer["w"], layer["b"])
    feats = avg_pool_2x2(feats)
    feats = feats.transpose(0, 3, 1, 2).reshape(B, S, -1)     # NCHW flatten, like .view()

    # ---- 4-layer bidirectional LSTM ----
    Hd = params["lstm"][0]["w_hh_f"].shape[0]
    layer_in = feats.transpose(1, 0, 2)                        # (S, B, D)
    for lp in params["lstm"]:
        din = layer_in.shape[-1]
        # Hoisted input projection for the whole sequence, both directions at once.
        pre = matmul_bias_act(layer_in.reshape(S * B, din), lp["w_ih_fb"], lp["b_fb"])
        pre = pre.reshape(S, B, 8 * Hd)
        out_f = lstm_direction(pre[..., :4 * Hd], lp["w_hh_f"], reverse=False)
        out_b = lstm_direction(pre[..., 4 * Hd:], lp["w_hh_b"], reverse=True)
        layer_in = jnp.concatenate([out_f, out_b], axis=-1)    # (S, B, 2H)

    lstm_out = layer_in.transpose(1, 0, 2).reshape(B * S, 2 * Hd)

    # ---- head: Linear(2H, 2) + sigmoid, then scale by pitch size ----
    out = matmul_bias_act(lstm_out, params["linear"]["w"], params["linear"]["b"],
                          act="sigmoid").reshape(B, S, 2)

    if target_type == "ball":
        return out * pitch_size
    # TODO(synk): non-'ball' branch mirrors the reference code; with a 2-wide head the
    # second slice is empty exactly as in the PyTorch module.
    return jnp.concatenate([out[:, :, 0:2] * pitch_size, out[:, :, 2:4] * pitch_size], axis=2)


# ---------------------------------------------------------------------------
# Main
# ---------------------------------------------------------------------------

if __name__ == "__main__":
    # H=W=128 is what the module's architecture implies: after six stride-2 convs and
    # the 2x2 avg-pool the spatial dims collapse to 1x1, so the flattened CNN feature
    # equals 128 channels = lstm_input_dim=128 (the nn.LSTM default in the spec).
    B, S, C, H, W = 2, 4, 2, 128, 128
    key = jax.random.PRNGKey(0)
    kp, kx, kc = jax.random.split(key, 3)

    params = init_params(kp, lstm_input_dim=128, lstm_hidden_dim=128, num_layers=4)
    x = jax.random.normal(kx, (B, S, C, H, W), jnp.float32)
    coords = jax.random.normal(kc, (B, S, 4), jnp.float32)     # unused by the forward

    fwd = jax.jit(functools.partial(trace_lstm_forward, target_type="ball"))
    out = fwd(params, x, coords)
    jax.block_until_ready(out)

    assert out.shape == (B, S, 2), out.shape
    assert bool(jnp.all(jnp.isfinite(out)))
    print("KERNEL_OK")
</pallas_src>

<mosaic_0001>
module attributes {stable_mosaic.version = 11 : i64} {
  func.func @_matmul_bias_act_kernel(%arg0: i32, %arg1: memref<512x18xf32, #tpu.memory_space<vmem>>, %arg2: memref<18x32xf32, #tpu.memory_space<vmem>>, %arg3: memref<1x32xf32, #tpu.memory_space<vmem>>, %arg4: memref<512x32xf32, #tpu.memory_space<vmem>>) attributes {dimension_semantics = [#tpu.dimension_semantics<parallel>], iteration_bounds = array<i64: 64>, scalar_prefetch = 0 : i64, scratch_operands = 0 : i64, tpu.core_type = #tpu.core_type<tc>, window_params = [{transform_indices = @transform_0, window_bounds = array<i64: 512, 18>}, {pipeline_mode = #tpu.pipeline_mode<synchronous>, transform_indices = @transform_1, window_bounds = array<i64: 18, 32>}, {pipeline_mode = #tpu.pipeline_mode<synchronous>, transform_indices = @transform_2, window_bounds = array<i64: 1, 32>}, {transform_indices = @transform_3, window_bounds = array<i64: 512, 32>}]} {
    %c0 = arith.constant 0 : index
    %c0_0 = arith.constant 0 : index
    %0 = vector.load %arg1[%c0, %c0_0] : memref<512x18xf32, #tpu.memory_space<vmem>>, vector<512x18xf32>
    %c0_1 = arith.constant 0 : index
    %c0_2 = arith.constant 0 : index
    %1 = vector.load %arg2[%c0_1, %c0_2] : memref<18x32xf32, #tpu.memory_space<vmem>>, vector<18x32xf32>
    %cst = arith.constant dense<0.000000e+00> : vector<512x32xf32>
    %2 = tpu.matmul %0, %1, %cst {dimension_numbers = #tpu.dot_dimension_numbers<[1], [0], [0], [1], [0, 0, 1, 1], [], []>} : vector<512x18xf32>, vector<18x32xf32>, vector<512x32xf32> -> vector<512x32xf32>
    %c0_3 = arith.constant 0 : index
    %c0_4 = arith.constant 0 : index
    %3 = vector.load %arg3[%c0_3, %c0_4] : memref<1x32xf32, #tpu.memory_space<vmem>>, vector<1x32xf32>
    %4 = vector.broadcast %3 : vector<1x32xf32> to vector<512x32xf32>
    %5 = arith.addf %2, %4 : vector<512x32xf32>
    %cst_5 = arith.constant 0.000000e+00 : f32
    %6 = vector.broadcast %cst_5 : f32 to vector<512x32xf32>
    %7 = arith.maximumf %5, %6 : vector<512x32xf32>
    %c0_6 = arith.constant 0 : index
    %c0_7 = arith.constant 0 : index
    %8 = vector.load %arg4[%c0_6, %c0_7] : memref<512x32xf32, #tpu.memory_space<vmem>>, vector<512x32xf32>
    tpu.vector_store %arg4[%c0_6, %c0_7], %7 {strides = array<i32>} : memref<512x32xf32, #tpu.memory_space<vmem>>, vector<512x32xf32>,
    return
  }
  func.func @transform_0(%arg0: i32) -> (i32, i32) {
    %c0_i32 = arith.constant 0 : i32
    %c0_i32_0 = arith.constant 0 : i32
    return %arg0, %c0_i32 : i32, i32
  }
  func.func @transform_1(%arg0: i32) -> (i32, i32) {
    %c0_i32 = arith.constant 0 : i32
    %c0_i32_0 = arith.constant 0 : i32
    %c0_i32_1 = arith.constant 0 : i32
    return %c0_i32, %c0_i32_0 : i32, i32
  }
  func.func @transform_2(%arg0: i32) -> (i32, i32) {
    %c0_i32 = arith.constant 0 : i32
    %c0_i32_0 = arith.constant 0 : i32
    %c0_i32_1 = arith.constant 0 : i32
    return %c0_i32, %c0_i32_0 : i32, i32
  }
  func.func @transform_3(%arg0: i32) -> (i32, i32) {
    %c0_i32 = arith.constant 0 : i32
    %c0_i32_0 = arith.constant 0 : i32
    return %arg0, %c0_i32 : i32, i32
  }
}

module attributes {stable_mosaic.version = 11 : i64} {
  func.func @_matmul_bias_act_kernel(%arg0: i32, %arg1: memref<512x288xf32, #tpu.memory_space<vmem>>, %arg2: memref<288x32xf32, #tpu.memory_space<vmem>>, %arg3: memref<1x32xf32, #tpu.memory_space<vmem>>, %arg4: memref<512x32xf32, #tpu.memory_space<vmem>>) attributes {dimension_semantics = [#tpu.dimension_semantics<parallel>], iteration_bounds = array<i64: 16>, scalar_prefetch = 0 : i64, scratch_operands = 0 : i64, tpu.core_type = #tpu.core_type<tc>, window_params = [{transform_indices = @transform_0, window_bounds = array<i64: 512, 288>}, {pipeline_mode = #tpu.pipeline_mode<synchronous>, transform_indices = @transform_1, window_bounds = array<i64: 288, 32>}, {pipeline_mode = #tpu.pipeline_mode<synchronous>, transform_indices = @transform_2, window_bounds = array<i64: 1, 32>}, {transform_indices = @transform_3, window_bounds = array<i64: 512, 32>}]} {
    %c0 = arith.constant 0 : index
    %c0_0 = arith.constant 0 : index
    %0 = vector.load %arg1[%c0, %c0_0] : memref<512x288xf32, #tpu.memory_space<vmem>>, vector<512x288xf32>
    %c0_1 = arith.constant 0 : index
    %c0_2 = arith.constant 0 : index
    %1 = vector.load %arg2[%c0_1, %c0_2] : memref<288x32xf32, #tpu.memory_space<vmem>>, vector<288x32xf32>
    %cst = arith.constant dense<0.000000e+00> : vector<512x32xf32>
    %2 = tpu.matmul %0, %1, %cst {dimension_numbers = #tpu.dot_dimension_numbers<[1], [0], [0], [1], [0, 0, 1, 1], [], []>} : vector<512x288xf32>, vector<288x32xf32>, vector<512x32xf32> -> vector<512x32xf32>
    %c0_3 = arith.constant 0 : index
    %c0_4 = arith.constant 0 : index
    %3 = vector.load %arg3[%c0_3, %c0_4] : memref<1x32xf32, #tpu.memory_space<vmem>>, vector<1x32xf32>
    %4 = vector.broadcast %3 : vector<1x32xf32> to vector<512x32xf32>
    %5 = arith.addf %2, %4 : vector<512x32xf32>
    %cst_5 = arith.constant 0.000000e+00 : f32
    %6 = vector.broadcast %cst_5 : f32 to vector<512x32xf32>
    %7 = arith.maximumf %5, %6 : vector<512x32xf32>
    %c0_6 = arith.constant 0 : index
    %c0_7 = arith.constant 0 : index
    %8 = vector.load %arg4[%c0_6, %c0_7] : memref<512x32xf32, #tpu.memory_space<vmem>>, vector<512x32xf32>
    tpu.vector_store %arg4[%c0_6, %c0_7], %7 {strides = array<i32>} : memref<512x32xf32, #tpu.memory_space<vmem>>, vector<512x32xf32>,
    return
  }
  func.func @transform_0(%arg0: i32) -> (i32, i32) {
    %c0_i32 = arith.constant 0 : i32
    %c0_i32_0 = arith.constant 0 : i32
    return %arg0, %c0_i32 : i32, i32
  }
  func.func @transform_1(%arg0: i32) -> (i32, i32) {
    %c0_i32 = arith.constant 0 : i32
    %c0_i32_0 = arith.constant 0 : i32
    %c0_i32_1 = arith.constant 0 : i32
    return %c0_i32, %c0_i32_0 : i32, i32
  }
  func.func @transform_2(%arg0: i32) -> (i32, i32) {
    %c0_i32 = arith.constant 0 : i32
    %c0_i32_0 = arith.constant 0 : i32
    %c0_i32_1 = arith.constant 0 : i32
    return %c0_i32, %c0_i32_0 : i32, i32
  }
  func.func @transform_3(%arg0: i32) -> (i32, i32) {
    %c0_i32 = arith.constant 0 : i32
    %c0_i32_0 = arith.constant 0 : i32
    return %arg0, %c0_i32 : i32, i32
  }
}

module attributes {stable_mosaic.version = 11 : i64} {
  func.func @_matmul_bias_act_kernel(%arg0: i32, %arg1: memref<512x288xf32, #tpu.memory_space<vmem>>, %arg2: memref<288x64xf32, #tpu.memory_space<vmem>>, %arg3: memref<1x64xf32, #tpu.memory_space<vmem>>, %arg4: memref<512x64xf32, #tpu.memory_space<vmem>>) attributes {dimension_semantics = [#tpu.dimension_semantics<parallel>], iteration_bounds = array<i64: 4>, scalar_prefetch = 0 : i64, scratch_operands = 0 : i64, tpu.core_type = #tpu.core_type<tc>, window_params = [{transform_indices = @transform_0, window_bounds = array<i64: 512, 288>}, {pipeline_mode = #tpu.pipeline_mode<synchronous>, transform_indices = @transform_1, window_bounds = array<i64: 288, 64>}, {pipeline_mode = #tpu.pipeline_mode<synchronous>, transform_indices = @transform_2, window_bounds = array<i64: 1, 64>}, {transform_indices = @transform_3, window_bounds = array<i64: 512, 64>}]} {
    %c0 = arith.constant 0 : index
    %c0_0 = arith.constant 0 : index
    %0 = vector.load %arg1[%c0, %c0_0] : memref<512x288xf32, #tpu.memory_space<vmem>>, vector<512x288xf32>
    %c0_1 = arith.constant 0 : index
    %c0_2 = arith.constant 0 : index
    %1 = vector.load %arg2[%c0_1, %c0_2] : memref<288x64xf32, #tpu.memory_space<vmem>>, vector<288x64xf32>
    %cst = arith.constant dense<0.000000e+00> : vector<512x64xf32>
    %2 = tpu.matmul %0, %1, %cst {dimension_numbers = #tpu.dot_dimension_numbers<[1], [0], [0], [1], [0, 0, 1, 1], [], []>} : vector<512x288xf32>, vector<288x64xf32>, vector<512x64xf32> -> vector<512x64xf32>
    %c0_3 = arith.constant 0 : index
    %c0_4 = arith.constant 0 : index
    %3 = vector.load %arg3[%c0_3, %c0_4] : memref<1x64xf32, #tpu.memory_space<vmem>>, vector<1x64xf32>
    %4 = vector.broadcast %3 : vector<1x64xf32> to vector<512x64xf32>
    %5 = arith.addf %2, %4 : vector<512x64xf32>
    %cst_5 = arith.constant 0.000000e+00 : f32
    %6 = vector.broadcast %cst_5 : f32 to vector<512x64xf32>
    %7 = arith.maximumf %5, %6 : vector<512x64xf32>
    %c0_6 = arith.constant 0 : index
    %c0_7 = arith.constant 0 : index
    %8 = vector.load %arg4[%c0_6, %c0_7] : memref<512x64xf32, #tpu.memory_space<vmem>>, vector<512x64xf32>
    tpu.vector_store %arg4[%c0_6, %c0_7], %7 {strides = array<i32>} : memref<512x64xf32, #tpu.memory_space<vmem>>, vector<512x64xf32>,
    return
  }
  func.func @transform_0(%arg0: i32) -> (i32, i32) {
    %c0_i32 = arith.constant 0 : i32
    %c0_i32_0 = arith.constant 0 : i32
    return %arg0, %c0_i32 : i32, i32
  }
  func.func @transform_1(%arg0: i32) -> (i32, i32) {
    %c0_i32 = arith.constant 0 : i32
    %c0_i32_0 = arith.constant 0 : i32
    %c0_i32_1 = arith.constant 0 : i32
    return %c0_i32, %c0_i32_0 : i32, i32
  }
  func.func @transform_2(%arg0: i32) -> (i32, i32) {
    %c0_i32 = arith.constant 0 : i32
    %c0_i32_0 = arith.constant 0 : i32
    %c0_i32_1 = arith.constant 0 : i32
    return %c0_i32, %c0_i32_0 : i32, i32
  }
  func.func @transform_3(%arg0: i32) -> (i32, i32) {
    %c0_i32 = arith.constant 0 : i32
    %c0_i32_0 = arith.constant 0 : i32
    return %arg0, %c0_i32 : i32, i32
  }
}

module attributes {stable_mosaic.version = 11 : i64} {
  func.func @_matmul_bias_act_kernel(%arg0: i32, %arg1: memref<512x576xf32, #tpu.memory_space<vmem>>, %arg2: memref<576x64xf32, #tpu.memory_space<vmem>>, %arg3: memref<1x64xf32, #tpu.memory_space<vmem>>, %arg4: memref<512x64xf32, #tpu.memory_space<vmem>>) attributes {dimension_semantics = [#tpu.dimension_semantics<parallel>], iteration_bounds = array<i64: 1>, scalar_prefetch = 0 : i64, scratch_operands = 0 : i64, tpu.core_type = #tpu.core_type<tc>, window_params = [{transform_indices = @transform_0, window_bounds = array<i64: 512, 576>}, {pipeline_mode = #tpu.pipeline_mode<synchronous>, transform_indices = @transform_1, window_bounds = array<i64: 576, 64>}, {pipeline_mode = #tpu.pipeline_mode<synchronous>, transform_indices = @transform_2, window_bounds = array<i64: 1, 64>}, {transform_indices = @transform_3, window_bounds = array<i64: 512, 64>}]} {
    %c0 = arith.constant 0 : index
    %c0_0 = arith.constant 0 : index
    %0 = vector.load %arg1[%c0, %c0_0] : memref<512x576xf32, #tpu.memory_space<vmem>>, vector<512x576xf32>
    %c0_1 = arith.constant 0 : index
    %c0_2 = arith.constant 0 : index
    %1 = vector.load %arg2[%c0_1, %c0_2] : memref<576x64xf32, #tpu.memory_space<vmem>>, vector<576x64xf32>
    %cst = arith.constant dense<0.000000e+00> : vector<512x64xf32>
    %2 = tpu.matmul %0, %1, %cst {dimension_numbers = #tpu.dot_dimension_numbers<[1], [0], [0], [1], [0, 0, 1, 1], [], []>} : vector<512x576xf32>, vector<576x64xf32>, vector<512x64xf32> -> vector<512x64xf32>
    %c0_3 = arith.constant 0 : index
    %c0_4 = arith.constant 0 : index
    %3 = vector.load %arg3[%c0_3, %c0_4] : memref<1x64xf32, #tpu.memory_space<vmem>>, vector<1x64xf32>
    %4 = vector.broadcast %3 : vector<1x64xf32> to vector<512x64xf32>
    %5 = arith.addf %2, %4 : vector<512x64xf32>
    %cst_5 = arith.constant 0.000000e+00 : f32
    %6 = vector.broadcast %cst_5 : f32 to vector<512x64xf32>
    %7 = arith.maximumf %5, %6 : vector<512x64xf32>
    %c0_6 = arith.constant 0 : index
    %c0_7 = arith.constant 0 : index
    %8 = vector.load %arg4[%c0_6, %c0_7] : memref<512x64xf32, #tpu.memory_space<vmem>>, vector<512x64xf32>
    tpu.vector_store %arg4[%c0_6, %c0_7], %7 {strides = array<i32>} : memref<512x64xf32, #tpu.memory_space<vmem>>, vector<512x64xf32>,
    return
  }
  func.func @transform_0(%arg0: i32) -> (i32, i32) {
    %c0_i32 = arith.constant 0 : i32
    %c0_i32_0 = arith.constant 0 : i32
    return %arg0, %c0_i32 : i32, i32
  }
  func.func @transform_1(%arg0: i32) -> (i32, i32) {
    %c0_i32 = arith.constant 0 : i32
    %c0_i32_0 = arith.constant 0 : i32
    %c0_i32_1 = arith.constant 0 : i32
    return %c0_i32, %c0_i32_0 : i32, i32
  }
  func.func @transform_2(%arg0: i32) -> (i32, i32) {
    %c0_i32 = arith.constant 0 : i32
    %c0_i32_0 = arith.constant 0 : i32
    %c0_i32_1 = arith.constant 0 : i32
    return %c0_i32, %c0_i32_0 : i32, i32
  }
  func.func @transform_3(%arg0: i32) -> (i32, i32) {
    %c0_i32 = arith.constant 0 : i32
    %c0_i32_0 = arith.constant 0 : i32
    return %arg0, %c0_i32 : i32, i32
  }
}

module attributes {stable_mosaic.version = 11 : i64} {
  func.func @_matmul_bias_act_kernel(%arg0: i32, %arg1: memref<128x576xf32, #tpu.memory_space<vmem>>, %arg2: memref<576x128xf32, #tpu.memory_space<vmem>>, %arg3: memref<1x128xf32, #tpu.memory_space<vmem>>, %arg4: memref<128x128xf32, #tpu.memory_space<vmem>>) attributes {dimension_semantics = [#tpu.dimension_semantics<parallel>], iteration_bounds = array<i64: 1>, scalar_prefetch = 0 : i64, scratch_operands = 0 : i64, tpu.core_type = #tpu.core_type<tc>, window_params = [{transform_indices = @transform_0, window_bounds = array<i64: 128, 576>}, {pipeline_mode = #tpu.pipeline_mode<synchronous>, transform_indices = @transform_1, window_bounds = array<i64: 576, 128>}, {pipeline_mode = #tpu.pipeline_mode<synchronous>, transform_indices = @transform_2, window_bounds = array<i64: 1, 128>}, {transform_indices = @transform_3, window_bounds = array<i64: 128, 128>}]} {
    %c0 = arith.constant 0 : index
    %c0_0 = arith.constant 0 : index
    %0 = vector.load %arg1[%c0, %c0_0] : memref<128x576xf32, #tpu.memory_space<vmem>>, vector<128x576xf32>
    %c0_1 = arith.constant 0 : index
    %c0_2 = arith.constant 0 : index
    %1 = vector.load %arg2[%c0_1, %c0_2] : memref<576x128xf32, #tpu.memory_space<vmem>>, vector<576x128xf32>
    %cst = arith.constant dense<0.000000e+00> : vector<128x128xf32>
    %2 = tpu.matmul %0, %1, %cst {dimension_numbers = #tpu.dot_dimension_numbers<[1], [0], [0], [1], [0, 0, 1, 1], [], []>} : vector<128x576xf32>, vector<576x128xf32>, vector<128x128xf32> -> vector<128x128xf32>
    %c0_3 = arith.constant 0 : index
    %c0_4 = arith.constant 0 : index
    %3 = vector.load %arg3[%c0_3, %c0_4] : memref<1x128xf32, #tpu.memory_space<vmem>>, vector<1x128xf32>
    %4 = vector.broadcast %3 : vector<1x128xf32> to vector<128x128xf32>
    %5 = arith.addf %2, %4 : vector<128x128xf32>
    %cst_5 = arith.constant 0.000000e+00 : f32
    %6 = vector.broadcast %cst_5 : f32 to vector<128x128xf32>
    %7 = arith.maximumf %5, %6 : vector<128x128xf32>
    %c0_6 = arith.constant 0 : index
    %c0_7 = arith.constant 0 : index
    %8 = vector.load %arg4[%c0_6, %c0_7] : memref<128x128xf32, #tpu.memory_space<vmem>>, vector<128x128xf32>
    tpu.vector_store %arg4[%c0_6, %c0_7], %7 {strides = array<i32>} : memref<128x128xf32, #tpu.memory_space<vmem>>, vector<128x128xf32>,
    return
  }
  func.func @transform_0(%arg0: i32) -> (i32, i32) {
    %c0_i32 = arith.constant 0 : i32
    %c0_i32_0 = arith.constant 0 : i32
    return %arg0, %c0_i32 : i32, i32
  }
  func.func @transform_1(%arg0: i32) -> (i32, i32) {
    %c0_i32 = arith.constant 0 : i32
    %c0_i32_0 = arith.constant 0 : i32
    %c0_i32_1 = arith.constant 0 : i32
    return %c0_i32, %c0_i32_0 : i32, i32
  }
  func.func @transform_2(%arg0: i32) -> (i32, i32) {
    %c0_i32 = arith.constant 0 : i32
    %c0_i32_0 = arith.constant 0 : i32
    %c0_i32_1 = arith.constant 0 : i32
    return %c0_i32, %c0_i32_0 : i32, i32
  }
  func.func @transform_3(%arg0: i32) -> (i32, i32) {
    %c0_i32 = arith.constant 0 : i32
    %c0_i32_0 = arith.constant 0 : i32
    return %arg0, %c0_i32 : i32, i32
  }
}

module attributes {stable_mosaic.version = 11 : i64} {
  func.func @_matmul_bias_act_kernel(%arg0: i32, %arg1: memref<8x128xf32, #tpu.memory_space<vmem>>, %arg2: memref<128x1024xf32, #tpu.memory_space<vmem>>, %arg3: memref<1x1024xf32, #tpu.memory_space<vmem>>, %arg4: memref<8x1024xf32, #tpu.memory_space<vmem>>) attributes {dimension_semantics = [#tpu.dimension_semantics<parallel>], iteration_bounds = array<i64: 1>, scalar_prefetch = 0 : i64, scratch_operands = 0 : i64, tpu.core_type = #tpu.core_type<tc>, window_params = [{transform_indices = @transform_0, window_bounds = array<i64: 8, 128>}, {pipeline_mode = #tpu.pipeline_mode<synchronous>, transform_indices = @transform_1, window_bounds = array<i64: 128, 1024>}, {pipeline_mode = #tpu.pipeline_mode<synchronous>, transform_indices = @transform_2, window_bounds = array<i64: 1, 1024>}, {transform_indices = @transform_3, window_bounds = array<i64: 8, 1024>}]} {
    %c0 = arith.constant 0 : index
    %c0_0 = arith.constant 0 : index
    %0 = vector.load %arg1[%c0, %c0_0] : memref<8x128xf32, #tpu.memory_space<vmem>>, vector<8x128xf32>
    %c0_1 = arith.constant 0 : index
    %c0_2 = arith.constant 0 : index
    %1 = vector.load %arg2[%c0_1, %c0_2] : memref<128x1024xf32, #tpu.memory_space<vmem>>, vector<128x1024xf32>
    %cst = arith.constant dense<0.000000e+00> : vector<8x1024xf32>
    %2 = tpu.matmul %0, %1, %cst {dimension_numbers = #tpu.dot_dimension_numbers<[1], [0], [0], [1], [0, 0, 1, 1], [], []>} : vector<8x128xf32>, vector<128x1024xf32>, vector<8x1024xf32> -> vector<8x1024xf32>
    %c0_3 = arith.constant 0 : index
    %c0_4 = arith.constant 0 : index
    %3 = vector.load %arg3[%c0_3, %c0_4] : memref<1x1024xf32, #tpu.memory_space<vmem>>, vector<1x1024xf32>
    %4 = vector.broadcast %3 : vector<1x1024xf32> to vector<8x1024xf32>
    %5 = arith.addf %2, %4 : vector<8x1024xf32>
    %c0_5 = arith.constant 0 : index
    %c0_6 = arith.constant 0 : index
    %6 = vector.load %arg4[%c0_5, %c0_6] : memref<8x1024xf32, #tpu.memory_space<vmem>>, vector<8x1024xf32>
    tpu.vector_store %arg4[%c0_5, %c0_6], %5 {strides = array<i32>} : memref<8x1024xf32, #tpu.memory_space<vmem>>, vector<8x1024xf32>,
    return
  }
  func.func @transform_0(%arg0: i32) -> (i32, i32) {
    %c0_i32 = arith.constant 0 : i32
    %c0_i32_0 = arith.constant 0 : i32
    return %arg0, %c0_i32 : i32, i32
  }
  func.func @transform_1(%arg0: i32) -> (i32, i32) {
    %c0_i32 = arith.constant 0 : i32
    %c0_i32_0 = arith.constant 0 : i32
    %c0_i32_1 = arith.constant 0 : i32
    return %c0_i32, %c0_i32_0 : i32, i32
  }
  func.func @transform_2(%arg0: i32) -> (i32, i32) {
    %c0_i32 = arith.constant 0 : i32
    %c0_i32_0 = arith.constant 0 : i32
    %c0_i32_1 = arith.constant 0 : i32
    return %c0_i32, %c0_i32_0 : i32, i32
  }
  func.func @transform_3(%arg0: i32) -> (i32, i32) {
    %c0_i32 = arith.constant 0 : i32
    %c0_i32_0 = arith.constant 0 : i32
    return %arg0, %c0_i32 : i32, i32
  }
}

module attributes {stable_mosaic.version = 11 : i64} {
  func.func @_lstm_scan_kernel(%arg0: i32, %arg1: memref<1x2x512xf32, #tpu.memory_space<vmem>>, %arg2: memref<128x512xf32, #tpu.memory_space<vmem>>, %arg3: memref<1x2x128xf32, #tpu.memory_space<vmem>>, %arg4: memref<2x128xf32, #tpu.memory_space<vmem>>, %arg5: memref<2x128xf32, #tpu.memory_space<vmem>>) attributes {dimension_semantics = [#tpu.dimension_semantics<arbitrary>], iteration_bounds = array<i64: 4>, scalar_prefetch = 0 : i64, scratch_operands = 2 : i64, tpu.core_type = #tpu.core_type<tc>, window_params = [{transform_indices = @transform_0, window_bounds = array<i64: 1, 2, 512>}, {pipeline_mode = #tpu.pipeline_mode<synchronous>, transform_indices = @transform_1, window_bounds = array<i64: 128, 512>}, {transform_indices = @transform_2, window_bounds = array<i64: 1, 2, 128>}]} {
    %c0_i32 = arith.constant 0 : i32
    %0 = arith.cmpi eq, %arg0, %c0_i32 : i32
    %1 = arith.extui %0 : i1 to i32
    %c0_i32_0 = arith.constant 0 : i32
    %2 = arith.cmpi ne, %1, %c0_i32_0 : i32
    scf.if %2 {
      %cst_19 = arith.constant 0.000000e+00 : f32
      %40 = vector.broadcast %cst_19 : f32 to vector<2x128xf32>
      %c0_20 = arith.constant 0 : index
      %c0_21 = arith.constant 0 : index
      %41 = vector.load %arg4[%c0_20, %c0_21] : memref<2x128xf32, #tpu.memory_space<vmem>>, vector<2x128xf32>
      tpu.vector_store %arg4[%c0_20, %c0_21], %40 {strides = array<i32>} : memref<2x128xf32, #tpu.memory_space<vmem>>, vector<2x128xf32>,
      %cst_22 = arith.constant 0.000000e+00 : f32
      %42 = vector.broadcast %cst_22 : f32 to vector<2x128xf32>
      %c0_23 = arith.constant 0 : index
      %c0_24 = arith.constant 0 : index
      %43 = vector.load %arg5[%c0_23, %c0_24] : memref<2x128xf32, #tpu.memory_space<vmem>>, vector<2x128xf32>
      tpu.vector_store %arg5[%c0_23, %c0_24], %42 {strides = array<i32>} : memref<2x128xf32, #tpu.memory_space<vmem>>, vector<2x128xf32>,
    } else {
    }
    %c0 = arith.constant 0 : index
    %c0_1 = arith.constant 0 : index
    %c0_2 = arith.constant 0 : index
    %3 = vector.load %arg1[%c0, %c0_1, %c0_2] : memref<1x2x512xf32, #tpu.memory_space<vmem>>, vector<1x2x512xf32>
    %4 = vector.shape_cast %3 : vector<1x2x512xf32> to vector<2x512xf32>
    %c0_3 = arith.constant 0 : index
    %c0_4 = arith.constant 0 : index
    %5 = vector.load %arg4[%c0_3, %c0_4] : memref<2x128xf32, #tpu.memory_space<vmem>>, vector<2x128xf32>
    %c0_5 = arith.constant 0 : index
    %c0_6 = arith.constant 0 : index
    %6 = vector.load %arg2[%c0_5, %c0_6] : memref<128x512xf32, #tpu.memory_space<vmem>>, vector<128x512xf32>
    %cst = arith.constant dense<0.000000e+00> : vector<2x512xf32>
    %7 = tpu.matmul %5, %6, %cst {dimension_numbers = #tpu.dot_dimension_numbers<[1], [0], [0], [1], [0, 0, 1, 1], [], []>} : vector<2x128xf32>, vector<128x512xf32>, vector<2x512xf32> -> vector<2x512xf32>
    %8 = arith.addf %4, %7 : vector<2x512xf32>
    %9 = vector.extract_strided_slice %8 {offsets = [0, 0], sizes = [2, 128], strides = [1, 1]} : vector<2x512xf32> to vector<2x128xf32>
    %10 = arith.negf %9 : vector<2x128xf32>
    %11 = math.exp %10 : vector<2x128xf32>
    %cst_7 = arith.constant 1.000000e+00 : f32
    %12 = vector.broadcast %cst_7 : f32 to vector<2x128xf32>
    %13 = arith.addf %12, %11 : vector<2x128xf32>
    %14 = arith.divf %12, %13 : vector<2x128xf32>
    %15 = vector.extract_strided_slice %8 {offsets = [0, 128], sizes = [2, 128], strides = [1, 1]} : vector<2x512xf32> to vector<2x128xf32>
    %16 = arith.negf %15 : vector<2x128xf32>
    %17 = math.exp %16 : vector<2x128xf32>
    %cst_8 = arith.constant 1.000000e+00 : f32
    %18 = vector.broadcast %cst_8 : f32 to vector<2x128xf32>
    %19 = arith.addf %18, %17 : vector<2x128xf32>
    %20 = arith.divf %18, %19 : vector<2x128xf32>
    %21 = vector.extract_strided_slice %8 {offsets = [0, 256], sizes = [2, 128], strides = [1, 1]} : vector<2x512xf32> to vector<2x128xf32>
    %22 = math.tanh %21 : vector<2x128xf32>
    %23 = vector.extract_strided_slice %8 {offsets = [0, 384], sizes = [2, 128], strides = [1, 1]} : vector<2x512xf32> to vector<2x128xf32>
    %24 = arith.negf %23 : vector<2x128xf32>
    %25 = math.exp %24 : vector<2x128xf32>
    %cst_9 = arith.constant 1.000000e+00 : f32
    %26 = vector.broadcast %cst_9 : f32 to vector<2x128xf32>
    %27 = arith.addf %26, %25 : vector<2x128xf32>
    %28 = arith.divf %26, %27 : vector<2x128xf32>
    %c0_10 = arith.constant 0 : index
    %c0_11 = arith.constant 0 : index
    %29 = vector.load %arg5[%c0_10, %c0_11] : memref<2x128xf32, #tpu.memory_space<vmem>>, vector<2x128xf32>
    %30 = arith.mulf %20, %29 : vector<2x128xf32>
    %31 = arith.mulf %14, %22 : vector<2x128xf32>
    %32 = arith.addf %30, %31 : vector<2x128xf32>
    %33 = math.tanh %32 : vector<2x128xf32>
    %34 = arith.mulf %28, %33 : vector<2x128xf32>
    %c0_12 = arith.constant 0 : index
    %c0_13 = arith.constant 0 : index
    %35 = vector.load %arg4[%c0_12, %c0_13] : memref<2x128xf32, #tpu.memory_space<vmem>>, vector<2x128xf32>
    tpu.vector_store %arg4[%c0_12, %c0_13], %34 {strides = array<i32>} : memref<2x128xf32, #tpu.memory_space<vmem>>, vector<2x128xf32>,
    %c0_14 = arith.constant 0 : index
    %c0_15 = arith.constant 0 : index
    %36 = vector.load %arg5[%c0_14, %c0_15] : memref<2x128xf32, #tpu.memory_space<vmem>>, vector<2x128xf32>
    tpu.vector_store %arg5[%c0_14, %c0_15], %32 {strides = array<i32>} : memref<2x128xf32, #tpu.memory_space<vmem>>, vector<2x128xf32>,
    %c0_16 = arith.constant 0 : index
    %c0_17 = arith.constant 0 : index
    %c0_18 = arith.constant 0 : index
    %37 = vector.load %arg3[%c0_16, %c0_17, %c0_18] : memref<1x2x128xf32, #tpu.memory_space<vmem>>, vector<1x2x128xf32>
    %38 = vector.shape_cast %37 : vector<1x2x128xf32> to vector<2x128xf32>
    %39 = vector.shape_cast %34 : vector<2x128xf32> to vector<1x2x128xf32>
    tpu.vector_store %arg3[%c0_16, %c0_17, %c0_18], %39 {strides = array<i32>} : memref<1x2x128xf32, #tpu.memory_space<vmem>>, vector<1x2x128xf32>,
    return
  }
  func.func @transform_0(%arg0: i32) -> (i32, i32, i32) {
    %c0_i32 = arith.constant 0 : i32
    %c0_i32_0 = arith.constant 0 : i32
    %c0_i32_1 = arith.constant 0 : i32
    return %arg0, %c0_i32, %c0_i32_0 : i32, i32, i32
  }
  func.func @transform_1(%arg0: i32) -> (i32, i32) {
    %c0_i32 = arith.constant 0 : i32
    %c0_i32_0 = arith.constant 0 : i32
    %c0_i32_1 = arith.constant 0 : i32
    return %c0_i32, %c0_i32_0 : i32, i32
  }
  func.func @transform_2(%arg0: i32) -> (i32, i32, i32) {
    %c0_i32 = arith.constant 0 : i32
    %c0_i32_0 = arith.constant 0 : i32
    %c0_i32_1 = arith.constant 0 : i32
    return %arg0, %c0_i32, %c0_i32_0 : i32, i32, i32
  }
}

module attributes {stable_mosaic.version = 11 : i64} {
  func.func @_lstm_scan_kernel(%arg0: i32, %arg1: memref<1x2x512xf32, #tpu.memory_space<vmem>>, %arg2: memref<128x512xf32, #tpu.memory_space<vmem>>, %arg3: memref<1x2x128xf32, #tpu.memory_space<vmem>>, %arg4: memref<2x128xf32, #tpu.memory_space<vmem>>, %arg5: memref<2x128xf32, #tpu.memory_space<vmem>>) attributes {dimension_semantics = [#tpu.dimension_semantics<arbitrary>], iteration_bounds = array<i64: 4>, scalar_prefetch = 0 : i64, scratch_operands = 2 : i64, tpu.core_type = #tpu.core_type<tc>, window_params = [{transform_indices = @transform_0, window_bounds = array<i64: 1, 2, 512>}, {pipeline_mode = #tpu.pipeline_mode<synchronous>, transform_indices = @transform_1, window_bounds = array<i64: 128, 512>}, {transform_indices = @transform_2, window_bounds = array<i64: 1, 2, 128>}]} {
    %c0_i32 = arith.constant 0 : i32
    %0 = arith.cmpi eq, %arg0, %c0_i32 : i32
    %1 = arith.extui %0 : i1 to i32
    %c0_i32_0 = arith.constant 0 : i32
    %2 = arith.cmpi ne, %1, %c0_i32_0 : i32
    scf.if %2 {
      %cst_19 = arith.constant 0.000000e+00 : f32
      %40 = vector.broadcast %cst_19 : f32 to vector<2x128xf32>
      %c0_20 = arith.constant 0 : index
      %c0_21 = arith.constant 0 : index
      %41 = vector.load %arg4[%c0_20, %c0_21] : memref<2x128xf32, #tpu.memory_space<vmem>>, vector<2x128xf32>
      tpu.vector_store %arg4[%c0_20, %c0_21], %40 {strides = array<i32>} : memref<2x128xf32, #tpu.memory_space<vmem>>, vector<2x128xf32>,
      %cst_22 = arith.constant 0.000000e+00 : f32
      %42 = vector.broadcast %cst_22 : f32 to vector<2x128xf32>
      %c0_23 = arith.constant 0 : index
      %c0_24 = arith.constant 0 : index
      %43 = vector.load %arg5[%c0_23, %c0_24] : memref<2x128xf32, #tpu.memory_space<vmem>>, vector<2x128xf32>
      tpu.vector_store %arg5[%c0_23, %c0_24], %42 {strides = array<i32>} : memref<2x128xf32, #tpu.memory_space<vmem>>, vector<2x128xf32>,
    } else {
    }
    %c0 = arith.constant 0 : index
    %c0_1 = arith.constant 0 : index
    %c0_2 = arith.constant 0 : index
    %3 = vector.load %arg1[%c0, %c0_1, %c0_2] : memref<1x2x512xf32, #tpu.memory_space<vmem>>, vector<1x2x512xf32>
    %4 = vector.shape_cast %3 : vector<1x2x512xf32> to vector<2x512xf32>
    %c0_3 = arith.constant 0 : index
    %c0_4 = arith.constant 0 : index
    %5 = vector.load %arg4[%c0_3, %c0_4] : memref<2x128xf32, #tpu.memory_space<vmem>>, vector<2x128xf32>
    %c0_5 = arith.constant 0 : index
    %c0_6 = arith.constant 0 : index
    %6 = vector.load %arg2[%c0_5, %c0_6] : memref<128x512xf32, #tpu.memory_space<vmem>>, vector<128x512xf32>
    %cst = arith.constant dense<0.000000e+00> : vector<2x512xf32>
    %7 = tpu.matmul %5, %6, %cst {dimension_numbers = #tpu.dot_dimension_numbers<[1], [0], [0], [1], [0, 0, 1, 1], [], []>} : vector<2x128xf32>, vector<128x512xf32>, vector<2x512xf32> -> vector<2x512xf32>
    %8 = arith.addf %4, %7 : vector<2x512xf32>
    %9 = vector.extract_strided_slice %8 {offsets = [0, 0], sizes = [2, 128], strides = [1, 1]} : vector<2x512xf32> to vector<2x128xf32>
    %10 = arith.negf %9 : vector<2x128xf32>
    %11 = math.exp %10 : vector<2x128xf32>
    %cst_7 = arith.constant 1.000000e+00 : f32
    %12 = vector.broadcast %cst_7 : f32 to vector<2x128xf32>
    %13 = arith.addf %12, %11 : vector<2x128xf32>
    %14 = arith.divf %12, %13 : vector<2x128xf32>
    %15 = vector.extract_strided_slice %8 {offsets = [0, 128], sizes = [2, 128], strides = [1, 1]} : vector<2x512xf32> to vector<2x128xf32>
    %16 = arith.negf %15 : vector<2x128xf32>
    %17 = math.exp %16 : vector<2x128xf32>
    %cst_8 = arith.constant 1.000000e+00 : f32
    %18 = vector.broadcast %cst_8 : f32 to vector<2x128xf32>
    %19 = arith.addf %18, %17 : vector<2x128xf32>
    %20 = arith.divf %18, %19 : vector<2x128xf32>
    %21 = vector.extract_strided_slice %8 {offsets = [0, 256], sizes = [2, 128], strides = [1, 1]} : vector<2x512xf32> to vector<2x128xf32>
    %22 = math.tanh %21 : vector<2x128xf32>
    %23 = vector.extract_strided_slice %8 {offsets = [0, 384], sizes = [2, 128], strides = [1, 1]} : vector<2x512xf32> to vector<2x128xf32>
    %24 = arith.negf %23 : vector<2x128xf32>
    %25 = math.exp %24 : vector<2x128xf32>
    %cst_9 = arith.constant 1.000000e+00 : f32
    %26 = vector.broadcast %cst_9 : f32 to vector<2x128xf32>
    %27 = arith.addf %26, %25 : vector<2x128xf32>
    %28 = arith.divf %26, %27 : vector<2x128xf32>
    %c0_10 = arith.constant 0 : index
    %c0_11 = arith.constant 0 : index
    %29 = vector.load %arg5[%c0_10, %c0_11] : memref<2x128xf32, #tpu.memory_space<vmem>>, vector<2x128xf32>
    %30 = arith.mulf %20, %29 : vector<2x128xf32>
    %31 = arith.mulf %14, %22 : vector<2x128xf32>
    %32 = arith.addf %30, %31 : vector<2x128xf32>
    %33 = math.tanh %32 : vector<2x128xf32>
    %34 = arith.mulf %28, %33 : vector<2x128xf32>
    %c0_12 = arith.constant 0 : index
    %c0_13 = arith.constant 0 : index
    %35 = vector.load %arg4[%c0_12, %c0_13] : memref<2x128xf32, #tpu.memory_space<vmem>>, vector<2x128xf32>
    tpu.vector_store %arg4[%c0_12, %c0_13], %34 {strides = array<i32>} : memref<2x128xf32, #tpu.memory_space<vmem>>, vector<2x128xf32>,
    %c0_14 = arith.constant 0 : index
    %c0_15 = arith.constant 0 : index
    %36 = vector.load %arg5[%c0_14, %c0_15] : memref<2x128xf32, #tpu.memory_space<vmem>>, vector<2x128xf32>
    tpu.vector_store %arg5[%c0_14, %c0_15], %32 {strides = array<i32>} : memref<2x128xf32, #tpu.memory_space<vmem>>, vector<2x128xf32>,
    %c0_16 = arith.constant 0 : index
    %c0_17 = arith.constant 0 : index
    %c0_18 = arith.constant 0 : index
    %37 = vector.load %arg3[%c0_16, %c0_17, %c0_18] : memref<1x2x128xf32, #tpu.memory_space<vmem>>, vector<1x2x128xf32>
    %38 = vector.shape_cast %37 : vector<1x2x128xf32> to vector<2x128xf32>
    %39 = vector.shape_cast %34 : vector<2x128xf32> to vector<1x2x128xf32>
    tpu.vector_store %arg3[%c0_16, %c0_17, %c0_18], %39 {strides = array<i32>} : memref<1x2x128xf32, #tpu.memory_space<vmem>>, vector<1x2x128xf32>,
    return
  }
  func.func @transform_0(%arg0: i32) -> (i32, i32, i32) {
    %c3_i32 = arith.constant 3 : i32
    %0 = arith.subi %c3_i32, %arg0 : i32
    %c0_i32 = arith.constant 0 : i32
    %c0_i32_0 = arith.constant 0 : i32
    %c0_i32_1 = arith.constant 0 : i32
    return %0, %c0_i32, %c0_i32_0 : i32, i32, i32
  }
  func.func @transform_1(%arg0: i32) -> (i32, i32) {
    %c0_i32 = arith.constant 0 : i32
    %c0_i32_0 = arith.constant 0 : i32
    %c0_i32_1 = arith.constant 0 : i32
    return %c0_i32, %c0_i32_0 : i32, i32
  }
  func.func @transform_2(%arg0: i32) -> (i32, i32, i32) {
    %c3_i32 = arith.constant 3 : i32
    %0 = arith.subi %c3_i32, %arg0 : i32
    %c0_i32 = arith.constant 0 : i32
    %c0_i32_0 = arith.constant 0 : i32
    %c0_i32_1 = arith.constant 0 : i32
    return %0, %c0_i32, %c0_i32_0 : i32, i32, i32
  }
}

module attributes {stable_mosaic.version = 11 : i64} {
  func.func @_matmul_bias_act_kernel(%arg0: i32, %arg1: memref<32x1152xf32, #tpu.memory_space<vmem>>, %arg2: memref<1152x128xf32, #tpu.memory_space<vmem>>, %arg3: memref<1x128xf32, #tpu.memory_space<vmem>>, %arg4: memref<32x128xf32, #tpu.memory_space<vmem>>) attributes {dimension_semantics = [#tpu.dimension_semantics<parallel>], iteration_bounds = array<i64: 1>, scalar_prefetch = 0 : i64, scratch_operands = 0 : i64, tpu.core_type = #tpu.core_type<tc>, window_params = [{transform_indices = @transform_0, window_bounds = array<i64: 32, 1152>}, {pipeline_mode = #tpu.pipeline_mode<synchronous>, transform_indices = @transform_1, window_bounds = array<i64: 1152, 128>}, {pipeline_mode = #tpu.pipeline_mode<synchronous>, transform_indices = @transform_2, window_bounds = array<i64: 1, 128>}, {transform_indices = @transform_3, window_bounds = array<i64: 32, 128>}]} {
    %c0 = arith.constant 0 : index
    %c0_0 = arith.constant 0 : index
    %0 = vector.load %arg1[%c0, %c0_0] : memref<32x1152xf32, #tpu.memory_space<vmem>>, vector<32x1152xf32>
    %c0_1 = arith.constant 0 : index
    %c0_2 = arith.constant 0 : index
    %1 = vector.load %arg2[%c0_1, %c0_2] : memref<1152x128xf32, #tpu.memory_space<vmem>>, vector<1152x128xf32>
    %cst = arith.constant dense<0.000000e+00> : vector<32x128xf32>
    %2 = tpu.matmul %0, %1, %cst {dimension_numbers = #tpu.dot_dimension_numbers<[1], [0], [0], [1], [0, 0, 1, 1], [], []>} : vector<32x1152xf32>, vector<1152x128xf32>, vector<32x128xf32> -> vector<32x128xf32>
    %c0_3 = arith.constant 0 : index
    %c0_4 = arith.constant 0 : index
    %3 = vector.load %arg3[%c0_3, %c0_4] : memref<1x128xf32, #tpu.memory_space<vmem>>, vector<1x128xf32>
    %4 = vector.broadcast %3 : vector<1x128xf32> to vector<32x128xf32>
    %5 = arith.addf %2, %4 : vector<32x128xf32>
    %cst_5 = arith.constant 0.000000e+00 : f32
    %6 = vector.broadcast %cst_5 : f32 to vector<32x128xf32>
    %7 = arith.maximumf %5, %6 : vector<32x128xf32>
    %c0_6 = arith.constant 0 : index
    %c0_7 = arith.constant 0 : index
    %8 = vector.load %arg4[%c0_6, %c0_7] : memref<32x128xf32, #tpu.memory_space<vmem>>, vector<32x128xf32>
    tpu.vector_store %arg4[%c0_6, %c0_7], %7 {strides = array<i32>} : memref<32x128xf32, #tpu.memory_space<vmem>>, vector<32x128xf32>,
    return
  }
  func.func @transform_0(%arg0: i32) -> (i32, i32) {
    %c0_i32 = arith.constant 0 : i32
    %c0_i32_0 = arith.constant 0 : i32
    return %arg0, %c0_i32 : i32, i32
  }
  func.func @transform_1(%arg0: i32) -> (i32, i32) {
    %c0_i32 = arith.constant 0 : i32
    %c0_i32_0 = arith.constant 0 : i32
    %c0_i32_1 = arith.constant 0 : i32
    return %c0_i32, %c0_i32_0 : i32, i32
  }
  func.func @transform_2(%arg0: i32) -> (i32, i32) {
    %c0_i32 = arith.constant 0 : i32
    %c0_i32_0 = arith.constant 0 : i32
    %c0_i32_1 = arith.constant 0 : i32
    return %c0_i32, %c0_i32_0 : i32, i32
  }
  func.func @transform_3(%arg0: i32) -> (i32, i32) {
    %c0_i32 = arith.constant 0 : i32
    %c0_i32_0 = arith.constant 0 : i32
    return %arg0, %c0_i32 : i32, i32
  }
}

module attributes {stable_mosaic.version = 11 : i64} {
  func.func @_matmul_bias_act_kernel(%arg0: i32, %arg1: memref<8x256xf32, #tpu.memory_space<vmem>>, %arg2: memref<256x1024xf32, #tpu.memory_space<vmem>>, %arg3: memref<1x1024xf32, #tpu.memory_space<vmem>>, %arg4: memref<8x1024xf32, #tpu.memory_space<vmem>>) attributes {dimension_semantics = [#tpu.dimension_semantics<parallel>], iteration_bounds = array<i64: 1>, scalar_prefetch = 0 : i64, scratch_operands = 0 : i64, tpu.core_type = #tpu.core_type<tc>, window_params = [{transform_indices = @transform_0, window_bounds = array<i64: 8, 256>}, {pipeline_mode = #tpu.pipeline_mode<synchronous>, transform_indices = @transform_1, window_bounds = array<i64: 256, 1024>}, {pipeline_mode = #tpu.pipeline_mode<synchronous>, transform_indices = @transform_2, window_bounds = array<i64: 1, 1024>}, {transform_indices = @transform_3, window_bounds = array<i64: 8, 1024>}]} {
    %c0 = arith.constant 0 : index
    %c0_0 = arith.constant 0 : index
    %0 = vector.load %arg1[%c0, %c0_0] : memref<8x256xf32, #tpu.memory_space<vmem>>, vector<8x256xf32>
    %c0_1 = arith.constant 0 : index
    %c0_2 = arith.constant 0 : index
    %1 = vector.load %arg2[%c0_1, %c0_2] : memref<256x1024xf32, #tpu.memory_space<vmem>>, vector<256x1024xf32>
    %cst = arith.constant dense<0.000000e+00> : vector<8x1024xf32>
    %2 = tpu.matmul %0, %1, %cst {dimension_numbers = #tpu.dot_dimension_numbers<[1], [0], [0], [1], [0, 0, 1, 1], [], []>} : vector<8x256xf32>, vector<256x1024xf32>, vector<8x1024xf32> -> vector<8x1024xf32>
    %c0_3 = arith.constant 0 : index
    %c0_4 = arith.constant 0 : index
    %3 = vector.load %arg3[%c0_3, %c0_4] : memref<1x1024xf32, #tpu.memory_space<vmem>>, vector<1x1024xf32>
    %4 = vector.broadcast %3 : vector<1x1024xf32> to vector<8x1024xf32>
    %5 = arith.addf %2, %4 : vector<8x1024xf32>
    %c0_5 = arith.constant 0 : index
    %c0_6 = arith.constant 0 : index
    %6 = vector.load %arg4[%c0_5, %c0_6] : memref<8x1024xf32, #tpu.memory_space<vmem>>, vector<8x1024xf32>
    tpu.vector_store %arg4[%c0_5, %c0_6], %5 {strides = array<i32>} : memref<8x1024xf32, #tpu.memory_space<vmem>>, vector<8x1024xf32>,
    return
  }
  func.func @transform_0(%arg0: i32) -> (i32, i32) {
    %c0_i32 = arith.constant 0 : i32
    %c0_i32_0 = arith.constant 0 : i32
    return %arg0, %c0_i32 : i32, i32
  }
  func.func @transform_1(%arg0: i32) -> (i32, i32) {
    %c0_i32 = arith.constant 0 : i32
    %c0_i32_0 = arith.constant 0 : i32
    %c0_i32_1 = arith.constant 0 : i32
    return %c0_i32, %c0_i32_0 : i32, i32
  }
  func.func @transform_2(%arg0: i32) -> (i32, i32) {
    %c0_i32 = arith.constant 0 : i32
    %c0_i32_0 = arith.constant 0 : i32
    %c0_i32_1 = arith.constant 0 : i32
    return %c0_i32, %c0_i32_0 : i32, i32
  }
  func.func @transform_3(%arg0: i32) -> (i32, i32) {
    %c0_i32 = arith.constant 0 : i32
    %c0_i32_0 = arith.constant 0 : i32
    return %arg0, %c0_i32 : i32, i32
  }
}

module attributes {stable_mosaic.version = 11 : i64} {
  func.func @_matmul_bias_act_kernel(%arg0: i32, %arg1: memref<8x256xf32, #tpu.memory_space<vmem>>, %arg2: memref<256x2xf32, #tpu.memory_space<vmem>>, %arg3: memref<1x2xf32, #tpu.memory_space<vmem>>, %arg4: memref<8x2xf32, #tpu.memory_space<vmem>>) attributes {dimension_semantics = [#tpu.dimension_semantics<parallel>], iteration_bounds = array<i64: 1>, scalar_prefetch = 0 : i64, scratch_operands = 0 : i64, tpu.core_type = #tpu.core_type<tc>, window_params = [{transform_indices = @transform_0, window_bounds = array<i64: 8, 256>}, {pipeline_mode = #tpu.pipeline_mode<synchronous>, transform_indices = @transform_1, window_bounds = array<i64: 256, 2>}, {pipeline_mode = #tpu.pipeline_mode<synchronous>, transform_indices = @transform_2, window_bounds = array<i64: 1, 2>}, {transform_indices = @transform_3, window_bounds = array<i64: 8, 2>}]} {
    %c0 = arith.constant 0 : index
    %c0_0 = arith.constant 0 : index
    %0 = vector.load %arg1[%c0, %c0_0] : memref<8x256xf32, #tpu.memory_space<vmem>>, vector<8x256xf32>
    %c0_1 = arith.constant 0 : index
    %c0_2 = arith.constant 0 : index
    %1 = vector.load %arg2[%c0_1, %c0_2] : memref<256x2xf32, #tpu.memory_space<vmem>>, vector<256x2xf32>
    %cst = arith.constant dense<0.000000e+00> : vector<8x2xf32>
    %2 = tpu.matmul %0, %1, %cst {dimension_numbers = #tpu.dot_dimension_numbers<[1], [0], [0], [1], [0, 0, 1, 1], [], []>} : vector<8x256xf32>, vector<256x2xf32>, vector<8x2xf32> -> vector<8x2xf32>
    %c0_3 = arith.constant 0 : index
    %c0_4 = arith.constant 0 : index
    %3 = vector.load %arg3[%c0_3, %c0_4] : memref<1x2xf32, #tpu.memory_space<vmem>>, vector<1x2xf32>
    %4 = vector.broadcast %3 : vector<1x2xf32> to vector<8x2xf32>
    %5 = arith.addf %2, %4 : vector<8x2xf32>
    %6 = arith.negf %5 : vector<8x2xf32>
    %7 = math.exp %6 : vector<8x2xf32>
    %cst_5 = arith.constant 1.000000e+00 : f32
    %8 = vector.broadcast %cst_5 : f32 to vector<8x2xf32>
    %9 = arith.addf %8, %7 : vector<8x2xf32>
    %10 = arith.divf %8, %9 : vector<8x2xf32>
    %c0_6 = arith.constant 0 : index
    %c0_7 = arith.constant 0 : index
    %11 = vector.load %arg4[%c0_6, %c0_7] : memref<8x2xf32, #tpu.memory_space<vmem>>, vector<8x2xf32>
    tpu.vector_store %arg4[%c0_6, %c0_7], %10 {strides = array<i32>} : memref<8x2xf32, #tpu.memory_space<vmem>>, vector<8x2xf32>,
    return
  }
  func.func @transform_0(%arg0: i32) -> (i32, i32) {
    %c0_i32 = arith.constant 0 : i32
    %c0_i32_0 = arith.constant 0 : i32
    return %arg0, %c0_i32 : i32, i32
  }
  func.func @transform_1(%arg0: i32) -> (i32, i32) {
    %c0_i32 = arith.constant 0 : i32
    %c0_i32_0 = arith.constant 0 : i32
    %c0_i32_1 = arith.constant 0 : i32
    return %c0_i32, %c0_i32_0 : i32, i32
  }
  func.func @transform_2(%arg0: i32) -> (i32, i32) {
    %c0_i32 = arith.constant 0 : i32
    %c0_i32_0 = arith.constant 0 : i32
    %c0_i32_1 = arith.constant 0 : i32
    return %c0_i32, %c0_i32_0 : i32, i32
  }
  func.func @transform_3(%arg0: i32) -> (i32, i32) {
    %c0_i32 = arith.constant 0 : i32
    %c0_i32_0 = arith.constant 0 : i32
    return %arg0, %c0_i32 : i32, i32
  }
}

</mosaic_0001>

<llo_original>
// kernel: trace_lstm_forward.19
$region0: #{trace_lstm_forward.19}
  #allocation0 [shape = 'u32[]', space=smem, size = 0x4, offset = 0x4, fixed_abs, tag = 'smem constant byte address 0x4 - core index']
  #allocation1 [shape = 'u32[72,128]{1,0:T(1,128)}', space=vmem, size = 0x9000, scoped, tag = 'internal scratch']
  %s0 = inlined_call_operand.vmem [shape: f32[32768,18], index: 0, kind: input, shape index: {}]
  %s1 = inlined_call_operand.vmem [shape: f32[18,32], index: 1, kind: input, shape index: {}]
  %s2 = inlined_call_operand.vmem [shape: f32[1,32], index: 2, kind: input, shape index: {}]
  %s3 = inlined_call_operand.vmem [shape: f32[32768,32], index: 3, kind: output, shape index: {}]
  %s4 = sld [smem:[#allocation0]]
  $region45: #{trace_lstm_forward.19} parent=0
    _
  %s6 = ssub.s32 1, %s4
  %s7 = scalar_select 0, %s6, %s4
  loop: start=0, step=1, limit=66
  $region2: #{trace_lstm_forward.19} parent=0 // loop_pre_header
    _
  $region3: #{trace_lstm_forward.19} parent=0 // loop_header
    %s9 = sphi 0, %s13
    %p10 = scmp.ge.s32.totalorder %s9, 66
    %s19 = sphi 0, %s21
    %s22 = sphi 0, %s19
    %s23 = sphi 0, %s22
    %s39 = sphi 0, %s23
    %s43 = sphi 0, %s43
    %s45 = sphi 0, %s43
    %s46 = sphi 0, %s45
    %s60 = sphi 0, %s46
    %s64 = sphi 0, %s64
    %s66 = sphi 0, %s64
    %s67 = sphi 0, %s66
    %s81 = sphi 0, %s67
    %s87 = sphi 0, %s89
    %s90 = sphi 0, %s87
    %s91 = sphi 0, %s90
    %s107 = sphi 0, %s91
  $region4: #{trace_lstm_forward.19} parent=0 // loop_header_branch
    %12 = sbr.rel (%p10) target = $region8
  $region5: #{trace_lstm_forward.19} parent=0 // loop_body
    %s14 = ssub.s32 %s9, 1
    %s15 = ssub.s32 %s9, 2
    %s16 = sadd.s32 %s9, 1
    %s17 = ssub.s32 %s9, %s16
    %p18 = scmp.eq.s32.totalorder %s17, 0
    %s20 = sadd.s32 %s19, 1
    %s21 = scalar_select %p18, %s19, %s20
    %p24 = pneg %p18
    %p25 = scmp.eq.s32.totalorder %s9, 63
    %p26 = por %p24, %p25
    %p27 = scmp.ne.s32.totalorder %s19, %s22
    %p28 = scmp.eq.s32.totalorder %s9, 0
    %p29 = por %p27, %p28
    %p30 = scmp.ne.s32.totalorder %s19, %s22
    %p31 = scmp.eq.s32.totalorder %s14, 63
    %p32 = por %p30, %p31
    %p33 = scmp.ne.s32.totalorder %s22, %s23
    %p34 = scmp.eq.s32.totalorder %s14, 0
    %p35 = por %p33, %p34
    %p36 = scmp.ne.s32.totalorder %s22, %s23
    %p37 = scmp.eq.s32.totalorder %s15, 63
    %p38 = por %p36, %p37
    %p40 = scmp.ne.s32.totalorder %s23, %s39
    %p41 = scmp.eq.s32.totalorder %s15, 0
    %p42 = por %p40, %p41
    %s44 = sadd.s32 %s43, 1
    %p47 = scmp.eq.s32.totalorder %s9, 63
    %p48 = scmp.ne.s32.totalorder %s43, %s45
    %p49 = scmp.eq.s32.totalorder %s9, 0
    %p50 = por %p48, %p49
    %p51 = scmp.ne.s32.totalorder %s43, %s45
    %p52 = scmp.eq.s32.totalorder %s14, 63
    %p53 = por %p51, %p52
    %p54 = scmp.ne.s32.totalorder %s45, %s46
    %p55 = scmp.eq.s32.totalorder %s14, 0
    %p56 = por %p54, %p55
    %p57 = scmp.ne.s32.totalorder %s45, %s46
    %p58 = scmp.eq.s32.totalorder %s15, 63
    %p59 = por %p57, %p58
    %p61 = scmp.ne.s32.totalorder %s46, %s60
    %p62 = scmp.eq.s32.totalorder %s15, 0
    %p63 = por %p61, %p62
    %s65 = sadd.s32 %s64, 1
    %p68 = scmp.eq.s32.totalorder %s9, 63
    %p69 = scmp.ne.s32.totalorder %s64, %s66
    %p70 = scmp.eq.s32.totalorder %s9, 0
    %p71 = por %p69, %p70
    %p72 = scmp.ne.s32.totalorder %s64, %s66
    %p73 = scmp.eq.s32.totalorder %s14, 63
    %p74 = por %p72, %p73
    %p75 = scmp.ne.s32.totalorder %s66, %s67
    %p76 = scmp.eq.s32.totalorder %s14, 0
    %p77 = por %p75, %p76
    %p78 = scmp.ne.s32.totalorder %s66, %s67
    %p79 = scmp.eq.s32.totalorder %s15, 63
    %p80 = por %p78, %p79
    %p82 = scmp.ne.s32.totalorder %s67, %s81
    %p83 = scmp.eq.s32.totalorder %s15, 0
    %p84 = por %p82, %p83
    %s85 = ssub.s32 %s9, %s16
    %p86 = scmp.eq.s32.totalorder %s85, 0
    %s88 = sadd.s32 %s87, 1
    %s89 = scalar_select %p86, %s87, %s88
    %p92 = pneg %p86
    %p93 = scmp.eq.s32.totalorder %s9, 63
    %p94 = por %p92, %p93
    %p95 = scmp.ne.s32.totalorder %s87, %s90
    %p96 = scmp.eq.s32.totalorder %s9, 0
    %p97 = por %p95, %p96
    %p98 = scmp.ne.s32.totalorder %s87, %s90
    %p99 = scmp.eq.s32.totalorder %s14, 63
    %p100 = por %p98, %p99
    %p101 = scmp.ne.s32.totalorder %s90, %s91
    %p102 = scmp.eq.s32.totalorder %s14, 0
    %p103 = por %p101, %p102
    %p104 = scmp.ne.s32.totalorder %s90, %s91
    %p105 = scmp.eq.s32.totalorder %s15, 63
    %p106 = por %p104, %p105
    %p108 = scmp.ne.s32.totalorder %s91, %s107
    %p109 = scmp.eq.s32.totalorder %s15, 0
    %p110 = por %p108, %p109
    %p111 = scmp.le.s32.totalorder 1, %s9
    %p112 = scmp.lt.s32.totalorder %s9, 65
    %p113 = pnand %p111, %p112
    %p114 = pneg %p113
    // Predicated region
    $region9: #{trace_lstm_forward.19} parent=5 // pred_check
      _
    $region10: #{trace_lstm_forward.19} parent=5 // pred_check_branch
      %116 = sbr.rel (%p113) target = $region12
    $region11: #{trace_lstm_forward.19} parent=5 // pred_region
      %s117 = ssub.s32 %s9, 1
      // Predicated region
      $region13: #{trace_lstm_forward.19} parent=11 // pred_check
        %p118 = pneg %p56
      $region14: #{trace_lstm_forward.19} parent=11 // pred_check_branch
        %120 = sbr.rel (%p118) target = $region16
      $region15: #{trace_lstm_forward.19} parent=11 // pred_region
        _
      $region16: #{trace_lstm_forward.19} parent=11 // pred_fallthru
        _
      // Predicated region
      $region17: #{trace_lstm_forward.19} parent=11 // pred_check
        %p121 = pneg %p77
      $region18: #{trace_lstm_forward.19} parent=11 // pred_check_branch
        %123 = sbr.rel (%p121) target = $region20
      $region19: #{trace_lstm_forward.19} parent=11 // pred_region
        _
      $region20: #{trace_lstm_forward.19} parent=11 // pred_fallthru
        _
    $region12: #{trace_lstm_forward.19} parent=5 // pred_fallthru
      _
    %p124 = scmp.lt.s32.totalorder %s9, 64
    // Predicated region
    $region21: #{trace_lstm_forward.19} parent=5 // pred_check
      %p125 = pneg %p124
    $region22: #{trace_lstm_forward.19} parent=5 // pred_check_branch
      %127 = sbr.rel (%p125) target = $region24
    $region23: #{trace_lstm_forward.19} parent=5 // pred_region
      // Predicated region
      $region25: #{trace_lstm_forward.19} parent=23 // pred_check
        %p128 = pneg %p29
      $region26: #{trace_lstm_forward.19} parent=23 // pred_check_branch
        %130 = sbr.rel (%p128) target = $region28
      $region27: #{trace_lstm_forward.19} parent=23 // pred_region
        %s131 = smul.u32 64, %s9
        %p132 = scmp.lt.s32.totalorder %s131, 4095
        %s133 = scalar_select %p132, %s131, 4095
        %s134 = smul.addr %s133, 8
        %s135 = scalar_lea.vmem %s0, %s134
        %s136 = smul.u32 64, %s9
      $region28: #{trace_lstm_forward.19} parent=23 // pred_fallthru
        _
    $region24: #{trace_lstm_forward.19} parent=5 // pred_fallthru
      _
    %p137 = scmp.le.s32.totalorder 1, %s9
    %p138 = scmp.lt.s32.totalorder %s9, 65
    %p139 = pnand %p137, %p138
    %p140 = pneg %p139
    // Predicated region
    $region29: #{trace_lstm_forward.19} parent=5 // pred_check
      _
    $region30: #{trace_lstm_forward.19} parent=5 // pred_check_branch
      %142 = sbr.rel (%p139) target = $region32
    $region31: #{trace_lstm_forward.19} parent=5 // pred_region
      %s143 = ssub.s32 %s9, 1
      %s144 = smul.u32 64, %s14
      %p145 = scmp.lt.s32.totalorder %s144, 4095
      %s146 = scalar_select %p145, %s144, 4095
      %s147 = smul.addr %s146, 8
      %s148 = scalar_lea.vmem %s0, %s147
      %p149 = pneg %p35
      %p150 = pneg %p32
      %p151 = pneg %p56
      %p152 = pneg %p53
      %p153 = pneg %p77
      %p154 = pneg %p74
      %p155 = pneg %p103
      %p156 = pneg %p100
      %s157 = smul.u32 64, %s14
      %p158 = scmp.lt.s32.totalorder %s157, 4095
      %s159 = scalar_select %p158, %s157, 4095
      %s160 = smul.addr %s159, 8
      %s161 = scalar_lea.vmem %s3, %s160
      %s162 = smul.u32 64, %s14
      %p163 = scmp.lt.s32.totalorder %s162, 4095
      %s164 = scalar_select %p163, %s162, 4095
      %s165 = smul.addr %s164, 8
      %s166 = scalar_lea.vmem %s0, %s165
      %s167 = smul.u32 64, %s14
      %s168 = smul.u32 64, %s14
      %p169 = scmp.lt.s32.totalorder %s168, 4095
      %s170 = scalar_select %p169, %s168, 4095
      %s171 = smul.addr %s170, 8
      %s172 = scalar_lea.vmem %s3, %s171
      %s173 = smul.u32 64, %s14
      %v174 = vld [vmem:[%s166] sm:$0xff]
      %v175 = vld [vmem:[%s166 + $0x8] sm:$0xff]
      %v176 = vld [vmem:[%s166 + $0x10] sm:$0xff]
      %v177 = vld [vmem:[%s166 + $0x18] sm:$0xff]
      %v178 = vld [vmem:[%s166 + $0x20] sm:$0xff]
      %v179 = vld [vmem:[%s166 + $0x28] sm:$0xff]
      %v180 = vld [vmem:[%s166 + $0x30] sm:$0xff]
      %v181 = vld [vmem:[%s166 + $0x38] sm:$0xff]
      %v182 = vld [vmem:[%s166 + $0x40] sm:$0xff]
      %v183 = vld [vmem:[%s166 + $0x48] sm:$0xff]
      %v184 = vld [vmem:[%s166 + $0x50] sm:$0xff]
      %v185 = vld [vmem:[%s166 + $0x58] sm:$0xff]
      %v186 = vld [vmem:[%s166 + $0x60] sm:$0xff]
      %v187 = vld [vmem:[%s166 + $0x68] sm:$0xff]
      %v188 = vld [vmem:[%s166 + $0x70] sm:$0xff]
      %v189 = vld [vmem:[%s166 + $0x78] sm:$0xff]
      %v190 = vld [vmem:[%s166 + $0x80] sm:$0xff]
      %v191 = vld [vmem:[%s166 + $0x88] sm:$0xff]
      %v192 = vld [vmem:[%s166 + $0x90] sm:$0xff]
      %v193 = vld [vmem:[%s166 + $0x98] sm:$0xff]
      %v194 = vld [vmem:[%s166 + $0xa0] sm:$0xff]
      %v195 = vld [vmem:[%s166 + $0xa8] sm:$0xff]
      %v196 = vld [vmem:[%s166 + $0xb0] sm:$0xff]
      %v197 = vld [vmem:[%s166 + $0xb8] sm:$0xff]
      %v198 = vld [vmem:[%s166 + $0xc0] sm:$0xff]
      %v199 = vld [vmem:[%s166 + $0xc8] sm:$0xff]
      %v200 = vld [vmem:[%s166 + $0xd0] sm:$0xff]
      %v201 = vld [vmem:[%s166 + $0xd8] sm:$0xff]
      %v202 = vld [vmem:[%s166 + $0xe0] sm:$0xff]
      %v203 = vld [vmem:[%s166 + $0xe8] sm:$0xff]
      %v204 = vld [vmem:[%s166 + $0xf0] sm:$0xff]
      %v205 = vld [vmem:[%s166 + $0xf8] sm:$0xff]
      %v206 = vld [vmem:[%s166 + $0x100] sm:$0xff]
      %v207 = vld [vmem:[%s166 + $0x108] sm:$0xff]
      %v208 = vld [vmem:[%s166 + $0x110] sm:$0xff]
      %v209 = vld [vmem:[%s166 + $0x118] sm:$0xff]
      %v210 = vld [vmem:[%s166 + $0x120] sm:$0xff]
      %v211 = vld [vmem:[%s166 + $0x128] sm:$0xff]
      %v212 = vld [vmem:[%s166 + $0x130] sm:$0xff]
      %v213 = vld [vmem:[%s166 + $0x138] sm:$0xff]
      %v214 = vld [vmem:[%s166 + $0x140] sm:$0xff]
      %v215 = vld [vmem:[%s166 + $0x148] sm:$0xff]
      %v216 = vld [vmem:[%s166 + $0x150] sm:$0xff]
      %v217 = vld [vmem:[%s166 + $0x158] sm:$0xff]
      %v218 = vld [vmem:[%s166 + $0x160] sm:$0xff]
      %v219 = vld [vmem:[%s166 + $0x168] sm:$0xff]
      %v220 = vld [vmem:[%s166 + $0x170] sm:$0xff]
      %v221 = vld [vmem:[%s166 + $0x178] sm:$0xff]
      %v222 = vld [vmem:[%s166 + $0x180] sm:$0xff]
      %v223 = vld [vmem:[%s166 + $0x188] sm:$0xff]
      %v224 = vld [vmem:[%s166 + $0x190] sm:$0xff]
      %v225 = vld [vmem:[%s166 + $0x198] sm:$0xff]
      %v226 = vld [vmem:[%s166 + $0x1a0] sm:$0xff]
      %v227 = vld [vmem:[%s166 + $0x1a8] sm:$0xff]
      %v228 = vld [vmem:[%s166 + $0x1b0] sm:$0xff]
      %v229 = vld [vmem:[%s166 + $0x1b8] sm:$0xff]
      %v230 = vld [vmem:[%s166 + $0x1c0] sm:$0xff]
      %v231 = vld [vmem:[%s166 + $0x1c8] sm:$0xff]
      %v232 = vld [vmem:[%s166 + $0x1d0] sm:$0xff]
      %v233 = vld [vmem:[%s166 + $0x1d8] sm:$0xff]
      %v234 = vld [vmem:[%s166 + $0x1e0] sm:$0xff]
      %v235 = vld [vmem:[%s166 + $0x1e8] sm:$0xff]
      %v236 = vld [vmem:[%s166 + $0x1f0] sm:$0xff]
      %v237 = vld [vmem:[%s166 + $0x1f8] sm:$0xff]
      %v238 = vld [vmem:[%s1] sm:$0xff]
      %v239 = vld [vmem:[%s1 + $0x8] sm:$0xff]
      %v240 = vld [vmem:[%s1 + $0x10] sm:$0x3]
      %v241 = vld [vmem:[%s2] sm:$0x1]
      %v243 = vperm.slane %v241, 0
      %vm245 = vcmask 146432
      %v247 = vsel %vm245, %v174, 0
      %v250 = vsel %vm245, %v175, 0
      %v253 = vsel %vm245, %v176, 0
      %v256 = vsel %vm245, %v177, 0
      %v259 = vsel %vm245, %v178, 0
      %v262 = vsel %vm245, %v179, 0
      %v265 = vsel %vm245, %v180, 0
      %v268 = vsel %vm245, %v181, 0
      %v271 = vsel %vm245, %v182, 0
      %v274 = vsel %vm245, %v183, 0
      %v277 = vsel %vm245, %v184, 0
      %v280 = vsel %vm245, %v185, 0
      %v283 = vsel %vm245, %v186, 0
      %v286 = vsel %vm245, %v187, 0
      %v289 = vsel %vm245, %v188, 0
      %v292 = vsel %vm245, %v189, 0
      %v295 = vsel %vm245, %v190, 0
      %v298 = vsel %vm245, %v191, 0
      %v301 = vsel %vm245, %v192, 0
      %v304 = vsel %vm245, %v193, 0
      %v307 = vsel %vm245, %v194, 0
      %v310 = vsel %vm245, %v195, 0
      %v313 = vsel %vm245, %v196, 0
      %v316 = vsel %vm245, %v197, 0
      %v319 = vsel %vm245, %v198, 0
      %v322 = vsel %vm245, %v199, 0
      %v325 = vsel %vm245, %v200, 0
      %v328 = vsel %vm245, %v201, 0
      %v331 = vsel %vm245, %v202, 0
      %v334 = vsel %vm245, %v203, 0
      %v337 = vsel %vm245, %v204, 0
      %v340 = vsel %vm245, %v205, 0
      %v343 = vsel %vm245, %v206, 0
      %v346 = vsel %vm245, %v207, 0
      %v349 = vsel %vm245, %v208, 0
      %v352 = vsel %vm245, %v209, 0
      %v355 = vsel %vm245, %v210, 0
      %v358 = vsel %vm245, %v211, 0
      %v361 = vsel %vm245, %v212, 0
      %v364 = vsel %vm245, %v213, 0
      %v367 = vsel %vm245, %v214, 0
      %v370 = vsel %vm245, %v215, 0
      %v373 = vsel %vm245, %v216, 0
      %v376 = vsel %vm245, %v217, 0
      %v379 = vsel %vm245, %v218, 0
      %v382 = vsel %vm245, %v219, 0
      %v385 = vsel %vm245, %v220, 0
      %v388 = vsel %vm245, %v221, 0
      %v391 = vsel %vm245, %v222, 0
      %v394 = vsel %vm245, %v223, 0
      %v397 = vsel %vm245, %v224, 0
      %v400 = vsel %vm245, %v225, 0
      %v403 = vsel %vm245, %v226, 0
      %v406 = vsel %vm245, %v227, 0
      %v409 = vsel %vm245, %v228, 0
      %v412 = vsel %vm245, %v229, 0
      %v415 = vsel %vm245, %v230, 0
      %v418 = vsel %vm245, %v231, 0
      %v421 = vsel %vm245, %v232, 0
      %v424 = vsel %vm245, %v233, 0
      %v427 = vsel %vm245, %v234, 0
      %v430 = vsel %vm245, %v235, 0
      %v433 = vsel %vm245, %v236, 0
      %v436 = vsel %vm245, %v237, 0
      %vm438 = vcmask 1041408
      %v440 = vsel %vm438, %v240, 0
      %442 = vmatpush.msra.mxu0 0.0
      %443 = vmatpush.msra.mxu0 0.0
      %444 = vmatpush.msra.mxu0 0.0
      %445 = vmatpush.msra.mxu0 0.0
      %446 = vmatpush.msra.mxu0 0.0
      %447 = vmatpush.msra.mxu0 0.0
      %448 = vmatpush.msra.mxu0 0.0
      %449 = vmatpush.msra.mxu0 0.0
      %450 = vmatpush.msra.mxu0 0.0
      %451 = vmatpush.msra.mxu0 0.0
      %452 = vmatpush.msra.mxu0 0.0
      %453 = vmatpush.msra.mxu0 0.0
      %454 = vmatpush.msra.mxu0 0.0
      %455 = vmatpush.msra.mxu0 %v440
      %456 = vmatpush.msra.mxu0 %v239
      %457 = vmatpush.msra.mxu0 %v238
      %458 = vmatmul.f32.gmra.mxu0 %v247
      %v459 = vpop.f32.mrf.mxu0
      %v460 = vadd.f32 %v243, %v459
      %461 = vmatmul.f32.gmra.mxu0 %v250
      %v462 = vpop.f32.mrf.mxu0
      %v463 = vadd.f32 %v243, %v462
      %464 = vmatmul.f32.gmra.mxu0 %v253
      %v465 = vpop.f32.mrf.mxu0
      %v466 = vadd.f32 %v243, %v465
      %467 = vmatmul.f32.gmra.mxu0 %v256
      %v468 = vpop.f32.mrf.mxu0
      %v469 = vadd.f32 %v243, %v468
      %470 = vmatmul.f32.gmra.mxu0 %v259
      %v471 = vpop.f32.mrf.mxu0
      %v472 = vadd.f32 %v243, %v471
      %473 = vmatmul.f32.gmra.mxu0 %v262
      %v474 = vpop.f32.mrf.mxu0
      %v475 = vadd.f32 %v243, %v474
      %476 = vmatmul.f32.gmra.mxu0 %v265
      %v477 = vpop.f32.mrf.mxu0
      %v478 = vadd.f32 %v243, %v477
      %479 = vmatmul.f32.gmra.mxu0 %v268
      %v480 = vpop.f32.mrf.mxu0
      %v481 = vadd.f32 %v243, %v480
      %482 = vmatmul.f32.gmra.mxu0 %v271
      %v483 = vpop.f32.mrf.mxu0
      %v484 = vadd.f32 %v243, %v483
      %485 = vmatmul.f32.gmra.mxu0 %v274
      %v486 = vpop.f32.mrf.mxu0
      %v487 = vadd.f32 %v243, %v486
      %488 = vmatmul.f32.gmra.mxu0 %v277
      %v489 = vpop.f32.mrf.mxu0
      %v490 = vadd.f32 %v243, %v489
      %491 = vmatmul.f32.gmra.mxu0 %v280
      %v492 = vpop.f32.mrf.mxu0
      %v493 = vadd.f32 %v243, %v492
      %494 = vmatmul.f32.gmra.mxu0 %v283
      %v495 = vpop.f32.mrf.mxu0
      %v496 = vadd.f32 %v243, %v495
      %497 = vmatmul.f32.gmra.mxu0 %v286
      %v498 = vpop.f32.mrf.mxu0
      %v499 = vadd.f32 %v243, %v498
      %500 = vmatmul.f32.gmra.mxu0 %v289
      %v501 = vpop.f32.mrf.mxu0
      %v502 = vadd.f32 %v243, %v501
      %503 = vmatmul.f32.gmra.mxu0 %v292
      %v504 = vpop.f32.mrf.mxu0
      %v505 = vadd.f32 %v243, %v504
      %506 = vmatmul.f32.gmra.mxu0 %v295
      %v507 = vpop.f32.mrf.mxu0
      %v508 = vadd.f32 %v243, %v507
      %509 = vmatmul.f32.gmra.mxu0 %v298
      %v510 = vpop.f32.mrf.mxu0
      %v511 = vadd.f32 %v243, %v510
      %512 = vmatmul.f32.gmra.mxu0 %v301
      %v513 = vpop.f32.mrf.mxu0
      %v514 = vadd.f32 %v243, %v513
      %515 = vmatmul.f32.gmra.mxu0 %v304
      %v516 = vpop.f32.mrf.mxu0
      %v517 = vadd.f32 %v243, %v516
      %518 = vmatmul.f32.gmra.mxu0 %v307
      %v519 = vpop.f32.mrf.mxu0
      %v520 = vadd.f32 %v243, %v519
      %521 = vmatmul.f32.gmra.mxu0 %v310
      %v522 = vpop.f32.mrf.mxu0
      %v523 = vadd.f32 %v243, %v522
      %524 = vmatmul.f32.gmra.mxu0 %v313
      %v525 = vpop.f32.mrf.mxu0
      %v526 = vadd.f32 %v243, %v525
      %527 = vmatmul.f32.gmra.mxu0 %v316
      %v528 = vpop.f32.mrf.mxu0
      %v529 = vadd.f32 %v243, %v528
      %530 = vmatmul.f32.gmra.mxu0 %v319
      %v531 = vpop.f32.mrf.mxu0
      %v532 = vadd.f32 %v243, %v531
      %533 = vmatmul.f32.gmra.mxu0 %v322
      %v534 = vpop.f32.mrf.mxu0
      %v535 = vadd.f32 %v243, %v534
      %536 = vmatmul.f32.gmra.mxu0 %v325
      %v537 = vpop.f32.mrf.mxu0
      %v538 = vadd.f32 %v243, %v537
      %539 = vmatmul.f32.gmra.mxu0 %v328
      %v540 = vpop.f32.mrf.mxu0
      %v541 = vadd.f32 %v243, %v540
      %542 = vmatmul.f32.gmra.mxu0 %v331
      %v543 = vpop.f32.mrf.mxu0
      %v544 = vadd.f32 %v243, %v543
      %545 = vmatmul.f32.gmra.mxu0 %v334
      %v546 = vpop.f32.mrf.mxu0
      %v547 = vadd.f32 %v243, %v546
      %548 = vmatmul.f32.gmra.mxu0 %v337
      %v549 = vpop.f32.mrf.mxu0
      %v550 = vadd.f32 %v243, %v549
      %551 = vmatmul.f32.gmra.mxu0 %v340
      %v552 = vpop.f32.mrf.mxu0
      %v553 = vadd.f32 %v243, %v552
      %554 = vmatmul.f32.gmra.mxu0 %v343
      %v555 = vpop.f32.mrf.mxu0
      %v556 = vadd.f32 %v243, %v555
      %557 = vmatmul.f32.gmra.mxu0 %v346
      %v558 = vpop.f32.mrf.mxu0
      %v559 = vadd.f32 %v243, %v558
      %560 = vmatmul.f32.gmra.mxu0 %v349
      %v561 = vpop.f32.mrf.mxu0
      %v562 = vadd.f32 %v243, %v561
      %563 = vmatmul.f32.gmra.mxu0 %v352
      %v564 = vpop.f32.mrf.mxu0
      %v565 = vadd.f32 %v243, %v564
      %566 = vmatmul.f32.gmra.mxu0 %v355
      %v567 = vpop.f32.mrf.mxu0
      %v568 = vadd.f32 %v243, %v567
      %569 = vmatmul.f32.gmra.mxu0 %v358
      %v570 = vpop.f32.mrf.mxu0
      %v571 = vadd.f32 %v243, %v570
      %572 = vmatmul.f32.gmra.mxu0 %v361
      %v573 = vpop.f32.mrf.mxu0
      %v574 = vadd.f32 %v243, %v573
      %575 = vmatmul.f32.gmra.mxu0 %v364
      %v576 = vpop.f32.mrf.mxu0
      %v577 = vadd.f32 %v243, %v576
      %578 = vmatmul.f32.gmra.mxu0 %v367
      %v579 = vpop.f32.mrf.mxu0
      %v580 = vadd.f32 %v243, %v579
      %581 = vmatmul.f32.gmra.mxu0 %v370
      %v582 = vpop.f32.mrf.mxu0
      %v583 = vadd.f32 %v243, %v582
      %584 = vmatmul.f32.gmra.mxu0 %v373
      %v585 = vpop.f32.mrf.mxu0
      %v586 = vadd.f32 %v243, %v585
      %587 = vmatmul.f32.gmra.mxu0 %v376
      %v588 = vpop.f32.mrf.mxu0
      %v589 = vadd.f32 %v243, %v588
      %590 = vmatmul.f32.gmra.mxu0 %v379
      %v591 = vpop.f32.mrf.mxu0
      %v592 = vadd.f32 %v243, %v591
      %593 = vmatmul.f32.gmra.mxu0 %v382
      %v594 = vpop.f32.mrf.mxu0
      %v595 = vadd.f32 %v243, %v594
      %596 = vmatmul.f32.gmra.mxu0 %v385
      %v597 = vpop.f32.mrf.mxu0
      %v598 = vadd.f32 %v243, %v597
      %599 = vmatmul.f32.gmra.mxu0 %v388
      %v600 = vpop.f32.mrf.mxu0
      %v601 = vadd.f32 %v243, %v600
      %602 = vmatmul.f32.gmra.mxu0 %v391
      %v603 = vpop.f32.mrf.mxu0
      %v604 = vadd.f32 %v243, %v603
      %605 = vmatmul.f32.gmra.mxu0 %v394
      %v606 = vpop.f32.mrf.mxu0
      %v607 = vadd.f32 %v243, %v606
      %608 = vmatmul.f32.gmra.mxu0 %v397
      %v609 = vpop.f32.mrf.mxu0
      %v610 = vadd.f32 %v243, %v609
      %611 = vmatmul.f32.gmra.mxu0 %v400
      %v612 = vpop.f32.mrf.mxu0
      %v613 = vadd.f32 %v243, %v612
      %614 = vmatmul.f32.gmra.mxu0 %v403
      %v615 = vpop.f32.mrf.mxu0
      %v616 = vadd.f32 %v243, %v615
      %617 = vmatmul.f32.gmra.mxu0 %v406
      %v618 = vpop.f32.mrf.mxu0
      %v619 = vadd.f32 %v243, %v618
      %620 = vmatmul.f32.gmra.mxu0 %v409
      %v621 = vpop.f32.mrf.mxu0
      %v622 = vadd.f32 %v243, %v621
      %623 = vmatmul.f32.gmra.mxu0 %v412
      %v624 = vpop.f32.mrf.mxu0
      %v625 = vadd.f32 %v243, %v624
      %626 = vmatmul.f32.gmra.mxu0 %v415
      %v627 = vpop.f32.mrf.mxu0
      %v628 = vadd.f32 %v243, %v627
      %629 = vmatmul.f32.gmra.mxu0 %v418
      %v630 = vpop.f32.mrf.mxu0
      %v631 = vadd.f32 %v243, %v630
      %632 = vmatmul.f32.gmra.mxu0 %v421
      %v633 = vpop.f32.mrf.mxu0
      %v634 = vadd.f32 %v243, %v633
      %635 = vmatmul.f32.gmra.mxu0 %v424
      %v636 = vpop.f32.mrf.mxu0
      %v637 = vadd.f32 %v243, %v636
      %638 = vmatmul.f32.gmra.mxu0 %v427
      %v639 = vpop.f32.mrf.mxu0
      %v640 = vadd.f32 %v243, %v639
      %641 = vmatmul.f32.gmra.mxu0 %v430
      %v642 = vpop.f32.mrf.mxu0
      %v643 = vadd.f32 %v243, %v642
      %644 = vmatmul.f32.gmra.mxu0 %v433
      %v645 = vpop.f32.mrf.mxu0
      %v646 = vadd.f32 %v243, %v645
      %647 = vmatmul.f32.gmra.mxu0 %v436
      %v648 = vpop.f32.mrf.mxu0
      %v649 = vadd.f32 %v243, %v648
      %650 = vdwg.mxu0
      %v651 = vmax.f32 %v460, 0.0
      %v652 = vmax.f32 %v463, 0.0
      %v653 = vmax.f32 %v466, 0.0
      %v654 = vmax.f32 %v469, 0.0
      %v655 = vmax.f32 %v472, 0.0
      %v656 = vmax.f32 %v475, 0.0
      %v657 = vmax.f32 %v478, 0.0
      %v658 = vmax.f32 %v481, 0.0
      %v659 = vmax.f32 %v484, 0.0
      %v660 = vmax.f32 %v487, 0.0
      %v661 = vmax.f32 %v490, 0.0
      %v662 = vmax.f32 %v493, 0.0
      %v663 = vmax.f32 %v496, 0.0
      %v664 = vmax.f32 %v499, 0.0
      %v665 = vmax.f32 %v502, 0.0
      %v666 = vmax.f32 %v505, 0.0
      %v667 = vmax.f32 %v508, 0.0
      %v668 = vmax.f32 %v511, 0.0
      %v669 = vmax.f32 %v514, 0.0
      %v670 = vmax.f32 %v517, 0.0
      %v671 = vmax.f32 %v520, 0.0
      %v672 = vmax.f32 %v523, 0.0
      %v673 = vmax.f32 %v526, 0.0
      %v674 = vmax.f32 %v529, 0.0
      %v675 = vmax.f32 %v532, 0.0
      %v676 = vmax.f32 %v535, 0.0
      %v677 = vmax.f32 %v538, 0.0
      %v678 = vmax.f32 %v541, 0.0
      %v679 = vmax.f32 %v544, 0.0
      %v680 = vmax.f32 %v547, 0.0
      %v681 = vmax.f32 %v550, 0.0
      %v682 = vmax.f32 %v553, 0.0
      %v683 = vmax.f32 %v556, 0.0
      %v684 = vmax.f32 %v559, 0.0
      %v685 = vmax.f32 %v562, 0.0
      %v686 = vmax.f32 %v565, 0.0
      %v687 = vmax.f32 %v568, 0.0
      %v688 = vmax.f32 %v571, 0.0
      %v689 = vmax.f32 %v574, 0.0
      %v690 = vmax.f32 %v577, 0.0
      %v691 = vmax.f32 %v580, 0.0
      %v692 = vmax.f32 %v583, 0.0
      %v693 = vmax.f32 %v586, 0.0
      %v694 = vmax.f32 %v589, 0.0
      %v695 = vmax.f32 %v592, 0.0
      %v696 = vmax.f32 %v595, 0.0
      %v697 = vmax.f32 %v598, 0.0
      %v698 = vmax.f32 %v601, 0.0
      %v699 = vmax.f32 %v604, 0.0
      %v700 = vmax.f32 %v607, 0.0
      %v701 = vmax.f32 %v610, 0.0
      %v702 = vmax.f32 %v613, 0.0
      %v703 = vmax.f32 %v616, 0.0
      %v704 = vmax.f32 %v619, 0.0
      %v705 = vmax.f32 %v622, 0.0
      %v706 = vmax.f32 %v625, 0.0
      %v707 = vmax.f32 %v628, 0.0
      %v708 = vmax.f32 %v631, 0.0
      %v709 = vmax.f32 %v634, 0.0
      %v710 = vmax.f32 %v637, 0.0
      %v711 = vmax.f32 %v640, 0.0
      %v712 = vmax.f32 %v643, 0.0
      %v713 = vmax.f32 %v646, 0.0
      %v714 = vmax.f32 %v649, 0.0
      %vm715 = vcmask 261120
      %716 = vst.msk [vmem:[%s172] sm:$0xff] %vm715, %v651
      %717 = vst.msk [vmem:[%s172 + $0x8] sm:$0xff] %vm715, %v652
      %718 = vst.msk [vmem:[%s172 + $0x10] sm:$0xff] %vm715, %v653
      %719 = vst.msk [vmem:[%s172 + $0x18] sm:$0xff] %vm715, %v654
      %720 = vst.msk [vmem:[%s172 + $0x20] sm:$0xff] %vm715, %v655
      %721 = vst.msk [vmem:[%s172 + $0x28] sm:$0xff] %vm715, %v656
      %722 = vst.msk [vmem:[%s172 + $0x30] sm:$0xff] %vm715, %v657
      %723 = vst.msk [vmem:[%s172 + $0x38] sm:$0xff] %vm715, %v658
      %724 = vst.msk [vmem:[%s172 + $0x40] sm:$0xff] %vm715, %v659
      %725 = vst.msk [vmem:[%s172 + $0x48] sm:$0xff] %vm715, %v660
      %726 = vst.msk [vmem:[%s172 + $0x50] sm:$0xff] %vm715, %v661
      %727 = vst.msk [vmem:[%s172 + $0x58] sm:$0xff] %vm715, %v662
      %728 = vst.msk [vmem:[%s172 + $0x60] sm:$0xff] %vm715, %v663
      %729 = vst.msk [vmem:[%s172 + $0x68] sm:$0xff] %vm715, %v664
      %730 = vst.msk [vmem:[%s172 + $0x70] sm:$0xff] %vm715, %v665
      %731 = vst.msk [vmem:[%s172 + $0x78] sm:$0xff] %vm715, %v666
      %732 = vst.msk [vmem:[%s172 + $0x80] sm:$0xff] %vm715, %v667
      %733 = vst.msk [vmem:[%s172 + $0x88] sm:$0xff] %vm715, %v668
      %734 = vst.msk [vmem:[%s172 + $0x90] sm:$0xff] %vm715, %v669
      %735 = vst.msk [vmem:[%s172 + $0x98] sm:$0xff] %vm715, %v670
      %736 = vst.msk [vmem:[%s172 + $0xa0] sm:$0xff] %vm715, %v671
      %737 = vst.msk [vmem:[%s172 + $0xa8] sm:$0xff] %vm715, %v672
      %738 = vst.msk [vmem:[%s172 + $0xb0] sm:$0xff] %vm715, %v673
      %739 = vst.msk [vmem:[%s172 + $0xb8] sm:$0xff] %vm715, %v674
      %740 = vst.msk [vmem:[%s172 + $0xc0] sm:$0xff] %vm715, %v675
      %741 = vst.msk [vmem:[%s172 + $0xc8] sm:$0xff] %vm715, %v676
      %742 = vst.msk [vmem:[%s172 + $0xd0] sm:$0xff] %vm715, %v677
      %743 = vst.msk [vmem:[%s172 + $0xd8] sm:$0xff] %vm715, %v678
      %744 = vst.msk [vmem:[%s172 + $0xe0] sm:$0xff] %vm715, %v679
      %745 = vst.msk [vmem:[%s172 + $0xe8] sm:$0xff] %vm715, %v680
      %746 = vst.msk [vmem:[%s172 + $0xf0] sm:$0xff] %vm715, %v681
      %747 = vst.msk [vmem:[%s172 + $0xf8] sm:$0xff] %vm715, %v682
      %748 = vst.msk [vmem:[%s172 + $0x100] sm:$0xff] %vm715, %v683
      %749 = vst.msk [vmem:[%s172 + $0x108] sm:$0xff] %vm715, %v684
      %750 = vst.msk [vmem:[%s172 + $0x110] sm:$0xff] %vm715, %v685
      %751 = vst.msk [vmem:[%s172 + $0x118] sm:$0xff] %vm715, %v686
      %752 = vst.msk [vmem:[%s172 + $0x120] sm:$0xff] %vm715, %v687
      %753 = vst.msk [vmem:[%s172 + $0x128] sm:$0xff] %vm715, %v688
      %754 = vst.msk [vmem:[%s172 + $0x130] sm:$0xff] %vm715, %v689
      %755 = vst.msk [vmem:[%s172 + $0x138] sm:$0xff] %vm715, %v690
      %756 = vst.msk [vmem:[%s172 + $0x140] sm:$0xff] %vm715, %v691
      %757 = vst.msk [vmem:[%s172 + $0x148] sm:$0xff] %vm715, %v692
      %758 = vst.msk [vmem:[%s172 + $0x150] sm:$0xff] %vm715, %v693
      %759 = vst.msk [vmem:[%s172 + $0x158] sm:$0xff] %vm715, %v694
      %760 = vst.msk [vmem:[%s172 + $0x160] sm:$0xff] %vm715, %v695
      %761 = vst.msk [vmem:[%s172 + $0x168] sm:$0xff] %vm715, %v696
      %762 = vst.msk [vmem:[%s172 + $0x170] sm:$0xff] %vm715, %v697
      %763 = vst.msk [vmem:[%s172 + $0x178] sm:$0xff] %vm715, %v698
      %764 = vst.msk [vmem:[%s172 + $0x180] sm:$0xff] %vm715, %v699
      %765 = vst.msk [vmem:[%s172 + $0x188] sm:$0xff] %vm715, %v700
      %766 = vst.msk [vmem:[%s172 + $0x190] sm:$0xff] %vm715, %v701
      %767 = vst.msk [vmem:[%s172 + $0x198] sm:$0xff] %vm715, %v702
      %768 = vst.msk [vmem:[%s172 + $0x1a0] sm:$0xff] %vm715, %v703
      %769 = vst.msk [vmem:[%s172 + $0x1a8] sm:$0xff] %vm715, %v704
      %770 = vst.msk [vmem:[%s172 + $0x1b0] sm:$0xff] %vm715, %v705
      %771 = vst.msk [vmem:[%s172 + $0x1b8] sm:$0xff] %vm715, %v706
      %772 = vst.msk [vmem:[%s172 + $0x1c0] sm:$0xff] %vm715, %v707
      %773 = vst.msk [vmem:[%s172 + $0x1c8] sm:$0xff] %vm715, %v708
      %774 = vst.msk [vmem:[%s172 + $0x1d0] sm:$0xff] %vm715, %v709
      %775 = vst.msk [vmem:[%s172 + $0x1d8] sm:$0xff] %vm715, %v710
      %776 = vst.msk [vmem:[%s172 + $0x1e0] sm:$0xff] %vm715, %v711
      %777 = vst.msk [vmem:[%s172 + $0x1e8] sm:$0xff] %vm715, %v712
      %778 = vst.msk [vmem:[%s172 + $0x1f0] sm:$0xff] %vm715, %v713
      %779 = vst.msk [vmem:[%s172 + $0x1f8] sm:$0xff] %vm715, %v714
      %s780 = smul.u32 64, %s14
      %p781 = scmp.lt.s32.totalorder %s780, 4095
      %s782 = scalar_select %p781, %s780, 4095
      %s783 = smul.addr %s782, 8
      %s784 = scalar_lea.vmem %s3, %s783
      // Predicated region
      $region33: #{trace_lstm_forward.19} parent=31 // pred_check
        %p785 = pneg %p100
      $region34: #{trace_lstm_forward.19} parent=31 // pred_check_branch
        %787 = sbr.rel (%p785) target = $region36
      $region35: #{trace_lstm_forward.19} parent=31 // pred_region
        %s788 = smul.u32 64, %s14
      $region36: #{trace_lstm_forward.19} parent=31 // pred_fallthru
        _
    $region32: #{trace_lstm_forward.19} parent=5 // pred_fallthru
      _
    %p789 = scmp.le.s32.totalorder 2, %s9
    // Predicated region
    $region37: #{trace_lstm_forward.19} parent=5 // pred_check
      %p790 = pneg %p789
    $region38: #{trace_lstm_forward.19} parent=5 // pred_check_branch
      %792 = sbr.rel (%p790) target = $region40
    $region39: #{trace_lstm_forward.19} parent=5 // pred_region
      %s793 = ssub.s32 %s9, 2
      // Predicated region
      $region41: #{trace_lstm_forward.19} parent=39 // pred_check
        %p794 = pneg %p106
      $region42: #{trace_lstm_forward.19} parent=39 // pred_check_branch
        %796 = sbr.rel (%p794) target = $region44
      $region43: #{trace_lstm_forward.19} parent=39 // pred_region
        %s797 = smul.u32 64, %s15
        %p798 = scmp.lt.s32.totalorder %s797, 4095
        %s799 = scalar_select %p798, %s797, 4095
        %s800 = smul.addr %s799, 8
        %s801 = scalar_lea.vmem %s3, %s800
      $region44: #{trace_lstm_forward.19} parent=39 // pred_fallthru
        _
    $region40: #{trace_lstm_forward.19} parent=5 // pred_fallthru
      _
  $region6: #{trace_lstm_forward.19} parent=0 // loop_footer
    %s13 = sadd.s32 1, %s9
  $region7: #{trace_lstm_forward.19} parent=0 // loop_footer_branch
    %8 = sbr.rel target = $region3
  $region8: #{trace_lstm_forward.19} parent=0 // loop_exit
    _

// kernel: trace_lstm_forward.20
$region0: #{trace_lstm_forward.20}
  #allocation0 [shape = 'u32[]', space=smem, size = 0x4, offset = 0x4, fixed_abs, tag = 'smem constant byte address 0x4 - core index']
  #allocation1 [shape = 'u32[72,128]{1,0:T(1,128)}', space=vmem, size = 0x9000, scoped, tag = 'internal scratch']
  %s0 = inlined_call_operand.vmem [shape: f32[8192,288], index: 0, kind: input, shape index: {}]
  %s1 = inlined_call_operand.vmem [shape: f32[288,32], index: 1, kind: input, shape index: {}]
  %s2 = inlined_call_operand.vmem [shape: f32[1,32], index: 2, kind: input, shape index: {}]
  %s3 = inlined_call_operand.vmem [shape: f32[8192,32], index: 3, kind: output, shape index: {}]
  %s4 = sld [smem:[#allocation0]]
  $region45: #{trace_lstm_forward.20} parent=0
    _
  %s6 = ssub.s32 1, %s4
  %s7 = scalar_select 0, %s6, %s4
  loop: start=0, step=1, limit=18
  $region2: #{trace_lstm_forward.20} parent=0 // loop_pre_header
    _
  $region3: #{trace_lstm_forward.20} parent=0 // loop_header
    %s9 = sphi 0, %s13
    %p10 = scmp.ge.s32.totalorder %s9, 18
    %s19 = sphi 0, %s21
    %s22 = sphi 0, %s19
    %s23 = sphi 0, %s22
    %s39 = sphi 0, %s23
    %s43 = sphi 0, %s43
    %s45 = sphi 0, %s43
    %s46 = sphi 0, %s45
    %s60 = sphi 0, %s46
    %s64 = sphi 0, %s64
    %s66 = sphi 0, %s64
    %s67 = sphi 0, %s66
    %s81 = sphi 0, %s67
    %s87 = sphi 0, %s89
    %s90 = sphi 0, %s87
    %s91 = sphi 0, %s90
    %s107 = sphi 0, %s91
  $region4: #{trace_lstm_forward.20} parent=0 // loop_header_branch
    %12 = sbr.rel (%p10) target = $region8
  $region5: #{trace_lstm_forward.20} parent=0 // loop_body
    %s14 = ssub.s32 %s9, 1
    %s15 = ssub.s32 %s9, 2
    %s16 = sadd.s32 %s9, 1
    %s17 = ssub.s32 %s9, %s16
    %p18 = scmp.eq.s32.totalorder %s17, 0
    %s20 = sadd.s32 %s19, 1
    %s21 = scalar_select %p18, %s19, %s20
    %p24 = pneg %p18
    %p25 = scmp.eq.s32.totalorder %s9, 15
    %p26 = por %p24, %p25
    %p27 = scmp.ne.s32.totalorder %s19, %s22
    %p28 = scmp.eq.s32.totalorder %s9, 0
    %p29 = por %p27, %p28
    %p30 = scmp.ne.s32.totalorder %s19, %s22
    %p31 = scmp.eq.s32.totalorder %s14, 15
    %p32 = por %p30, %p31
    %p33 = scmp.ne.s32.totalorder %s22, %s23
    %p34 = scmp.eq.s32.totalorder %s14, 0
    %p35 = por %p33, %p34
    %p36 = scmp.ne.s32.totalorder %s22, %s23
    %p37 = scmp.eq.s32.totalorder %s15, 15
    %p38 = por %p36, %p37
    %p40 = scmp.ne.s32.totalorder %s23, %s39
    %p41 = scmp.eq.s32.totalorder %s15, 0
    %p42 = por %p40, %p41
    %s44 = sadd.s32 %s43, 1
    %p47 = scmp.eq.s32.totalorder %s9, 15
    %p48 = scmp.ne.s32.totalorder %s43, %s45
    %p49 = scmp.eq.s32.totalorder %s9, 0
    %p50 = por %p48, %p49
    %p51 = scmp.ne.s32.totalorder %s43, %s45
    %p52 = scmp.eq.s32.totalorder %s14, 15
    %p53 = por %p51, %p52
    %p54 = scmp.ne.s32.totalorder %s45, %s46
    %p55 = scmp.eq.s32.totalorder %s14, 0
    %p56 = por %p54, %p55
    %p57 = scmp.ne.s32.totalorder %s45, %s46
    %p58 = scmp.eq.s32.totalorder %s15, 15
    %p59 = por %p57, %p58
    %p61 = scmp.ne.s32.totalorder %s46, %s60
    %p62 = scmp.eq.s32.totalorder %s15, 0
    %p63 = por %p61, %p62
    %s65 = sadd.s32 %s64, 1
    %p68 = scmp.eq.s32.totalorder %s9, 15
    %p69 = scmp.ne.s32.totalorder %s64, %s66
    %p70 = scmp.eq.s32.totalorder %s9, 0
    %p71 = por %p69, %p70
    %p72 = scmp.ne.s32.totalorder %s64, %s66
    %p73 = scmp.eq.s32.totalorder %s14, 15
    %p74 = por %p72, %p73
    %p75 = scmp.ne.s32.totalorder %s66, %s67
    %p76 = scmp.eq.s32.totalorder %s14, 0
    %p77 = por %p75, %p76
    %p78 = scmp.ne.s32.totalorder %s66, %s67
    %p79 = scmp.eq.s32.totalorder %s15, 15
    %p80 = por %p78, %p79
    %p82 = scmp.ne.s32.totalorder %s67, %s81
    %p83 = scmp.eq.s32.totalorder %s15, 0
    %p84 = por %p82, %p83
    %s85 = ssub.s32 %s9, %s16
    %p86 = scmp.eq.s32.totalorder %s85, 0
    %s88 = sadd.s32 %s87, 1
    %s89 = scalar_select %p86, %s87, %s88
    %p92 = pneg %p86
    %p93 = scmp.eq.s32.totalorder %s9, 15
    %p94 = por %p92, %p93
    %p95 = scmp.ne.s32.totalorder %s87, %s90
    %p96 = scmp.eq.s32.totalorder %s9, 0
    %p97 = por %p95, %p96
    %p98 = scmp.ne.s32.totalorder %s87, %s90
    %p99 = scmp.eq.s32.totalorder %s14, 15
    %p100 = por %p98, %p99
    %p101 = scmp.ne.s32.totalorder %s90, %s91
    %p102 = scmp.eq.s32.totalorder %s14, 0
    %p103 = por %p101, %p102
    %p104 = scmp.ne.s32.totalorder %s90, %s91
    %p105 = scmp.eq.s32.totalorder %s15, 15
    %p106 = por %p104, %p105
    %p108 = scmp.ne.s32.totalorder %s91, %s107
    %p109 = scmp.eq.s32.totalorder %s15, 0
    %p110 = por %p108, %p109
    %p111 = scmp.le.s32.totalorder 1, %s9
    %p112 = scmp.lt.s32.totalorder %s9, 17
    %p113 = pnand %p111, %p112
    %p114 = pneg %p113
    // Predicated region
    $region9: #{trace_lstm_forward.20} parent=5 // pred_check
      _
    $region10: #{trace_lstm_forward.20} parent=5 // pred_check_branch
      %116 = sbr.rel (%p113) target = $region12
    $region11: #{trace_lstm_forward.20} parent=5 // pred_region
      %s117 = ssub.s32 %s9, 1
      // Predicated region
      $region13: #{trace_lstm_forward.20} parent=11 // pred_check
        %p118 = pneg %p56
      $region14: #{trace_lstm_forward.20} parent=11 // pred_check_branch
        %120 = sbr.rel (%p118) target = $region16
      $region15: #{trace_lstm_forward.20} parent=11 // pred_region
        _
      $region16: #{trace_lstm_forward.20} parent=11 // pred_fallthru
        _
      // Predicated region
      $region17: #{trace_lstm_forward.20} parent=11 // pred_check
        %p121 = pneg %p77
      $region18: #{trace_lstm_forward.20} parent=11 // pred_check_branch
        %123 = sbr.rel (%p121) target = $region20
      $region19: #{trace_lstm_forward.20} parent=11 // pred_region
        _
      $region20: #{trace_lstm_forward.20} parent=11 // pred_fallthru
        _
    $region12: #{trace_lstm_forward.20} parent=5 // pred_fallthru
      _
    %p124 = scmp.lt.s32.totalorder %s9, 16
    // Predicated region
    $region21: #{trace_lstm_forward.20} parent=5 // pred_check
      %p125 = pneg %p124
    $region22: #{trace_lstm_forward.20} parent=5 // pred_check_branch
      %127 = sbr.rel (%p125) target = $region24
    $region23: #{trace_lstm_forward.20} parent=5 // pred_region
      // Predicated region
      $region25: #{trace_lstm_forward.20} parent=23 // pred_check
        %p128 = pneg %p29
      $region26: #{trace_lstm_forward.20} parent=23 // pred_check_branch
        %130 = sbr.rel (%p128) target = $region28
      $region27: #{trace_lstm_forward.20} parent=23 // pred_region
        %s131 = smul.u32 64, %s9
        %p132 = scmp.lt.s32.totalorder %s131, 1023
        %s133 = scalar_select %p132, %s131, 1023
        %s134 = smul.addr %s133, 3
        %s135 = smul.addr %s134, 8
        %s136 = scalar_lea.vmem %s0, %s135
        %s137 = smul.u32 64, %s9
      $region28: #{trace_lstm_forward.20} parent=23 // pred_fallthru
        _
    $region24: #{trace_lstm_forward.20} parent=5 // pred_fallthru
      _
    %p138 = scmp.le.s32.totalorder 1, %s9
    %p139 = scmp.lt.s32.totalorder %s9, 17
    %p140 = pnand %p138, %p139
    %p141 = pneg %p140
    // Predicated region
    $region29: #{trace_lstm_forward.20} parent=5 // pred_check
      _
    $region30: #{trace_lstm_forward.20} parent=5 // pred_check_branch
      %143 = sbr.rel (%p140) target = $region32
    $region31: #{trace_lstm_forward.20} parent=5 // pred_region
      %s144 = ssub.s32 %s9, 1
      %s145 = smul.u32 64, %s14
      %p146 = scmp.lt.s32.totalorder %s145, 1023
      %s147 = scalar_select %p146, %s145, 1023
      %s148 = smul.addr %s147, 3
      %s149 = smul.addr %s148, 8
      %s150 = scalar_lea.vmem %s0, %s149
      %p151 = pneg %p35
      %p152 = pneg %p32
      %p153 = pneg %p56
      %p154 = pneg %p53
      %p155 = pneg %p77
      %p156 = pneg %p74
      %p157 = pneg %p103
      %p158 = pneg %p100
      %s159 = smul.u32 64, %s14
      %p160 = scmp.lt.s32.totalorder %s159, 1023
      %s161 = scalar_select %p160, %s159, 1023
      %s162 = smul.addr %s161, 8
      %s163 = scalar_lea.vmem %s3, %s162
      %s164 = smul.u32 64, %s14
      %p165 = scmp.lt.s32.totalorder %s164, 1023
      %s166 = scalar_select %p165, %s164, 1023
      %s167 = smul.addr %s166, 3
      %s168 = smul.addr %s167, 8
      %s169 = scalar_lea.vmem %s0, %s168
      %s170 = smul.u32 64, %s14
      %s171 = smul.u32 64, %s14
      %p172 = scmp.lt.s32.totalorder %s171, 1023
      %s173 = scalar_select %p172, %s171, 1023
      %s174 = smul.addr %s173, 8
      %s175 = scalar_lea.vmem %s3, %s174
      %s176 = smul.u32 64, %s14
      %v177 = vld [vmem:[%s169] sm:$0xff]
      %v178 = vld [vmem:[%s169 + $0x8] sm:$0xff]
      %v179 = vld [vmem:[%s169 + $0x10] sm:$0xff]
      %v180 = vld [vmem:[%s169 + $0x18] sm:$0xff]
      %v181 = vld [vmem:[%s169 + $0x20] sm:$0xff]
      %v182 = vld [vmem:[%s169 + $0x28] sm:$0xff]
      %v183 = vld [vmem:[%s169 + $0x30] sm:$0xff]
      %v184 = vld [vmem:[%s169 + $0x38] sm:$0xff]
      %v185 = vld [vmem:[%s169 + $0x40] sm:$0xff]
      %v186 = vld [vmem:[%s169 + $0x48] sm:$0xff]
      %v187 = vld [vmem:[%s169 + $0x50] sm:$0xff]
      %v188 = vld [vmem:[%s169 + $0x58] sm:$0xff]
      %v189 = vld [vmem:[%s169 + $0x60] sm:$0xff]
      %v190 = vld [vmem:[%s169 + $0x68] sm:$0xff]
      %v191 = vld [vmem:[%s169 + $0x70] sm:$0xff]
      %v192 = vld [vmem:[%s169 + $0x78] sm:$0xff]
      %v193 = vld [vmem:[%s169 + $0x80] sm:$0xff]
      %v194 = vld [vmem:[%s169 + $0x88] sm:$0xff]
      %v195 = vld [vmem:[%s169 + $0x90] sm:$0xff]
      %v196 = vld [vmem:[%s169 + $0x98] sm:$0xff]
      %v197 = vld [vmem:[%s169 + $0xa0] sm:$0xff]
      %v198 = vld [vmem:[%s169 + $0xa8] sm:$0xff]
      %v199 = vld [vmem:[%s169 + $0xb0] sm:$0xff]
      %v200 = vld [vmem:[%s169 + $0xb8] sm:$0xff]
      %v201 = vld [vmem:[%s169 + $0xc0] sm:$0xff]
      %v202 = vld [vmem:[%s169 + $0xc8] sm:$0xff]
      %v203 = vld [vmem:[%s169 + $0xd0] sm:$0xff]
      %v204 = vld [vmem:[%s169 + $0xd8] sm:$0xff]
      %v205 = vld [vmem:[%s169 + $0xe0] sm:$0xff]
      %v206 = vld [vmem:[%s169 + $0xe8] sm:$0xff]
      %v207 = vld [vmem:[%s169 + $0xf0] sm:$0xff]
      %v208 = vld [vmem:[%s169 + $0xf8] sm:$0xff]
      %v209 = vld [vmem:[%s169 + $0x100] sm:$0xff]
      %v210 = vld [vmem:[%s169 + $0x108] sm:$0xff]
      %v211 = vld [vmem:[%s169 + $0x110] sm:$0xff]
      %v212 = vld [vmem:[%s169 + $0x118] sm:$0xff]
      %v213 = vld [vmem:[%s169 + $0x120] sm:$0xff]
      %v214 = vld [vmem:[%s169 + $0x128] sm:$0xff]
      %v215 = vld [vmem:[%s169 + $0x130] sm:$0xff]
      %v216 = vld [vmem:[%s169 + $0x138] sm:$0xff]
      %v217 = vld [vmem:[%s169 + $0x140] sm:$0xff]
      %v218 = vld [vmem:[%s169 + $0x148] sm:$0xff]
      %v219 = vld [vmem:[%s169 + $0x150] sm:$0xff]
      %v220 = vld [vmem:[%s169 + $0x158] sm:$0xff]
      %v221 = vld [vmem:[%s169 + $0x160] sm:$0xff]
      %v222 = vld [vmem:[%s169 + $0x168] sm:$0xff]
      %v223 = vld [vmem:[%s169 + $0x170] sm:$0xff]
      %v224 = vld [vmem:[%s169 + $0x178] sm:$0xff]
      %v225 = vld [vmem:[%s169 + $0x180] sm:$0xff]
      %v226 = vld [vmem:[%s169 + $0x188] sm:$0xff]
      %v227 = vld [vmem:[%s169 + $0x190] sm:$0xff]
      %v228 = vld [vmem:[%s169 + $0x198] sm:$0xff]
      %v229 = vld [vmem:[%s169 + $0x1a0] sm:$0xff]
      %v230 = vld [vmem:[%s169 + $0x1a8] sm:$0xff]
      %v231 = vld [vmem:[%s169 + $0x1b0] sm:$0xff]
      %v232 = vld [vmem:[%s169 + $0x1b8] sm:$0xff]
      %v233 = vld [vmem:[%s169 + $0x1c0] sm:$0xff]
      %v234 = vld [vmem:[%s169 + $0x1c8] sm:$0xff]
      %v235 = vld [vmem:[%s169 + $0x1d0] sm:$0xff]
      %v236 = vld [vmem:[%s169 + $0x1d8] sm:$0xff]
      %v237 = vld [vmem:[%s169 + $0x1e0] sm:$0xff]
      %v238 = vld [vmem:[%s169 + $0x1e8] sm:$0xff]
      %v239 = vld [vmem:[%s169 + $0x1f0] sm:$0xff]
      %v240 = vld [vmem:[%s169 + $0x1f8] sm:$0xff]
      %v241 = vld [vmem:[%s169 + $0x200] sm:$0xff]
      %v242 = vld [vmem:[%s169 + $0x208] sm:$0xff]
      %v243 = vld [vmem:[%s169 + $0x210] sm:$0xff]
      %v244 = vld [vmem:[%s169 + $0x218] sm:$0xff]
      %v245 = vld [vmem:[%s169 + $0x220] sm:$0xff]
      %v246 = vld [vmem:[%s169 + $0x228] sm:$0xff]
      %v247 = vld [vmem:[%s169 + $0x230] sm:$0xff]
      %v248 = vld [vmem:[%s169 + $0x238] sm:$0xff]
      %v249 = vld [vmem:[%s169 + $0x240] sm:$0xff]
      %v250 = vld [vmem:[%s169 + $0x248] sm:$0xff]
      %v251 = vld [vmem:[%s169 + $0x250] sm:$0xff]
      %v252 = vld [vmem:[%s169 + $0x258] sm:$0xff]
      %v253 = vld [vmem:[%s169 + $0x260] sm:$0xff]
      %v254 = vld [vmem:[%s169 + $0x268] sm:$0xff]
      %v255 = vld [vmem:[%s169 + $0x270] sm:$0xff]
      %v256 = vld [vmem:[%s169 + $0x278] sm:$0xff]
      %v257 = vld [vmem:[%s169 + $0x280] sm:$0xff]
      %v258 = vld [vmem:[%s169 + $0x288] sm:$0xff]
      %v259 = vld [vmem:[%s169 + $0x290] sm:$0xff]
      %v260 = vld [vmem:[%s169 + $0x298] sm:$0xff]
      %v261 = vld [vmem:[%s169 + $0x2a0] sm:$0xff]
      %v262 = vld [vmem:[%s169 + $0x2a8] sm:$0xff]
      %v263 = vld [vmem:[%s169 + $0x2b0] sm:$0xff]
      %v264 = vld [vmem:[%s169 + $0x2b8] sm:$0xff]
      %v265 = vld [vmem:[%s169 + $0x2c0] sm:$0xff]
      %v266 = vld [vmem:[%s169 + $0x2c8] sm:$0xff]
      %v267 = vld [vmem:[%s169 + $0x2d0] sm:$0xff]
      %v268 = vld [vmem:[%s169 + $0x2d8] sm:$0xff]
      %v269 = vld [vmem:[%s169 + $0x2e0] sm:$0xff]
      %v270 = vld [vmem:[%s169 + $0x2e8] sm:$0xff]
      %v271 = vld [vmem:[%s169 + $0x2f0] sm:$0xff]
      %v272 = vld [vmem:[%s169 + $0x2f8] sm:$0xff]
      %v273 = vld [vmem:[%s169 + $0x300] sm:$0xff]
      %v274 = vld [vmem:[%s169 + $0x308] sm:$0xff]
      %v275 = vld [vmem:[%s169 + $0x310] sm:$0xff]
      %v276 = vld [vmem:[%s169 + $0x318] sm:$0xff]
      %v277 = vld [vmem:[%s169 + $0x320] sm:$0xff]
      %v278 = vld [vmem:[%s169 + $0x328] sm:$0xff]
      %v279 = vld [vmem:[%s169 + $0x330] sm:$0xff]
      %v280 = vld [vmem:[%s169 + $0x338] sm:$0xff]
      %v281 = vld [vmem:[%s169 + $0x340] sm:$0xff]
      %v282 = vld [vmem:[%s169 + $0x348] sm:$0xff]
      %v283 = vld [vmem:[%s169 + $0x350] sm:$0xff]
      %v284 = vld [vmem:[%s169 + $0x358] sm:$0xff]
      %v285 = vld [vmem:[%s169 + $0x360] sm:$0xff]
      %v286 = vld [vmem:[%s169 + $0x368] sm:$0xff]
      %v287 = vld [vmem:[%s169 + $0x370] sm:$0xff]
      %v288 = vld [vmem:[%s169 + $0x378] sm:$0xff]
      %v289 = vld [vmem:[%s169 + $0x380] sm:$0xff]
      %v290 = vld [vmem:[%s169 + $0x388] sm:$0xff]
      %v291 = vld [vmem:[%s169 + $0x390] sm:$0xff]
      %v292 = vld [vmem:[%s169 + $0x398] sm:$0xff]
      %v293 = vld [vmem:[%s169 + $0x3a0] sm:$0xff]
      %v294 = vld [vmem:[%s169 + $0x3a8] sm:$0xff]
      %v295 = vld [vmem:[%s169 + $0x3b0] sm:$0xff]
      %v296 = vld [vmem:[%s169 + $0x3b8] sm:$0xff]
      %v297 = vld [vmem:[%s169 + $0x3c0] sm:$0xff]
      %v298 = vld [vmem:[%s169 + $0x3c8] sm:$0xff]
      %v299 = vld [vmem:[%s169 + $0x3d0] sm:$0xff]
      %v300 = vld [vmem:[%s169 + $0x3d8] sm:$0xff]
      %v301 = vld [vmem:[%s169 + $0x3e0] sm:$0xff]
      %v302 = vld [vmem:[%s169 + $0x3e8] sm:$0xff]
      %v303 = vld [vmem:[%s169 + $0x3f0] sm:$0xff]
      %v304 = vld [vmem:[%s169 + $0x3f8] sm:$0xff]
      %v305 = vld [vmem:[%s169 + $0x400] sm:$0xff]
      %v306 = vld [vmem:[%s169 + $0x408] sm:$0xff]
      %v307 = vld [vmem:[%s169 + $0x410] sm:$0xff]
      %v308 = vld [vmem:[%s169 + $0x418] sm:$0xff]
      %v309 = vld [vmem:[%s169 + $0x420] sm:$0xff]
      %v310 = vld [vmem:[%s169 + $0x428] sm:$0xff]
      %v311 = vld [vmem:[%s169 + $0x430] sm:$0xff]
      %v312 = vld [vmem:[%s169 + $0x438] sm:$0xff]
      %v313 = vld [vmem:[%s169 + $0x440] sm:$0xff]
      %v314 = vld [vmem:[%s169 + $0x448] sm:$0xff]
      %v315 = vld [vmem:[%s169 + $0x450] sm:$0xff]
      %v316 = vld [vmem:[%s169 + $0x458] sm:$0xff]
      %v317 = vld [vmem:[%s169 + $0x460] sm:$0xff]
      %v318 = vld [vmem:[%s169 + $0x468] sm:$0xff]
      %v319 = vld [vmem:[%s169 + $0x470] sm:$0xff]
      %v320 = vld [vmem:[%s169 + $0x478] sm:$0xff]
      %v321 = vld [vmem:[%s169 + $0x480] sm:$0xff]
      %v322 = vld [vmem:[%s169 + $0x488] sm:$0xff]
      %v323 = vld [vmem:[%s169 + $0x490] sm:$0xff]
      %v324 = vld [vmem:[%s169 + $0x498] sm:$0xff]
      %v325 = vld [vmem:[%s169 + $0x4a0] sm:$0xff]
      %v326 = vld [vmem:[%s169 + $0x4a8] sm:$0xff]
      %v327 = vld [vmem:[%s169 + $0x4b0] sm:$0xff]
      %v328 = vld [vmem:[%s169 + $0x4b8] sm:$0xff]
      %v329 = vld [vmem:[%s169 + $0x4c0] sm:$0xff]
      %v330 = vld [vmem:[%s169 + $0x4c8] sm:$0xff]
      %v331 = vld [vmem:[%s169 + $0x4d0] sm:$0xff]
      %v332 = vld [vmem:[%s169 + $0x4d8] sm:$0xff]
      %v333 = vld [vmem:[%s169 + $0x4e0] sm:$0xff]
      %v334 = vld [vmem:[%s169 + $0x4e8] sm:$0xff]
      %v335 = vld [vmem:[%s169 + $0x4f0] sm:$0xff]
      %v336 = vld [vmem:[%s169 + $0x4f8] sm:$0xff]
      %v337 = vld [vmem:[%s169 + $0x500] sm:$0xff]
      %v338 = vld [vmem:[%s169 + $0x508] sm:$0xff]
      %v339 = vld [vmem:[%s169 + $0x510] sm:$0xff]
      %v340 = vld [vmem:[%s169 + $0x518] sm:$0xff]
      %v341 = vld [vmem:[%s169 + $0x520] sm:$0xff]
      %v342 = vld [vmem:[%s169 + $0x528] sm:$0xff]
      %v343 = vld [vmem:[%s169 + $0x530] sm:$0xff]
      %v344 = vld [vmem:[%s169 + $0x538] sm:$0xff]
      %v345 = vld [vmem:[%s169 + $0x540] sm:$0xff]
      %v346 = vld [vmem:[%s169 + $0x548] sm:$0xff]
      %v347 = vld [vmem:[%s169 + $0x550] sm:$0xff]
      %v348 = vld [vmem:[%s169 + $0x558] sm:$0xff]
      %v349 = vld [vmem:[%s169 + $0x560] sm:$0xff]
      %v350 = vld [vmem:[%s169 + $0x568] sm:$0xff]
      %v351 = vld [vmem:[%s169 + $0x570] sm:$0xff]
      %v352 = vld [vmem:[%s169 + $0x578] sm:$0xff]
      %v353 = vld [vmem:[%s169 + $0x580] sm:$0xff]
      %v354 = vld [vmem:[%s169 + $0x588] sm:$0xff]
      %v355 = vld [vmem:[%s169 + $0x590] sm:$0xff]
      %v356 = vld [vmem:[%s169 + $0x598] sm:$0xff]
      %v357 = vld [vmem:[%s169 + $0x5a0] sm:$0xff]
      %v358 = vld [vmem:[%s169 + $0x5a8] sm:$0xff]
      %v359 = vld [vmem:[%s169 + $0x5b0] sm:$0xff]
      %v360 = vld [vmem:[%s169 + $0x5b8] sm:$0xff]
      %v361 = vld [vmem:[%s169 + $0x5c0] sm:$0xff]
      %v362 = vld [vmem:[%s169 + $0x5c8] sm:$0xff]
      %v363 = vld [vmem:[%s169 + $0x5d0] sm:$0xff]
      %v364 = vld [vmem:[%s169 + $0x5d8] sm:$0xff]
      %v365 = vld [vmem:[%s169 + $0x5e0] sm:$0xff]
      %v366 = vld [vmem:[%s169 + $0x5e8] sm:$0xff]
      %v367 = vld [vmem:[%s169 + $0x5f0] sm:$0xff]
      %v368 = vld [vmem:[%s169 + $0x5f8] sm:$0xff]
      %v369 = vld [vmem:[%s1] sm:$0xff]
      %v370 = vld [vmem:[%s1 + $0x8] sm:$0xff]
      %v371 = vld [vmem:[%s1 + $0x10] sm:$0xff]
      %v372 = vld [vmem:[%s1 + $0x18] sm:$0xff]
      %v373 = vld [vmem:[%s1 + $0x20] sm:$0xff]
      %v374 = vld [vmem:[%s1 + $0x28] sm:$0xff]
      %v375 = vld [vmem:[%s1 + $0x30] sm:$0xff]
      %v376 = vld [vmem:[%s1 + $0x38] sm:$0xff]
      %v377 = vld [vmem:[%s1 + $0x40] sm:$0xff]
      %v378 = vld [vmem:[%s1 + $0x48] sm:$0xff]
      %v379 = vld [vmem:[%s1 + $0x50] sm:$0xff]
      %v380 = vld [vmem:[%s1 + $0x58] sm:$0xff]
      %v381 = vld [vmem:[%s1 + $0x60] sm:$0xff]
      %v382 = vld [vmem:[%s1 + $0x68] sm:$0xff]
      %v383 = vld [vmem:[%s1 + $0x70] sm:$0xff]
      %v384 = vld [vmem:[%s1 + $0x78] sm:$0xff]
      %v385 = vld [vmem:[%s1 + $0x80] sm:$0xff]
      %v386 = vld [vmem:[%s1 + $0x88] sm:$0xff]
      %v387 = vld [vmem:[%s1 + $0x90] sm:$0xff]
      %v388 = vld [vmem:[%s1 + $0x98] sm:$0xff]
      %v389 = vld [vmem:[%s1 + $0xa0] sm:$0xff]
      %v390 = vld [vmem:[%s1 + $0xa8] sm:$0xff]
      %v391 = vld [vmem:[%s1 + $0xb0] sm:$0xff]
      %v392 = vld [vmem:[%s1 + $0xb8] sm:$0xff]
      %v393 = vld [vmem:[%s1 + $0xc0] sm:$0xff]
      %v394 = vld [vmem:[%s1 + $0xc8] sm:$0xff]
      %v395 = vld [vmem:[%s1 + $0xd0] sm:$0xff]
      %v396 = vld [vmem:[%s1 + $0xd8] sm:$0xff]
      %v397 = vld [vmem:[%s1 + $0xe0] sm:$0xff]
      %v398 = vld [vmem:[%s1 + $0xe8] sm:$0xff]
      %v399 = vld [vmem:[%s1 + $0xf0] sm:$0xff]
      %v400 = vld [vmem:[%s1 + $0xf8] sm:$0xff]
      %v401 = vld [vmem:[%s1 + $0x100] sm:$0xff]
      %v402 = vld [vmem:[%s1 + $0x108] sm:$0xff]
      %v403 = vld [vmem:[%s1 + $0x110] sm:$0xff]
      %v404 = vld [vmem:[%s1 + $0x118] sm:$0xff]
      %v405 = vld [vmem:[%s2] sm:$0x1]
      %v407 = vperm.slane %v405, 0
      %vm409 = vcmask 261120
      %v411 = vsel %vm409, %v179, 0
      %v414 = vsel %vm409, %v182, 0
      %v417 = vsel %vm409, %v185, 0
      %v420 = vsel %vm409, %v188, 0
      %v423 = vsel %vm409, %v191, 0
      %v426 = vsel %vm409, %v194, 0
      %v429 = vsel %vm409, %v197, 0
      %v432 = vsel %vm409, %v200, 0
      %v435 = vsel %vm409, %v203, 0
      %v438 = vsel %vm409, %v206, 0
      %v441 = vsel %vm409, %v209, 0
      %v444 = vsel %vm409, %v212, 0
      %v447 = vsel %vm409, %v215, 0
      %v450 = vsel %vm409, %v218, 0
      %v453 = vsel %vm409, %v221, 0
      %v456 = vsel %vm409, %v224, 0
      %v459 = vsel %vm409, %v227, 0
      %v462 = vsel %vm409, %v230, 0
      %v465 = vsel %vm409, %v233, 0
      %v468 = vsel %vm409, %v236, 0
      %v471 = vsel %vm409, %v239, 0
      %v474 = vsel %vm409, %v242, 0
      %v477 = vsel %vm409, %v245, 0
      %v480 = vsel %vm409, %v248, 0
      %v483 = vsel %vm409, %v251, 0
      %v486 = vsel %vm409, %v254, 0
      %v489 = vsel %vm409, %v257, 0
      %v492 = vsel %vm409, %v260, 0
      %v495 = vsel %vm409, %v263, 0
      %v498 = vsel %vm409, %v266, 0
      %v501 = vsel %vm409, %v269, 0
      %v504 = vsel %vm409, %v272, 0
      %v507 = vsel %vm409, %v275, 0
      %v510 = vsel %vm409, %v278, 0
      %v513 = vsel %vm409, %v281, 0
      %v516 = vsel %vm409, %v284, 0
      %v519 = vsel %vm409, %v287, 0
      %v522 = vsel %vm409, %v290, 0
      %v525 = vsel %vm409, %v293, 0
      %v528 = vsel %vm409, %v296, 0
      %v531 = vsel %vm409, %v299, 0
      %v534 = vsel %vm409, %v302, 0
      %v537 = vsel %vm409, %v305, 0
      %v540 = vsel %vm409, %v308, 0
      %v543 = vsel %vm409, %v311, 0
      %v546 = vsel %vm409, %v314, 0
      %v549 = vsel %vm409, %v317, 0
      %v552 = vsel %vm409, %v320, 0
      %v555 = vsel %vm409, %v323, 0
      %v558 = vsel %vm409, %v326, 0
      %v561 = vsel %vm409, %v329, 0
      %v564 = vsel %vm409, %v332, 0
      %v567 = vsel %vm409, %v335, 0
      %v570 = vsel %vm409, %v338, 0
      %v573 = vsel %vm409, %v341, 0
      %v576 = vsel %vm409, %v344, 0
      %v579 = vsel %vm409, %v347, 0
      %v582 = vsel %vm409, %v350, 0
      %v585 = vsel %vm409, %v353, 0
      %v588 = vsel %vm409, %v356, 0
      %v591 = vsel %vm409, %v359, 0
      %v594 = vsel %vm409, %v362, 0
      %v597 = vsel %vm409, %v365, 0
      %v600 = vsel %vm409, %v368, 0
      %602 = vmatpush.msra.mxu0 %v384
      %603 = vmatpush.msra.mxu0 %v383
      %604 = vmatpush.msra.mxu0 %v382
      %605 = vmatpush.msra.mxu0 %v381
      %606 = vmatpush.msra.mxu0 %v380
      %607 = vmatpush.msra.mxu0 %v379
      %608 = vmatpush.msra.mxu0 %v378
      %609 = vmatpush.msra.mxu0 %v377
      %610 = vmatpush.msra.mxu0 %v376
      %611 = vmatpush.msra.mxu0 %v375
      %612 = vmatpush.msra.mxu0 %v374
      %613 = vmatpush.msra.mxu0 %v373
      %614 = vmatpush.msra.mxu0 %v372
      %615 = vmatpush.msra.mxu0 %v371
      %616 = vmatpush.msra.mxu0 %v370
      %617 = vmatpush.msra.mxu0 %v369
      %618 = vmatmul.f32.gmra.mxu0 %v177
      %v619 = vpop.f32.mrf.mxu0
      %v620 = vadd.f32 %v407, %v619
      %621 = vmatmul.f32.gmra.mxu0 %v180
      %v622 = vpop.f32.mrf.mxu0
      %v623 = vadd.f32 %v407, %v622
      %624 = vmatmul.f32.gmra.mxu0 %v183
      %v625 = vpop.f32.mrf.mxu0
      %v626 = vadd.f32 %v407, %v625
      %627 = vmatmul.f32.gmra.mxu0 %v186
      %v628 = vpop.f32.mrf.mxu0
      %v629 = vadd.f32 %v407, %v628
      %630 = vmatmul.f32.gmra.mxu0 %v189
      %v631 = vpop.f32.mrf.mxu0
      %v632 = vadd.f32 %v407, %v631
      %633 = vmatmul.f32.gmra.mxu0 %v192
      %v634 = vpop.f32.mrf.mxu0
      %v635 = vadd.f32 %v407, %v634
      %636 = vmatmul.f32.gmra.mxu0 %v195
      %v637 = vpop.f32.mrf.mxu0
      %v638 = vadd.f32 %v407, %v637
      %639 = vmatmul.f32.gmra.mxu0 %v198
      %v640 = vpop.f32.mrf.mxu0
      %v641 = vadd.f32 %v407, %v640
      %642 = vmatmul.f32.gmra.mxu0 %v201
      %v643 = vpop.f32.mrf.mxu0
      %v644 = vadd.f32 %v407, %v643
      %645 = vmatmul.f32.gmra.mxu0 %v204
      %v646 = vpop.f32.mrf.mxu0
      %v647 = vadd.f32 %v407, %v646
      %648 = vmatmul.f32.gmra.mxu0 %v207
      %v649 = vpop.f32.mrf.mxu0
      %v650 = vadd.f32 %v407, %v649
      %651 = vmatmul.f32.gmra.mxu0 %v210
      %v652 = vpop.f32.mrf.mxu0
      %v653 = vadd.f32 %v407, %v652
      %654 = vmatmul.f32.gmra.mxu0 %v213
      %v655 = vpop.f32.mrf.mxu0
      %v656 = vadd.f32 %v407, %v655
      %657 = vmatmul.f32.gmra.mxu0 %v216
      %v658 = vpop.f32.mrf.mxu0
      %v659 = vadd.f32 %v407, %v658
      %660 = vmatmul.f32.gmra.mxu0 %v219
      %v661 = vpop.f32.mrf.mxu0
      %v662 = vadd.f32 %v407, %v661
      %663 = vmatmul.f32.gmra.mxu0 %v222
      %v664 = vpop.f32.mrf.mxu0
      %v665 = vadd.f32 %v407, %v664
      %666 = vmatmul.f32.gmra.mxu0 %v225
      %v667 = vpop.f32.mrf.mxu0
      %v668 = vadd.f32 %v407, %v667
      %669 = vmatmul.f32.gmra.mxu0 %v228
      %v670 = vpop.f32.mrf.mxu0
      %v671 = vadd.f32 %v407, %v670
      %672 = vmatmul.f32.gmra.mxu0 %v231
      %v673 = vpop.f32.mrf.mxu0
      %v674 = vadd.f32 %v407, %v673
      %675 = vmatmul.f32.gmra.mxu0 %v234
      %v676 = vpop.f32.mrf.mxu0
      %v677 = vadd.f32 %v407, %v676
      %678 = vmatmul.f32.gmra.mxu0 %v237
      %v679 = vpop.f32.mrf.mxu0
      %v680 = vadd.f32 %v407, %v679
      %681 = vmatmul.f32.gmra.mxu0 %v240
      %v682 = vpop.f32.mrf.mxu0
      %v683 = vadd.f32 %v407, %v682
      %684 = vmatmul.f32.gmra.mxu0 %v243
      %v685 = vpop.f32.mrf.mxu0
      %v686 = vadd.f32 %v407, %v685
      %687 = vmatmul.f32.gmra.mxu0 %v246
      %v688 = vpop.f32.mrf.mxu0
      %v689 = vadd.f32 %v407, %v688
      %690 = vmatmul.f32.gmra.mxu0 %v249
      %v691 = vpop.f32.mrf.mxu0
      %v692 = vadd.f32 %v407, %v691
      %693 = vmatmul.f32.gmra.mxu0 %v252
      %v694 = vpop.f32.mrf.mxu0
      %v695 = vadd.f32 %v407, %v694
      %696 = vmatmul.f32.gmra.mxu0 %v255
      %v697 = vpop.f32.mrf.mxu0
      %v698 = vadd.f32 %v407, %v697
      %699 = vmatmul.f32.gmra.mxu0 %v258
      %v700 = vpop.f32.mrf.mxu0
      %v701 = vadd.f32 %v407, %v700
      %702 = vmatmul.f32.gmra.mxu0 %v261
      %v703 = vpop.f32.mrf.mxu0
      %v704 = vadd.f32 %v407, %v703
      %705 = vmatmul.f32.gmra.mxu0 %v264
      %v706 = vpop.f32.mrf.mxu0
      %v707 = vadd.f32 %v407, %v706
      %708 = vmatmul.f32.gmra.mxu0 %v267
      %v709 = vpop.f32.mrf.mxu0
      %v710 = vadd.f32 %v407, %v709
      %711 = vmatmul.f32.gmra.mxu0 %v270
      %v712 = vpop.f32.mrf.mxu0
      %v713 = vadd.f32 %v407, %v712
      %714 = vmatmul.f32.gmra.mxu0 %v273
      %v715 = vpop.f32.mrf.mxu0
      %v716 = vadd.f32 %v407, %v715
      %717 = vmatmul.f32.gmra.mxu0 %v276
      %v718 = vpop.f32.mrf.mxu0
      %v719 = vadd.f32 %v407, %v718
      %720 = vmatmul.f32.gmra.mxu0 %v279
      %v721 = vpop.f32.mrf.mxu0
      %v722 = vadd.f32 %v407, %v721
      %723 = vmatmul.f32.gmra.mxu0 %v282
      %v724 = vpop.f32.mrf.mxu0
      %v725 = vadd.f32 %v407, %v724
      %726 = vmatmul.f32.gmra.mxu0 %v285
      %v727 = vpop.f32.mrf.mxu0
      %v728 = vadd.f32 %v407, %v727
      %729 = vmatmul.f32.gmra.mxu0 %v288
      %v730 = vpop.f32.mrf.mxu0
      %v731 = vadd.f32 %v407, %v730
      %732 = vmatmul.f32.gmra.mxu0 %v291
      %v733 = vpop.f32.mrf.mxu0
      %v734 = vadd.f32 %v407, %v733
      %735 = vmatmul.f32.gmra.mxu0 %v294
      %v736 = vpop.f32.mrf.mxu0
      %v737 = vadd.f32 %v407, %v736
      %738 = vmatmul.f32.gmra.mxu0 %v297
      %v739 = vpop.f32.mrf.mxu0
      %v740 = vadd.f32 %v407, %v739
      %741 = vmatmul.f32.gmra.mxu0 %v300
      %v742 = vpop.f32.mrf.mxu0
      %v743 = vadd.f32 %v407, %v742
      %744 = vmatmul.f32.gmra.mxu0 %v303
      %v745 = vpop.f32.mrf.mxu0
      %v746 = vadd.f32 %v407, %v745
      %747 = vmatmul.f32.gmra.mxu0 %v306
      %v748 = vpop.f32.mrf.mxu0
      %v749 = vadd.f32 %v407, %v748
      %750 = vmatmul.f32.gmra.mxu0 %v309
      %v751 = vpop.f32.mrf.mxu0
      %v752 = vadd.f32 %v407, %v751
      %753 = vmatmul.f32.gmra.mxu0 %v312
      %v754 = vpop.f32.mrf.mxu0
      %v755 = vadd.f32 %v407, %v754
      %756 = vmatmul.f32.gmra.mxu0 %v315
      %v757 = vpop.f32.mrf.mxu0
      %v758 = vadd.f32 %v407, %v757
      %759 = vmatmul.f32.gmra.mxu0 %v318
      %v760 = vpop.f32.mrf.mxu0
      %v761 = vadd.f32 %v407, %v760
      %762 = vmatmul.f32.gmra.mxu0 %v321
      %v763 = vpop.f32.mrf.mxu0
      %v764 = vadd.f32 %v407, %v763
      %765 = vmatmul.f32.gmra.mxu0 %v324
      %v766 = vpop.f32.mrf.mxu0
      %v767 = vadd.f32 %v407, %v766
      %768 = vmatmul.f32.gmra.mxu0 %v327
      %v769 = vpop.f32.mrf.mxu0
      %v770 = vadd.f32 %v407, %v769
      %771 = vmatmul.f32.gmra.mxu0 %v330
      %v772 = vpop.f32.mrf.mxu0
      %v773 = vadd.f32 %v407, %v772
      %774 = vmatmul.f32.gmra.mxu0 %v333
      %v775 = vpop.f32.mrf.mxu0
      %v776 = vadd.f32 %v407, %v775
      %777 = vmatmul.f32.gmra.mxu0 %v336
      %v778 = vpop.f32.mrf.mxu0
      %v779 = vadd.f32 %v407, %v778
      %780 = vmatmul.f32.gmra.mxu0 %v339
      %v781 = vpop.f32.mrf.mxu0
      %v782 = vadd.f32 %v407, %v781
      %783 = vmatmul.f32.gmra.mxu0 %v342
      %v784 = vpop.f32.mrf.mxu0
      %v785 = vadd.f32 %v407, %v784
      %786 = vmatmul.f32.gmra.mxu0 %v345
      %v787 = vpop.f32.mrf.mxu0
      %v788 = vadd.f32 %v407, %v787
      %789 = vmatmul.f32.gmra.mxu0 %v348
      %v790 = vpop.f32.mrf.mxu0
      %v791 = vadd.f32 %v407, %v790
      %792 = vmatmul.f32.gmra.mxu0 %v351
      %v793 = vpop.f32.mrf.mxu0
      %v794 = vadd.f32 %v407, %v793
      %795 = vmatmul.f32.gmra.mxu0 %v354
      %v796 = vpop.f32.mrf.mxu0
      %v797 = vadd.f32 %v407, %v796
      %798 = vmatmul.f32.gmra.mxu0 %v357
      %v799 = vpop.f32.mrf.mxu0
      %v800 = vadd.f32 %v407, %v799
      %801 = vmatmul.f32.gmra.mxu0 %v360
      %v802 = vpop.f32.mrf.mxu0
      %v803 = vadd.f32 %v407, %v802
      %804 = vmatmul.f32.gmra.mxu0 %v363
      %v805 = vpop.f32.mrf.mxu0
      %v806 = vadd.f32 %v407, %v805
      %807 = vmatmul.f32.gmra.mxu0 %v366
      %v808 = vpop.f32.mrf.mxu0
      %v809 = vadd.f32 %v407, %v808
      %810 = vdwg.mxu0
      %811 = vmatpush.msra.mxu0 %v400
      %812 = vmatpush.msra.mxu0 %v399
      %813 = vmatpush.msra.mxu0 %v398
      %814 = vmatpush.msra.mxu0 %v397
      %815 = vmatpush.msra.mxu0 %v396
      %816 = vmatpush.msra.mxu0 %v395
      %817 = vmatpush.msra.mxu0 %v394
      %818 = vmatpush.msra.mxu0 %v393
      %819 = vmatpush.msra.mxu0 %v392
      %820 = vmatpush.msra.mxu0 %v391
      %821 = vmatpush.msra.mxu0 %v390
      %822 = vmatpush.msra.mxu0 %v389
      %823 = vmatpush.msra.mxu0 %v388
      %824 = vmatpush.msra.mxu0 %v387
      %825 = vmatpush.msra.mxu0 %v386
      %826 = vmatpush.msra.mxu0 %v385
      %827 = vmatmul.f32.gmra.mxu0 %v178
      %v828 = vpop.f32.mrf.mxu0
      %v829 = vadd.f32 %v620, %v828
      %830 = vmatmul.f32.gmra.mxu0 %v181
      %v831 = vpop.f32.mrf.mxu0
      %v832 = vadd.f32 %v623, %v831
      %833 = vmatmul.f32.gmra.mxu0 %v184
      %v834 = vpop.f32.mrf.mxu0
      %v835 = vadd.f32 %v626, %v834
      %836 = vmatmul.f32.gmra.mxu0 %v187
      %v837 = vpop.f32.mrf.mxu0
      %v838 = vadd.f32 %v629, %v837
      %839 = vmatmul.f32.gmra.mxu0 %v190
      %v840 = vpop.f32.mrf.mxu0
      %v841 = vadd.f32 %v632, %v840
      %842 = vmatmul.f32.gmra.mxu0 %v193
      %v843 = vpop.f32.mrf.mxu0
      %v844 = vadd.f32 %v635, %v843
      %845 = vmatmul.f32.gmra.mxu0 %v196
      %v846 = vpop.f32.mrf.mxu0
      %v847 = vadd.f32 %v638, %v846
      %848 = vmatmul.f32.gmra.mxu0 %v199
      %v849 = vpop.f32.mrf.mxu0
      %v850 = vadd.f32 %v641, %v849
      %851 = vmatmul.f32.gmra.mxu0 %v202
      %v852 = vpop.f32.mrf.mxu0
      %v853 = vadd.f32 %v644, %v852
      %854 = vmatmul.f32.gmra.mxu0 %v205
      %v855 = vpop.f32.mrf.mxu0
      %v856 = vadd.f32 %v647, %v855
      %857 = vmatmul.f32.gmra.mxu0 %v208
      %v858 = vpop.f32.mrf.mxu0
      %v859 = vadd.f32 %v650, %v858
      %860 = vmatmul.f32.gmra.mxu0 %v211
      %v861 = vpop.f32.mrf.mxu0
      %v862 = vadd.f32 %v653, %v861
      %863 = vmatmul.f32.gmra.mxu0 %v214
      %v864 = vpop.f32.mrf.mxu0
      %v865 = vadd.f32 %v656, %v864
      %866 = vmatmul.f32.gmra.mxu0 %v217
      %v867 = vpop.f32.mrf.mxu0
      %v868 = vadd.f32 %v659, %v867
      %869 = vmatmul.f32.gmra.mxu0 %v220
      %v870 = vpop.f32.mrf.mxu0
      %v871 = vadd.f32 %v662, %v870
      %872 = vmatmul.f32.gmra.mxu0 %v223
      %v873 = vpop.f32.mrf.mxu0
      %v874 = vadd.f32 %v665, %v873
      %875 = vmatmul.f32.gmra.mxu0 %v226
      %v876 = vpop.f32.mrf.mxu0
      %v877 = vadd.f32 %v668, %v876
      %878 = vmatmul.f32.gmra.mxu0 %v229
      %v879 = vpop.f32.mrf.mxu0
      %v880 = vadd.f32 %v671, %v879
      %881 = vmatmul.f32.gmra.mxu0 %v232
      %v882 = vpop.f32.mrf.mxu0
      %v883 = vadd.f32 %v674, %v882
      %884 = vmatmul.f32.gmra.mxu0 %v235
      %v885 = vpop.f32.mrf.mxu0
      %v886 = vadd.f32 %v677, %v885
      %887 = vmatmul.f32.gmra.mxu0 %v238
      %v888 = vpop.f32.mrf.mxu0
      %v889 = vadd.f32 %v680, %v888
      %890 = vmatmul.f32.gmra.mxu0 %v241
      %v891 = vpop.f32.mrf.mxu0
      %v892 = vadd.f32 %v683, %v891
      %893 = vmatmul.f32.gmra.mxu0 %v244
      %v894 = vpop.f32.mrf.mxu0
      %v895 = vadd.f32 %v686, %v894
      %896 = vmatmul.f32.gmra.mxu0 %v247
      %v897 = vpop.f32.mrf.mxu0
      %v898 = vadd.f32 %v689, %v897
      %899 = vmatmul.f32.gmra.mxu0 %v250
      %v900 = vpop.f32.mrf.mxu0
      %v901 = vadd.f32 %v692, %v900
      %902 = vmatmul.f32.gmra.mxu0 %v253
      %v903 = vpop.f32.mrf.mxu0
      %v904 = vadd.f32 %v695, %v903
      %905 = vmatmul.f32.gmra.mxu0 %v256
      %v906 = vpop.f32.mrf.mxu0
      %v907 = vadd.f32 %v698, %v906
      %908 = vmatmul.f32.gmra.mxu0 %v259
      %v909 = vpop.f32.mrf.mxu0
      %v910 = vadd.f32 %v701, %v909
      %911 = vmatmul.f32.gmra.mxu0 %v262
      %v912 = vpop.f32.mrf.mxu0
      %v913 = vadd.f32 %v704, %v912
      %914 = vmatmul.f32.gmra.mxu0 %v265
      %v915 = vpop.f32.mrf.mxu0
      %v916 = vadd.f32 %v707, %v915
      %917 = vmatmul.f32.gmra.mxu0 %v268
      %v918 = vpop.f32.mrf.mxu0
      %v919 = vadd.f32 %v710, %v918
      %920 = vmatmul.f32.gmra.mxu0 %v271
      %v921 = vpop.f32.mrf.mxu0
      %v922 = vadd.f32 %v713, %v921
      %923 = vmatmul.f32.gmra.mxu0 %v274
      %v924 = vpop.f32.mrf.mxu0
      %v925 = vadd.f32 %v716, %v924
      %926 = vmatmul.f32.gmra.mxu0 %v277
      %v927 = vpop.f32.mrf.mxu0
      %v928 = vadd.f32 %v719, %v927
      %929 = vmatmul.f32.gmra.mxu0 %v280
      %v930 = vpop.f32.mrf.mxu0
      %v931 = vadd.f32 %v722, %v930
      %932 = vmatmul.f32.gmra.mxu0 %v283
      %v933 = vpop.f32.mrf.mxu0
      %v934 = vadd.f32 %v725, %v933
      %935 = vmatmul.f32.gmra.mxu0 %v286
      %v936 = vpop.f32.mrf.mxu0
      %v937 = vadd.f32 %v728, %v936
      %938 = vmatmul.f32.gmra.mxu0 %v289
      %v939 = vpop.f32.mrf.mxu0
      %v940 = vadd.f32 %v731, %v939
      %941 = vmatmul.f32.gmra.mxu0 %v292
      %v942 = vpop.f32.mrf.mxu0
      %v943 = vadd.f32 %v734, %v942
      %944 = vmatmul.f32.gmra.mxu0 %v295
      %v945 = vpop.f32.mrf.mxu0
      %v946 = vadd.f32 %v737, %v945
      %947 = vmatmul.f32.gmra.mxu0 %v298
      %v948 = vpop.f32.mrf.mxu0
      %v949 = vadd.f32 %v740, %v948
      %950 = vmatmul.f32.gmra.mxu0 %v301
      %v951 = vpop.f32.mrf.mxu0
      %v952 = vadd.f32 %v743, %v951
      %953 = vmatmul.f32.gmra.mxu0 %v304
      %v954 = vpop.f32.mrf.mxu0
      %v955 = vadd.f32 %v746, %v954
      %956 = vmatmul.f32.gmra.mxu0 %v307
      %v957 = vpop.f32.mrf.mxu0
      %v958 = vadd.f32 %v749, %v957
      %959 = vmatmul.f32.gmra.mxu0 %v310
      %v960 = vpop.f32.mrf.mxu0
      %v961 = vadd.f32 %v752, %v960
      %962 = vmatmul.f32.gmra.mxu0 %v313
      %v963 = vpop.f32.mrf.mxu0
      %v964 = vadd.f32 %v755, %v963
      %965 = vmatmul.f32.gmra.mxu0 %v316
      %v966 = vpop.f32.mrf.mxu0
      %v967 = vadd.f32 %v758, %v966
      %968 = vmatmul.f32.gmra.mxu0 %v319
      %v969 = vpop.f32.mrf.mxu0
      %v970 = vadd.f32 %v761, %v969
      %971 = vmatmul.f32.gmra.mxu0 %v322
      %v972 = vpop.f32.mrf.mxu0
      %v973 = vadd.f32 %v764, %v972
      %974 = vmatmul.f32.gmra.mxu0 %v325
      %v975 = vpop.f32.mrf.mxu0
      %v976 = vadd.f32 %v767, %v975
      %977 = vmatmul.f32.gmra.mxu0 %v328
      %v978 = vpop.f32.mrf.mxu0
      %v979 = vadd.f32 %v770, %v978
      %980 = vmatmul.f32.gmra.mxu0 %v331
      %v981 = vpop.f32.mrf.mxu0
      %v982 = vadd.f32 %v773, %v981
      %983 = vmatmul.f32.gmra.mxu0 %v334
      %v984 = vpop.f32.mrf.mxu0
      %v985 = vadd.f32 %v776, %v984
      %986 = vmatmul.f32.gmra.mxu0 %v337
      %v987 = vpop.f32.mrf.mxu0
      %v988 = vadd.f32 %v779, %v987
      %989 = vmatmul.f32.gmra.mxu0 %v340
      %v990 = vpop.f32.mrf.mxu0
      %v991 = vadd.f32 %v782, %v990
      %992 = vmatmul.f32.gmra.mxu0 %v343
      %v993 = vpop.f32.mrf.mxu0
      %v994 = vadd.f32 %v785, %v993
      %995 = vmatmul.f32.gmra.mxu0 %v346
      %v996 = vpop.f32.mrf.mxu0
      %v997 = vadd.f32 %v788, %v996
      %998 = vmatmul.f32.gmra.mxu0 %v349
      %v999 = vpop.f32.mrf.mxu0
      %v1000 = vadd.f32 %v791, %v999
      %1001 = vmatmul.f32.gmra.mxu0 %v352
      %v1002 = vpop.f32.mrf.mxu0
      %v1003 = vadd.f32 %v794, %v1002
      %1004 = vmatmul.f32.gmra.mxu0 %v355
      %v1005 = vpop.f32.mrf.mxu0
      %v1006 = vadd.f32 %v797, %v1005
      %1007 = vmatmul.f32.gmra.mxu0 %v358
      %v1008 = vpop.f32.mrf.mxu0
      %v1009 = vadd.f32 %v800, %v1008
      %1010 = vmatmul.f32.gmra.mxu0 %v361
      %v1011 = vpop.f32.mrf.mxu0
      %v1012 = vadd.f32 %v803, %v1011
      %1013 = vmatmul.f32.gmra.mxu0 %v364
      %v1014 = vpop.f32.mrf.mxu0
      %v1015 = vadd.f32 %v806, %v1014
      %1016 = vmatmul.f32.gmra.mxu0 %v367
      %v1017 = vpop.f32.mrf.mxu0
      %v1018 = vadd.f32 %v809, %v1017
      %1019 = vdwg.mxu0
      %1020 = vmatpush.msra.mxu0 0.0
      %1021 = vmatpush.msra.mxu0 0.0
      %1022 = vmatpush.msra.mxu0 0.0
      %1023 = vmatpush.msra.mxu0 0.0
      %1024 = vmatpush.msra.mxu0 0.0
      %1025 = vmatpush.msra.mxu0 0.0
      %1026 = vmatpush.msra.mxu0 0.0
      %1027 = vmatpush.msra.mxu0 0.0
      %1028 = vmatpush.msra.mxu0 0.0
      %1029 = vmatpush.msra.mxu0 0.0
      %1030 = vmatpush.msra.mxu0 0.0
      %1031 = vmatpush.msra.mxu0 0.0
      %1032 = vmatpush.msra.mxu0 %v404
      %1033 = vmatpush.msra.mxu0 %v403
      %1034 = vmatpush.msra.mxu0 %v402
      %1035 = vmatpush.msra.mxu0 %v401
      %1036 = vmatmul.f32.gmra.mxu0 %v411
      %v1037 = vpop.f32.mrf.mxu0
      %v1038 = vadd.f32 %v829, %v1037
      %1039 = vmatmul.f32.gmra.mxu0 %v414
      %v1040 = vpop.f32.mrf.mxu0
      %v1041 = vadd.f32 %v832, %v1040
      %1042 = vmatmul.f32.gmra.mxu0 %v417
      %v1043 = vpop.f32.mrf.mxu0
      %v1044 = vadd.f32 %v835, %v1043
      %1045 = vmatmul.f32.gmra.mxu0 %v420
      %v1046 = vpop.f32.mrf.mxu0
      %v1047 = vadd.f32 %v838, %v1046
      %1048 = vmatmul.f32.gmra.mxu0 %v423
      %v1049 = vpop.f32.mrf.mxu0
      %v1050 = vadd.f32 %v841, %v1049
      %1051 = vmatmul.f32.gmra.mxu0 %v426
      %v1052 = vpop.f32.mrf.mxu0
      %v1053 = vadd.f32 %v844, %v1052
      %1054 = vmatmul.f32.gmra.mxu0 %v429
      %v1055 = vpop.f32.mrf.mxu0
      %v1056 = vadd.f32 %v847, %v1055
      %1057 = vmatmul.f32.gmra.mxu0 %v432
      %v1058 = vpop.f32.mrf.mxu0
      %v1059 = vadd.f32 %v850, %v1058
      %1060 = vmatmul.f32.gmra.mxu0 %v435
      %v1061 = vpop.f32.mrf.mxu0
      %v1062 = vadd.f32 %v853, %v1061
      %1063 = vmatmul.f32.gmra.mxu0 %v438
      %v1064 = vpop.f32.mrf.mxu0
      %v1065 = vadd.f32 %v856, %v1064
      %1066 = vmatmul.f32.gmra.mxu0 %v441
      %v1067 = vpop.f32.mrf.mxu0
      %v1068 = vadd.f32 %v859, %v1067
      %1069 = vmatmul.f32.gmra.mxu0 %v444
      %v1070 = vpop.f32.mrf.mxu0
      %v1071 = vadd.f32 %v862, %v1070
      %1072 = vmatmul.f32.gmra.mxu0 %v447
      %v1073 = vpop.f32.mrf.mxu0
      %v1074 = vadd.f32 %v865, %v1073
      %1075 = vmatmul.f32.gmra.mxu0 %v450
      %v1076 = vpop.f32.mrf.mxu0
      %v1077 = vadd.f32 %v868, %v1076
      %1078 = vmatmul.f32.gmra.mxu0 %v453
      %v1079 = vpop.f32.mrf.mxu0
      %v1080 = vadd.f32 %v871, %v1079
      %1081 = vmatmul.f32.gmra.mxu0 %v456
      %v1082 = vpop.f32.mrf.mxu0
      %v1083 = vadd.f32 %v874, %v1082
      %1084 = vmatmul.f32.gmra.mxu0 %v459
      %v1085 = vpop.f32.mrf.mxu0
      %v1086 = vadd.f32 %v877, %v1085
      %1087 = vmatmul.f32.gmra.mxu0 %v462
      %v1088 = vpop.f32.mrf.mxu0
      %v1089 = vadd.f32 %v880, %v1088
      %1090 = vmatmul.f32.gmra.mxu0 %v465
      %v1091 = vpop.f32.mrf.mxu0
      %v1092 = vadd.f32 %v883, %v1091
      %1093 = vmatmul.f32.gmra.mxu0 %v468
      %v1094 = vpop.f32.mrf.mxu0
      %v1095 = vadd.f32 %v886, %v1094
      %1096 = vmatmul.f32.gmra.mxu0 %v471
      %v1097 = vpop.f32.mrf.mxu0
      %v1098 = vadd.f32 %v889, %v1097
      %1099 = vmatmul.f32.gmra.mxu0 %v474
      %v1100 = vpop.f32.mrf.mxu0
      %v1101 = vadd.f32 %v892, %v1100
      %1102 = vmatmul.f32.gmra.mxu0 %v477
      %v1103 = vpop.f32.mrf.mxu0
      %v1104 = vadd.f32 %v895, %v1103
      %1105 = vmatmul.f32.gmra.mxu0 %v480
      %v1106 = vpop.f32.mrf.mxu0
      %v1107 = vadd.f32 %v898, %v1106
      %1108 = vmatmul.f32.gmra.mxu0 %v483
      %v1109 = vpop.f32.mrf.mxu0
      %v1110 = vadd.f32 %v901, %v1109
      %1111 = vmatmul.f32.gmra.mxu0 %v486
      %v1112 = vpop.f32.mrf.mxu0
      %v1113 = vadd.f32 %v904, %v1112
      %1114 = vmatmul.f32.gmra.mxu0 %v489
      %v1115 = vpop.f32.mrf.mxu0
      %v1116 = vadd.f32 %v907, %v1115
      %1117 = vmatmul.f32.gmra.mxu0 %v492
      %v1118 = vpop.f32.mrf.mxu0
      %v1119 = vadd.f32 %v910, %v1118
      %1120 = vmatmul.f32.gmra.mxu0 %v495
      %v1121 = vpop.f32.mrf.mxu0
      %v1122 = vadd.f32 %v913, %v1121
      %1123 = vmatmul.f32.gmra.mxu0 %v498
      %v1124 = vpop.f32.mrf.mxu0
      %v1125 = vadd.f32 %v916, %v1124
      %1126 = vmatmul.f32.gmra.mxu0 %v501
      %v1127 = vpop.f32.mrf.mxu0
      %v1128 = vadd.f32 %v919, %v1127
      %1129 = vmatmul.f32.gmra.mxu0 %v504
      %v1130 = vpop.f32.mrf.mxu0
      %v1131 = vadd.f32 %v922, %v1130
      %1132 = vmatmul.f32.gmra.mxu0 %v507
      %v1133 = vpop.f32.mrf.mxu0
      %v1134 = vadd.f32 %v925, %v1133
      %1135 = vmatmul.f32.gmra.mxu0 %v510
      %v1136 = vpop.f32.mrf.mxu0
      %v1137 = vadd.f32 %v928, %v1136
      %1138 = vmatmul.f32.gmra.mxu0 %v513
      %v1139 = vpop.f32.mrf.mxu0
      %v1140 = vadd.f32 %v931, %v1139
      %1141 = vmatmul.f32.gmra.mxu0 %v516
      %v1142 = vpop.f32.mrf.mxu0
      %v1143 = vadd.f32 %v934, %v1142
      %1144 = vmatmul.f32.gmra.mxu0 %v519
      %v1145 = vpop.f32.mrf.mxu0
      %v1146 = vadd.f32 %v937, %v1145
      %1147 = vmatmul.f32.gmra.mxu0 %v522
      %v1148 = vpop.f32.mrf.mxu0
      %v1149 = vadd.f32 %v940, %v1148
      %1150 = vmatmul.f32.gmra.mxu0 %v525
      %v1151 = vpop.f32.mrf.mxu0
      %v1152 = vadd.f32 %v943, %v1151
      %1153 = vmatmul.f32.gmra.mxu0 %v528
      %v1154 = vpop.f32.mrf.mxu0
      %v1155 = vadd.f32 %v946, %v1154
      %1156 = vmatmul.f32.gmra.mxu0 %v531
      %v1157 = vpop.f32.mrf.mxu0
      %v1158 = vadd.f32 %v949, %v1157
      %1159 = vmatmul.f32.gmra.mxu0 %v534
      %v1160 = vpop.f32.mrf.mxu0
      %v1161 = vadd.f32 %v952, %v1160
      %1162 = vmatmul.f32.gmra.mxu0 %v537
      %v1163 = vpop.f32.mrf.mxu0
      %v1164 = vadd.f32 %v955, %v1163
      %1165 = vmatmul.f32.gmra.mxu0 %v540
      %v1166 = vpop.f32.mrf.mxu0
      %v1167 = vadd.f32 %v958, %v1166
      %1168 = vmatmul.f32.gmra.mxu0 %v543
      %v1169 = vpop.f32.mrf.mxu0
      %v1170 = vadd.f32 %v961, %v1169
      %1171 = vmatmul.f32.gmra.mxu0 %v546
      %v1172 = vpop.f32.mrf.mxu0
      %v1173 = vadd.f32 %v964, %v1172
      %1174 = vmatmul.f32.gmra.mxu0 %v549
      %v1175 = vpop.f32.mrf.mxu0
      %v1176 = vadd.f32 %v967, %v1175
      %1177 = vmatmul.f32.gmra.mxu0 %v552
      %v1178 = vpop.f32.mrf.mxu0
      %v1179 = vadd.f32 %v970, %v1178
      %1180 = vmatmul.f32.gmra.mxu0 %v555
      %v1181 = vpop.f32.mrf.mxu0
      %v1182 = vadd.f32 %v973, %v1181
      %1183 = vmatmul.f32.gmra.mxu0 %v558
      %v1184 = vpop.f32.mrf.mxu0
      %v1185 = vadd.f32 %v976, %v1184
      %1186 = vmatmul.f32.gmra.mxu0 %v561
      %v1187 = vpop.f32.mrf.mxu0
      %v1188 = vadd.f32 %v979, %v1187
      %1189 = vmatmul.f32.gmra.mxu0 %v564
      %v1190 = vpop.f32.mrf.mxu0
      %v1191 = vadd.f32 %v982, %v1190
      %1192 = vmatmul.f32.gmra.mxu0 %v567
      %v1193 = vpop.f32.mrf.mxu0
      %v1194 = vadd.f32 %v985, %v1193
      %1195 = vmatmul.f32.gmra.mxu0 %v570
      %v1196 = vpop.f32.mrf.mxu0
      %v1197 = vadd.f32 %v988, %v1196
      %1198 = vmatmul.f32.gmra.mxu0 %v573
      %v1199 = vpop.f32.mrf.mxu0
      %v1200 = vadd.f32 %v991, %v1199
      %1201 = vmatmul.f32.gmra.mxu0 %v576
      %v1202 = vpop.f32.mrf.mxu0
      %v1203 = vadd.f32 %v994, %v1202
      %1204 = vmatmul.f32.gmra.mxu0 %v579
      %v1205 = vpop.f32.mrf.mxu0
      %v1206 = vadd.f32 %v997, %v1205
      %1207 = vmatmul.f32.gmra.mxu0 %v582
      %v1208 = vpop.f32.mrf.mxu0
      %v1209 = vadd.f32 %v1000, %v1208
      %1210 = vmatmul.f32.gmra.mxu0 %v585
      %v1211 = vpop.f32.mrf.mxu0
      %v1212 = vadd.f32 %v1003, %v1211
      %1213 = vmatmul.f32.gmra.mxu0 %v588
      %v1214 = vpop.f32.mrf.mxu0
      %v1215 = vadd.f32 %v1006, %v1214
      %1216 = vmatmul.f32.gmra.mxu0 %v591
      %v1217 = vpop.f32.mrf.mxu0
      %v1218 = vadd.f32 %v1009, %v1217
      %1219 = vmatmul.f32.gmra.mxu0 %v594
      %v1220 = vpop.f32.mrf.mxu0
      %v1221 = vadd.f32 %v1012, %v1220
      %1222 = vmatmul.f32.gmra.mxu0 %v597
      %v1223 = vpop.f32.mrf.mxu0
      %v1224 = vadd.f32 %v1015, %v1223
      %1225 = vmatmul.f32.gmra.mxu0 %v600
      %v1226 = vpop.f32.mrf.mxu0
      %v1227 = vadd.f32 %v1018, %v1226
      %1228 = vdwg.mxu0
      %v1229 = vmax.f32 %v1038, 0.0
      %v1230 = vmax.f32 %v1041, 0.0
      %v1231 = vmax.f32 %v1044, 0.0
      %v1232 = vmax.f32 %v1047, 0.0
      %v1233 = vmax.f32 %v1050, 0.0
      %v1234 = vmax.f32 %v1053, 0.0
      %v1235 = vmax.f32 %v1056, 0.0
      %v1236 = vmax.f32 %v1059, 0.0
      %v1237 = vmax.f32 %v1062, 0.0
      %v1238 = vmax.f32 %v1065, 0.0
      %v1239 = vmax.f32 %v1068, 0.0
      %v1240 = vmax.f32 %v1071, 0.0
      %v1241 = vmax.f32 %v1074, 0.0
      %v1242 = vmax.f32 %v1077, 0.0
      %v1243 = vmax.f32 %v1080, 0.0
      %v1244 = vmax.f32 %v1083, 0.0
      %v1245 = vmax.f32 %v1086, 0.0
      %v1246 = vmax.f32 %v1089, 0.0
      %v1247 = vmax.f32 %v1092, 0.0
      %v1248 = vmax.f32 %v1095, 0.0
      %v1249 = vmax.f32 %v1098, 0.0
      %v1250 = vmax.f32 %v1101, 0.0
      %v1251 = vmax.f32 %v1104, 0.0
      %v1252 = vmax.f32 %v1107, 0.0
      %v1253 = vmax.f32 %v1110, 0.0
      %v1254 = vmax.f32 %v1113, 0.0
      %v1255 = vmax.f32 %v1116, 0.0
      %v1256 = vmax.f32 %v1119, 0.0
      %v1257 = vmax.f32 %v1122, 0.0
      %v1258 = vmax.f32 %v1125, 0.0
      %v1259 = vmax.f32 %v1128, 0.0
      %v1260 = vmax.f32 %v1131, 0.0
      %v1261 = vmax.f32 %v1134, 0.0
      %v1262 = vmax.f32 %v1137, 0.0
      %v1263 = vmax.f32 %v1140, 0.0
      %v1264 = vmax.f32 %v1143, 0.0
      %v1265 = vmax.f32 %v1146, 0.0
      %v1266 = vmax.f32 %v1149, 0.0
      %v1267 = vmax.f32 %v1152, 0.0
      %v1268 = vmax.f32 %v1155, 0.0
      %v1269 = vmax.f32 %v1158, 0.0
      %v1270 = vmax.f32 %v1161, 0.0
      %v1271 = vmax.f32 %v1164, 0.0
      %v1272 = vmax.f32 %v1167, 0.0
      %v1273 = vmax.f32 %v1170, 0.0
      %v1274 = vmax.f32 %v1173, 0.0
      %v1275 = vmax.f32 %v1176, 0.0
      %v1276 = vmax.f32 %v1179, 0.0
      %v1277 = vmax.f32 %v1182, 0.0
      %v1278 = vmax.f32 %v1185, 0.0
      %v1279 = vmax.f32 %v1188, 0.0
      %v1280 = vmax.f32 %v1191, 0.0
      %v1281 = vmax.f32 %v1194, 0.0
      %v1282 = vmax.f32 %v1197, 0.0
      %v1283 = vmax.f32 %v1200, 0.0
      %v1284 = vmax.f32 %v1203, 0.0
      %v1285 = vmax.f32 %v1206, 0.0
      %v1286 = vmax.f32 %v1209, 0.0
      %v1287 = vmax.f32 %v1212, 0.0
      %v1288 = vmax.f32 %v1215, 0.0
      %v1289 = vmax.f32 %v1218, 0.0
      %v1290 = vmax.f32 %v1221, 0.0
      %v1291 = vmax.f32 %v1224, 0.0
      %v1292 = vmax.f32 %v1227, 0.0
      %1293 = vst.msk [vmem:[%s175] sm:$0xff] %vm409, %v1229
      %1294 = vst.msk [vmem:[%s175 + $0x8] sm:$0xff] %vm409, %v1230
      %1295 = vst.msk [vmem:[%s175 + $0x10] sm:$0xff] %vm409, %v1231
      %1296 = vst.msk [vmem:[%s175 + $0x18] sm:$0xff] %vm409, %v1232
      %1297 = vst.msk [vmem:[%s175 + $0x20] sm:$0xff] %vm409, %v1233
      %1298 = vst.msk [vmem:[%s175 + $0x28] sm:$0xff] %vm409, %v1234
      %1299 = vst.msk [vmem:[%s175 + $0x30] sm:$0xff] %vm409, %v1235
      %1300 = vst.msk [vmem:[%s175 + $0x38] sm:$0xff] %vm409, %v1236
      %1301 = vst.msk [vmem:[%s175 + $0x40] sm:$0xff] %vm409, %v1237
      %1302 = vst.msk [vmem:[%s175 + $0x48] sm:$0xff] %vm409, %v1238
      %1303 = vst.msk [vmem:[%s175 + $0x50] sm:$0xff] %vm409, %v1239
      %1304 = vst.msk [vmem:[%s175 + $0x58] sm:$0xff] %vm409, %v1240
      %1305 = vst.msk [vmem:[%s175 + $0x60] sm:$0xff] %vm409, %v1241
      %1306 = vst.msk [vmem:[%s175 + $0x68] sm:$0xff] %vm409, %v1242
      %1307 = vst.msk [vmem:[%s175 + $0x70] sm:$0xff] %vm409, %v1243
      %1308 = vst.msk [vmem:[%s175 + $0x78] sm:$0xff] %vm409, %v1244
      %1309 = vst.msk [vmem:[%s175 + $0x80] sm:$0xff] %vm409, %v1245
      %1310 = vst.msk [vmem:[%s175 + $0x88] sm:$0xff] %vm409, %v1246
      %1311 = vst.msk [vmem:[%s175 + $0x90] sm:$0xff] %vm409, %v1247
      %1312 = vst.msk [vmem:[%s175 + $0x98] sm:$0xff] %vm409, %v1248
      %1313 = vst.msk [vmem:[%s175 + $0xa0] sm:$0xff] %vm409, %v1249
      %1314 = vst.msk [vmem:[%s175 + $0xa8] sm:$0xff] %vm409, %v1250
      %1315 = vst.msk [vmem:[%s175 + $0xb0] sm:$0xff] %vm409, %v1251
      %1316 = vst.msk [vmem:[%s175 + $0xb8] sm:$0xff] %vm409, %v1252
      %1317 = vst.msk [vmem:[%s175 + $0xc0] sm:$0xff] %vm409, %v1253
      %1318 = vst.msk [vmem:[%s175 + $0xc8] sm:$0xff] %vm409, %v1254
      %1319 = vst.msk [vmem:[%s175 + $0xd0] sm:$0xff] %vm409, %v1255
      %1320 = vst.msk [vmem:[%s175 + $0xd8] sm:$0xff] %vm409, %v1256
      %1321 = vst.msk [vmem:[%s175 + $0xe0] sm:$0xff] %vm409, %v1257
      %1322 = vst.msk [vmem:[%s175 + $0xe8] sm:$0xff] %vm409, %v1258
      %1323 = vst.msk [vmem:[%s175 + $0xf0] sm:$0xff] %vm409, %v1259
      %1324 = vst.msk [vmem:[%s175 + $0xf8] sm:$0xff] %vm409, %v1260
      %1325 = vst.msk [vmem:[%s175 + $0x100] sm:$0xff] %vm409, %v1261
      %1326 = vst.msk [vmem:[%s175 + $0x108] sm:$0xff] %vm409, %v1262
      %1327 = vst.msk [vmem:[%s175 + $0x110] sm:$0xff] %vm409, %v1263
      %1328 = vst.msk [vmem:[%s175 + $0x118] sm:$0xff] %vm409, %v1264
      %1329 = vst.msk [vmem:[%s175 + $0x120] sm:$0xff] %vm409, %v1265
      %1330 = vst.msk [vmem:[%s175 + $0x128] sm:$0xff] %vm409, %v1266
      %1331 = vst.msk [vmem:[%s175 + $0x130] sm:$0xff] %vm409, %v1267
      %1332 = vst.msk [vmem:[%s175 + $0x138] sm:$0xff] %vm409, %v1268
      %1333 = vst.msk [vmem:[%s175 + $0x140] sm:$0xff] %vm409, %v1269
      %1334 = vst.msk [vmem:[%s175 + $0x148] sm:$0xff] %vm409, %v1270
      %1335 = vst.msk [vmem:[%s175 + $0x150] sm:$0xff] %vm409, %v1271
      %1336 = vst.msk [vmem:[%s175 + $0x158] sm:$0xff] %vm409, %v1272
      %1337 = vst.msk [vmem:[%s175 + $0x160] sm:$0xff] %vm409, %v1273
      %1338 = vst.msk [vmem:[%s175 + $0x168] sm:$0xff] %vm409, %v1274
      %1339 = vst.msk [vmem:[%s175 + $0x170] sm:$0xff] %vm409, %v1275
      %1340 = vst.msk [vmem:[%s175 + $0x178] sm:$0xff] %vm409, %v1276
      %1341 = vst.msk [vmem:[%s175 + $0x180] sm:$0xff] %vm409, %v1277
      %1342 = vst.msk [vmem:[%s175 + $0x188] sm:$0xff] %vm409, %v1278
      %1343 = vst.msk [vmem:[%s175 + $0x190] sm:$0xff] %vm409, %v1279
      %1344 = vst.msk [vmem:[%s175 + $0x198] sm:$0xff] %vm409, %v1280
      %1345 = vst.msk [vmem:[%s175 + $0x1a0] sm:$0xff] %vm409, %v1281
      %1346 = vst.msk [vmem:[%s175 + $0x1a8] sm:$0xff] %vm409, %v1282
      %1347 = vst.msk [vmem:[%s175 + $0x1b0] sm:$0xff] %vm409, %v1283
      %1348 = vst.msk [vmem:[%s175 + $0x1b8] sm:$0xff] %vm409, %v1284
      %1349 = vst.msk [vmem:[%s175 + $0x1c0] sm:$0xff] %vm409, %v1285
      %1350 = vst.msk [vmem:[%s175 + $0x1c8] sm:$0xff] %vm409, %v1286
      %1351 = vst.msk [vmem:[%s175 + $0x1d0] sm:$0xff] %vm409, %v1287
      %1352 = vst.msk [vmem:[%s175 + $0x1d8] sm:$0xff] %vm409, %v1288
      %1353 = vst.msk [vmem:[%s175 + $0x1e0] sm:$0xff] %vm409, %v1289
      %1354 = vst.msk [vmem:[%s175 + $0x1e8] sm:$0xff] %vm409, %v1290
      %1355 = vst.msk [vmem:[%s175 + $0x1f0] sm:$0xff] %vm409, %v1291
      %1356 = vst.msk [vmem:[%s175 + $0x1f8] sm:$0xff] %vm409, %v1292
      %s1357 = smul.u32 64, %s14
      %p1358 = scmp.lt.s32.totalorder %s1357, 1023
      %s1359 = scalar_select %p1358, %s1357, 1023
      %s1360 = smul.addr %s1359, 8
      %s1361 = scalar_lea.vmem %s3, %s1360
      // Predicated region
      $region33: #{trace_lstm_forward.20} parent=31 // pred_check
        %p1362 = pneg %p100
      $region34: #{trace_lstm_forward.20} parent=31 // pred_check_branch
        %1364 = sbr.rel (%p1362) target = $region36
      $region35: #{trace_lstm_forward.20} parent=31 // pred_region
        %s1365 = smul.u32 64, %s14
      $region36: #{trace_lstm_forward.20} parent=31 // pred_fallthru
        _
    $region32: #{trace_lstm_forward.20} parent=5 // pred_fallthru
      _
    %p1366 = scmp.le.s32.totalorder 2, %s9
    // Predicated region
    $region37: #{trace_lstm_forward.20} parent=5 // pred_check
      %p1367 = pneg %p1366
    $region38: #{trace_lstm_forward.20} parent=5 // pred_check_branch
      %1369 = sbr.rel (%p1367) target = $region40
    $region39: #{trace_lstm_forward.20} parent=5 // pred_region
      %s1370 = ssub.s32 %s9, 2
      // Predicated region
      $region41: #{trace_lstm_forward.20} parent=39 // pred_check
        %p1371 = pneg %p106
      $region42: #{trace_lstm_forward.20} parent=39 // pred_check_branch
        %1373 = sbr.rel (%p1371) target = $region44
      $region43: #{trace_lstm_forward.20} parent=39 // pred_region
        %s1374 = smul.u32 64, %s15
        %p1375 = scmp.lt.s32.totalorder %s1374, 1023
        %s1376 = scalar_select %p1375, %s1374, 1023
        %s1377 = smul.addr %s1376, 8
        %s1378 = scalar_lea.vmem %s3, %s1377
      $region44: #{trace_lstm_forward.20} parent=39 // pred_fallthru
        _
    $region40: #{trace_lstm_forward.20} parent=5 // pred_fallthru
      _
  $region6: #{trace_lstm_forward.20} parent=0 // loop_footer
    %s13 = sadd.s32 1, %s9
  $region7: #{trace_lstm_forward.20} parent=0 // loop_footer_branch
    %8 = sbr.rel target = $region3
  $region8: #{trace_lstm_forward.20} parent=0 // loop_exit
    _

// kernel: trace_lstm_forward.21
$region0: #{trace_lstm_forward.21}
  #allocation0 [shape = 'u32[]', space=smem, size = 0x4, offset = 0x4, fixed_abs, tag = 'smem constant byte address 0x4 - core index']
  #allocation1 [shape = 'u32[72,128]{1,0:T(1,128)}', space=vmem, size = 0x9000, scoped, tag = 'internal scratch']
  %s0 = inlined_call_operand.vmem [shape: f32[2048,288], index: 0, kind: input, shape index: {}]
  %s1 = inlined_call_operand.vmem [shape: f32[288,64], index: 1, kind: input, shape index: {}]
  %s2 = inlined_call_operand.vmem [shape: f32[1,64], index: 2, kind: input, shape index: {}]
  %s3 = inlined_call_operand.vmem [shape: f32[2048,64], index: 3, kind: output, shape index: {}]
  %s4 = sld [smem:[#allocation0]]
  $region45: #{trace_lstm_forward.21} parent=0
    _
  %s6 = ssub.s32 1, %s4
  %s7 = scalar_select 0, %s6, %s4
  loop: start=0, step=1, limit=6
  $region2: #{trace_lstm_forward.21} parent=0 // loop_pre_header
    _
  $region3: #{trace_lstm_forward.21} parent=0 // loop_header
    %s9 = sphi 0, %s13
    %p10 = scmp.ge.s32.totalorder %s9, 6
    %s19 = sphi 0, %s21
    %s22 = sphi 0, %s19
    %s23 = sphi 0, %s22
    %s39 = sphi 0, %s23
    %s43 = sphi 0, %s43
    %s45 = sphi 0, %s43
    %s46 = sphi 0, %s45
    %s60 = sphi 0, %s46
    %s64 = sphi 0, %s64
    %s66 = sphi 0, %s64
    %s67 = sphi 0, %s66
    %s81 = sphi 0, %s67
    %s87 = sphi 0, %s89
    %s90 = sphi 0, %s87
    %s91 = sphi 0, %s90
    %s107 = sphi 0, %s91
  $region4: #{trace_lstm_forward.21} parent=0 // loop_header_branch
    %12 = sbr.rel (%p10) target = $region8
  $region5: #{trace_lstm_forward.21} parent=0 // loop_body
    %s14 = ssub.s32 %s9, 1
    %s15 = ssub.s32 %s9, 2
    %s16 = sadd.s32 %s9, 1
    %s17 = ssub.s32 %s9, %s16
    %p18 = scmp.eq.s32.totalorder %s17, 0
    %s20 = sadd.s32 %s19, 1
    %s21 = scalar_select %p18, %s19, %s20
    %p24 = pneg %p18
    %p25 = scmp.eq.s32.totalorder %s9, 3
    %p26 = por %p24, %p25
    %p27 = scmp.ne.s32.totalorder %s19, %s22
    %p28 = scmp.eq.s32.totalorder %s9, 0
    %p29 = por %p27, %p28
    %p30 = scmp.ne.s32.totalorder %s19, %s22
    %p31 = scmp.eq.s32.totalorder %s14, 3
    %p32 = por %p30, %p31
    %p33 = scmp.ne.s32.totalorder %s22, %s23
    %p34 = scmp.eq.s32.totalorder %s14, 0
    %p35 = por %p33, %p34
    %p36 = scmp.ne.s32.totalorder %s22, %s23
    %p37 = scmp.eq.s32.totalorder %s15, 3
    %p38 = por %p36, %p37
    %p40 = scmp.ne.s32.totalorder %s23, %s39
    %p41 = scmp.eq.s32.totalorder %s15, 0
    %p42 = por %p40, %p41
    %s44 = sadd.s32 %s43, 1
    %p47 = scmp.eq.s32.totalorder %s9, 3
    %p48 = scmp.ne.s32.totalorder %s43, %s45
    %p49 = scmp.eq.s32.totalorder %s9, 0
    %p50 = por %p48, %p49
    %p51 = scmp.ne.s32.totalorder %s43, %s45
    %p52 = scmp.eq.s32.totalorder %s14, 3
    %p53 = por %p51, %p52
    %p54 = scmp.ne.s32.totalorder %s45, %s46
    %p55 = scmp.eq.s32.totalorder %s14, 0
    %p56 = por %p54, %p55
    %p57 = scmp.ne.s32.totalorder %s45, %s46
    %p58 = scmp.eq.s32.totalorder %s15, 3
    %p59 = por %p57, %p58
    %p61 = scmp.ne.s32.totalorder %s46, %s60
    %p62 = scmp.eq.s32.totalorder %s15, 0
    %p63 = por %p61, %p62
    %s65 = sadd.s32 %s64, 1
    %p68 = scmp.eq.s32.totalorder %s9, 3
    %p69 = scmp.ne.s32.totalorder %s64, %s66
    %p70 = scmp.eq.s32.totalorder %s9, 0
    %p71 = por %p69, %p70
    %p72 = scmp.ne.s32.totalorder %s64, %s66
    %p73 = scmp.eq.s32.totalorder %s14, 3
    %p74 = por %p72, %p73
    %p75 = scmp.ne.s32.totalorder %s66, %s67
    %p76 = scmp.eq.s32.totalorder %s14, 0
    %p77 = por %p75, %p76
    %p78 = scmp.ne.s32.totalorder %s66, %s67
    %p79 = scmp.eq.s32.totalorder %s15, 3
    %p80 = por %p78, %p79
    %p82 = scmp.ne.s32.totalorder %s67, %s81
    %p83 = scmp.eq.s32.totalorder %s15, 0
    %p84 = por %p82, %p83
    %s85 = ssub.s32 %s9, %s16
    %p86 = scmp.eq.s32.totalorder %s85, 0
    %s88 = sadd.s32 %s87, 1
    %s89 = scalar_select %p86, %s87, %s88
    %p92 = pneg %p86
    %p93 = scmp.eq.s32.totalorder %s9, 3
    %p94 = por %p92, %p93
    %p95 = scmp.ne.s32.totalorder %s87, %s90
    %p96 = scmp.eq.s32.totalorder %s9, 0
    %p97 = por %p95, %p96
    %p98 = scmp.ne.s32.totalorder %s87, %s90
    %p99 = scmp.eq.s32.totalorder %s14, 3
    %p100 = por %p98, %p99
    %p101 = scmp.ne.s32.totalorder %s90, %s91
    %p102 = scmp.eq.s32.totalorder %s14, 0
    %p103 = por %p101, %p102
    %p104 = scmp.ne.s32.totalorder %s90, %s91
    %p105 = scmp.eq.s32.totalorder %s15, 3
    %p106 = por %p104, %p105
    %p108 = scmp.ne.s32.totalorder %s91, %s107
    %p109 = scmp.eq.s32.totalorder %s15, 0
    %p110 = por %p108, %p109
    %p111 = scmp.le.s32.totalorder 1, %s9
    %p112 = scmp.lt.s32.totalorder %s9, 5
    %p113 = pnand %p111, %p112
    %p114 = pneg %p113
    // Predicated region
    $region9: #{trace_lstm_forward.21} parent=5 // pred_check
      _
    $region10: #{trace_lstm_forward.21} parent=5 // pred_check_branch
      %116 = sbr.rel (%p113) target = $region12
    $region11: #{trace_lstm_forward.21} parent=5 // pred_region
      %s117 = ssub.s32 %s9, 1
      // Predicated region
      $region13: #{trace_lstm_forward.21} parent=11 // pred_check
        %p118 = pneg %p56
      $region14: #{trace_lstm_forward.21} parent=11 // pred_check_branch
        %120 = sbr.rel (%p118) target = $region16
      $region15: #{trace_lstm_forward.21} parent=11 // pred_region
        _
      $region16: #{trace_lstm_forward.21} parent=11 // pred_fallthru
        _
      // Predicated region
      $region17: #{trace_lstm_forward.21} parent=11 // pred_check
        %p121 = pneg %p77
      $region18: #{trace_lstm_forward.21} parent=11 // pred_check_branch
        %123 = sbr.rel (%p121) target = $region20
      $region19: #{trace_lstm_forward.21} parent=11 // pred_region
        _
      $region20: #{trace_lstm_forward.21} parent=11 // pred_fallthru
        _
    $region12: #{trace_lstm_forward.21} parent=5 // pred_fallthru
      _
    %p124 = scmp.lt.s32.totalorder %s9, 4
    // Predicated region
    $region21: #{trace_lstm_forward.21} parent=5 // pred_check
      %p125 = pneg %p124
    $region22: #{trace_lstm_forward.21} parent=5 // pred_check_branch
      %127 = sbr.rel (%p125) target = $region24
    $region23: #{trace_lstm_forward.21} parent=5 // pred_region
      // Predicated region
      $region25: #{trace_lstm_forward.21} parent=23 // pred_check
        %p128 = pneg %p29
      $region26: #{trace_lstm_forward.21} parent=23 // pred_check_branch
        %130 = sbr.rel (%p128) target = $region28
      $region27: #{trace_lstm_forward.21} parent=23 // pred_region
        %s131 = smul.u32 64, %s9
        %p132 = scmp.lt.s32.totalorder %s131, 255
        %s133 = scalar_select %p132, %s131, 255
        %s134 = smul.addr %s133, 3
        %s135 = smul.addr %s134, 8
        %s136 = scalar_lea.vmem %s0, %s135
        %s137 = smul.u32 64, %s9
      $region28: #{trace_lstm_forward.21} parent=23 // pred_fallthru
        _
    $region24: #{trace_lstm_forward.21} parent=5 // pred_fallthru
      _
    %p138 = scmp.le.s32.totalorder 1, %s9
    %p139 = scmp.lt.s32.totalorder %s9, 5
    %p140 = pnand %p138, %p139
    %p141 = pneg %p140
    // Predicated region
    $region29: #{trace_lstm_forward.21} parent=5 // pred_check
      _
    $region30: #{trace_lstm_forward.21} parent=5 // pred_check_branch
      %143 = sbr.rel (%p140) target = $region32
    $region31: #{trace_lstm_forward.21} parent=5 // pred_region
      %s144 = ssub.s32 %s9, 1
      %s145 = smul.u32 64, %s14
      %p146 = scmp.lt.s32.totalorder %s145, 255
      %s147 = scalar_select %p146, %s145, 255
      %s148 = smul.addr %s147, 3
      %s149 = smul.addr %s148, 8
      %s150 = scalar_lea.vmem %s0, %s149
      %p151 = pneg %p35
      %p152 = pneg %p32
      %p153 = pneg %p56
      %p154 = pneg %p53
      %p155 = pneg %p77
      %p156 = pneg %p74
      %p157 = pneg %p103
      %p158 = pneg %p100
      %s159 = smul.u32 64, %s14
      %p160 = scmp.lt.s32.totalorder %s159, 255
      %s161 = scalar_select %p160, %s159, 255
      %s162 = smul.addr %s161, 8
      %s163 = scalar_lea.vmem %s3, %s162
      %s164 = smul.u32 64, %s14
      %p165 = scmp.lt.s32.totalorder %s164, 255
      %s166 = scalar_select %p165, %s164, 255
      %s167 = smul.addr %s166, 3
      %s168 = smul.addr %s167, 8
      %s169 = scalar_lea.vmem %s0, %s168
      %s170 = smul.u32 64, %s14
      %s171 = smul.u32 64, %s14
      %p172 = scmp.lt.s32.totalorder %s171, 255
      %s173 = scalar_select %p172, %s171, 255
      %s174 = smul.addr %s173, 8
      %s175 = scalar_lea.vmem %s3, %s174
      %s176 = smul.u32 64, %s14
      %v177 = vld [vmem:[%s169] sm:$0xff]
      %v178 = vld [vmem:[%s169 + $0x8] sm:$0xff]
      %v179 = vld [vmem:[%s169 + $0x10] sm:$0xff]
      %v180 = vld [vmem:[%s169 + $0x18] sm:$0xff]
      %v181 = vld [vmem:[%s169 + $0x20] sm:$0xff]
      %v182 = vld [vmem:[%s169 + $0x28] sm:$0xff]
      %v183 = vld [vmem:[%s169 + $0x30] sm:$0xff]
      %v184 = vld [vmem:[%s169 + $0x38] sm:$0xff]
      %v185 = vld [vmem:[%s169 + $0x40] sm:$0xff]
      %v186 = vld [vmem:[%s169 + $0x48] sm:$0xff]
      %v187 = vld [vmem:[%s169 + $0x50] sm:$0xff]
      %v188 = vld [vmem:[%s169 + $0x58] sm:$0xff]
      %v189 = vld [vmem:[%s169 + $0x60] sm:$0xff]
      %v190 = vld [vmem:[%s169 + $0x68] sm:$0xff]
      %v191 = vld [vmem:[%s169 + $0x70] sm:$0xff]
      %v192 = vld [vmem:[%s169 + $0x78] sm:$0xff]
      %v193 = vld [vmem:[%s169 + $0x80] sm:$0xff]
      %v194 = vld [vmem:[%s169 + $0x88] sm:$0xff]
      %v195 = vld [vmem:[%s169 + $0x90] sm:$0xff]
      %v196 = vld [vmem:[%s169 + $0x98] sm:$0xff]
      %v197 = vld [vmem:[%s169 + $0xa0] sm:$0xff]
      %v198 = vld [vmem:[%s169 + $0xa8] sm:$0xff]
      %v199 = vld [vmem:[%s169 + $0xb0] sm:$0xff]
      %v200 = vld [vmem:[%s169 + $0xb8] sm:$0xff]
      %v201 = vld [vmem:[%s169 + $0xc0] sm:$0xff]
      %v202 = vld [vmem:[%s169 + $0xc8] sm:$0xff]
      %v203 = vld [vmem:[%s169 + $0xd0] sm:$0xff]
      %v204 = vld [vmem:[%s169 + $0xd8] sm:$0xff]
      %v205 = vld [vmem:[%s169 + $0xe0] sm:$0xff]
      %v206 = vld [vmem:[%s169 + $0xe8] sm:$0xff]
      %v207 = vld [vmem:[%s169 + $0xf0] sm:$0xff]
      %v208 = vld [vmem:[%s169 + $0xf8] sm:$0xff]
      %v209 = vld [vmem:[%s169 + $0x100] sm:$0xff]
      %v210 = vld [vmem:[%s169 + $0x108] sm:$0xff]
      %v211 = vld [vmem:[%s169 + $0x110] sm:$0xff]
      %v212 = vld [vmem:[%s169 + $0x118] sm:$0xff]
      %v213 = vld [vmem:[%s169 + $0x120] sm:$0xff]
      %v214 = vld [vmem:[%s169 + $0x128] sm:$0xff]
      %v215 = vld [vmem:[%s169 + $0x130] sm:$0xff]
      %v216 = vld [vmem:[%s169 + $0x138] sm:$0xff]
      %v217 = vld [vmem:[%s169 + $0x140] sm:$0xff]
      %v218 = vld [vmem:[%s169 + $0x148] sm:$0xff]
      %v219 = vld [vmem:[%s169 + $0x150] sm:$0xff]
      %v220 = vld [vmem:[%s169 + $0x158] sm:$0xff]
      %v221 = vld [vmem:[%s169 + $0x160] sm:$0xff]
      %v222 = vld [vmem:[%s169 + $0x168] sm:$0xff]
      %v223 = vld [vmem:[%s169 + $0x170] sm:$0xff]
      %v224 = vld [vmem:[%s169 + $0x178] sm:$0xff]
      %v225 = vld [vmem:[%s169 + $0x180] sm:$0xff]
      %v226 = vld [vmem:[%s169 + $0x188] sm:$0xff]
      %v227 = vld [vmem:[%s169 + $0x190] sm:$0xff]
      %v228 = vld [vmem:[%s169 + $0x198] sm:$0xff]
      %v229 = vld [vmem:[%s169 + $0x1a0] sm:$0xff]
      %v230 = vld [vmem:[%s169 + $0x1a8] sm:$0xff]
      %v231 = vld [vmem:[%s169 + $0x1b0] sm:$0xff]
      %v232 = vld [vmem:[%s169 + $0x1b8] sm:$0xff]
      %v233 = vld [vmem:[%s169 + $0x1c0] sm:$0xff]
      %v234 = vld [vmem:[%s169 + $0x1c8] sm:$0xff]
      %v235 = vld [vmem:[%s169 + $0x1d0] sm:$0xff]
      %v236 = vld [vmem:[%s169 + $0x1d8] sm:$0xff]
      %v237 = vld [vmem:[%s169 + $0x1e0] sm:$0xff]
      %v238 = vld [vmem:[%s169 + $0x1e8] sm:$0xff]
      %v239 = vld [vmem:[%s169 + $0x1f0] sm:$0xff]
      %v240 = vld [vmem:[%s169 + $0x1f8] sm:$0xff]
      %v241 = vld [vmem:[%s169 + $0x200] sm:$0xff]
      %v242 = vld [vmem:[%s169 + $0x208] sm:$0xff]
      %v243 = vld [vmem:[%s169 + $0x210] sm:$0xff]
      %v244 = vld [vmem:[%s169 + $0x218] sm:$0xff]
      %v245 = vld [vmem:[%s169 + $0x220] sm:$0xff]
      %v246 = vld [vmem:[%s169 + $0x228] sm:$0xff]
      %v247 = vld [vmem:[%s169 + $0x230] sm:$0xff]
      %v248 = vld [vmem:[%s169 + $0x238] sm:$0xff]
      %v249 = vld [vmem:[%s169 + $0x240] sm:$0xff]
      %v250 = vld [vmem:[%s169 + $0x248] sm:$0xff]
      %v251 = vld [vmem:[%s169 + $0x250] sm:$0xff]
      %v252 = vld [vmem:[%s169 + $0x258] sm:$0xff]
      %v253 = vld [vmem:[%s169 + $0x260] sm:$0xff]
      %v254 = vld [vmem:[%s169 + $0x268] sm:$0xff]
      %v255 = vld [vmem:[%s169 + $0x270] sm:$0xff]
      %v256 = vld [vmem:[%s169 + $0x278] sm:$0xff]
      %v257 = vld [vmem:[%s169 + $0x280] sm:$0xff]
      %v258 = vld [vmem:[%s169 + $0x288] sm:$0xff]
      %v259 = vld [vmem:[%s169 + $0x290] sm:$0xff]
      %v260 = vld [vmem:[%s169 + $0x298] sm:$0xff]
      %v261 = vld [vmem:[%s169 + $0x2a0] sm:$0xff]
      %v262 = vld [vmem:[%s169 + $0x2a8] sm:$0xff]
      %v263 = vld [vmem:[%s169 + $0x2b0] sm:$0xff]
      %v264 = vld [vmem:[%s169 + $0x2b8] sm:$0xff]
      %v265 = vld [vmem:[%s169 + $0x2c0] sm:$0xff]
      %v266 = vld [vmem:[%s169 + $0x2c8] sm:$0xff]
      %v267 = vld [vmem:[%s169 + $0x2d0] sm:$0xff]
      %v268 = vld [vmem:[%s169 + $0x2d8] sm:$0xff]
      %v269 = vld [vmem:[%s169 + $0x2e0] sm:$0xff]
      %v270 = vld [vmem:[%s169 + $0x2e8] sm:$0xff]
      %v271 = vld [vmem:[%s169 + $0x2f0] sm:$0xff]
      %v272 = vld [vmem:[%s169 + $0x2f8] sm:$0xff]
      %v273 = vld [vmem:[%s169 + $0x300] sm:$0xff]
      %v274 = vld [vmem:[%s169 + $0x308] sm:$0xff]
      %v275 = vld [vmem:[%s169 + $0x310] sm:$0xff]
      %v276 = vld [vmem:[%s169 + $0x318] sm:$0xff]
      %v277 = vld [vmem:[%s169 + $0x320] sm:$0xff]
      %v278 = vld [vmem:[%s169 + $0x328] sm:$0xff]
      %v279 = vld [vmem:[%s169 + $0x330] sm:$0xff]
      %v280 = vld [vmem:[%s169 + $0x338] sm:$0xff]
      %v281 = vld [vmem:[%s169 + $0x340] sm:$0xff]
      %v282 = vld [vmem:[%s169 + $0x348] sm:$0xff]
      %v283 = vld [vmem:[%s169 + $0x350] sm:$0xff]
      %v284 = vld [vmem:[%s169 + $0x358] sm:$0xff]
      %v285 = vld [vmem:[%s169 + $0x360] sm:$0xff]
      %v286 = vld [vmem:[%s169 + $0x368] sm:$0xff]
      %v287 = vld [vmem:[%s169 + $0x370] sm:$0xff]
      %v288 = vld [vmem:[%s169 + $0x378] sm:$0xff]
      %v289 = vld [vmem:[%s169 + $0x380] sm:$0xff]
      %v290 = vld [vmem:[%s169 + $0x388] sm:$0xff]
      %v291 = vld [vmem:[%s169 + $0x390] sm:$0xff]
      %v292 = vld [vmem:[%s169 + $0x398] sm:$0xff]
      %v293 = vld [vmem:[%s169 + $0x3a0] sm:$0xff]
      %v294 = vld [vmem:[%s169 + $0x3a8] sm:$0xff]
      %v295 = vld [vmem:[%s169 + $0x3b0] sm:$0xff]
      %v296 = vld [vmem:[%s169 + $0x3b8] sm:$0xff]
      %v297 = vld [vmem:[%s169 + $0x3c0] sm:$0xff]
      %v298 = vld [vmem:[%s169 + $0x3c8] sm:$0xff]
      %v299 = vld [vmem:[%s169 + $0x3d0] sm:$0xff]
      %v300 = vld [vmem:[%s169 + $0x3d8] sm:$0xff]
      %v301 = vld [vmem:[%s169 + $0x3e0] sm:$0xff]
      %v302 = vld [vmem:[%s169 + $0x3e8] sm:$0xff]
      %v303 = vld [vmem:[%s169 + $0x3f0] sm:$0xff]
      %v304 = vld [vmem:[%s169 + $0x3f8] sm:$0xff]
      %v305 = vld [vmem:[%s169 + $0x400] sm:$0xff]
      %v306 = vld [vmem:[%s169 + $0x408] sm:$0xff]
      %v307 = vld [vmem:[%s169 + $0x410] sm:$0xff]
      %v308 = vld [vmem:[%s169 + $0x418] sm:$0xff]
      %v309 = vld [vmem:[%s169 + $0x420] sm:$0xff]
      %v310 = vld [vmem:[%s169 + $0x428] sm:$0xff]
      %v311 = vld [vmem:[%s169 + $0x430] sm:$0xff]
      %v312 = vld [vmem:[%s169 + $0x438] sm:$0xff]
      %v313 = vld [vmem:[%s169 + $0x440] sm:$0xff]
      %v314 = vld [vmem:[%s169 + $0x448] sm:$0xff]
      %v315 = vld [vmem:[%s169 + $0x450] sm:$0xff]
      %v316 = vld [vmem:[%s169 + $0x458] sm:$0xff]
      %v317 = vld [vmem:[%s169 + $0x460] sm:$0xff]
      %v318 = vld [vmem:[%s169 + $0x468] sm:$0xff]
      %v319 = vld [vmem:[%s169 + $0x470] sm:$0xff]
      %v320 = vld [vmem:[%s169 + $0x478] sm:$0xff]
      %v321 = vld [vmem:[%s169 + $0x480] sm:$0xff]
      %v322 = vld [vmem:[%s169 + $0x488] sm:$0xff]
      %v323 = vld [vmem:[%s169 + $0x490] sm:$0xff]
      %v324 = vld [vmem:[%s169 + $0x498] sm:$0xff]
      %v325 = vld [vmem:[%s169 + $0x4a0] sm:$0xff]
      %v326 = vld [vmem:[%s169 + $0x4a8] sm:$0xff]
      %v327 = vld [vmem:[%s169 + $0x4b0] sm:$0xff]
      %v328 = vld [vmem:[%s169 + $0x4b8] sm:$0xff]
      %v329 = vld [vmem:[%s169 + $0x4c0] sm:$0xff]
      %v330 = vld [vmem:[%s169 + $0x4c8] sm:$0xff]
      %v331 = vld [vmem:[%s169 + $0x4d0] sm:$0xff]
      %v332 = vld [vmem:[%s169 + $0x4d8] sm:$0xff]
      %v333 = vld [vmem:[%s169 + $0x4e0] sm:$0xff]
      %v334 = vld [vmem:[%s169 + $0x4e8] sm:$0xff]
      %v335 = vld [vmem:[%s169 + $0x4f0] sm:$0xff]
      %v336 = vld [vmem:[%s169 + $0x4f8] sm:$0xff]
      %v337 = vld [vmem:[%s169 + $0x500] sm:$0xff]
      %v338 = vld [vmem:[%s169 + $0x508] sm:$0xff]
      %v339 = vld [vmem:[%s169 + $0x510] sm:$0xff]
      %v340 = vld [vmem:[%s169 + $0x518] sm:$0xff]
      %v341 = vld [vmem:[%s169 + $0x520] sm:$0xff]
      %v342 = vld [vmem:[%s169 + $0x528] sm:$0xff]
      %v343 = vld [vmem:[%s169 + $0x530] sm:$0xff]
      %v344 = vld [vmem:[%s169 + $0x538] sm:$0xff]
      %v345 = vld [vmem:[%s169 + $0x540] sm:$0xff]
      %v346 = vld [vmem:[%s169 + $0x548] sm:$0xff]
      %v347 = vld [vmem:[%s169 + $0x550] sm:$0xff]
      %v348 = vld [vmem:[%s169 + $0x558] sm:$0xff]
      %v349 = vld [vmem:[%s169 + $0x560] sm:$0xff]
      %v350 = vld [vmem:[%s169 + $0x568] sm:$0xff]
      %v351 = vld [vmem:[%s169 + $0x570] sm:$0xff]
      %v352 = vld [vmem:[%s169 + $0x578] sm:$0xff]
      %v353 = vld [vmem:[%s169 + $0x580] sm:$0xff]
      %v354 = vld [vmem:[%s169 + $0x588] sm:$0xff]
      %v355 = vld [vmem:[%s169 + $0x590] sm:$0xff]
      %v356 = vld [vmem:[%s169 + $0x598] sm:$0xff]
      %v357 = vld [vmem:[%s169 + $0x5a0] sm:$0xff]
      %v358 = vld [vmem:[%s169 + $0x5a8] sm:$0xff]
      %v359 = vld [vmem:[%s169 + $0x5b0] sm:$0xff]
      %v360 = vld [vmem:[%s169 + $0x5b8] sm:$0xff]
      %v361 = vld [vmem:[%s169 + $0x5c0] sm:$0xff]
      %v362 = vld [vmem:[%s169 + $0x5c8] sm:$0xff]
      %v363 = vld [vmem:[%s169 + $0x5d0] sm:$0xff]
      %v364 = vld [vmem:[%s169 + $0x5d8] sm:$0xff]
      %v365 = vld [vmem:[%s169 + $0x5e0] sm:$0xff]
      %v366 = vld [vmem:[%s169 + $0x5e8] sm:$0xff]
      %v367 = vld [vmem:[%s169 + $0x5f0] sm:$0xff]
      %v368 = vld [vmem:[%s169 + $0x5f8] sm:$0xff]
      %v369 = vld [vmem:[%s1] sm:$0xff]
      %v370 = vld [vmem:[%s1 + $0x8] sm:$0xff]
      %v371 = vld [vmem:[%s1 + $0x10] sm:$0xff]
      %v372 = vld [vmem:[%s1 + $0x18] sm:$0xff]
      %v373 = vld [vmem:[%s1 + $0x20] sm:$0xff]
      %v374 = vld [vmem:[%s1 + $0x28] sm:$0xff]
      %v375 = vld [vmem:[%s1 + $0x30] sm:$0xff]
      %v376 = vld [vmem:[%s1 + $0x38] sm:$0xff]
      %v377 = vld [vmem:[%s1 + $0x40] sm:$0xff]
      %v378 = vld [vmem:[%s1 + $0x48] sm:$0xff]
      %v379 = vld [vmem:[%s1 + $0x50] sm:$0xff]
      %v380 = vld [vmem:[%s1 + $0x58] sm:$0xff]
      %v381 = vld [vmem:[%s1 + $0x60] sm:$0xff]
      %v382 = vld [vmem:[%s1 + $0x68] sm:$0xff]
      %v383 = vld [vmem:[%s1 + $0x70] sm:$0xff]
      %v384 = vld [vmem:[%s1 + $0x78] sm:$0xff]
      %v385 = vld [vmem:[%s1 + $0x80] sm:$0xff]
      %v386 = vld [vmem:[%s1 + $0x88] sm:$0xff]
      %v387 = vld [vmem:[%s1 + $0x90] sm:$0xff]
      %v388 = vld [vmem:[%s1 + $0x98] sm:$0xff]
      %v389 = vld [vmem:[%s1 + $0xa0] sm:$0xff]
      %v390 = vld [vmem:[%s1 + $0xa8] sm:$0xff]
      %v391 = vld [vmem:[%s1 + $0xb0] sm:$0xff]
      %v392 = vld [vmem:[%s1 + $0xb8] sm:$0xff]
      %v393 = vld [vmem:[%s1 + $0xc0] sm:$0xff]
      %v394 = vld [vmem:[%s1 + $0xc8] sm:$0xff]
      %v395 = vld [vmem:[%s1 + $0xd0] sm:$0xff]
      %v396 = vld [vmem:[%s1 + $0xd8] sm:$0xff]
      %v397 = vld [vmem:[%s1 + $0xe0] sm:$0xff]
      %v398 = vld [vmem:[%s1 + $0xe8] sm:$0xff]
      %v399 = vld [vmem:[%s1 + $0xf0] sm:$0xff]
      %v400 = vld [vmem:[%s1 + $0xf8] sm:$0xff]
      %v401 = vld [vmem:[%s1 + $0x100] sm:$0xff]
      %v402 = vld [vmem:[%s1 + $0x108] sm:$0xff]
      %v403 = vld [vmem:[%s1 + $0x110] sm:$0xff]
      %v404 = vld [vmem:[%s1 + $0x118] sm:$0xff]
      %v405 = vld [vmem:[%s2] sm:$0x1]
      %v407 = vperm.slane %v405, 0
      %vm409 = vcmask 261120
      %v411 = vsel %vm409, %v179, 0
      %v414 = vsel %vm409, %v182, 0
      %v417 = vsel %vm409, %v185, 0
      %v420 = vsel %vm409, %v188, 0
      %v423 = vsel %vm409, %v191, 0
      %v426 = vsel %vm409, %v194, 0
      %v429 = vsel %vm409, %v197, 0
      %v432 = vsel %vm409, %v200, 0
      %v435 = vsel %vm409, %v203, 0
      %v438 = vsel %vm409, %v206, 0
      %v441 = vsel %vm409, %v209, 0
      %v444 = vsel %vm409, %v212, 0
      %v447 = vsel %vm409, %v215, 0
      %v450 = vsel %vm409, %v218, 0
      %v453 = vsel %vm409, %v221, 0
      %v456 = vsel %vm409, %v224, 0
      %v459 = vsel %vm409, %v227, 0
      %v462 = vsel %vm409, %v230, 0
      %v465 = vsel %vm409, %v233, 0
      %v468 = vsel %vm409, %v236, 0
      %v471 = vsel %vm409, %v239, 0
      %v474 = vsel %vm409, %v242, 0
      %v477 = vsel %vm409, %v245, 0
      %v480 = vsel %vm409, %v248, 0
      %v483 = vsel %vm409, %v251, 0
      %v486 = vsel %vm409, %v254, 0
      %v489 = vsel %vm409, %v257, 0
      %v492 = vsel %vm409, %v260, 0
      %v495 = vsel %vm409, %v263, 0
      %v498 = vsel %vm409, %v266, 0
      %v501 = vsel %vm409, %v269, 0
      %v504 = vsel %vm409, %v272, 0
      %v507 = vsel %vm409, %v275, 0
      %v510 = vsel %vm409, %v278, 0
      %v513 = vsel %vm409, %v281, 0
      %v516 = vsel %vm409, %v284, 0
      %v519 = vsel %vm409, %v287, 0
      %v522 = vsel %vm409, %v290, 0
      %v525 = vsel %vm409, %v293, 0
      %v528 = vsel %vm409, %v296, 0
      %v531 = vsel %vm409, %v299, 0
      %v534 = vsel %vm409, %v302, 0
      %v537 = vsel %vm409, %v305, 0
      %v540 = vsel %vm409, %v308, 0
      %v543 = vsel %vm409, %v311, 0
      %v546 = vsel %vm409, %v314, 0
      %v549 = vsel %vm409, %v317, 0
      %v552 = vsel %vm409, %v320, 0
      %v555 = vsel %vm409, %v323, 0
      %v558 = vsel %vm409, %v326, 0
      %v561 = vsel %vm409, %v329, 0
      %v564 = vsel %vm409, %v332, 0
      %v567 = vsel %vm409, %v335, 0
      %v570 = vsel %vm409, %v338, 0
      %v573 = vsel %vm409, %v341, 0
      %v576 = vsel %vm409, %v344, 0
      %v579 = vsel %vm409, %v347, 0
      %v582 = vsel %vm409, %v350, 0
      %v585 = vsel %vm409, %v353, 0
      %v588 = vsel %vm409, %v356, 0
      %v591 = vsel %vm409, %v359, 0
      %v594 = vsel %vm409, %v362, 0
      %v597 = vsel %vm409, %v365, 0
      %v600 = vsel %vm409, %v368, 0
      %602 = vmatpush.msra.mxu0 %v384
      %603 = vmatpush.msra.mxu0 %v383
      %604 = vmatpush.msra.mxu0 %v382
      %605 = vmatpush.msra.mxu0 %v381
      %606 = vmatpush.msra.mxu0 %v380
      %607 = vmatpush.msra.mxu0 %v379
      %608 = vmatpush.msra.mxu0 %v378
      %609 = vmatpush.msra.mxu0 %v377
      %610 = vmatpush.msra.mxu0 %v376
      %611 = vmatpush.msra.mxu0 %v375
      %612 = vmatpush.msra.mxu0 %v374
      %613 = vmatpush.msra.mxu0 %v373
      %614 = vmatpush.msra.mxu0 %v372
      %615 = vmatpush.msra.mxu0 %v371
      %616 = vmatpush.msra.mxu0 %v370
      %617 = vmatpush.msra.mxu0 %v369
      %618 = vmatmul.f32.gmra.mxu0 %v177
      %v619 = vpop.f32.mrf.mxu0
      %v620 = vadd.f32 %v407, %v619
      %621 = vmatmul.f32.gmra.mxu0 %v180
      %v622 = vpop.f32.mrf.mxu0
      %v623 = vadd.f32 %v407, %v622
      %624 = vmatmul.f32.gmra.mxu0 %v183
      %v625 = vpop.f32.mrf.mxu0
      %v626 = vadd.f32 %v407, %v625
      %627 = vmatmul.f32.gmra.mxu0 %v186
      %v628 = vpop.f32.mrf.mxu0
      %v629 = vadd.f32 %v407, %v628
      %630 = vmatmul.f32.gmra.mxu0 %v189
      %v631 = vpop.f32.mrf.mxu0
      %v632 = vadd.f32 %v407, %v631
      %633 = vmatmul.f32.gmra.mxu0 %v192
      %v634 = vpop.f32.mrf.mxu0
      %v635 = vadd.f32 %v407, %v634
      %636 = vmatmul.f32.gmra.mxu0 %v195
      %v637 = vpop.f32.mrf.mxu0
      %v638 = vadd.f32 %v407, %v637
      %639 = vmatmul.f32.gmra.mxu0 %v198
      %v640 = vpop.f32.mrf.mxu0
      %v641 = vadd.f32 %v407, %v640
      %642 = vmatmul.f32.gmra.mxu0 %v201
      %v643 = vpop.f32.mrf.mxu0
      %v644 = vadd.f32 %v407, %v643
      %645 = vmatmul.f32.gmra.mxu0 %v204
      %v646 = vpop.f32.mrf.mxu0
      %v647 = vadd.f32 %v407, %v646
      %648 = vmatmul.f32.gmra.mxu0 %v207
      %v649 = vpop.f32.mrf.mxu0
      %v650 = vadd.f32 %v407, %v649
      %651 = vmatmul.f32.gmra.mxu0 %v210
      %v652 = vpop.f32.mrf.mxu0
      %v653 = vadd.f32 %v407, %v652
      %654 = vmatmul.f32.gmra.mxu0 %v213
      %v655 = vpop.f32.mrf.mxu0
      %v656 = vadd.f32 %v407, %v655
      %657 = vmatmul.f32.gmra.mxu0 %v216
      %v658 = vpop.f32.mrf.mxu0
      %v659 = vadd.f32 %v407, %v658
      %660 = vmatmul.f32.gmra.mxu0 %v219
      %v661 = vpop.f32.mrf.mxu0
      %v662 = vadd.f32 %v407, %v661
      %663 = vmatmul.f32.gmra.mxu0 %v222
      %v664 = vpop.f32.mrf.mxu0
      %v665 = vadd.f32 %v407, %v664
      %666 = vmatmul.f32.gmra.mxu0 %v225
      %v667 = vpop.f32.mrf.mxu0
      %v668 = vadd.f32 %v407, %v667
      %669 = vmatmul.f32.gmra.mxu0 %v228
      %v670 = vpop.f32.mrf.mxu0
      %v671 = vadd.f32 %v407, %v670
      %672 = vmatmul.f32.gmra.mxu0 %v231
      %v673 = vpop.f32.mrf.mxu0
      %v674 = vadd.f32 %v407, %v673
      %675 = vmatmul.f32.gmra.mxu0 %v234
      %v676 = vpop.f32.mrf.mxu0
      %v677 = vadd.f32 %v407, %v676
      %678 = vmatmul.f32.gmra.mxu0 %v237
      %v679 = vpop.f32.mrf.mxu0
      %v680 = vadd.f32 %v407, %v679
      %681 = vmatmul.f32.gmra.mxu0 %v240
      %v682 = vpop.f32.mrf.mxu0
      %v683 = vadd.f32 %v407, %v682
      %684 = vmatmul.f32.gmra.mxu0 %v243
      %v685 = vpop.f32.mrf.mxu0
      %v686 = vadd.f32 %v407, %v685
      %687 = vmatmul.f32.gmra.mxu0 %v246
      %v688 = vpop.f32.mrf.mxu0
      %v689 = vadd.f32 %v407, %v688
      %690 = vmatmul.f32.gmra.mxu0 %v249
      %v691 = vpop.f32.mrf.mxu0
      %v692 = vadd.f32 %v407, %v691
      %693 = vmatmul.f32.gmra.mxu0 %v252
      %v694 = vpop.f32.mrf.mxu0
      %v695 = vadd.f32 %v407, %v694
      %696 = vmatmul.f32.gmra.mxu0 %v255
      %v697 = vpop.f32.mrf.mxu0
      %v698 = vadd.f32 %v407, %v697
      %699 = vmatmul.f32.gmra.mxu0 %v258
      %v700 = vpop.f32.mrf.mxu0
      %v701 = vadd.f32 %v407, %v700
      %702 = vmatmul.f32.gmra.mxu0 %v261
      %v703 = vpop.f32.mrf.mxu0
      %v704 = vadd.f32 %v407, %v703
      %705 = vmatmul.f32.gmra.mxu0 %v264
      %v706 = vpop.f32.mrf.mxu0
      %v707 = vadd.f32 %v407, %v706
      %708 = vmatmul.f32.gmra.mxu0 %v267
      %v709 = vpop.f32.mrf.mxu0
      %v710 = vadd.f32 %v407, %v709
      %711 = vmatmul.f32.gmra.mxu0 %v270
      %v712 = vpop.f32.mrf.mxu0
      %v713 = vadd.f32 %v407, %v712
      %714 = vmatmul.f32.gmra.mxu0 %v273
      %v715 = vpop.f32.mrf.mxu0
      %v716 = vadd.f32 %v407, %v715
      %717 = vmatmul.f32.gmra.mxu0 %v276
      %v718 = vpop.f32.mrf.mxu0
      %v719 = vadd.f32 %v407, %v718
      %720 = vmatmul.f32.gmra.mxu0 %v279
      %v721 = vpop.f32.mrf.mxu0
      %v722 = vadd.f32 %v407, %v721
      %723 = vmatmul.f32.gmra.mxu0 %v282
      %v724 = vpop.f32.mrf.mxu0
      %v725 = vadd.f32 %v407, %v724
      %726 = vmatmul.f32.gmra.mxu0 %v285
      %v727 = vpop.f32.mrf.mxu0
      %v728 = vadd.f32 %v407, %v727
      %729 = vmatmul.f32.gmra.mxu0 %v288
      %v730 = vpop.f32.mrf.mxu0
      %v731 = vadd.f32 %v407, %v730
      %732 = vmatmul.f32.gmra.mxu0 %v291
      %v733 = vpop.f32.mrf.mxu0
      %v734 = vadd.f32 %v407, %v733
      %735 = vmatmul.f32.gmra.mxu0 %v294
      %v736 = vpop.f32.mrf.mxu0
      %v737 = vadd.f32 %v407, %v736
      %738 = vmatmul.f32.gmra.mxu0 %v297
      %v739 = vpop.f32.mrf.mxu0
      %v740 = vadd.f32 %v407, %v739
      %741 = vmatmul.f32.gmra.mxu0 %v300
      %v742 = vpop.f32.mrf.mxu0
      %v743 = vadd.f32 %v407, %v742
      %744 = vmatmul.f32.gmra.mxu0 %v303
      %v745 = vpop.f32.mrf.mxu0
      %v746 = vadd.f32 %v407, %v745
      %747 = vmatmul.f32.gmra.mxu0 %v306
      %v748 = vpop.f32.mrf.mxu0
      %v749 = vadd.f32 %v407, %v748
      %750 = vmatmul.f32.gmra.mxu0 %v309
      %v751 = vpop.f32.mrf.mxu0
      %v752 = vadd.f32 %v407, %v751
      %753 = vmatmul.f32.gmra.mxu0 %v312
      %v754 = vpop.f32.mrf.mxu0
      %v755 = vadd.f32 %v407, %v754
      %756 = vmatmul.f32.gmra.mxu0 %v315
      %v757 = vpop.f32.mrf.mxu0
      %v758 = vadd.f32 %v407, %v757
      %759 = vmatmul.f32.gmra.mxu0 %v318
      %v760 = vpop.f32.mrf.mxu0
      %v761 = vadd.f32 %v407, %v760
      %762 = vmatmul.f32.gmra.mxu0 %v321
      %v763 = vpop.f32.mrf.mxu0
      %v764 = vadd.f32 %v407, %v763
      %765 = vmatmul.f32.gmra.mxu0 %v324
      %v766 = vpop.f32.mrf.mxu0
      %v767 = vadd.f32 %v407, %v766
      %768 = vmatmul.f32.gmra.mxu0 %v327
      %v769 = vpop.f32.mrf.mxu0
      %v770 = vadd.f32 %v407, %v769
      %771 = vmatmul.f32.gmra.mxu0 %v330
      %v772 = vpop.f32.mrf.mxu0
      %v773 = vadd.f32 %v407, %v772
      %774 = vmatmul.f32.gmra.mxu0 %v333
      %v775 = vpop.f32.mrf.mxu0
      %v776 = vadd.f32 %v407, %v775
      %777 = vmatmul.f32.gmra.mxu0 %v336
      %v778 = vpop.f32.mrf.mxu0
      %v779 = vadd.f32 %v407, %v778
      %780 = vmatmul.f32.gmra.mxu0 %v339
      %v781 = vpop.f32.mrf.mxu0
      %v782 = vadd.f32 %v407, %v781
      %783 = vmatmul.f32.gmra.mxu0 %v342
      %v784 = vpop.f32.mrf.mxu0
      %v785 = vadd.f32 %v407, %v784
      %786 = vmatmul.f32.gmra.mxu0 %v345
      %v787 = vpop.f32.mrf.mxu0
      %v788 = vadd.f32 %v407, %v787
      %789 = vmatmul.f32.gmra.mxu0 %v348
      %v790 = vpop.f32.mrf.mxu0
      %v791 = vadd.f32 %v407, %v790
      %792 = vmatmul.f32.gmra.mxu0 %v351
      %v793 = vpop.f32.mrf.mxu0
      %v794 = vadd.f32 %v407, %v793
      %795 = vmatmul.f32.gmra.mxu0 %v354
      %v796 = vpop.f32.mrf.mxu0
      %v797 = vadd.f32 %v407, %v796
      %798 = vmatmul.f32.gmra.mxu0 %v357
      %v799 = vpop.f32.mrf.mxu0
      %v800 = vadd.f32 %v407, %v799
      %801 = vmatmul.f32.gmra.mxu0 %v360
      %v802 = vpop.f32.mrf.mxu0
      %v803 = vadd.f32 %v407, %v802
      %804 = vmatmul.f32.gmra.mxu0 %v363
      %v805 = vpop.f32.mrf.mxu0
      %v806 = vadd.f32 %v407, %v805
      %807 = vmatmul.f32.gmra.mxu0 %v366
      %v808 = vpop.f32.mrf.mxu0
      %v809 = vadd.f32 %v407, %v808
      %810 = vdwg.mxu0
      %811 = vmatpush.msra.mxu0 %v400
      %812 = vmatpush.msra.mxu0 %v399
      %813 = vmatpush.msra.mxu0 %v398
      %814 = vmatpush.msra.mxu0 %v397
      %815 = vmatpush.msra.mxu0 %v396
      %816 = vmatpush.msra.mxu0 %v395
      %817 = vmatpush.msra.mxu0 %v394
      %818 = vmatpush.msra.mxu0 %v393
      %819 = vmatpush.msra.mxu0 %v392
      %820 = vmatpush.msra.mxu0 %v391
      %821 = vmatpush.msra.mxu0 %v390
      %822 = vmatpush.msra.mxu0 %v389
      %823 = vmatpush.msra.mxu0 %v388
      %824 = vmatpush.msra.mxu0 %v387
      %825 = vmatpush.msra.mxu0 %v386
      %826 = vmatpush.msra.mxu0 %v385
      %827 = vmatmul.f32.gmra.mxu0 %v178
      %v828 = vpop.f32.mrf.mxu0
      %v829 = vadd.f32 %v620, %v828
      %830 = vmatmul.f32.gmra.mxu0 %v181
      %v831 = vpop.f32.mrf.mxu0
      %v832 = vadd.f32 %v623, %v831
      %833 = vmatmul.f32.gmra.mxu0 %v184
      %v834 = vpop.f32.mrf.mxu0
      %v835 = vadd.f32 %v626, %v834
      %836 = vmatmul.f32.gmra.mxu0 %v187
      %v837 = vpop.f32.mrf.mxu0
      %v838 = vadd.f32 %v629, %v837
      %839 = vmatmul.f32.gmra.mxu0 %v190
      %v840 = vpop.f32.mrf.mxu0
      %v841 = vadd.f32 %v632, %v840
      %842 = vmatmul.f32.gmra.mxu0 %v193
      %v843 = vpop.f32.mrf.mxu0
      %v844 = vadd.f32 %v635, %v843
      %845 = vmatmul.f32.gmra.mxu0 %v196
      %v846 = vpop.f32.mrf.mxu0
      %v847 = vadd.f32 %v638, %v846
      %848 = vmatmul.f32.gmra.mxu0 %v199
      %v849 = vpop.f32.mrf.mxu0
      %v850 = vadd.f32 %v641, %v849
      %851 = vmatmul.f32.gmra.mxu0 %v202
      %v852 = vpop.f32.mrf.mxu0
      %v853 = vadd.f32 %v644, %v852
      %854 = vmatmul.f32.gmra.mxu0 %v205
      %v855 = vpop.f32.mrf.mxu0
      %v856 = vadd.f32 %v647, %v855
      %857 = vmatmul.f32.gmra.mxu0 %v208
      %v858 = vpop.f32.mrf.mxu0
      %v859 = vadd.f32 %v650, %v858
      %860 = vmatmul.f32.gmra.mxu0 %v211
      %v861 = vpop.f32.mrf.mxu0
      %v862 = vadd.f32 %v653, %v861
      %863 = vmatmul.f32.gmra.mxu0 %v214
      %v864 = vpop.f32.mrf.mxu0
      %v865 = vadd.f32 %v656, %v864
      %866 = vmatmul.f32.gmra.mxu0 %v217
      %v867 = vpop.f32.mrf.mxu0
      %v868 = vadd.f32 %v659, %v867
      %869 = vmatmul.f32.gmra.mxu0 %v220
      %v870 = vpop.f32.mrf.mxu0
      %v871 = vadd.f32 %v662, %v870
      %872 = vmatmul.f32.gmra.mxu0 %v223
      %v873 = vpop.f32.mrf.mxu0
      %v874 = vadd.f32 %v665, %v873
      %875 = vmatmul.f32.gmra.mxu0 %v226
      %v876 = vpop.f32.mrf.mxu0
      %v877 = vadd.f32 %v668, %v876
      %878 = vmatmul.f32.gmra.mxu0 %v229
      %v879 = vpop.f32.mrf.mxu0
      %v880 = vadd.f32 %v671, %v879
      %881 = vmatmul.f32.gmra.mxu0 %v232
      %v882 = vpop.f32.mrf.mxu0
      %v883 = vadd.f32 %v674, %v882
      %884 = vmatmul.f32.gmra.mxu0 %v235
      %v885 = vpop.f32.mrf.mxu0
      %v886 = vadd.f32 %v677, %v885
      %887 = vmatmul.f32.gmra.mxu0 %v238
      %v888 = vpop.f32.mrf.mxu0
      %v889 = vadd.f32 %v680, %v888
      %890 = vmatmul.f32.gmra.mxu0 %v241
      %v891 = vpop.f32.mrf.mxu0
      %v892 = vadd.f32 %v683, %v891
      %893 = vmatmul.f32.gmra.mxu0 %v244
      %v894 = vpop.f32.mrf.mxu0
      %v895 = vadd.f32 %v686, %v894
      %896 = vmatmul.f32.gmra.mxu0 %v247
      %v897 = vpop.f32.mrf.mxu0
      %v898 = vadd.f32 %v689, %v897
      %899 = vmatmul.f32.gmra.mxu0 %v250
      %v900 = vpop.f32.mrf.mxu0
      %v901 = vadd.f32 %v692, %v900
      %902 = vmatmul.f32.gmra.mxu0 %v253
      %v903 = vpop.f32.mrf.mxu0
      %v904 = vadd.f32 %v695, %v903
      %905 = vmatmul.f32.gmra.mxu0 %v256
      %v906 = vpop.f32.mrf.mxu0
      %v907 = vadd.f32 %v698, %v906
      %908 = vmatmul.f32.gmra.mxu0 %v259
      %v909 = vpop.f32.mrf.mxu0
      %v910 = vadd.f32 %v701, %v909
      %911 = vmatmul.f32.gmra.mxu0 %v262
      %v912 = vpop.f32.mrf.mxu0
      %v913 = vadd.f32 %v704, %v912
      %914 = vmatmul.f32.gmra.mxu0 %v265
      %v915 = vpop.f32.mrf.mxu0
      %v916 = vadd.f32 %v707, %v915
      %917 = vmatmul.f32.gmra.mxu0 %v268
      %v918 = vpop.f32.mrf.mxu0
      %v919 = vadd.f32 %v710, %v918
      %920 = vmatmul.f32.gmra.mxu0 %v271
      %v921 = vpop.f32.mrf.mxu0
      %v922 = vadd.f32 %v713, %v921
      %923 = vmatmul.f32.gmra.mxu0 %v274
      %v924 = vpop.f32.mrf.mxu0
      %v925 = vadd.f32 %v716, %v924
      %926 = vmatmul.f32.gmra.mxu0 %v277
      %v927 = vpop.f32.mrf.mxu0
      %v928 = vadd.f32 %v719, %v927
      %929 = vmatmul.f32.gmra.mxu0 %v280
      %v930 = vpop.f32.mrf.mxu0
      %v931 = vadd.f32 %v722, %v930
      %932 = vmatmul.f32.gmra.mxu0 %v283
      %v933 = vpop.f32.mrf.mxu0
      %v934 = vadd.f32 %v725, %v933
      %935 = vmatmul.f32.gmra.mxu0 %v286
      %v936 = vpop.f32.mrf.mxu0
      %v937 = vadd.f32 %v728, %v936
      %938 = vmatmul.f32.gmra.mxu0 %v289
      %v939 = vpop.f32.mrf.mxu0
      %v940 = vadd.f32 %v731, %v939
      %941 = vmatmul.f32.gmra.mxu0 %v292
      %v942 = vpop.f32.mrf.mxu0
      %v943 = vadd.f32 %v734, %v942
      %944 = vmatmul.f32.gmra.mxu0 %v295
      %v945 = vpop.f32.mrf.mxu0
      %v946 = vadd.f32 %v737, %v945
      %947 = vmatmul.f32.gmra.mxu0 %v298
      %v948 = vpop.f32.mrf.mxu0
      %v949 = vadd.f32 %v740, %v948
      %950 = vmatmul.f32.gmra.mxu0 %v301
      %v951 = vpop.f32.mrf.mxu0
      %v952 = vadd.f32 %v743, %v951
      %953 = vmatmul.f32.gmra.mxu0 %v304
      %v954 = vpop.f32.mrf.mxu0
      %v955 = vadd.f32 %v746, %v954
      %956 = vmatmul.f32.gmra.mxu0 %v307
      %v957 = vpop.f32.mrf.mxu0
      %v958 = vadd.f32 %v749, %v957
      %959 = vmatmul.f32.gmra.mxu0 %v310
      %v960 = vpop.f32.mrf.mxu0
      %v961 = vadd.f32 %v752, %v960
      %962 = vmatmul.f32.gmra.mxu0 %v313
      %v963 = vpop.f32.mrf.mxu0
      %v964 = vadd.f32 %v755, %v963
      %965 = vmatmul.f32.gmra.mxu0 %v316
      %v966 = vpop.f32.mrf.mxu0
      %v967 = vadd.f32 %v758, %v966
      %968 = vmatmul.f32.gmra.mxu0 %v319
      %v969 = vpop.f32.mrf.mxu0
      %v970 = vadd.f32 %v761, %v969
      %971 = vmatmul.f32.gmra.mxu0 %v322
      %v972 = vpop.f32.mrf.mxu0
      %v973 = vadd.f32 %v764, %v972
      %974 = vmatmul.f32.gmra.mxu0 %v325
      %v975 = vpop.f32.mrf.mxu0
      %v976 = vadd.f32 %v767, %v975
      %977 = vmatmul.f32.gmra.mxu0 %v328
      %v978 = vpop.f32.mrf.mxu0
      %v979 = vadd.f32 %v770, %v978
      %980 = vmatmul.f32.gmra.mxu0 %v331
      %v981 = vpop.f32.mrf.mxu0
      %v982 = vadd.f32 %v773, %v981
      %983 = vmatmul.f32.gmra.mxu0 %v334
      %v984 = vpop.f32.mrf.mxu0
      %v985 = vadd.f32 %v776, %v984
      %986 = vmatmul.f32.gmra.mxu0 %v337
      %v987 = vpop.f32.mrf.mxu0
      %v988 = vadd.f32 %v779, %v987
      %989 = vmatmul.f32.gmra.mxu0 %v340
      %v990 = vpop.f32.mrf.mxu0
      %v991 = vadd.f32 %v782, %v990
      %992 = vmatmul.f32.gmra.mxu0 %v343
      %v993 = vpop.f32.mrf.mxu0
      %v994 = vadd.f32 %v785, %v993
      %995 = vmatmul.f32.gmra.mxu0 %v346
      %v996 = vpop.f32.mrf.mxu0
      %v997 = vadd.f32 %v788, %v996
      %998 = vmatmul.f32.gmra.mxu0 %v349
      %v999 = vpop.f32.mrf.mxu0
      %v1000 = vadd.f32 %v791, %v999
      %1001 = vmatmul.f32.gmra.mxu0 %v352
      %v1002 = vpop.f32.mrf.mxu0
      %v1003 = vadd.f32 %v794, %v1002
      %1004 = vmatmul.f32.gmra.mxu0 %v355
      %v1005 = vpop.f32.mrf.mxu0
      %v1006 = vadd.f32 %v797, %v1005
      %1007 = vmatmul.f32.gmra.mxu0 %v358
      %v1008 = vpop.f32.mrf.mxu0
      %v1009 = vadd.f32 %v800, %v1008
      %1010 = vmatmul.f32.gmra.mxu0 %v361
      %v1011 = vpop.f32.mrf.mxu0
      %v1012 = vadd.f32 %v803, %v1011
      %1013 = vmatmul.f32.gmra.mxu0 %v364
      %v1014 = vpop.f32.mrf.mxu0
      %v1015 = vadd.f32 %v806, %v1014
      %1016 = vmatmul.f32.gmra.mxu0 %v367
      %v1017 = vpop.f32.mrf.mxu0
      %v1018 = vadd.f32 %v809, %v1017
      %1019 = vdwg.mxu0
      %1020 = vmatpush.msra.mxu0 0.0
      %1021 = vmatpush.msra.mxu0 0.0
      %1022 = vmatpush.msra.mxu0 0.0
      %1023 = vmatpush.msra.mxu0 0.0
      %1024 = vmatpush.msra.mxu0 0.0
      %1025 = vmatpush.msra.mxu0 0.0
      %1026 = vmatpush.msra.mxu0 0.0
      %1027 = vmatpush.msra.mxu0 0.0
      %1028 = vmatpush.msra.mxu0 0.0
      %1029 = vmatpush.msra.mxu0 0.0
      %1030 = vmatpush.msra.mxu0 0.0
      %1031 = vmatpush.msra.mxu0 0.0
      %1032 = vmatpush.msra.mxu0 %v404
      %1033 = vmatpush.msra.mxu0 %v403
      %1034 = vmatpush.msra.mxu0 %v402
      %1035 = vmatpush.msra.mxu0 %v401
      %1036 = vmatmul.f32.gmra.mxu0 %v411
      %v1037 = vpop.f32.mrf.mxu0
      %v1038 = vadd.f32 %v829, %v1037
      %1039 = vmatmul.f32.gmra.mxu0 %v414
      %v1040 = vpop.f32.mrf.mxu0
      %v1041 = vadd.f32 %v832, %v1040
      %1042 = vmatmul.f32.gmra.mxu0 %v417
      %v1043 = vpop.f32.mrf.mxu0
      %v1044 = vadd.f32 %v835, %v1043
      %1045 = vmatmul.f32.gmra.mxu0 %v420
      %v1046 = vpop.f32.mrf.mxu0
      %v1047 = vadd.f32 %v838, %v1046
      %1048 = vmatmul.f32.gmra.mxu0 %v423
      %v1049 = vpop.f32.mrf.mxu0
      %v1050 = vadd.f32 %v841, %v1049
      %1051 = vmatmul.f32.gmra.mxu0 %v426
      %v1052 = vpop.f32.mrf.mxu0
      %v1053 = vadd.f32 %v844, %v1052
      %1054 = vmatmul.f32.gmra.mxu0 %v429
      %v1055 = vpop.f32.mrf.mxu0
      %v1056 = vadd.f32 %v847, %v1055
      %1057 = vmatmul.f32.gmra.mxu0 %v432
      %v1058 = vpop.f32.mrf.mxu0
      %v1059 = vadd.f32 %v850, %v1058
      %1060 = vmatmul.f32.gmra.mxu0 %v435
      %v1061 = vpop.f32.mrf.mxu0
      %v1062 = vadd.f32 %v853, %v1061
      %1063 = vmatmul.f32.gmra.mxu0 %v438
      %v1064 = vpop.f32.mrf.mxu0
      %v1065 = vadd.f32 %v856, %v1064
      %1066 = vmatmul.f32.gmra.mxu0 %v441
      %v1067 = vpop.f32.mrf.mxu0
      %v1068 = vadd.f32 %v859, %v1067
      %1069 = vmatmul.f32.gmra.mxu0 %v444
      %v1070 = vpop.f32.mrf.mxu0
      %v1071 = vadd.f32 %v862, %v1070
      %1072 = vmatmul.f32.gmra.mxu0 %v447
      %v1073 = vpop.f32.mrf.mxu0
      %v1074 = vadd.f32 %v865, %v1073
      %1075 = vmatmul.f32.gmra.mxu0 %v450
      %v1076 = vpop.f32.mrf.mxu0
      %v1077 = vadd.f32 %v868, %v1076
      %1078 = vmatmul.f32.gmra.mxu0 %v453
      %v1079 = vpop.f32.mrf.mxu0
      %v1080 = vadd.f32 %v871, %v1079
      %1081 = vmatmul.f32.gmra.mxu0 %v456
      %v1082 = vpop.f32.mrf.mxu0
      %v1083 = vadd.f32 %v874, %v1082
      %1084 = vmatmul.f32.gmra.mxu0 %v459
      %v1085 = vpop.f32.mrf.mxu0
      %v1086 = vadd.f32 %v877, %v1085
      %1087 = vmatmul.f32.gmra.mxu0 %v462
      %v1088 = vpop.f32.mrf.mxu0
      %v1089 = vadd.f32 %v880, %v1088
      %1090 = vmatmul.f32.gmra.mxu0 %v465
      %v1091 = vpop.f32.mrf.mxu0
      %v1092 = vadd.f32 %v883, %v1091
      %1093 = vmatmul.f32.gmra.mxu0 %v468
      %v1094 = vpop.f32.mrf.mxu0
      %v1095 = vadd.f32 %v886, %v1094
      %1096 = vmatmul.f32.gmra.mxu0 %v471
      %v1097 = vpop.f32.mrf.mxu0
      %v1098 = vadd.f32 %v889, %v1097
      %1099 = vmatmul.f32.gmra.mxu0 %v474
      %v1100 = vpop.f32.mrf.mxu0
      %v1101 = vadd.f32 %v892, %v1100
      %1102 = vmatmul.f32.gmra.mxu0 %v477
      %v1103 = vpop.f32.mrf.mxu0
      %v1104 = vadd.f32 %v895, %v1103
      %1105 = vmatmul.f32.gmra.mxu0 %v480
      %v1106 = vpop.f32.mrf.mxu0
      %v1107 = vadd.f32 %v898, %v1106
      %1108 = vmatmul.f32.gmra.mxu0 %v483
      %v1109 = vpop.f32.mrf.mxu0
      %v1110 = vadd.f32 %v901, %v1109
      %1111 = vmatmul.f32.gmra.mxu0 %v486
      %v1112 = vpop.f32.mrf.mxu0
      %v1113 = vadd.f32 %v904, %v1112
      %1114 = vmatmul.f32.gmra.mxu0 %v489
      %v1115 = vpop.f32.mrf.mxu0
      %v1116 = vadd.f32 %v907, %v1115
      %1117 = vmatmul.f32.gmra.mxu0 %v492
      %v1118 = vpop.f32.mrf.mxu0
      %v1119 = vadd.f32 %v910, %v1118
      %1120 = vmatmul.f32.gmra.mxu0 %v495
      %v1121 = vpop.f32.mrf.mxu0
      %v1122 = vadd.f32 %v913, %v1121
      %1123 = vmatmul.f32.gmra.mxu0 %v498
      %v1124 = vpop.f32.mrf.mxu0
      %v1125 = vadd.f32 %v916, %v1124
      %1126 = vmatmul.f32.gmra.mxu0 %v501
      %v1127 = vpop.f32.mrf.mxu0
      %v1128 = vadd.f32 %v919, %v1127
      %1129 = vmatmul.f32.gmra.mxu0 %v504
      %v1130 = vpop.f32.mrf.mxu0
      %v1131 = vadd.f32 %v922, %v1130
      %1132 = vmatmul.f32.gmra.mxu0 %v507
      %v1133 = vpop.f32.mrf.mxu0
      %v1134 = vadd.f32 %v925, %v1133
      %1135 = vmatmul.f32.gmra.mxu0 %v510
      %v1136 = vpop.f32.mrf.mxu0
      %v1137 = vadd.f32 %v928, %v1136
      %1138 = vmatmul.f32.gmra.mxu0 %v513
      %v1139 = vpop.f32.mrf.mxu0
      %v1140 = vadd.f32 %v931, %v1139
      %1141 = vmatmul.f32.gmra.mxu0 %v516
      %v1142 = vpop.f32.mrf.mxu0
      %v1143 = vadd.f32 %v934, %v1142
      %1144 = vmatmul.f32.gmra.mxu0 %v519
      %v1145 = vpop.f32.mrf.mxu0
      %v1146 = vadd.f32 %v937, %v1145
      %1147 = vmatmul.f32.gmra.mxu0 %v522
      %v1148 = vpop.f32.mrf.mxu0
      %v1149 = vadd.f32 %v940, %v1148
      %1150 = vmatmul.f32.gmra.mxu0 %v525
      %v1151 = vpop.f32.mrf.mxu0
      %v1152 = vadd.f32 %v943, %v1151
      %1153 = vmatmul.f32.gmra.mxu0 %v528
      %v1154 = vpop.f32.mrf.mxu0
      %v1155 = vadd.f32 %v946, %v1154
      %1156 = vmatmul.f32.gmra.mxu0 %v531
      %v1157 = vpop.f32.mrf.mxu0
      %v1158 = vadd.f32 %v949, %v1157
      %1159 = vmatmul.f32.gmra.mxu0 %v534
      %v1160 = vpop.f32.mrf.mxu0
      %v1161 = vadd.f32 %v952, %v1160
      %1162 = vmatmul.f32.gmra.mxu0 %v537
      %v1163 = vpop.f32.mrf.mxu0
      %v1164 = vadd.f32 %v955, %v1163
      %1165 = vmatmul.f32.gmra.mxu0 %v540
      %v1166 = vpop.f32.mrf.mxu0
      %v1167 = vadd.f32 %v958, %v1166
      %1168 = vmatmul.f32.gmra.mxu0 %v543
      %v1169 = vpop.f32.mrf.mxu0
      %v1170 = vadd.f32 %v961, %v1169
      %1171 = vmatmul.f32.gmra.mxu0 %v546
      %v1172 = vpop.f32.mrf.mxu0
      %v1173 = vadd.f32 %v964, %v1172
      %1174 = vmatmul.f32.gmra.mxu0 %v549
      %v1175 = vpop.f32.mrf.mxu0
      %v1176 = vadd.f32 %v967, %v1175
      %1177 = vmatmul.f32.gmra.mxu0 %v552
      %v1178 = vpop.f32.mrf.mxu0
      %v1179 = vadd.f32 %v970, %v1178
      %1180 = vmatmul.f32.gmra.mxu0 %v555
      %v1181 = vpop.f32.mrf.mxu0
      %v1182 = vadd.f32 %v973, %v1181
      %1183 = vmatmul.f32.gmra.mxu0 %v558
      %v1184 = vpop.f32.mrf.mxu0
      %v1185 = vadd.f32 %v976, %v1184
      %1186 = vmatmul.f32.gmra.mxu0 %v561
      %v1187 = vpop.f32.mrf.mxu0
      %v1188 = vadd.f32 %v979, %v1187
      %1189 = vmatmul.f32.gmra.mxu0 %v564
      %v1190 = vpop.f32.mrf.mxu0
      %v1191 = vadd.f32 %v982, %v1190
      %1192 = vmatmul.f32.gmra.mxu0 %v567
      %v1193 = vpop.f32.mrf.mxu0
      %v1194 = vadd.f32 %v985, %v1193
      %1195 = vmatmul.f32.gmra.mxu0 %v570
      %v1196 = vpop.f32.mrf.mxu0
      %v1197 = vadd.f32 %v988, %v1196
      %1198 = vmatmul.f32.gmra.mxu0 %v573
      %v1199 = vpop.f32.mrf.mxu0
      %v1200 = vadd.f32 %v991, %v1199
      %1201 = vmatmul.f32.gmra.mxu0 %v576
      %v1202 = vpop.f32.mrf.mxu0
      %v1203 = vadd.f32 %v994, %v1202
      %1204 = vmatmul.f32.gmra.mxu0 %v579
      %v1205 = vpop.f32.mrf.mxu0
      %v1206 = vadd.f32 %v997, %v1205
      %1207 = vmatmul.f32.gmra.mxu0 %v582
      %v1208 = vpop.f32.mrf.mxu0
      %v1209 = vadd.f32 %v1000, %v1208
      %1210 = vmatmul.f32.gmra.mxu0 %v585
      %v1211 = vpop.f32.mrf.mxu0
      %v1212 = vadd.f32 %v1003, %v1211
      %1213 = vmatmul.f32.gmra.mxu0 %v588
      %v1214 = vpop.f32.mrf.mxu0
      %v1215 = vadd.f32 %v1006, %v1214
      %1216 = vmatmul.f32.gmra.mxu0 %v591
      %v1217 = vpop.f32.mrf.mxu0
      %v1218 = vadd.f32 %v1009, %v1217
      %1219 = vmatmul.f32.gmra.mxu0 %v594
      %v1220 = vpop.f32.mrf.mxu0
      %v1221 = vadd.f32 %v1012, %v1220
      %1222 = vmatmul.f32.gmra.mxu0 %v597
      %v1223 = vpop.f32.mrf.mxu0
      %v1224 = vadd.f32 %v1015, %v1223
      %1225 = vmatmul.f32.gmra.mxu0 %v600
      %v1226 = vpop.f32.mrf.mxu0
      %v1227 = vadd.f32 %v1018, %v1226
      %1228 = vdwg.mxu0
      %v1229 = vmax.f32 %v1038, 0.0
      %v1230 = vmax.f32 %v1041, 0.0
      %v1231 = vmax.f32 %v1044, 0.0
      %v1232 = vmax.f32 %v1047, 0.0
      %v1233 = vmax.f32 %v1050, 0.0
      %v1234 = vmax.f32 %v1053, 0.0
      %v1235 = vmax.f32 %v1056, 0.0
      %v1236 = vmax.f32 %v1059, 0.0
      %v1237 = vmax.f32 %v1062, 0.0
      %v1238 = vmax.f32 %v1065, 0.0
      %v1239 = vmax.f32 %v1068, 0.0
      %v1240 = vmax.f32 %v1071, 0.0
      %v1241 = vmax.f32 %v1074, 0.0
      %v1242 = vmax.f32 %v1077, 0.0
      %v1243 = vmax.f32 %v1080, 0.0
      %v1244 = vmax.f32 %v1083, 0.0
      %v1245 = vmax.f32 %v1086, 0.0
      %v1246 = vmax.f32 %v1089, 0.0
      %v1247 = vmax.f32 %v1092, 0.0
      %v1248 = vmax.f32 %v1095, 0.0
      %v1249 = vmax.f32 %v1098, 0.0
      %v1250 = vmax.f32 %v1101, 0.0
      %v1251 = vmax.f32 %v1104, 0.0
      %v1252 = vmax.f32 %v1107, 0.0
      %v1253 = vmax.f32 %v1110, 0.0
      %v1254 = vmax.f32 %v1113, 0.0
      %v1255 = vmax.f32 %v1116, 0.0
      %v1256 = vmax.f32 %v1119, 0.0
      %v1257 = vmax.f32 %v1122, 0.0
      %v1258 = vmax.f32 %v1125, 0.0
      %v1259 = vmax.f32 %v1128, 0.0
      %v1260 = vmax.f32 %v1131, 0.0
      %v1261 = vmax.f32 %v1134, 0.0
      %v1262 = vmax.f32 %v1137, 0.0
      %v1263 = vmax.f32 %v1140, 0.0
      %v1264 = vmax.f32 %v1143, 0.0
      %v1265 = vmax.f32 %v1146, 0.0
      %v1266 = vmax.f32 %v1149, 0.0
      %v1267 = vmax.f32 %v1152, 0.0
      %v1268 = vmax.f32 %v1155, 0.0
      %v1269 = vmax.f32 %v1158, 0.0
      %v1270 = vmax.f32 %v1161, 0.0
      %v1271 = vmax.f32 %v1164, 0.0
      %v1272 = vmax.f32 %v1167, 0.0
      %v1273 = vmax.f32 %v1170, 0.0
      %v1274 = vmax.f32 %v1173, 0.0
      %v1275 = vmax.f32 %v1176, 0.0
      %v1276 = vmax.f32 %v1179, 0.0
      %v1277 = vmax.f32 %v1182, 0.0
      %v1278 = vmax.f32 %v1185, 0.0
      %v1279 = vmax.f32 %v1188, 0.0
      %v1280 = vmax.f32 %v1191, 0.0
      %v1281 = vmax.f32 %v1194, 0.0
      %v1282 = vmax.f32 %v1197, 0.0
      %v1283 = vmax.f32 %v1200, 0.0
      %v1284 = vmax.f32 %v1203, 0.0
      %v1285 = vmax.f32 %v1206, 0.0
      %v1286 = vmax.f32 %v1209, 0.0
      %v1287 = vmax.f32 %v1212, 0.0
      %v1288 = vmax.f32 %v1215, 0.0
      %v1289 = vmax.f32 %v1218, 0.0
      %v1290 = vmax.f32 %v1221, 0.0
      %v1291 = vmax.f32 %v1224, 0.0
      %v1292 = vmax.f32 %v1227, 0.0
      %vm1293 = vcmask 523264
      %1294 = vst.msk [vmem:[%s175] sm:$0xff] %vm1293, %v1229
      %1295 = vst.msk [vmem:[%s175 + $0x8] sm:$0xff] %vm1293, %v1230
      %1296 = vst.msk [vmem:[%s175 + $0x10] sm:$0xff] %vm1293, %v1231
      %1297 = vst.msk [vmem:[%s175 + $0x18] sm:$0xff] %vm1293, %v1232
      %1298 = vst.msk [vmem:[%s175 + $0x20] sm:$0xff] %vm1293, %v1233
      %1299 = vst.msk [vmem:[%s175 + $0x28] sm:$0xff] %vm1293, %v1234
      %1300 = vst.msk [vmem:[%s175 + $0x30] sm:$0xff] %vm1293, %v1235
      %1301 = vst.msk [vmem:[%s175 + $0x38] sm:$0xff] %vm1293, %v1236
      %1302 = vst.msk [vmem:[%s175 + $0x40] sm:$0xff] %vm1293, %v1237
      %1303 = vst.msk [vmem:[%s175 + $0x48] sm:$0xff] %vm1293, %v1238
      %1304 = vst.msk [vmem:[%s175 + $0x50] sm:$0xff] %vm1293, %v1239
      %1305 = vst.msk [vmem:[%s175 + $0x58] sm:$0xff] %vm1293, %v1240
      %1306 = vst.msk [vmem:[%s175 + $0x60] sm:$0xff] %vm1293, %v1241
      %1307 = vst.msk [vmem:[%s175 + $0x68] sm:$0xff] %vm1293, %v1242
      %1308 = vst.msk [vmem:[%s175 + $0x70] sm:$0xff] %vm1293, %v1243
      %1309 = vst.msk [vmem:[%s175 + $0x78] sm:$0xff] %vm1293, %v1244
      %1310 = vst.msk [vmem:[%s175 + $0x80] sm:$0xff] %vm1293, %v1245
      %1311 = vst.msk [vmem:[%s175 + $0x88] sm:$0xff] %vm1293, %v1246
      %1312 = vst.msk [vmem:[%s175 + $0x90] sm:$0xff] %vm1293, %v1247
      %1313 = vst.msk [vmem:[%s175 + $0x98] sm:$0xff] %vm1293, %v1248
      %1314 = vst.msk [vmem:[%s175 + $0xa0] sm:$0xff] %vm1293, %v1249
      %1315 = vst.msk [vmem:[%s175 + $0xa8] sm:$0xff] %vm1293, %v1250
      %1316 = vst.msk [vmem:[%s175 + $0xb0] sm:$0xff] %vm1293, %v1251
      %1317 = vst.msk [vmem:[%s175 + $0xb8] sm:$0xff] %vm1293, %v1252
      %1318 = vst.msk [vmem:[%s175 + $0xc0] sm:$0xff] %vm1293, %v1253
      %1319 = vst.msk [vmem:[%s175 + $0xc8] sm:$0xff] %vm1293, %v1254
      %1320 = vst.msk [vmem:[%s175 + $0xd0] sm:$0xff] %vm1293, %v1255
      %1321 = vst.msk [vmem:[%s175 + $0xd8] sm:$0xff] %vm1293, %v1256
      %1322 = vst.msk [vmem:[%s175 + $0xe0] sm:$0xff] %vm1293, %v1257
      %1323 = vst.msk [vmem:[%s175 + $0xe8] sm:$0xff] %vm1293, %v1258
      %1324 = vst.msk [vmem:[%s175 + $0xf0] sm:$0xff] %vm1293, %v1259
      %1325 = vst.msk [vmem:[%s175 + $0xf8] sm:$0xff] %vm1293, %v1260
      %1326 = vst.msk [vmem:[%s175 + $0x100] sm:$0xff] %vm1293, %v1261
      %1327 = vst.msk [vmem:[%s175 + $0x108] sm:$0xff] %vm1293, %v1262
      %1328 = vst.msk [vmem:[%s175 + $0x110] sm:$0xff] %vm1293, %v1263
      %1329 = vst.msk [vmem:[%s175 + $0x118] sm:$0xff] %vm1293, %v1264
      %1330 = vst.msk [vmem:[%s175 + $0x120] sm:$0xff] %vm1293, %v1265
      %1331 = vst.msk [vmem:[%s175 + $0x128] sm:$0xff] %vm1293, %v1266
      %1332 = vst.msk [vmem:[%s175 + $0x130] sm:$0xff] %vm1293, %v1267
      %1333 = vst.msk [vmem:[%s175 + $0x138] sm:$0xff] %vm1293, %v1268
      %1334 = vst.msk [vmem:[%s175 + $0x140] sm:$0xff] %vm1293, %v1269
      %1335 = vst.msk [vmem:[%s175 + $0x148] sm:$0xff] %vm1293, %v1270
      %1336 = vst.msk [vmem:[%s175 + $0x150] sm:$0xff] %vm1293, %v1271
      %1337 = vst.msk [vmem:[%s175 + $0x158] sm:$0xff] %vm1293, %v1272
      %1338 = vst.msk [vmem:[%s175 + $0x160] sm:$0xff] %vm1293, %v1273
      %1339 = vst.msk [vmem:[%s175 + $0x168] sm:$0xff] %vm1293, %v1274
      %1340 = vst.msk [vmem:[%s175 + $0x170] sm:$0xff] %vm1293, %v1275
      %1341 = vst.msk [vmem:[%s175 + $0x178] sm:$0xff] %vm1293, %v1276
      %1342 = vst.msk [vmem:[%s175 + $0x180] sm:$0xff] %vm1293, %v1277
      %1343 = vst.msk [vmem:[%s175 + $0x188] sm:$0xff] %vm1293, %v1278
      %1344 = vst.msk [vmem:[%s175 + $0x190] sm:$0xff] %vm1293, %v1279
      %1345 = vst.msk [vmem:[%s175 + $0x198] sm:$0xff] %vm1293, %v1280
      %1346 = vst.msk [vmem:[%s175 + $0x1a0] sm:$0xff] %vm1293, %v1281
      %1347 = vst.msk [vmem:[%s175 + $0x1a8] sm:$0xff] %vm1293, %v1282
      %1348 = vst.msk [vmem:[%s175 + $0x1b0] sm:$0xff] %vm1293, %v1283
      %1349 = vst.msk [vmem:[%s175 + $0x1b8] sm:$0xff] %vm1293, %v1284
      %1350 = vst.msk [vmem:[%s175 + $0x1c0] sm:$0xff] %vm1293, %v1285
      %1351 = vst.msk [vmem:[%s175 + $0x1c8] sm:$0xff] %vm1293, %v1286
      %1352 = vst.msk [vmem:[%s175 + $0x1d0] sm:$0xff] %vm1293, %v1287
      %1353 = vst.msk [vmem:[%s175 + $0x1d8] sm:$0xff] %vm1293, %v1288
      %1354 = vst.msk [vmem:[%s175 + $0x1e0] sm:$0xff] %vm1293, %v1289
      %1355 = vst.msk [vmem:[%s175 + $0x1e8] sm:$0xff] %vm1293, %v1290
      %1356 = vst.msk [vmem:[%s175 + $0x1f0] sm:$0xff] %vm1293, %v1291
      %1357 = vst.msk [vmem:[%s175 + $0x1f8] sm:$0xff] %vm1293, %v1292
      %s1358 = smul.u32 64, %s14
      %p1359 = scmp.lt.s32.totalorder %s1358, 255
      %s1360 = scalar_select %p1359, %s1358, 255
      %s1361 = smul.addr %s1360, 8
      %s1362 = scalar_lea.vmem %s3, %s1361
      // Predicated region
      $region33: #{trace_lstm_forward.21} parent=31 // pred_check
        %p1363 = pneg %p100
      $region34: #{trace_lstm_forward.21} parent=31 // pred_check_branch
        %1365 = sbr.rel (%p1363) target = $region36
      $region35: #{trace_lstm_forward.21} parent=31 // pred_region
        %s1366 = smul.u32 64, %s14
      $region36: #{trace_lstm_forward.21} parent=31 // pred_fallthru
        _
    $region32: #{trace_lstm_forward.21} parent=5 // pred_fallthru
      _
    %p1367 = scmp.le.s32.totalorder 2, %s9
    // Predicated region
    $region37: #{trace_lstm_forward.21} parent=5 // pred_check
      %p1368 = pneg %p1367
    $region38: #{trace_lstm_forward.21} parent=5 // pred_check_branch
      %1370 = sbr.rel (%p1368) target = $region40
    $region39: #{trace_lstm_forward.21} parent=5 // pred_region
      %s1371 = ssub.s32 %s9, 2
      // Predicated region
      $region41: #{trace_lstm_forward.21} parent=39 // pred_check
        %p1372 = pneg %p106
      $region42: #{trace_lstm_forward.21} parent=39 // pred_check_branch
        %1374 = sbr.rel (%p1372) target = $region44
      $region43: #{trace_lstm_forward.21} parent=39 // pred_region
        %s1375 = smul.u32 64, %s15
        %p1376 = scmp.lt.s32.totalorder %s1375, 255
        %s1377 = scalar_select %p1376, %s1375, 255
        %s1378 = smul.addr %s1377, 8
        %s1379 = scalar_lea.vmem %s3, %s1378
      $region44: #{trace_lstm_forward.21} parent=39 // pred_fallthru
        _
    $region40: #{trace_lstm_forward.21} parent=5 // pred_fallthru
      _
  $region6: #{trace_lstm_forward.21} parent=0 // loop_footer
    %s13 = sadd.s32 1, %s9
  $region7: #{trace_lstm_forward.21} parent=0 // loop_footer_branch
    %8 = sbr.rel target = $region3
  $region8: #{trace_lstm_forward.21} parent=0 // loop_exit
    _

// kernel: trace_lstm_forward.22
$region0: #{trace_lstm_forward.22}
  #allocation0 [shape = 'u32[]', space=smem, size = 0x4, offset = 0x4, fixed_abs, tag = 'smem constant byte address 0x4 - core index']
  #allocation1 [shape = 'u32[72,128]{1,0:T(1,128)}', space=vmem, size = 0x9000, scoped, tag = 'internal scratch']
  %s0 = inlined_call_operand.vmem [shape: f32[512,576], index: 0, kind: input, shape index: {}]
  %s1 = inlined_call_operand.vmem [shape: f32[576,64], index: 1, kind: input, shape index: {}]
  %s2 = inlined_call_operand.vmem [shape: f32[1,64], index: 2, kind: input, shape index: {}]
  %s3 = inlined_call_operand.vmem [shape: f32[512,64], index: 3, kind: output, shape index: {}]
  %s4 = sld [smem:[#allocation0]]
  $region22: #{trace_lstm_forward.22} parent=0
    _
  %s6 = ssub.s32 1, %s4
  %s7 = scalar_select 0, %s6, %s4
  // Predicated region
  $region2: #{trace_lstm_forward.22} parent=0 // pred_check
    _
  $region3: #{trace_lstm_forward.22} parent=0 // pred_check_branch
    %9 = sbr.rel (0) target = $region5
  $region4: #{trace_lstm_forward.22} parent=0 // pred_region
    _
  $region5: #{trace_lstm_forward.22} parent=0 // pred_fallthru
    _
  // Predicated region
  $region6: #{trace_lstm_forward.22} parent=0 // pred_check
    _
  $region7: #{trace_lstm_forward.22} parent=0 // pred_check_branch
    %11 = sbr.rel (0) target = $region9
  $region8: #{trace_lstm_forward.22} parent=0 // pred_region
    _
  $region9: #{trace_lstm_forward.22} parent=0 // pred_fallthru
    _
  // Predicated region
  $region10: #{trace_lstm_forward.22} parent=0 // pred_check
    _
  $region11: #{trace_lstm_forward.22} parent=0 // pred_check_branch
    %13 = sbr.rel (0) target = $region13
  $region12: #{trace_lstm_forward.22} parent=0 // pred_region
    _
  $region13: #{trace_lstm_forward.22} parent=0 // pred_fallthru
    _
  %v14 = vld [vmem:[%s0] sm:$0xff]
  %v15 = vld [vmem:[%s0 + $0x8] sm:$0xff]
  %v16 = vld [vmem:[%s0 + $0x10] sm:$0xff]
  %v17 = vld [vmem:[%s0 + $0x18] sm:$0xff]
  %v18 = vld [vmem:[%s0 + $0x20] sm:$0xff]
  %v19 = vld [vmem:[%s0 + $0x28] sm:$0xff]
  %v20 = vld [vmem:[%s0 + $0x30] sm:$0xff]
  %v21 = vld [vmem:[%s0 + $0x38] sm:$0xff]
  %v22 = vld [vmem:[%s0 + $0x40] sm:$0xff]
  %v23 = vld [vmem:[%s0 + $0x48] sm:$0xff]
  %v24 = vld [vmem:[%s0 + $0x50] sm:$0xff]
  %v25 = vld [vmem:[%s0 + $0x58] sm:$0xff]
  %v26 = vld [vmem:[%s0 + $0x60] sm:$0xff]
  %v27 = vld [vmem:[%s0 + $0x68] sm:$0xff]
  %v28 = vld [vmem:[%s0 + $0x70] sm:$0xff]
  %v29 = vld [vmem:[%s0 + $0x78] sm:$0xff]
  %v30 = vld [vmem:[%s0 + $0x80] sm:$0xff]
  %v31 = vld [vmem:[%s0 + $0x88] sm:$0xff]
  %v32 = vld [vmem:[%s0 + $0x90] sm:$0xff]
  %v33 = vld [vmem:[%s0 + $0x98] sm:$0xff]
  %v34 = vld [vmem:[%s0 + $0xa0] sm:$0xff]
  %v35 = vld [vmem:[%s0 + $0xa8] sm:$0xff]
  %v36 = vld [vmem:[%s0 + $0xb0] sm:$0xff]
  %v37 = vld [vmem:[%s0 + $0xb8] sm:$0xff]
  %v38 = vld [vmem:[%s0 + $0xc0] sm:$0xff]
  %v39 = vld [vmem:[%s0 + $0xc8] sm:$0xff]
  %v40 = vld [vmem:[%s0 + $0xd0] sm:$0xff]
  %v41 = vld [vmem:[%s0 + $0xd8] sm:$0xff]
  %v42 = vld [vmem:[%s0 + $0xe0] sm:$0xff]
  %v43 = vld [vmem:[%s0 + $0xe8] sm:$0xff]
  %v44 = vld [vmem:[%s0 + $0xf0] sm:$0xff]
  %v45 = vld [vmem:[%s0 + $0xf8] sm:$0xff]
  %v46 = vld [vmem:[%s0 + $0x100] sm:$0xff]
  %v47 = vld [vmem:[%s0 + $0x108] sm:$0xff]
  %v48 = vld [vmem:[%s0 + $0x110] sm:$0xff]
  %v49 = vld [vmem:[%s0 + $0x118] sm:$0xff]
  %v50 = vld [vmem:[%s0 + $0x120] sm:$0xff]
  %v51 = vld [vmem:[%s0 + $0x128] sm:$0xff]
  %v52 = vld [vmem:[%s0 + $0x130] sm:$0xff]
  %v53 = vld [vmem:[%s0 + $0x138] sm:$0xff]
  %v54 = vld [vmem:[%s0 + $0x140] sm:$0xff]
  %v55 = vld [vmem:[%s0 + $0x148] sm:$0xff]
  %v56 = vld [vmem:[%s0 + $0x150] sm:$0xff]
  %v57 = vld [vmem:[%s0 + $0x158] sm:$0xff]
  %v58 = vld [vmem:[%s0 + $0x160] sm:$0xff]
  %v59 = vld [vmem:[%s0 + $0x168] sm:$0xff]
  %v60 = vld [vmem:[%s0 + $0x170] sm:$0xff]
  %v61 = vld [vmem:[%s0 + $0x178] sm:$0xff]
  %v62 = vld [vmem:[%s0 + $0x180] sm:$0xff]
  %v63 = vld [vmem:[%s0 + $0x188] sm:$0xff]
  %v64 = vld [vmem:[%s0 + $0x190] sm:$0xff]
  %v65 = vld [vmem:[%s0 + $0x198] sm:$0xff]
  %v66 = vld [vmem:[%s0 + $0x1a0] sm:$0xff]
  %v67 = vld [vmem:[%s0 + $0x1a8] sm:$0xff]
  %v68 = vld [vmem:[%s0 + $0x1b0] sm:$0xff]
  %v69 = vld [vmem:[%s0 + $0x1b8] sm:$0xff]
  %v70 = vld [vmem:[%s0 + $0x1c0] sm:$0xff]
  %v71 = vld [vmem:[%s0 + $0x1c8] sm:$0xff]
  %v72 = vld [vmem:[%s0 + $0x1d0] sm:$0xff]
  %v73 = vld [vmem:[%s0 + $0x1d8] sm:$0xff]
  %v74 = vld [vmem:[%s0 + $0x1e0] sm:$0xff]
  %v75 = vld [vmem:[%s0 + $0x1e8] sm:$0xff]
  %v76 = vld [vmem:[%s0 + $0x1f0] sm:$0xff]
  %v77 = vld [vmem:[%s0 + $0x1f8] sm:$0xff]
  %v78 = vld [vmem:[%s0 + $0x200] sm:$0xff]
  %v79 = vld [vmem:[%s0 + $0x208] sm:$0xff]
  %v80 = vld [vmem:[%s0 + $0x210] sm:$0xff]
  %v81 = vld [vmem:[%s0 + $0x218] sm:$0xff]
  %v82 = vld [vmem:[%s0 + $0x220] sm:$0xff]
  %v83 = vld [vmem:[%s0 + $0x228] sm:$0xff]
  %v84 = vld [vmem:[%s0 + $0x230] sm:$0xff]
  %v85 = vld [vmem:[%s0 + $0x238] sm:$0xff]
  %v86 = vld [vmem:[%s0 + $0x240] sm:$0xff]
  %v87 = vld [vmem:[%s0 + $0x248] sm:$0xff]
  %v88 = vld [vmem:[%s0 + $0x250] sm:$0xff]
  %v89 = vld [vmem:[%s0 + $0x258] sm:$0xff]
  %v90 = vld [vmem:[%s0 + $0x260] sm:$0xff]
  %v91 = vld [vmem:[%s0 + $0x268] sm:$0xff]
  %v92 = vld [vmem:[%s0 + $0x270] sm:$0xff]
  %v93 = vld [vmem:[%s0 + $0x278] sm:$0xff]
  %v94 = vld [vmem:[%s0 + $0x280] sm:$0xff]
  %v95 = vld [vmem:[%s0 + $0x288] sm:$0xff]
  %v96 = vld [vmem:[%s0 + $0x290] sm:$0xff]
  %v97 = vld [vmem:[%s0 + $0x298] sm:$0xff]
  %v98 = vld [vmem:[%s0 + $0x2a0] sm:$0xff]
  %v99 = vld [vmem:[%s0 + $0x2a8] sm:$0xff]
  %v100 = vld [vmem:[%s0 + $0x2b0] sm:$0xff]
  %v101 = vld [vmem:[%s0 + $0x2b8] sm:$0xff]
  %v102 = vld [vmem:[%s0 + $0x2c0] sm:$0xff]
  %v103 = vld [vmem:[%s0 + $0x2c8] sm:$0xff]
  %v104 = vld [vmem:[%s0 + $0x2d0] sm:$0xff]
  %v105 = vld [vmem:[%s0 + $0x2d8] sm:$0xff]
  %v106 = vld [vmem:[%s0 + $0x2e0] sm:$0xff]
  %v107 = vld [vmem:[%s0 + $0x2e8] sm:$0xff]
  %v108 = vld [vmem:[%s0 + $0x2f0] sm:$0xff]
  %v109 = vld [vmem:[%s0 + $0x2f8] sm:$0xff]
  %v110 = vld [vmem:[%s0 + $0x300] sm:$0xff]
  %v111 = vld [vmem:[%s0 + $0x308] sm:$0xff]
  %v112 = vld [vmem:[%s0 + $0x310] sm:$0xff]
  %v113 = vld [vmem:[%s0 + $0x318] sm:$0xff]
  %v114 = vld [vmem:[%s0 + $0x320] sm:$0xff]
  %v115 = vld [vmem:[%s0 + $0x328] sm:$0xff]
  %v116 = vld [vmem:[%s0 + $0x330] sm:$0xff]
  %v117 = vld [vmem:[%s0 + $0x338] sm:$0xff]
  %v118 = vld [vmem:[%s0 + $0x340] sm:$0xff]
  %v119 = vld [vmem:[%s0 + $0x348] sm:$0xff]
  %v120 = vld [vmem:[%s0 + $0x350] sm:$0xff]
  %v121 = vld [vmem:[%s0 + $0x358] sm:$0xff]
  %v122 = vld [vmem:[%s0 + $0x360] sm:$0xff]
  %v123 = vld [vmem:[%s0 + $0x368] sm:$0xff]
  %v124 = vld [vmem:[%s0 + $0x370] sm:$0xff]
  %v125 = vld [vmem:[%s0 + $0x378] sm:$0xff]
  %v126 = vld [vmem:[%s0 + $0x380] sm:$0xff]
  %v127 = vld [vmem:[%s0 + $0x388] sm:$0xff]
  %v128 = vld [vmem:[%s0 + $0x390] sm:$0xff]
  %v129 = vld [vmem:[%s0 + $0x398] sm:$0xff]
  %v130 = vld [vmem:[%s0 + $0x3a0] sm:$0xff]
  %v131 = vld [vmem:[%s0 + $0x3a8] sm:$0xff]
  %v132 = vld [vmem:[%s0 + $0x3b0] sm:$0xff]
  %v133 = vld [vmem:[%s0 + $0x3b8] sm:$0xff]
  %v134 = vld [vmem:[%s0 + $0x3c0] sm:$0xff]
  %v135 = vld [vmem:[%s0 + $0x3c8] sm:$0xff]
  %v136 = vld [vmem:[%s0 + $0x3d0] sm:$0xff]
  %v137 = vld [vmem:[%s0 + $0x3d8] sm:$0xff]
  %v138 = vld [vmem:[%s0 + $0x3e0] sm:$0xff]
  %v139 = vld [vmem:[%s0 + $0x3e8] sm:$0xff]
  %v140 = vld [vmem:[%s0 + $0x3f0] sm:$0xff]
  %v141 = vld [vmem:[%s0 + $0x3f8] sm:$0xff]
  %v142 = vld [vmem:[%s0 + $0x400] sm:$0xff]
  %v143 = vld [vmem:[%s0 + $0x408] sm:$0xff]
  %v144 = vld [vmem:[%s0 + $0x410] sm:$0xff]
  %v145 = vld [vmem:[%s0 + $0x418] sm:$0xff]
  %v146 = vld [vmem:[%s0 + $0x420] sm:$0xff]
  %v147 = vld [vmem:[%s0 + $0x428] sm:$0xff]
  %v148 = vld [vmem:[%s0 + $0x430] sm:$0xff]
  %v149 = vld [vmem:[%s0 + $0x438] sm:$0xff]
  %v150 = vld [vmem:[%s0 + $0x440] sm:$0xff]
  %v151 = vld [vmem:[%s0 + $0x448] sm:$0xff]
  %v152 = vld [vmem:[%s0 + $0x450] sm:$0xff]
  %v153 = vld [vmem:[%s0 + $0x458] sm:$0xff]
  %v154 = vld [vmem:[%s0 + $0x460] sm:$0xff]
  %v155 = vld [vmem:[%s0 + $0x468] sm:$0xff]
  %v156 = vld [vmem:[%s0 + $0x470] sm:$0xff]
  %v157 = vld [vmem:[%s0 + $0x478] sm:$0xff]
  %v158 = vld [vmem:[%s0 + $0x480] sm:$0xff]
  %v159 = vld [vmem:[%s0 + $0x488] sm:$0xff]
  %v160 = vld [vmem:[%s0 + $0x490] sm:$0xff]
  %v161 = vld [vmem:[%s0 + $0x498] sm:$0xff]
  %v162 = vld [vmem:[%s0 + $0x4a0] sm:$0xff]
  %v163 = vld [vmem:[%s0 + $0x4a8] sm:$0xff]
  %v164 = vld [vmem:[%s0 + $0x4b0] sm:$0xff]
  %v165 = vld [vmem:[%s0 + $0x4b8] sm:$0xff]
  %v166 = vld [vmem:[%s0 + $0x4c0] sm:$0xff]
  %v167 = vld [vmem:[%s0 + $0x4c8] sm:$0xff]
  %v168 = vld [vmem:[%s0 + $0x4d0] sm:$0xff]
  %v169 = vld [vmem:[%s0 + $0x4d8] sm:$0xff]
  %v170 = vld [vmem:[%s0 + $0x4e0] sm:$0xff]
  %v171 = vld [vmem:[%s0 + $0x4e8] sm:$0xff]
  %v172 = vld [vmem:[%s0 + $0x4f0] sm:$0xff]
  %v173 = vld [vmem:[%s0 + $0x4f8] sm:$0xff]
  %v174 = vld [vmem:[%s0 + $0x500] sm:$0xff]
  %v175 = vld [vmem:[%s0 + $0x508] sm:$0xff]
  %v176 = vld [vmem:[%s0 + $0x510] sm:$0xff]
  %v177 = vld [vmem:[%s0 + $0x518] sm:$0xff]
  %v178 = vld [vmem:[%s0 + $0x520] sm:$0xff]
  %v179 = vld [vmem:[%s0 + $0x528] sm:$0xff]
  %v180 = vld [vmem:[%s0 + $0x530] sm:$0xff]
  %v181 = vld [vmem:[%s0 + $0x538] sm:$0xff]
  %v182 = vld [vmem:[%s0 + $0x540] sm:$0xff]
  %v183 = vld [vmem:[%s0 + $0x548] sm:$0xff]
  %v184 = vld [vmem:[%s0 + $0x550] sm:$0xff]
  %v185 = vld [vmem:[%s0 + $0x558] sm:$0xff]
  %v186 = vld [vmem:[%s0 + $0x560] sm:$0xff]
  %v187 = vld [vmem:[%s0 + $0x568] sm:$0xff]
  %v188 = vld [vmem:[%s0 + $0x570] sm:$0xff]
  %v189 = vld [vmem:[%s0 + $0x578] sm:$0xff]
  %v190 = vld [vmem:[%s0 + $0x580] sm:$0xff]
  %v191 = vld [vmem:[%s0 + $0x588] sm:$0xff]
  %v192 = vld [vmem:[%s0 + $0x590] sm:$0xff]
  %v193 = vld [vmem:[%s0 + $0x598] sm:$0xff]
  %v194 = vld [vmem:[%s0 + $0x5a0] sm:$0xff]
  %v195 = vld [vmem:[%s0 + $0x5a8] sm:$0xff]
  %v196 = vld [vmem:[%s0 + $0x5b0] sm:$0xff]
  %v197 = vld [vmem:[%s0 + $0x5b8] sm:$0xff]
  %v198 = vld [vmem:[%s0 + $0x5c0] sm:$0xff]
  %v199 = vld [vmem:[%s0 + $0x5c8] sm:$0xff]
  %v200 = vld [vmem:[%s0 + $0x5d0] sm:$0xff]
  %v201 = vld [vmem:[%s0 + $0x5d8] sm:$0xff]
  %v202 = vld [vmem:[%s0 + $0x5e0] sm:$0xff]
  %v203 = vld [vmem:[%s0 + $0x5e8] sm:$0xff]
  %v204 = vld [vmem:[%s0 + $0x5f0] sm:$0xff]
  %v205 = vld [vmem:[%s0 + $0x5f8] sm:$0xff]
  %v206 = vld [vmem:[%s0 + $0x600] sm:$0xff]
  %v207 = vld [vmem:[%s0 + $0x608] sm:$0xff]
  %v208 = vld [vmem:[%s0 + $0x610] sm:$0xff]
  %v209 = vld [vmem:[%s0 + $0x618] sm:$0xff]
  %v210 = vld [vmem:[%s0 + $0x620] sm:$0xff]
  %v211 = vld [vmem:[%s0 + $0x628] sm:$0xff]
  %v212 = vld [vmem:[%s0 + $0x630] sm:$0xff]
  %v213 = vld [vmem:[%s0 + $0x638] sm:$0xff]
  %v214 = vld [vmem:[%s0 + $0x640] sm:$0xff]
  %v215 = vld [vmem:[%s0 + $0x648] sm:$0xff]
  %v216 = vld [vmem:[%s0 + $0x650] sm:$0xff]
  %v217 = vld [vmem:[%s0 + $0x658] sm:$0xff]
  %v218 = vld [vmem:[%s0 + $0x660] sm:$0xff]
  %v219 = vld [vmem:[%s0 + $0x668] sm:$0xff]
  %v220 = vld [vmem:[%s0 + $0x670] sm:$0xff]
  %v221 = vld [vmem:[%s0 + $0x678] sm:$0xff]
  %v222 = vld [vmem:[%s0 + $0x680] sm:$0xff]
  %v223 = vld [vmem:[%s0 + $0x688] sm:$0xff]
  %v224 = vld [vmem:[%s0 + $0x690] sm:$0xff]
  %v225 = vld [vmem:[%s0 + $0x698] sm:$0xff]
  %v226 = vld [vmem:[%s0 + $0x6a0] sm:$0xff]
  %v227 = vld [vmem:[%s0 + $0x6a8] sm:$0xff]
  %v228 = vld [vmem:[%s0 + $0x6b0] sm:$0xff]
  %v229 = vld [vmem:[%s0 + $0x6b8] sm:$0xff]
  %v230 = vld [vmem:[%s0 + $0x6c0] sm:$0xff]
  %v231 = vld [vmem:[%s0 + $0x6c8] sm:$0xff]
  %v232 = vld [vmem:[%s0 + $0x6d0] sm:$0xff]
  %v233 = vld [vmem:[%s0 + $0x6d8] sm:$0xff]
  %v234 = vld [vmem:[%s0 + $0x6e0] sm:$0xff]
  %v235 = vld [vmem:[%s0 + $0x6e8] sm:$0xff]
  %v236 = vld [vmem:[%s0 + $0x6f0] sm:$0xff]
  %v237 = vld [vmem:[%s0 + $0x6f8] sm:$0xff]
  %v238 = vld [vmem:[%s0 + $0x700] sm:$0xff]
  %v239 = vld [vmem:[%s0 + $0x708] sm:$0xff]
  %v240 = vld [vmem:[%s0 + $0x710] sm:$0xff]
  %v241 = vld [vmem:[%s0 + $0x718] sm:$0xff]
  %v242 = vld [vmem:[%s0 + $0x720] sm:$0xff]
  %v243 = vld [vmem:[%s0 + $0x728] sm:$0xff]
  %v244 = vld [vmem:[%s0 + $0x730] sm:$0xff]
  %v245 = vld [vmem:[%s0 + $0x738] sm:$0xff]
  %v246 = vld [vmem:[%s0 + $0x740] sm:$0xff]
  %v247 = vld [vmem:[%s0 + $0x748] sm:$0xff]
  %v248 = vld [vmem:[%s0 + $0x750] sm:$0xff]
  %v249 = vld [vmem:[%s0 + $0x758] sm:$0xff]
  %v250 = vld [vmem:[%s0 + $0x760] sm:$0xff]
  %v251 = vld [vmem:[%s0 + $0x768] sm:$0xff]
  %v252 = vld [vmem:[%s0 + $0x770] sm:$0xff]
  %v253 = vld [vmem:[%s0 + $0x778] sm:$0xff]
  %v254 = vld [vmem:[%s0 + $0x780] sm:$0xff]
  %v255 = vld [vmem:[%s0 + $0x788] sm:$0xff]
  %v256 = vld [vmem:[%s0 + $0x790] sm:$0xff]
  %v257 = vld [vmem:[%s0 + $0x798] sm:$0xff]
  %v258 = vld [vmem:[%s0 + $0x7a0] sm:$0xff]
  %v259 = vld [vmem:[%s0 + $0x7a8] sm:$0xff]
  %v260 = vld [vmem:[%s0 + $0x7b0] sm:$0xff]
  %v261 = vld [vmem:[%s0 + $0x7b8] sm:$0xff]
  %v262 = vld [vmem:[%s0 + $0x7c0] sm:$0xff]
  %v263 = vld [vmem:[%s0 + $0x7c8] sm:$0xff]
  %v264 = vld [vmem:[%s0 + $0x7d0] sm:$0xff]
  %v265 = vld [vmem:[%s0 + $0x7d8] sm:$0xff]
  %v266 = vld [vmem:[%s0 + $0x7e0] sm:$0xff]
  %v267 = vld [vmem:[%s0 + $0x7e8] sm:$0xff]
  %v268 = vld [vmem:[%s0 + $0x7f0] sm:$0xff]
  %v269 = vld [vmem:[%s0 + $0x7f8] sm:$0xff]
  %v270 = vld [vmem:[%s0 + $0x800] sm:$0xff]
  %v271 = vld [vmem:[%s0 + $0x808] sm:$0xff]
  %v272 = vld [vmem:[%s0 + $0x810] sm:$0xff]
  %v273 = vld [vmem:[%s0 + $0x818] sm:$0xff]
  %v274 = vld [vmem:[%s0 + $0x820] sm:$0xff]
  %v275 = vld [vmem:[%s0 + $0x828] sm:$0xff]
  %v276 = vld [vmem:[%s0 + $0x830] sm:$0xff]
  %v277 = vld [vmem:[%s0 + $0x838] sm:$0xff]
  %v278 = vld [vmem:[%s0 + $0x840] sm:$0xff]
  %v279 = vld [vmem:[%s0 + $0x848] sm:$0xff]
  %v280 = vld [vmem:[%s0 + $0x850] sm:$0xff]
  %v281 = vld [vmem:[%s0 + $0x858] sm:$0xff]
  %v282 = vld [vmem:[%s0 + $0x860] sm:$0xff]
  %v283 = vld [vmem:[%s0 + $0x868] sm:$0xff]
  %v284 = vld [vmem:[%s0 + $0x870] sm:$0xff]
  %v285 = vld [vmem:[%s0 + $0x878] sm:$0xff]
  %v286 = vld [vmem:[%s0 + $0x880] sm:$0xff]
  %v287 = vld [vmem:[%s0 + $0x888] sm:$0xff]
  %v288 = vld [vmem:[%s0 + $0x890] sm:$0xff]
  %v289 = vld [vmem:[%s0 + $0x898] sm:$0xff]
  %v290 = vld [vmem:[%s0 + $0x8a0] sm:$0xff]
  %v291 = vld [vmem:[%s0 + $0x8a8] sm:$0xff]
  %v292 = vld [vmem:[%s0 + $0x8b0] sm:$0xff]
  %v293 = vld [vmem:[%s0 + $0x8b8] sm:$0xff]
  %v294 = vld [vmem:[%s0 + $0x8c0] sm:$0xff]
  %v295 = vld [vmem:[%s0 + $0x8c8] sm:$0xff]
  %v296 = vld [vmem:[%s0 + $0x8d0] sm:$0xff]
  %v297 = vld [vmem:[%s0 + $0x8d8] sm:$0xff]
  %v298 = vld [vmem:[%s0 + $0x8e0] sm:$0xff]
  %v299 = vld [vmem:[%s0 + $0x8e8] sm:$0xff]
  %v300 = vld [vmem:[%s0 + $0x8f0] sm:$0xff]
  %v301 = vld [vmem:[%s0 + $0x8f8] sm:$0xff]
  %v302 = vld [vmem:[%s0 + $0x900] sm:$0xff]
  %v303 = vld [vmem:[%s0 + $0x908] sm:$0xff]
  %v304 = vld [vmem:[%s0 + $0x910] sm:$0xff]
  %v305 = vld [vmem:[%s0 + $0x918] sm:$0xff]
  %v306 = vld [vmem:[%s0 + $0x920] sm:$0xff]
  %v307 = vld [vmem:[%s0 + $0x928] sm:$0xff]
  %v308 = vld [vmem:[%s0 + $0x930] sm:$0xff]
  %v309 = vld [vmem:[%s0 + $0x938] sm:$0xff]
  %v310 = vld [vmem:[%s0 + $0x940] sm:$0xff]
  %v311 = vld [vmem:[%s0 + $0x948] sm:$0xff]
  %v312 = vld [vmem:[%s0 + $0x950] sm:$0xff]
  %v313 = vld [vmem:[%s0 + $0x958] sm:$0xff]
  %v314 = vld [vmem:[%s0 + $0x960] sm:$0xff]
  %v315 = vld [vmem:[%s0 + $0x968] sm:$0xff]
  %v316 = vld [vmem:[%s0 + $0x970] sm:$0xff]
  %v317 = vld [vmem:[%s0 + $0x978] sm:$0xff]
  %v318 = vld [vmem:[%s0 + $0x980] sm:$0xff]
  %v319 = vld [vmem:[%s0 + $0x988] sm:$0xff]
  %v320 = vld [vmem:[%s0 + $0x990] sm:$0xff]
  %v321 = vld [vmem:[%s0 + $0x998] sm:$0xff]
  %v322 = vld [vmem:[%s0 + $0x9a0] sm:$0xff]
  %v323 = vld [vmem:[%s0 + $0x9a8] sm:$0xff]
  %v324 = vld [vmem:[%s0 + $0x9b0] sm:$0xff]
  %v325 = vld [vmem:[%s0 + $0x9b8] sm:$0xff]
  %v326 = vld [vmem:[%s0 + $0x9c0] sm:$0xff]
  %v327 = vld [vmem:[%s0 + $0x9c8] sm:$0xff]
  %v328 = vld [vmem:[%s0 + $0x9d0] sm:$0xff]
  %v329 = vld [vmem:[%s0 + $0x9d8] sm:$0xff]
  %v330 = vld [vmem:[%s0 + $0x9e0] sm:$0xff]
  %v331 = vld [vmem:[%s0 + $0x9e8] sm:$0xff]
  %v332 = vld [vmem:[%s0 + $0x9f0] sm:$0xff]
  %v333 = vld [vmem:[%s0 + $0x9f8] sm:$0xff]
  %v334 = vld [vmem:[%s1] sm:$0xff]
  %v335 = vld [vmem:[%s1 + $0x8] sm:$0xff]
  %v336 = vld [vmem:[%s1 + $0x10] sm:$0xff]
  %v337 = vld [vmem:[%s1 + $0x18] sm:$0xff]
  %v338 = vld [vmem:[%s1 + $0x20] sm:$0xff]
  %v339 = vld [vmem:[%s1 + $0x28] sm:$0xff]
  %v340 = vld [vmem:[%s1 + $0x30] sm:$0xff]
  %v341 = vld [vmem:[%s1 + $0x38] sm:$0xff]
  %v342 = vld [vmem:[%s1 + $0x40] sm:$0xff]
  %v343 = vld [vmem:[%s1 + $0x48] sm:$0xff]
  %v344 = vld [vmem:[%s1 + $0x50] sm:$0xff]
  %v345 = vld [vmem:[%s1 + $0x58] sm:$0xff]
  %v346 = vld [vmem:[%s1 + $0x60] sm:$0xff]
  %v347 = vld [vmem:[%s1 + $0x68] sm:$0xff]
  %v348 = vld [vmem:[%s1 + $0x70] sm:$0xff]
  %v349 = vld [vmem:[%s1 + $0x78] sm:$0xff]
  %v350 = vld [vmem:[%s1 + $0x80] sm:$0xff]
  %v351 = vld [vmem:[%s1 + $0x88] sm:$0xff]
  %v352 = vld [vmem:[%s1 + $0x90] sm:$0xff]
  %v353 = vld [vmem:[%s1 + $0x98] sm:$0xff]
  %v354 = vld [vmem:[%s1 + $0xa0] sm:$0xff]
  %v355 = vld [vmem:[%s1 + $0xa8] sm:$0xff]
  %v356 = vld [vmem:[%s1 + $0xb0] sm:$0xff]
  %v357 = vld [vmem:[%s1 + $0xb8] sm:$0xff]
  %v358 = vld [vmem:[%s1 + $0xc0] sm:$0xff]
  %v359 = vld [vmem:[%s1 + $0xc8] sm:$0xff]
  %v360 = vld [vmem:[%s1 + $0xd0] sm:$0xff]
  %v361 = vld [vmem:[%s1 + $0xd8] sm:$0xff]
  %v362 = vld [vmem:[%s1 + $0xe0] sm:$0xff]
  %v363 = vld [vmem:[%s1 + $0xe8] sm:$0xff]
  %v364 = vld [vmem:[%s1 + $0xf0] sm:$0xff]
  %v365 = vld [vmem:[%s1 + $0xf8] sm:$0xff]
  %v366 = vld [vmem:[%s1 + $0x100] sm:$0xff]
  %v367 = vld [vmem:[%s1 + $0x108] sm:$0xff]
  %v368 = vld [vmem:[%s1 + $0x110] sm:$0xff]
  %v369 = vld [vmem:[%s1 + $0x118] sm:$0xff]
  %v370 = vld [vmem:[%s1 + $0x120] sm:$0xff]
  %v371 = vld [vmem:[%s1 + $0x128] sm:$0xff]
  %v372 = vld [vmem:[%s1 + $0x130] sm:$0xff]
  %v373 = vld [vmem:[%s1 + $0x138] sm:$0xff]
  %v374 = vld [vmem:[%s1 + $0x140] sm:$0xff]
  %v375 = vld [vmem:[%s1 + $0x148] sm:$0xff]
  %v376 = vld [vmem:[%s1 + $0x150] sm:$0xff]
  %v377 = vld [vmem:[%s1 + $0x158] sm:$0xff]
  %v378 = vld [vmem:[%s1 + $0x160] sm:$0xff]
  %v379 = vld [vmem:[%s1 + $0x168] sm:$0xff]
  %v380 = vld [vmem:[%s1 + $0x170] sm:$0xff]
  %v381 = vld [vmem:[%s1 + $0x178] sm:$0xff]
  %v382 = vld [vmem:[%s1 + $0x180] sm:$0xff]
  %v383 = vld [vmem:[%s1 + $0x188] sm:$0xff]
  %v384 = vld [vmem:[%s1 + $0x190] sm:$0xff]
  %v385 = vld [vmem:[%s1 + $0x198] sm:$0xff]
  %v386 = vld [vmem:[%s1 + $0x1a0] sm:$0xff]
  %v387 = vld [vmem:[%s1 + $0x1a8] sm:$0xff]
  %v388 = vld [vmem:[%s1 + $0x1b0] sm:$0xff]
  %v389 = vld [vmem:[%s1 + $0x1b8] sm:$0xff]
  %v390 = vld [vmem:[%s1 + $0x1c0] sm:$0xff]
  %v391 = vld [vmem:[%s1 + $0x1c8] sm:$0xff]
  %v392 = vld [vmem:[%s1 + $0x1d0] sm:$0xff]
  %v393 = vld [vmem:[%s1 + $0x1d8] sm:$0xff]
  %v394 = vld [vmem:[%s1 + $0x1e0] sm:$0xff]
  %v395 = vld [vmem:[%s1 + $0x1e8] sm:$0xff]
  %v396 = vld [vmem:[%s1 + $0x1f0] sm:$0xff]
  %v397 = vld [vmem:[%s1 + $0x1f8] sm:$0xff]
  %v398 = vld [vmem:[%s1 + $0x200] sm:$0xff]
  %v399 = vld [vmem:[%s1 + $0x208] sm:$0xff]
  %v400 = vld [vmem:[%s1 + $0x210] sm:$0xff]
  %v401 = vld [vmem:[%s1 + $0x218] sm:$0xff]
  %v402 = vld [vmem:[%s1 + $0x220] sm:$0xff]
  %v403 = vld [vmem:[%s1 + $0x228] sm:$0xff]
  %v404 = vld [vmem:[%s1 + $0x230] sm:$0xff]
  %v405 = vld [vmem:[%s1 + $0x238] sm:$0xff]
  %v406 = vld [vmem:[%s2] sm:$0x1]
  %v408 = vperm.slane %v406, 0
  %vm410 = vcmask 523264
  %v412 = vsel %vm410, %v18, 0
  %v415 = vsel %vm410, %v23, 0
  %v418 = vsel %vm410, %v28, 0
  %v421 = vsel %vm410, %v33, 0
  %v424 = vsel %vm410, %v38, 0
  %v427 = vsel %vm410, %v43, 0
  %v430 = vsel %vm410, %v48, 0
  %v433 = vsel %vm410, %v53, 0
  %v436 = vsel %vm410, %v58, 0
  %v439 = vsel %vm410, %v63, 0
  %v442 = vsel %vm410, %v68, 0
  %v445 = vsel %vm410, %v73, 0
  %v448 = vsel %vm410, %v78, 0
  %v451 = vsel %vm410, %v83, 0
  %v454 = vsel %vm410, %v88, 0
  %v457 = vsel %vm410, %v93, 0
  %v460 = vsel %vm410, %v98, 0
  %v463 = vsel %vm410, %v103, 0
  %v466 = vsel %vm410, %v108, 0
  %v469 = vsel %vm410, %v113, 0
  %v472 = vsel %vm410, %v118, 0
  %v475 = vsel %vm410, %v123, 0
  %v478 = vsel %vm410, %v128, 0
  %v481 = vsel %vm410, %v133, 0
  %v484 = vsel %vm410, %v138, 0
  %v487 = vsel %vm410, %v143, 0
  %v490 = vsel %vm410, %v148, 0
  %v493 = vsel %vm410, %v153, 0
  %v496 = vsel %vm410, %v158, 0
  %v499 = vsel %vm410, %v163, 0
  %v502 = vsel %vm410, %v168, 0
  %v505 = vsel %vm410, %v173, 0
  %v508 = vsel %vm410, %v178, 0
  %v511 = vsel %vm410, %v183, 0
  %v514 = vsel %vm410, %v188, 0
  %v517 = vsel %vm410, %v193, 0
  %v520 = vsel %vm410, %v198, 0
  %v523 = vsel %vm410, %v203, 0
  %v526 = vsel %vm410, %v208, 0
  %v529 = vsel %vm410, %v213, 0
  %v532 = vsel %vm410, %v218, 0
  %v535 = vsel %vm410, %v223, 0
  %v538 = vsel %vm410, %v228, 0
  %v541 = vsel %vm410, %v233, 0
  %v544 = vsel %vm410, %v238, 0
  %v547 = vsel %vm410, %v243, 0
  %v550 = vsel %vm410, %v248, 0
  %v553 = vsel %vm410, %v253, 0
  %v556 = vsel %vm410, %v258, 0
  %v559 = vsel %vm410, %v263, 0
  %v562 = vsel %vm410, %v268, 0
  %v565 = vsel %vm410, %v273, 0
  %v568 = vsel %vm410, %v278, 0
  %v571 = vsel %vm410, %v283, 0
  %v574 = vsel %vm410, %v288, 0
  %v577 = vsel %vm410, %v293, 0
  %v580 = vsel %vm410, %v298, 0
  %v583 = vsel %vm410, %v303, 0
  %v586 = vsel %vm410, %v308, 0
  %v589 = vsel %vm410, %v313, 0
  %v592 = vsel %vm410, %v318, 0
  %v595 = vsel %vm410, %v323, 0
  %v598 = vsel %vm410, %v328, 0
  %v601 = vsel %vm410, %v333, 0
  %603 = vmatpush.msra.mxu0 %v349
  %604 = vmatpush.msra.mxu0 %v348
  %605 = vmatpush.msra.mxu0 %v347
  %606 = vmatpush.msra.mxu0 %v346
  %607 = vmatpush.msra.mxu0 %v345
  %608 = vmatpush.msra.mxu0 %v344
  %609 = vmatpush.msra.mxu0 %v343
  %610 = vmatpush.msra.mxu0 %v342
  %611 = vmatpush.msra.mxu0 %v341
  %612 = vmatpush.msra.mxu0 %v340
  %613 = vmatpush.msra.mxu0 %v339
  %614 = vmatpush.msra.mxu0 %v338
  %615 = vmatpush.msra.mxu0 %v337
  %616 = vmatpush.msra.mxu0 %v336
  %617 = vmatpush.msra.mxu0 %v335
  %618 = vmatpush.msra.mxu0 %v334
  %619 = vmatmul.f32.gmra.mxu0 %v14
  %v620 = vpop.f32.mrf.mxu0
  %v621 = vadd.f32 %v408, %v620
  %622 = vmatmul.f32.gmra.mxu0 %v19
  %v623 = vpop.f32.mrf.mxu0
  %v624 = vadd.f32 %v408, %v623
  %625 = vmatmul.f32.gmra.mxu0 %v24
  %v626 = vpop.f32.mrf.mxu0
  %v627 = vadd.f32 %v408, %v626
  %628 = vmatmul.f32.gmra.mxu0 %v29
  %v629 = vpop.f32.mrf.mxu0
  %v630 = vadd.f32 %v408, %v629
  %631 = vmatmul.f32.gmra.mxu0 %v34
  %v632 = vpop.f32.mrf.mxu0
  %v633 = vadd.f32 %v408, %v632
  %634 = vmatmul.f32.gmra.mxu0 %v39
  %v635 = vpop.f32.mrf.mxu0
  %v636 = vadd.f32 %v408, %v635
  %637 = vmatmul.f32.gmra.mxu0 %v44
  %v638 = vpop.f32.mrf.mxu0
  %v639 = vadd.f32 %v408, %v638
  %640 = vmatmul.f32.gmra.mxu0 %v49
  %v641 = vpop.f32.mrf.mxu0
  %v642 = vadd.f32 %v408, %v641
  %643 = vmatmul.f32.gmra.mxu0 %v54
  %v644 = vpop.f32.mrf.mxu0
  %v645 = vadd.f32 %v408, %v644
  %646 = vmatmul.f32.gmra.mxu0 %v59
  %v647 = vpop.f32.mrf.mxu0
  %v648 = vadd.f32 %v408, %v647
  %649 = vmatmul.f32.gmra.mxu0 %v64
  %v650 = vpop.f32.mrf.mxu0
  %v651 = vadd.f32 %v408, %v650
  %652 = vmatmul.f32.gmra.mxu0 %v69
  %v653 = vpop.f32.mrf.mxu0
  %v654 = vadd.f32 %v408, %v653
  %655 = vmatmul.f32.gmra.mxu0 %v74
  %v656 = vpop.f32.mrf.mxu0
  %v657 = vadd.f32 %v408, %v656
  %658 = vmatmul.f32.gmra.mxu0 %v79
  %v659 = vpop.f32.mrf.mxu0
  %v660 = vadd.f32 %v408, %v659
  %661 = vmatmul.f32.gmra.mxu0 %v84
  %v662 = vpop.f32.mrf.mxu0
  %v663 = vadd.f32 %v408, %v662
  %664 = vmatmul.f32.gmra.mxu0 %v89
  %v665 = vpop.f32.mrf.mxu0
  %v666 = vadd.f32 %v408, %v665
  %667 = vmatmul.f32.gmra.mxu0 %v94
  %v668 = vpop.f32.mrf.mxu0
  %v669 = vadd.f32 %v408, %v668
  %670 = vmatmul.f32.gmra.mxu0 %v99
  %v671 = vpop.f32.mrf.mxu0
  %v672 = vadd.f32 %v408, %v671
  %673 = vmatmul.f32.gmra.mxu0 %v104
  %v674 = vpop.f32.mrf.mxu0
  %v675 = vadd.f32 %v408, %v674
  %676 = vmatmul.f32.gmra.mxu0 %v109
  %v677 = vpop.f32.mrf.mxu0
  %v678 = vadd.f32 %v408, %v677
  %679 = vmatmul.f32.gmra.mxu0 %v114
  %v680 = vpop.f32.mrf.mxu0
  %v681 = vadd.f32 %v408, %v680
  %682 = vmatmul.f32.gmra.mxu0 %v119
  %v683 = vpop.f32.mrf.mxu0
  %v684 = vadd.f32 %v408, %v683
  %685 = vmatmul.f32.gmra.mxu0 %v124
  %v686 = vpop.f32.mrf.mxu0
  %v687 = vadd.f32 %v408, %v686
  %688 = vmatmul.f32.gmra.mxu0 %v129
  %v689 = vpop.f32.mrf.mxu0
  %v690 = vadd.f32 %v408, %v689
  %691 = vmatmul.f32.gmra.mxu0 %v134
  %v692 = vpop.f32.mrf.mxu0
  %v693 = vadd.f32 %v408, %v692
  %694 = vmatmul.f32.gmra.mxu0 %v139
  %v695 = vpop.f32.mrf.mxu0
  %v696 = vadd.f32 %v408, %v695
  %697 = vmatmul.f32.gmra.mxu0 %v144
  %v698 = vpop.f32.mrf.mxu0
  %v699 = vadd.f32 %v408, %v698
  %700 = vmatmul.f32.gmra.mxu0 %v149
  %v701 = vpop.f32.mrf.mxu0
  %v702 = vadd.f32 %v408, %v701
  %703 = vmatmul.f32.gmra.mxu0 %v154
  %v704 = vpop.f32.mrf.mxu0
  %v705 = vadd.f32 %v408, %v704
  %706 = vmatmul.f32.gmra.mxu0 %v159
  %v707 = vpop.f32.mrf.mxu0
  %v708 = vadd.f32 %v408, %v707
  %709 = vmatmul.f32.gmra.mxu0 %v164
  %v710 = vpop.f32.mrf.mxu0
  %v711 = vadd.f32 %v408, %v710
  %712 = vmatmul.f32.gmra.mxu0 %v169
  %v713 = vpop.f32.mrf.mxu0
  %v714 = vadd.f32 %v408, %v713
  %715 = vmatmul.f32.gmra.mxu0 %v174
  %v716 = vpop.f32.mrf.mxu0
  %v717 = vadd.f32 %v408, %v716
  %718 = vmatmul.f32.gmra.mxu0 %v179
  %v719 = vpop.f32.mrf.mxu0
  %v720 = vadd.f32 %v408, %v719
  %721 = vmatmul.f32.gmra.mxu0 %v184
  %v722 = vpop.f32.mrf.mxu0
  %v723 = vadd.f32 %v408, %v722
  %724 = vmatmul.f32.gmra.mxu0 %v189
  %v725 = vpop.f32.mrf.mxu0
  %v726 = vadd.f32 %v408, %v725
  %727 = vmatmul.f32.gmra.mxu0 %v194
  %v728 = vpop.f32.mrf.mxu0
  %v729 = vadd.f32 %v408, %v728
  %730 = vmatmul.f32.gmra.mxu0 %v199
  %v731 = vpop.f32.mrf.mxu0
  %v732 = vadd.f32 %v408, %v731
  %733 = vmatmul.f32.gmra.mxu0 %v204
  %v734 = vpop.f32.mrf.mxu0
  %v735 = vadd.f32 %v408, %v734
  %736 = vmatmul.f32.gmra.mxu0 %v209
  %v737 = vpop.f32.mrf.mxu0
  %v738 = vadd.f32 %v408, %v737
  %739 = vmatmul.f32.gmra.mxu0 %v214
  %v740 = vpop.f32.mrf.mxu0
  %v741 = vadd.f32 %v408, %v740
  %742 = vmatmul.f32.gmra.mxu0 %v219
  %v743 = vpop.f32.mrf.mxu0
  %v744 = vadd.f32 %v408, %v743
  %745 = vmatmul.f32.gmra.mxu0 %v224
  %v746 = vpop.f32.mrf.mxu0
  %v747 = vadd.f32 %v408, %v746
  %748 = vmatmul.f32.gmra.mxu0 %v229
  %v749 = vpop.f32.mrf.mxu0
  %v750 = vadd.f32 %v408, %v749
  %751 = vmatmul.f32.gmra.mxu0 %v234
  %v752 = vpop.f32.mrf.mxu0
  %v753 = vadd.f32 %v408, %v752
  %754 = vmatmul.f32.gmra.mxu0 %v239
  %v755 = vpop.f32.mrf.mxu0
  %v756 = vadd.f32 %v408, %v755
  %757 = vmatmul.f32.gmra.mxu0 %v244
  %v758 = vpop.f32.mrf.mxu0
  %v759 = vadd.f32 %v408, %v758
  %760 = vmatmul.f32.gmra.mxu0 %v249
  %v761 = vpop.f32.mrf.mxu0
  %v762 = vadd.f32 %v408, %v761
  %763 = vmatmul.f32.gmra.mxu0 %v254
  %v764 = vpop.f32.mrf.mxu0
  %v765 = vadd.f32 %v408, %v764
  %766 = vmatmul.f32.gmra.mxu0 %v259
  %v767 = vpop.f32.mrf.mxu0
  %v768 = vadd.f32 %v408, %v767
  %769 = vmatmul.f32.gmra.mxu0 %v264
  %v770 = vpop.f32.mrf.mxu0
  %v771 = vadd.f32 %v408, %v770
  %772 = vmatmul.f32.gmra.mxu0 %v269
  %v773 = vpop.f32.mrf.mxu0
  %v774 = vadd.f32 %v408, %v773
  %775 = vmatmul.f32.gmra.mxu0 %v274
  %v776 = vpop.f32.mrf.mxu0
  %v777 = vadd.f32 %v408, %v776
  %778 = vmatmul.f32.gmra.mxu0 %v279
  %v779 = vpop.f32.mrf.mxu0
  %v780 = vadd.f32 %v408, %v779
  %781 = vmatmul.f32.gmra.mxu0 %v284
  %v782 = vpop.f32.mrf.mxu0
  %v783 = vadd.f32 %v408, %v782
  %784 = vmatmul.f32.gmra.mxu0 %v289
  %v785 = vpop.f32.mrf.mxu0
  %v786 = vadd.f32 %v408, %v785
  %787 = vmatmul.f32.gmra.mxu0 %v294
  %v788 = vpop.f32.mrf.mxu0
  %v789 = vadd.f32 %v408, %v788
  %790 = vmatmul.f32.gmra.mxu0 %v299
  %v791 = vpop.f32.mrf.mxu0
  %v792 = vadd.f32 %v408, %v791
  %793 = vmatmul.f32.gmra.mxu0 %v304
  %v794 = vpop.f32.mrf.mxu0
  %v795 = vadd.f32 %v408, %v794
  %796 = vmatmul.f32.gmra.mxu0 %v309
  %v797 = vpop.f32.mrf.mxu0
  %v798 = vadd.f32 %v408, %v797
  %799 = vmatmul.f32.gmra.mxu0 %v314
  %v800 = vpop.f32.mrf.mxu0
  %v801 = vadd.f32 %v408, %v800
  %802 = vmatmul.f32.gmra.mxu0 %v319
  %v803 = vpop.f32.mrf.mxu0
  %v804 = vadd.f32 %v408, %v803
  %805 = vmatmul.f32.gmra.mxu0 %v324
  %v806 = vpop.f32.mrf.mxu0
  %v807 = vadd.f32 %v408, %v806
  %808 = vmatmul.f32.gmra.mxu0 %v329
  %v809 = vpop.f32.mrf.mxu0
  %v810 = vadd.f32 %v408, %v809
  %811 = vdwg.mxu0
  %812 = vmatpush.msra.mxu0 %v365
  %813 = vmatpush.msra.mxu0 %v364
  %814 = vmatpush.msra.mxu0 %v363
  %815 = vmatpush.msra.mxu0 %v362
  %816 = vmatpush.msra.mxu0 %v361
  %817 = vmatpush.msra.mxu0 %v360
  %818 = vmatpush.msra.mxu0 %v359
  %819 = vmatpush.msra.mxu0 %v358
  %820 = vmatpush.msra.mxu0 %v357
  %821 = vmatpush.msra.mxu0 %v356
  %822 = vmatpush.msra.mxu0 %v355
  %823 = vmatpush.msra.mxu0 %v354
  %824 = vmatpush.msra.mxu0 %v353
  %825 = vmatpush.msra.mxu0 %v352
  %826 = vmatpush.msra.mxu0 %v351
  %827 = vmatpush.msra.mxu0 %v350
  %828 = vmatmul.f32.gmra.mxu0 %v15
  %v829 = vpop.f32.mrf.mxu0
  %v830 = vadd.f32 %v621, %v829
  %831 = vmatmul.f32.gmra.mxu0 %v20
  %v832 = vpop.f32.mrf.mxu0
  %v833 = vadd.f32 %v624, %v832
  %834 = vmatmul.f32.gmra.mxu0 %v25
  %v835 = vpop.f32.mrf.mxu0
  %v836 = vadd.f32 %v627, %v835
  %837 = vmatmul.f32.gmra.mxu0 %v30
  %v838 = vpop.f32.mrf.mxu0
  %v839 = vadd.f32 %v630, %v838
  %840 = vmatmul.f32.gmra.mxu0 %v35
  %v841 = vpop.f32.mrf.mxu0
  %v842 = vadd.f32 %v633, %v841
  %843 = vmatmul.f32.gmra.mxu0 %v40
  %v844 = vpop.f32.mrf.mxu0
  %v845 = vadd.f32 %v636, %v844
  %846 = vmatmul.f32.gmra.mxu0 %v45
  %v847 = vpop.f32.mrf.mxu0
  %v848 = vadd.f32 %v639, %v847
  %849 = vmatmul.f32.gmra.mxu0 %v50
  %v850 = vpop.f32.mrf.mxu0
  %v851 = vadd.f32 %v642, %v850
  %852 = vmatmul.f32.gmra.mxu0 %v55
  %v853 = vpop.f32.mrf.mxu0
  %v854 = vadd.f32 %v645, %v853
  %855 = vmatmul.f32.gmra.mxu0 %v60
  %v856 = vpop.f32.mrf.mxu0
  %v857 = vadd.f32 %v648, %v856
  %858 = vmatmul.f32.gmra.mxu0 %v65
  %v859 = vpop.f32.mrf.mxu0
  %v860 = vadd.f32 %v651, %v859
  %861 = vmatmul.f32.gmra.mxu0 %v70
  %v862 = vpop.f32.mrf.mxu0
  %v863 = vadd.f32 %v654, %v862
  %864 = vmatmul.f32.gmra.mxu0 %v75
  %v865 = vpop.f32.mrf.mxu0
  %v866 = vadd.f32 %v657, %v865
  %867 = vmatmul.f32.gmra.mxu0 %v80
  %v868 = vpop.f32.mrf.mxu0
  %v869 = vadd.f32 %v660, %v868
  %870 = vmatmul.f32.gmra.mxu0 %v85
  %v871 = vpop.f32.mrf.mxu0
  %v872 = vadd.f32 %v663, %v871
  %873 = vmatmul.f32.gmra.mxu0 %v90
  %v874 = vpop.f32.mrf.mxu0
  %v875 = vadd.f32 %v666, %v874
  %876 = vmatmul.f32.gmra.mxu0 %v95
  %v877 = vpop.f32.mrf.mxu0
  %v878 = vadd.f32 %v669, %v877
  %879 = vmatmul.f32.gmra.mxu0 %v100
  %v880 = vpop.f32.mrf.mxu0
  %v881 = vadd.f32 %v672, %v880
  %882 = vmatmul.f32.gmra.mxu0 %v105
  %v883 = vpop.f32.mrf.mxu0
  %v884 = vadd.f32 %v675, %v883
  %885 = vmatmul.f32.gmra.mxu0 %v110
  %v886 = vpop.f32.mrf.mxu0
  %v887 = vadd.f32 %v678, %v886
  %888 = vmatmul.f32.gmra.mxu0 %v115
  %v889 = vpop.f32.mrf.mxu0
  %v890 = vadd.f32 %v681, %v889
  %891 = vmatmul.f32.gmra.mxu0 %v120
  %v892 = vpop.f32.mrf.mxu0
  %v893 = vadd.f32 %v684, %v892
  %894 = vmatmul.f32.gmra.mxu0 %v125
  %v895 = vpop.f32.mrf.mxu0
  %v896 = vadd.f32 %v687, %v895
  %897 = vmatmul.f32.gmra.mxu0 %v130
  %v898 = vpop.f32.mrf.mxu0
  %v899 = vadd.f32 %v690, %v898
  %900 = vmatmul.f32.gmra.mxu0 %v135
  %v901 = vpop.f32.mrf.mxu0
  %v902 = vadd.f32 %v693, %v901
  %903 = vmatmul.f32.gmra.mxu0 %v140
  %v904 = vpop.f32.mrf.mxu0
  %v905 = vadd.f32 %v696, %v904
  %906 = vmatmul.f32.gmra.mxu0 %v145
  %v907 = vpop.f32.mrf.mxu0
  %v908 = vadd.f32 %v699, %v907
  %909 = vmatmul.f32.gmra.mxu0 %v150
  %v910 = vpop.f32.mrf.mxu0
  %v911 = vadd.f32 %v702, %v910
  %912 = vmatmul.f32.gmra.mxu0 %v155
  %v913 = vpop.f32.mrf.mxu0
  %v914 = vadd.f32 %v705, %v913
  %915 = vmatmul.f32.gmra.mxu0 %v160
  %v916 = vpop.f32.mrf.mxu0
  %v917 = vadd.f32 %v708, %v916
  %918 = vmatmul.f32.gmra.mxu0 %v165
  %v919 = vpop.f32.mrf.mxu0
  %v920 = vadd.f32 %v711, %v919
  %921 = vmatmul.f32.gmra.mxu0 %v170
  %v922 = vpop.f32.mrf.mxu0
  %v923 = vadd.f32 %v714, %v922
  %924 = vmatmul.f32.gmra.mxu0 %v175
  %v925 = vpop.f32.mrf.mxu0
  %v926 = vadd.f32 %v717, %v925
  %927 = vmatmul.f32.gmra.mxu0 %v180
  %v928 = vpop.f32.mrf.mxu0
  %v929 = vadd.f32 %v720, %v928
  %930 = vmatmul.f32.gmra.mxu0 %v185
  %v931 = vpop.f32.mrf.mxu0
  %v932 = vadd.f32 %v723, %v931
  %933 = vmatmul.f32.gmra.mxu0 %v190
  %v934 = vpop.f32.mrf.mxu0
  %v935 = vadd.f32 %v726, %v934
  %936 = vmatmul.f32.gmra.mxu0 %v195
  %v937 = vpop.f32.mrf.mxu0
  %v938 = vadd.f32 %v729, %v937
  %939 = vmatmul.f32.gmra.mxu0 %v200
  %v940 = vpop.f32.mrf.mxu0
  %v941 = vadd.f32 %v732, %v940
  %942 = vmatmul.f32.gmra.mxu0 %v205
  %v943 = vpop.f32.mrf.mxu0
  %v944 = vadd.f32 %v735, %v943
  %945 = vmatmul.f32.gmra.mxu0 %v210
  %v946 = vpop.f32.mrf.mxu0
  %v947 = vadd.f32 %v738, %v946
  %948 = vmatmul.f32.gmra.mxu0 %v215
  %v949 = vpop.f32.mrf.mxu0
  %v950 = vadd.f32 %v741, %v949
  %951 = vmatmul.f32.gmra.mxu0 %v220
  %v952 = vpop.f32.mrf.mxu0
  %v953 = vadd.f32 %v744, %v952
  %954 = vmatmul.f32.gmra.mxu0 %v225
  %v955 = vpop.f32.mrf.mxu0
  %v956 = vadd.f32 %v747, %v955
  %957 = vmatmul.f32.gmra.mxu0 %v230
  %v958 = vpop.f32.mrf.mxu0
  %v959 = vadd.f32 %v750, %v958
  %960 = vmatmul.f32.gmra.mxu0 %v235
  %v961 = vpop.f32.mrf.mxu0
  %v962 = vadd.f32 %v753, %v961
  %963 = vmatmul.f32.gmra.mxu0 %v240
  %v964 = vpop.f32.mrf.mxu0
  %v965 = vadd.f32 %v756, %v964
  %966 = vmatmul.f32.gmra.mxu0 %v245
  %v967 = vpop.f32.mrf.mxu0
  %v968 = vadd.f32 %v759, %v967
  %969 = vmatmul.f32.gmra.mxu0 %v250
  %v970 = vpop.f32.mrf.mxu0
  %v971 = vadd.f32 %v762, %v970
  %972 = vmatmul.f32.gmra.mxu0 %v255
  %v973 = vpop.f32.mrf.mxu0
  %v974 = vadd.f32 %v765, %v973
  %975 = vmatmul.f32.gmra.mxu0 %v260
  %v976 = vpop.f32.mrf.mxu0
  %v977 = vadd.f32 %v768, %v976
  %978 = vmatmul.f32.gmra.mxu0 %v265
  %v979 = vpop.f32.mrf.mxu0
  %v980 = vadd.f32 %v771, %v979
  %981 = vmatmul.f32.gmra.mxu0 %v270
  %v982 = vpop.f32.mrf.mxu0
  %v983 = vadd.f32 %v774, %v982
  %984 = vmatmul.f32.gmra.mxu0 %v275
  %v985 = vpop.f32.mrf.mxu0
  %v986 = vadd.f32 %v777, %v985
  %987 = vmatmul.f32.gmra.mxu0 %v280
  %v988 = vpop.f32.mrf.mxu0
  %v989 = vadd.f32 %v780, %v988
  %990 = vmatmul.f32.gmra.mxu0 %v285
  %v991 = vpop.f32.mrf.mxu0
  %v992 = vadd.f32 %v783, %v991
  %993 = vmatmul.f32.gmra.mxu0 %v290
  %v994 = vpop.f32.mrf.mxu0
  %v995 = vadd.f32 %v786, %v994
  %996 = vmatmul.f32.gmra.mxu0 %v295
  %v997 = vpop.f32.mrf.mxu0
  %v998 = vadd.f32 %v789, %v997
  %999 = vmatmul.f32.gmra.mxu0 %v300
  %v1000 = vpop.f32.mrf.mxu0
  %v1001 = vadd.f32 %v792, %v1000
  %1002 = vmatmul.f32.gmra.mxu0 %v305
  %v1003 = vpop.f32.mrf.mxu0
  %v1004 = vadd.f32 %v795, %v1003
  %1005 = vmatmul.f32.gmra.mxu0 %v310
  %v1006 = vpop.f32.mrf.mxu0
  %v1007 = vadd.f32 %v798, %v1006
  %1008 = vmatmul.f32.gmra.mxu0 %v315
  %v1009 = vpop.f32.mrf.mxu0
  %v1010 = vadd.f32 %v801, %v1009
  %1011 = vmatmul.f32.gmra.mxu0 %v320
  %v1012 = vpop.f32.mrf.mxu0
  %v1013 = vadd.f32 %v804, %v1012
  %1014 = vmatmul.f32.gmra.mxu0 %v325
  %v1015 = vpop.f32.mrf.mxu0
  %v1016 = vadd.f32 %v807, %v1015
  %1017 = vmatmul.f32.gmra.mxu0 %v330
  %v1018 = vpop.f32.mrf.mxu0
  %v1019 = vadd.f32 %v810, %v1018
  %1020 = vdwg.mxu0
  %1021 = vmatpush.msra.mxu0 %v381
  %1022 = vmatpush.msra.mxu0 %v380
  %1023 = vmatpush.msra.mxu0 %v379
  %1024 = vmatpush.msra.mxu0 %v378
  %1025 = vmatpush.msra.mxu0 %v377
  %1026 = vmatpush.msra.mxu0 %v376
  %1027 = vmatpush.msra.mxu0 %v375
  %1028 = vmatpush.msra.mxu0 %v374
  %1029 = vmatpush.msra.mxu0 %v373
  %1030 = vmatpush.msra.mxu0 %v372
  %1031 = vmatpush.msra.mxu0 %v371
  %1032 = vmatpush.msra.mxu0 %v370
  %1033 = vmatpush.msra.mxu0 %v369
  %1034 = vmatpush.msra.mxu0 %v368
  %1035 = vmatpush.msra.mxu0 %v367
  %1036 = vmatpush.msra.mxu0 %v366
  %1037 = vmatmul.f32.gmra.mxu0 %v16
  %v1038 = vpop.f32.mrf.mxu0
  %v1039 = vadd.f32 %v830, %v1038
  %1040 = vmatmul.f32.gmra.mxu0 %v21
  %v1041 = vpop.f32.mrf.mxu0
  %v1042 = vadd.f32 %v833, %v1041
  %1043 = vmatmul.f32.gmra.mxu0 %v26
  %v1044 = vpop.f32.mrf.mxu0
  %v1045 = vadd.f32 %v836, %v1044
  %1046 = vmatmul.f32.gmra.mxu0 %v31
  %v1047 = vpop.f32.mrf.mxu0
  %v1048 = vadd.f32 %v839, %v1047
  %1049 = vmatmul.f32.gmra.mxu0 %v36
  %v1050 = vpop.f32.mrf.mxu0
  %v1051 = vadd.f32 %v842, %v1050
  %1052 = vmatmul.f32.gmra.mxu0 %v41
  %v1053 = vpop.f32.mrf.mxu0
  %v1054 = vadd.f32 %v845, %v1053
  %1055 = vmatmul.f32.gmra.mxu0 %v46
  %v1056 = vpop.f32.mrf.mxu0
  %v1057 = vadd.f32 %v848, %v1056
  %1058 = vmatmul.f32.gmra.mxu0 %v51
  %v1059 = vpop.f32.mrf.mxu0
  %v1060 = vadd.f32 %v851, %v1059
  %1061 = vmatmul.f32.gmra.mxu0 %v56
  %v1062 = vpop.f32.mrf.mxu0
  %v1063 = vadd.f32 %v854, %v1062
  %1064 = vmatmul.f32.gmra.mxu0 %v61
  %v1065 = vpop.f32.mrf.mxu0
  %v1066 = vadd.f32 %v857, %v1065
  %1067 = vmatmul.f32.gmra.mxu0 %v66
  %v1068 = vpop.f32.mrf.mxu0
  %v1069 = vadd.f32 %v860, %v1068
  %1070 = vmatmul.f32.gmra.mxu0 %v71
  %v1071 = vpop.f32.mrf.mxu0
  %v1072 = vadd.f32 %v863, %v1071
  %1073 = vmatmul.f32.gmra.mxu0 %v76
  %v1074 = vpop.f32.mrf.mxu0
  %v1075 = vadd.f32 %v866, %v1074
  %1076 = vmatmul.f32.gmra.mxu0 %v81
  %v1077 = vpop.f32.mrf.mxu0
  %v1078 = vadd.f32 %v869, %v1077
  %1079 = vmatmul.f32.gmra.mxu0 %v86
  %v1080 = vpop.f32.mrf.mxu0
  %v1081 = vadd.f32 %v872, %v1080
  %1082 = vmatmul.f32.gmra.mxu0 %v91
  %v1083 = vpop.f32.mrf.mxu0
  %v1084 = vadd.f32 %v875, %v1083
  %1085 = vmatmul.f32.gmra.mxu0 %v96
  %v1086 = vpop.f32.mrf.mxu0
  %v1087 = vadd.f32 %v878, %v1086
  %1088 = vmatmul.f32.gmra.mxu0 %v101
  %v1089 = vpop.f32.mrf.mxu0
  %v1090 = vadd.f32 %v881, %v1089
  %1091 = vmatmul.f32.gmra.mxu0 %v106
  %v1092 = vpop.f32.mrf.mxu0
  %v1093 = vadd.f32 %v884, %v1092
  %1094 = vmatmul.f32.gmra.mxu0 %v111
  %v1095 = vpop.f32.mrf.mxu0
  %v1096 = vadd.f32 %v887, %v1095
  %1097 = vmatmul.f32.gmra.mxu0 %v116
  %v1098 = vpop.f32.mrf.mxu0
  %v1099 = vadd.f32 %v890, %v1098
  %1100 = vmatmul.f32.gmra.mxu0 %v121
  %v1101 = vpop.f32.mrf.mxu0
  %v1102 = vadd.f32 %v893, %v1101
  %1103 = vmatmul.f32.gmra.mxu0 %v126
  %v1104 = vpop.f32.mrf.mxu0
  %v1105 = vadd.f32 %v896, %v1104
  %1106 = vmatmul.f32.gmra.mxu0 %v131
  %v1107 = vpop.f32.mrf.mxu0
  %v1108 = vadd.f32 %v899, %v1107
  %1109 = vmatmul.f32.gmra.mxu0 %v136
  %v1110 = vpop.f32.mrf.mxu0
  %v1111 = vadd.f32 %v902, %v1110
  %1112 = vmatmul.f32.gmra.mxu0 %v141
  %v1113 = vpop.f32.mrf.mxu0
  %v1114 = vadd.f32 %v905, %v1113
  %1115 = vmatmul.f32.gmra.mxu0 %v146
  %v1116 = vpop.f32.mrf.mxu0
  %v1117 = vadd.f32 %v908, %v1116
  %1118 = vmatmul.f32.gmra.mxu0 %v151
  %v1119 = vpop.f32.mrf.mxu0
  %v1120 = vadd.f32 %v911, %v1119
  %1121 = vmatmul.f32.gmra.mxu0 %v156
  %v1122 = vpop.f32.mrf.mxu0
  %v1123 = vadd.f32 %v914, %v1122
  %1124 = vmatmul.f32.gmra.mxu0 %v161
  %v1125 = vpop.f32.mrf.mxu0
  %v1126 = vadd.f32 %v917, %v1125
  %1127 = vmatmul.f32.gmra.mxu0 %v166
  %v1128 = vpop.f32.mrf.mxu0
  %v1129 = vadd.f32 %v920, %v1128
  %1130 = vmatmul.f32.gmra.mxu0 %v171
  %v1131 = vpop.f32.mrf.mxu0
  %v1132 = vadd.f32 %v923, %v1131
  %1133 = vmatmul.f32.gmra.mxu0 %v176
  %v1134 = vpop.f32.mrf.mxu0
  %v1135 = vadd.f32 %v926, %v1134
  %1136 = vmatmul.f32.gmra.mxu0 %v181
  %v1137 = vpop.f32.mrf.mxu0
  %v1138 = vadd.f32 %v929, %v1137
  %1139 = vmatmul.f32.gmra.mxu0 %v186
  %v1140 = vpop.f32.mrf.mxu0
  %v1141 = vadd.f32 %v932, %v1140
  %1142 = vmatmul.f32.gmra.mxu0 %v191
  %v1143 = vpop.f32.mrf.mxu0
  %v1144 = vadd.f32 %v935, %v1143
  %1145 = vmatmul.f32.gmra.mxu0 %v196
  %v1146 = vpop.f32.mrf.mxu0
  %v1147 = vadd.f32 %v938, %v1146
  %1148 = vmatmul.f32.gmra.mxu0 %v201
  %v1149 = vpop.f32.mrf.mxu0
  %v1150 = vadd.f32 %v941, %v1149
  %1151 = vmatmul.f32.gmra.mxu0 %v206
  %v1152 = vpop.f32.mrf.mxu0
  %v1153 = vadd.f32 %v944, %v1152
  %1154 = vmatmul.f32.gmra.mxu0 %v211
  %v1155 = vpop.f32.mrf.mxu0
  %v1156 = vadd.f32 %v947, %v1155
  %1157 = vmatmul.f32.gmra.mxu0 %v216
  %v1158 = vpop.f32.mrf.mxu0
  %v1159 = vadd.f32 %v950, %v1158
  %1160 = vmatmul.f32.gmra.mxu0 %v221
  %v1161 = vpop.f32.mrf.mxu0
  %v1162 = vadd.f32 %v953, %v1161
  %1163 = vmatmul.f32.gmra.mxu0 %v226
  %v1164 = vpop.f32.mrf.mxu0
  %v1165 = vadd.f32 %v956, %v1164
  %1166 = vmatmul.f32.gmra.mxu0 %v231
  %v1167 = vpop.f32.mrf.mxu0
  %v1168 = vadd.f32 %v959, %v1167
  %1169 = vmatmul.f32.gmra.mxu0 %v236
  %v1170 = vpop.f32.mrf.mxu0
  %v1171 = vadd.f32 %v962, %v1170
  %1172 = vmatmul.f32.gmra.mxu0 %v241
  %v1173 = vpop.f32.mrf.mxu0
  %v1174 = vadd.f32 %v965, %v1173
  %1175 = vmatmul.f32.gmra.mxu0 %v246
  %v1176 = vpop.f32.mrf.mxu0
  %v1177 = vadd.f32 %v968, %v1176
  %1178 = vmatmul.f32.gmra.mxu0 %v251
  %v1179 = vpop.f32.mrf.mxu0
  %v1180 = vadd.f32 %v971, %v1179
  %1181 = vmatmul.f32.gmra.mxu0 %v256
  %v1182 = vpop.f32.mrf.mxu0
  %v1183 = vadd.f32 %v974, %v1182
  %1184 = vmatmul.f32.gmra.mxu0 %v261
  %v1185 = vpop.f32.mrf.mxu0
  %v1186 = vadd.f32 %v977, %v1185
  %1187 = vmatmul.f32.gmra.mxu0 %v266
  %v1188 = vpop.f32.mrf.mxu0
  %v1189 = vadd.f32 %v980, %v1188
  %1190 = vmatmul.f32.gmra.mxu0 %v271
  %v1191 = vpop.f32.mrf.mxu0
  %v1192 = vadd.f32 %v983, %v1191
  %1193 = vmatmul.f32.gmra.mxu0 %v276
  %v1194 = vpop.f32.mrf.mxu0
  %v1195 = vadd.f32 %v986, %v1194
  %1196 = vmatmul.f32.gmra.mxu0 %v281
  %v1197 = vpop.f32.mrf.mxu0
  %v1198 = vadd.f32 %v989, %v1197
  %1199 = vmatmul.f32.gmra.mxu0 %v286
  %v1200 = vpop.f32.mrf.mxu0
  %v1201 = vadd.f32 %v992, %v1200
  %1202 = vmatmul.f32.gmra.mxu0 %v291
  %v1203 = vpop.f32.mrf.mxu0
  %v1204 = vadd.f32 %v995, %v1203
  %1205 = vmatmul.f32.gmra.mxu0 %v296
  %v1206 = vpop.f32.mrf.mxu0
  %v1207 = vadd.f32 %v998, %v1206
  %1208 = vmatmul.f32.gmra.mxu0 %v301
  %v1209 = vpop.f32.mrf.mxu0
  %v1210 = vadd.f32 %v1001, %v1209
  %1211 = vmatmul.f32.gmra.mxu0 %v306
  %v1212 = vpop.f32.mrf.mxu0
  %v1213 = vadd.f32 %v1004, %v1212
  %1214 = vmatmul.f32.gmra.mxu0 %v311
  %v1215 = vpop.f32.mrf.mxu0
  %v1216 = vadd.f32 %v1007, %v1215
  %1217 = vmatmul.f32.gmra.mxu0 %v316
  %v1218 = vpop.f32.mrf.mxu0
  %v1219 = vadd.f32 %v1010, %v1218
  %1220 = vmatmul.f32.gmra.mxu0 %v321
  %v1221 = vpop.f32.mrf.mxu0
  %v1222 = vadd.f32 %v1013, %v1221
  %1223 = vmatmul.f32.gmra.mxu0 %v326
  %v1224 = vpop.f32.mrf.mxu0
  %v1225 = vadd.f32 %v1016, %v1224
  %1226 = vmatmul.f32.gmra.mxu0 %v331
  %v1227 = vpop.f32.mrf.mxu0
  %v1228 = vadd.f32 %v1019, %v1227
  %1229 = vdwg.mxu0
  %1230 = vmatpush.msra.mxu0 %v397
  %1231 = vmatpush.msra.mxu0 %v396
  %1232 = vmatpush.msra.mxu0 %v395
  %1233 = vmatpush.msra.mxu0 %v394
  %1234 = vmatpush.msra.mxu0 %v393
  %1235 = vmatpush.msra.mxu0 %v392
  %1236 = vmatpush.msra.mxu0 %v391
  %1237 = vmatpush.msra.mxu0 %v390
  %1238 = vmatpush.msra.mxu0 %v389
  %1239 = vmatpush.msra.mxu0 %v388
  %1240 = vmatpush.msra.mxu0 %v387
  %1241 = vmatpush.msra.mxu0 %v386
  %1242 = vmatpush.msra.mxu0 %v385
  %1243 = vmatpush.msra.mxu0 %v384
  %1244 = vmatpush.msra.mxu0 %v383
  %1245 = vmatpush.msra.mxu0 %v382
  %1246 = vmatmul.f32.gmra.mxu0 %v17
  %v1247 = vpop.f32.mrf.mxu0
  %v1248 = vadd.f32 %v1039, %v1247
  %1249 = vmatmul.f32.gmra.mxu0 %v22
  %v1250 = vpop.f32.mrf.mxu0
  %v1251 = vadd.f32 %v1042, %v1250
  %1252 = vmatmul.f32.gmra.mxu0 %v27
  %v1253 = vpop.f32.mrf.mxu0
  %v1254 = vadd.f32 %v1045, %v1253
  %1255 = vmatmul.f32.gmra.mxu0 %v32
  %v1256 = vpop.f32.mrf.mxu0
  %v1257 = vadd.f32 %v1048, %v1256
  %1258 = vmatmul.f32.gmra.mxu0 %v37
  %v1259 = vpop.f32.mrf.mxu0
  %v1260 = vadd.f32 %v1051, %v1259
  %1261 = vmatmul.f32.gmra.mxu0 %v42
  %v1262 = vpop.f32.mrf.mxu0
  %v1263 = vadd.f32 %v1054, %v1262
  %1264 = vmatmul.f32.gmra.mxu0 %v47
  %v1265 = vpop.f32.mrf.mxu0
  %v1266 = vadd.f32 %v1057, %v1265
  %1267 = vmatmul.f32.gmra.mxu0 %v52
  %v1268 = vpop.f32.mrf.mxu0
  %v1269 = vadd.f32 %v1060, %v1268
  %1270 = vmatmul.f32.gmra.mxu0 %v57
  %v1271 = vpop.f32.mrf.mxu0
  %v1272 = vadd.f32 %v1063, %v1271
  %1273 = vmatmul.f32.gmra.mxu0 %v62
  %v1274 = vpop.f32.mrf.mxu0
  %v1275 = vadd.f32 %v1066, %v1274
  %1276 = vmatmul.f32.gmra.mxu0 %v67
  %v1277 = vpop.f32.mrf.mxu0
  %v1278 = vadd.f32 %v1069, %v1277
  %1279 = vmatmul.f32.gmra.mxu0 %v72
  %v1280 = vpop.f32.mrf.mxu0
  %v1281 = vadd.f32 %v1072, %v1280
  %1282 = vmatmul.f32.gmra.mxu0 %v77
  %v1283 = vpop.f32.mrf.mxu0
  %v1284 = vadd.f32 %v1075, %v1283
  %1285 = vmatmul.f32.gmra.mxu0 %v82
  %v1286 = vpop.f32.mrf.mxu0
  %v1287 = vadd.f32 %v1078, %v1286
  %1288 = vmatmul.f32.gmra.mxu0 %v87
  %v1289 = vpop.f32.mrf.mxu0
  %v1290 = vadd.f32 %v1081, %v1289
  %1291 = vmatmul.f32.gmra.mxu0 %v92
  %v1292 = vpop.f32.mrf.mxu0
  %v1293 = vadd.f32 %v1084, %v1292
  %1294 = vmatmul.f32.gmra.mxu0 %v97
  %v1295 = vpop.f32.mrf.mxu0
  %v1296 = vadd.f32 %v1087, %v1295
  %1297 = vmatmul.f32.gmra.mxu0 %v102
  %v1298 = vpop.f32.mrf.mxu0
  %v1299 = vadd.f32 %v1090, %v1298
  %1300 = vmatmul.f32.gmra.mxu0 %v107
  %v1301 = vpop.f32.mrf.mxu0
  %v1302 = vadd.f32 %v1093, %v1301
  %1303 = vmatmul.f32.gmra.mxu0 %v112
  %v1304 = vpop.f32.mrf.mxu0
  %v1305 = vadd.f32 %v1096, %v1304
  %1306 = vmatmul.f32.gmra.mxu0 %v117
  %v1307 = vpop.f32.mrf.mxu0
  %v1308 = vadd.f32 %v1099, %v1307
  %1309 = vmatmul.f32.gmra.mxu0 %v122
  %v1310 = vpop.f32.mrf.mxu0
  %v1311 = vadd.f32 %v1102, %v1310
  %1312 = vmatmul.f32.gmra.mxu0 %v127
  %v1313 = vpop.f32.mrf.mxu0
  %v1314 = vadd.f32 %v1105, %v1313
  %1315 = vmatmul.f32.gmra.mxu0 %v132
  %v1316 = vpop.f32.mrf.mxu0
  %v1317 = vadd.f32 %v1108, %v1316
  %1318 = vmatmul.f32.gmra.mxu0 %v137
  %v1319 = vpop.f32.mrf.mxu0
  %v1320 = vadd.f32 %v1111, %v1319
  %1321 = vmatmul.f32.gmra.mxu0 %v142
  %v1322 = vpop.f32.mrf.mxu0
  %v1323 = vadd.f32 %v1114, %v1322
  %1324 = vmatmul.f32.gmra.mxu0 %v147
  %v1325 = vpop.f32.mrf.mxu0
  %v1326 = vadd.f32 %v1117, %v1325
  %1327 = vmatmul.f32.gmra.mxu0 %v152
  %v1328 = vpop.f32.mrf.mxu0
  %v1329 = vadd.f32 %v1120, %v1328
  %1330 = vmatmul.f32.gmra.mxu0 %v157
  %v1331 = vpop.f32.mrf.mxu0
  %v1332 = vadd.f32 %v1123, %v1331
  %1333 = vmatmul.f32.gmra.mxu0 %v162
  %v1334 = vpop.f32.mrf.mxu0
  %v1335 = vadd.f32 %v1126, %v1334
  %1336 = vmatmul.f32.gmra.mxu0 %v167
  %v1337 = vpop.f32.mrf.mxu0
  %v1338 = vadd.f32 %v1129, %v1337
  %1339 = vmatmul.f32.gmra.mxu0 %v172
  %v1340 = vpop.f32.mrf.mxu0
  %v1341 = vadd.f32 %v1132, %v1340
  %1342 = vmatmul.f32.gmra.mxu0 %v177
  %v1343 = vpop.f32.mrf.mxu0
  %v1344 = vadd.f32 %v1135, %v1343
  %1345 = vmatmul.f32.gmra.mxu0 %v182
  %v1346 = vpop.f32.mrf.mxu0
  %v1347 = vadd.f32 %v1138, %v1346
  %1348 = vmatmul.f32.gmra.mxu0 %v187
  %v1349 = vpop.f32.mrf.mxu0
  %v1350 = vadd.f32 %v1141, %v1349
  %1351 = vmatmul.f32.gmra.mxu0 %v192
  %v1352 = vpop.f32.mrf.mxu0
  %v1353 = vadd.f32 %v1144, %v1352
  %1354 = vmatmul.f32.gmra.mxu0 %v197
  %v1355 = vpop.f32.mrf.mxu0
  %v1356 = vadd.f32 %v1147, %v1355
  %1357 = vmatmul.f32.gmra.mxu0 %v202
  %v1358 = vpop.f32.mrf.mxu0
  %v1359 = vadd.f32 %v1150, %v1358
  %1360 = vmatmul.f32.gmra.mxu0 %v207
  %v1361 = vpop.f32.mrf.mxu0
  %v1362 = vadd.f32 %v1153, %v1361
  %1363 = vmatmul.f32.gmra.mxu0 %v212
  %v1364 = vpop.f32.mrf.mxu0
  %v1365 = vadd.f32 %v1156, %v1364
  %1366 = vmatmul.f32.gmra.mxu0 %v217
  %v1367 = vpop.f32.mrf.mxu0
  %v1368 = vadd.f32 %v1159, %v1367
  %1369 = vmatmul.f32.gmra.mxu0 %v222
  %v1370 = vpop.f32.mrf.mxu0
  %v1371 = vadd.f32 %v1162, %v1370
  %1372 = vmatmul.f32.gmra.mxu0 %v227
  %v1373 = vpop.f32.mrf.mxu0
  %v1374 = vadd.f32 %v1165, %v1373
  %1375 = vmatmul.f32.gmra.mxu0 %v232
  %v1376 = vpop.f32.mrf.mxu0
  %v1377 = vadd.f32 %v1168, %v1376
  %1378 = vmatmul.f32.gmra.mxu0 %v237
  %v1379 = vpop.f32.mrf.mxu0
  %v1380 = vadd.f32 %v1171, %v1379
  %1381 = vmatmul.f32.gmra.mxu0 %v242
  %v1382 = vpop.f32.mrf.mxu0
  %v1383 = vadd.f32 %v1174, %v1382
  %1384 = vmatmul.f32.gmra.mxu0 %v247
  %v1385 = vpop.f32.mrf.mxu0
  %v1386 = vadd.f32 %v1177, %v1385
  %1387 = vmatmul.f32.gmra.mxu0 %v252
  %v1388 = vpop.f32.mrf.mxu0
  %v1389 = vadd.f32 %v1180, %v1388
  %1390 = vmatmul.f32.gmra.mxu0 %v257
  %v1391 = vpop.f32.mrf.mxu0
  %v1392 = vadd.f32 %v1183, %v1391
  %1393 = vmatmul.f32.gmra.mxu0 %v262
  %v1394 = vpop.f32.mrf.mxu0
  %v1395 = vadd.f32 %v1186, %v1394
  %1396 = vmatmul.f32.gmra.mxu0 %v267
  %v1397 = vpop.f32.mrf.mxu0
  %v1398 = vadd.f32 %v1189, %v1397
  %1399 = vmatmul.f32.gmra.mxu0 %v272
  %v1400 = vpop.f32.mrf.mxu0
  %v1401 = vadd.f32 %v1192, %v1400
  %1402 = vmatmul.f32.gmra.mxu0 %v277
  %v1403 = vpop.f32.mrf.mxu0
  %v1404 = vadd.f32 %v1195, %v1403
  %1405 = vmatmul.f32.gmra.mxu0 %v282
  %v1406 = vpop.f32.mrf.mxu0
  %v1407 = vadd.f32 %v1198, %v1406
  %1408 = vmatmul.f32.gmra.mxu0 %v287
  %v1409 = vpop.f32.mrf.mxu0
  %v1410 = vadd.f32 %v1201, %v1409
  %1411 = vmatmul.f32.gmra.mxu0 %v292
  %v1412 = vpop.f32.mrf.mxu0
  %v1413 = vadd.f32 %v1204, %v1412
  %1414 = vmatmul.f32.gmra.mxu0 %v297
  %v1415 = vpop.f32.mrf.mxu0
  %v1416 = vadd.f32 %v1207, %v1415
  %1417 = vmatmul.f32.gmra.mxu0 %v302
  %v1418 = vpop.f32.mrf.mxu0
  %v1419 = vadd.f32 %v1210, %v1418
  %1420 = vmatmul.f32.gmra.mxu0 %v307
  %v1421 = vpop.f32.mrf.mxu0
  %v1422 = vadd.f32 %v1213, %v1421
  %1423 = vmatmul.f32.gmra.mxu0 %v312
  %v1424 = vpop.f32.mrf.mxu0
  %v1425 = vadd.f32 %v1216, %v1424
  %1426 = vmatmul.f32.gmra.mxu0 %v317
  %v1427 = vpop.f32.mrf.mxu0
  %v1428 = vadd.f32 %v1219, %v1427
  %1429 = vmatmul.f32.gmra.mxu0 %v322
  %v1430 = vpop.f32.mrf.mxu0
  %v1431 = vadd.f32 %v1222, %v1430
  %1432 = vmatmul.f32.gmra.mxu0 %v327
  %v1433 = vpop.f32.mrf.mxu0
  %v1434 = vadd.f32 %v1225, %v1433
  %1435 = vmatmul.f32.gmra.mxu0 %v332
  %v1436 = vpop.f32.mrf.mxu0
  %v1437 = vadd.f32 %v1228, %v1436
  %1438 = vdwg.mxu0
  %1439 = vmatpush.msra.mxu0 0.0
  %1440 = vmatpush.msra.mxu0 0.0
  %1441 = vmatpush.msra.mxu0 0.0
  %1442 = vmatpush.msra.mxu0 0.0
  %1443 = vmatpush.msra.mxu0 0.0
  %1444 = vmatpush.msra.mxu0 0.0
  %1445 = vmatpush.msra.mxu0 0.0
  %1446 = vmatpush.msra.mxu0 0.0
  %1447 = vmatpush.msra.mxu0 %v405
  %1448 = vmatpush.msra.mxu0 %v404
  %1449 = vmatpush.msra.mxu0 %v403
  %1450 = vmatpush.msra.mxu0 %v402
  %1451 = vmatpush.msra.mxu0 %v401
  %1452 = vmatpush.msra.mxu0 %v400
  %1453 = vmatpush.msra.mxu0 %v399
  %1454 = vmatpush.msra.mxu0 %v398
  %1455 = vmatmul.f32.gmra.mxu0 %v412
  %v1456 = vpop.f32.mrf.mxu0
  %v1457 = vadd.f32 %v1248, %v1456
  %1458 = vmatmul.f32.gmra.mxu0 %v415
  %v1459 = vpop.f32.mrf.mxu0
  %v1460 = vadd.f32 %v1251, %v1459
  %1461 = vmatmul.f32.gmra.mxu0 %v418
  %v1462 = vpop.f32.mrf.mxu0
  %v1463 = vadd.f32 %v1254, %v1462
  %1464 = vmatmul.f32.gmra.mxu0 %v421
  %v1465 = vpop.f32.mrf.mxu0
  %v1466 = vadd.f32 %v1257, %v1465
  %1467 = vmatmul.f32.gmra.mxu0 %v424
  %v1468 = vpop.f32.mrf.mxu0
  %v1469 = vadd.f32 %v1260, %v1468
  %1470 = vmatmul.f32.gmra.mxu0 %v427
  %v1471 = vpop.f32.mrf.mxu0
  %v1472 = vadd.f32 %v1263, %v1471
  %1473 = vmatmul.f32.gmra.mxu0 %v430
  %v1474 = vpop.f32.mrf.mxu0
  %v1475 = vadd.f32 %v1266, %v1474
  %1476 = vmatmul.f32.gmra.mxu0 %v433
  %v1477 = vpop.f32.mrf.mxu0
  %v1478 = vadd.f32 %v1269, %v1477
  %1479 = vmatmul.f32.gmra.mxu0 %v436
  %v1480 = vpop.f32.mrf.mxu0
  %v1481 = vadd.f32 %v1272, %v1480
  %1482 = vmatmul.f32.gmra.mxu0 %v439
  %v1483 = vpop.f32.mrf.mxu0
  %v1484 = vadd.f32 %v1275, %v1483
  %1485 = vmatmul.f32.gmra.mxu0 %v442
  %v1486 = vpop.f32.mrf.mxu0
  %v1487 = vadd.f32 %v1278, %v1486
  %1488 = vmatmul.f32.gmra.mxu0 %v445
  %v1489 = vpop.f32.mrf.mxu0
  %v1490 = vadd.f32 %v1281, %v1489
  %1491 = vmatmul.f32.gmra.mxu0 %v448
  %v1492 = vpop.f32.mrf.mxu0
  %v1493 = vadd.f32 %v1284, %v1492
  %1494 = vmatmul.f32.gmra.mxu0 %v451
  %v1495 = vpop.f32.mrf.mxu0
  %v1496 = vadd.f32 %v1287, %v1495
  %1497 = vmatmul.f32.gmra.mxu0 %v454
  %v1498 = vpop.f32.mrf.mxu0
  %v1499 = vadd.f32 %v1290, %v1498
  %1500 = vmatmul.f32.gmra.mxu0 %v457
  %v1501 = vpop.f32.mrf.mxu0
  %v1502 = vadd.f32 %v1293, %v1501
  %1503 = vmatmul.f32.gmra.mxu0 %v460
  %v1504 = vpop.f32.mrf.mxu0
  %v1505 = vadd.f32 %v1296, %v1504
  %1506 = vmatmul.f32.gmra.mxu0 %v463
  %v1507 = vpop.f32.mrf.mxu0
  %v1508 = vadd.f32 %v1299, %v1507
  %1509 = vmatmul.f32.gmra.mxu0 %v466
  %v1510 = vpop.f32.mrf.mxu0
  %v1511 = vadd.f32 %v1302, %v1510
  %1512 = vmatmul.f32.gmra.mxu0 %v469
  %v1513 = vpop.f32.mrf.mxu0
  %v1514 = vadd.f32 %v1305, %v1513
  %1515 = vmatmul.f32.gmra.mxu0 %v472
  %v1516 = vpop.f32.mrf.mxu0
  %v1517 = vadd.f32 %v1308, %v1516
  %1518 = vmatmul.f32.gmra.mxu0 %v475
  %v1519 = vpop.f32.mrf.mxu0
  %v1520 = vadd.f32 %v1311, %v1519
  %1521 = vmatmul.f32.gmra.mxu0 %v478
  %v1522 = vpop.f32.mrf.mxu0
  %v1523 = vadd.f32 %v1314, %v1522
  %1524 = vmatmul.f32.gmra.mxu0 %v481
  %v1525 = vpop.f32.mrf.mxu0
  %v1526 = vadd.f32 %v1317, %v1525
  %1527 = vmatmul.f32.gmra.mxu0 %v484
  %v1528 = vpop.f32.mrf.mxu0
  %v1529 = vadd.f32 %v1320, %v1528
  %1530 = vmatmul.f32.gmra.mxu0 %v487
  %v1531 = vpop.f32.mrf.mxu0
  %v1532 = vadd.f32 %v1323, %v1531
  %1533 = vmatmul.f32.gmra.mxu0 %v490
  %v1534 = vpop.f32.mrf.mxu0
  %v1535 = vadd.f32 %v1326, %v1534
  %1536 = vmatmul.f32.gmra.mxu0 %v493
  %v1537 = vpop.f32.mrf.mxu0
  %v1538 = vadd.f32 %v1329, %v1537
  %1539 = vmatmul.f32.gmra.mxu0 %v496
  %v1540 = vpop.f32.mrf.mxu0
  %v1541 = vadd.f32 %v1332, %v1540
  %1542 = vmatmul.f32.gmra.mxu0 %v499
  %v1543 = vpop.f32.mrf.mxu0
  %v1544 = vadd.f32 %v1335, %v1543
  %1545 = vmatmul.f32.gmra.mxu0 %v502
  %v1546 = vpop.f32.mrf.mxu0
  %v1547 = vadd.f32 %v1338, %v1546
  %1548 = vmatmul.f32.gmra.mxu0 %v505
  %v1549 = vpop.f32.mrf.mxu0
  %v1550 = vadd.f32 %v1341, %v1549
  %1551 = vmatmul.f32.gmra.mxu0 %v508
  %v1552 = vpop.f32.mrf.mxu0
  %v1553 = vadd.f32 %v1344, %v1552
  %1554 = vmatmul.f32.gmra.mxu0 %v511
  %v1555 = vpop.f32.mrf.mxu0
  %v1556 = vadd.f32 %v1347, %v1555
  %1557 = vmatmul.f32.gmra.mxu0 %v514
  %v1558 = vpop.f32.mrf.mxu0
  %v1559 = vadd.f32 %v1350, %v1558
  %1560 = vmatmul.f32.gmra.mxu0 %v517
  %v1561 = vpop.f32.mrf.mxu0
  %v1562 = vadd.f32 %v1353, %v1561
  %1563 = vmatmul.f32.gmra.mxu0 %v520
  %v1564 = vpop.f32.mrf.mxu0
  %v1565 = vadd.f32 %v1356, %v1564
  %1566 = vmatmul.f32.gmra.mxu0 %v523
  %v1567 = vpop.f32.mrf.mxu0
  %v1568 = vadd.f32 %v1359, %v1567
  %1569 = vmatmul.f32.gmra.mxu0 %v526
  %v1570 = vpop.f32.mrf.mxu0
  %v1571 = vadd.f32 %v1362, %v1570
  %1572 = vmatmul.f32.gmra.mxu0 %v529
  %v1573 = vpop.f32.mrf.mxu0
  %v1574 = vadd.f32 %v1365, %v1573
  %1575 = vmatmul.f32.gmra.mxu0 %v532
  %v1576 = vpop.f32.mrf.mxu0
  %v1577 = vadd.f32 %v1368, %v1576
  %1578 = vmatmul.f32.gmra.mxu0 %v535
  %v1579 = vpop.f32.mrf.mxu0
  %v1580 = vadd.f32 %v1371, %v1579
  %1581 = vmatmul.f32.gmra.mxu0 %v538
  %v1582 = vpop.f32.mrf.mxu0
  %v1583 = vadd.f32 %v1374, %v1582
  %1584 = vmatmul.f32.gmra.mxu0 %v541
  %v1585 = vpop.f32.mrf.mxu0
  %v1586 = vadd.f32 %v1377, %v1585
  %1587 = vmatmul.f32.gmra.mxu0 %v544
  %v1588 = vpop.f32.mrf.mxu0
  %v1589 = vadd.f32 %v1380, %v1588
  %1590 = vmatmul.f32.gmra.mxu0 %v547
  %v1591 = vpop.f32.mrf.mxu0
  %v1592 = vadd.f32 %v1383, %v1591
  %1593 = vmatmul.f32.gmra.mxu0 %v550
  %v1594 = vpop.f32.mrf.mxu0
  %v1595 = vadd.f32 %v1386, %v1594
  %1596 = vmatmul.f32.gmra.mxu0 %v553
  %v1597 = vpop.f32.mrf.mxu0
  %v1598 = vadd.f32 %v1389, %v1597
  %1599 = vmatmul.f32.gmra.mxu0 %v556
  %v1600 = vpop.f32.mrf.mxu0
  %v1601 = vadd.f32 %v1392, %v1600
  %1602 = vmatmul.f32.gmra.mxu0 %v559
  %v1603 = vpop.f32.mrf.mxu0
  %v1604 = vadd.f32 %v1395, %v1603
  %1605 = vmatmul.f32.gmra.mxu0 %v562
  %v1606 = vpop.f32.mrf.mxu0
  %v1607 = vadd.f32 %v1398, %v1606
  %1608 = vmatmul.f32.gmra.mxu0 %v565
  %v1609 = vpop.f32.mrf.mxu0
  %v1610 = vadd.f32 %v1401, %v1609
  %1611 = vmatmul.f32.gmra.mxu0 %v568
  %v1612 = vpop.f32.mrf.mxu0
  %v1613 = vadd.f32 %v1404, %v1612
  %1614 = vmatmul.f32.gmra.mxu0 %v571
  %v1615 = vpop.f32.mrf.mxu0
  %v1616 = vadd.f32 %v1407, %v1615
  %1617 = vmatmul.f32.gmra.mxu0 %v574
  %v1618 = vpop.f32.mrf.mxu0
  %v1619 = vadd.f32 %v1410, %v1618
  %1620 = vmatmul.f32.gmra.mxu0 %v577
  %v1621 = vpop.f32.mrf.mxu0
  %v1622 = vadd.f32 %v1413, %v1621
  %1623 = vmatmul.f32.gmra.mxu0 %v580
  %v1624 = vpop.f32.mrf.mxu0
  %v1625 = vadd.f32 %v1416, %v1624
  %1626 = vmatmul.f32.gmra.mxu0 %v583
  %v1627 = vpop.f32.mrf.mxu0
  %v1628 = vadd.f32 %v1419, %v1627
  %1629 = vmatmul.f32.gmra.mxu0 %v586
  %v1630 = vpop.f32.mrf.mxu0
  %v1631 = vadd.f32 %v1422, %v1630
  %1632 = vmatmul.f32.gmra.mxu0 %v589
  %v1633 = vpop.f32.mrf.mxu0
  %v1634 = vadd.f32 %v1425, %v1633
  %1635 = vmatmul.f32.gmra.mxu0 %v592
  %v1636 = vpop.f32.mrf.mxu0
  %v1637 = vadd.f32 %v1428, %v1636
  %1638 = vmatmul.f32.gmra.mxu0 %v595
  %v1639 = vpop.f32.mrf.mxu0
  %v1640 = vadd.f32 %v1431, %v1639
  %1641 = vmatmul.f32.gmra.mxu0 %v598
  %v1642 = vpop.f32.mrf.mxu0
  %v1643 = vadd.f32 %v1434, %v1642
  %1644 = vmatmul.f32.gmra.mxu0 %v601
  %v1645 = vpop.f32.mrf.mxu0
  %v1646 = vadd.f32 %v1437, %v1645
  %1647 = vdwg.mxu0
  %v1648 = vmax.f32 %v1457, 0.0
  %v1649 = vmax.f32 %v1460, 0.0
  %v1650 = vmax.f32 %v1463, 0.0
  %v1651 = vmax.f32 %v1466, 0.0
  %v1652 = vmax.f32 %v1469, 0.0
  %v1653 = vmax.f32 %v1472, 0.0
  %v1654 = vmax.f32 %v1475, 0.0
  %v1655 = vmax.f32 %v1478, 0.0
  %v1656 = vmax.f32 %v1481, 0.0
  %v1657 = vmax.f32 %v1484, 0.0
  %v1658 = vmax.f32 %v1487, 0.0
  %v1659 = vmax.f32 %v1490, 0.0
  %v1660 = vmax.f32 %v1493, 0.0
  %v1661 = vmax.f32 %v1496, 0.0
  %v1662 = vmax.f32 %v1499, 0.0
  %v1663 = vmax.f32 %v1502, 0.0
  %v1664 = vmax.f32 %v1505, 0.0
  %v1665 = vmax.f32 %v1508, 0.0
  %v1666 = vmax.f32 %v1511, 0.0
  %v1667 = vmax.f32 %v1514, 0.0
  %v1668 = vmax.f32 %v1517, 0.0
  %v1669 = vmax.f32 %v1520, 0.0
  %v1670 = vmax.f32 %v1523, 0.0
  %v1671 = vmax.f32 %v1526, 0.0
  %v1672 = vmax.f32 %v1529, 0.0
  %v1673 = vmax.f32 %v1532, 0.0
  %v1674 = vmax.f32 %v1535, 0.0
  %v1675 = vmax.f32 %v1538, 0.0
  %v1676 = vmax.f32 %v1541, 0.0
  %v1677 = vmax.f32 %v1544, 0.0
  %v1678 = vmax.f32 %v1547, 0.0
  %v1679 = vmax.f32 %v1550, 0.0
  %v1680 = vmax.f32 %v1553, 0.0
  %v1681 = vmax.f32 %v1556, 0.0
  %v1682 = vmax.f32 %v1559, 0.0
  %v1683 = vmax.f32 %v1562, 0.0
  %v1684 = vmax.f32 %v1565, 0.0
  %v1685 = vmax.f32 %v1568, 0.0
  %v1686 = vmax.f32 %v1571, 0.0
  %v1687 = vmax.f32 %v1574, 0.0
  %v1688 = vmax.f32 %v1577, 0.0
  %v1689 = vmax.f32 %v1580, 0.0
  %v1690 = vmax.f32 %v1583, 0.0
  %v1691 = vmax.f32 %v1586, 0.0
  %v1692 = vmax.f32 %v1589, 0.0
  %v1693 = vmax.f32 %v1592, 0.0
  %v1694 = vmax.f32 %v1595, 0.0
  %v1695 = vmax.f32 %v1598, 0.0
  %v1696 = vmax.f32 %v1601, 0.0
  %v1697 = vmax.f32 %v1604, 0.0
  %v1698 = vmax.f32 %v1607, 0.0
  %v1699 = vmax.f32 %v1610, 0.0
  %v1700 = vmax.f32 %v1613, 0.0
  %v1701 = vmax.f32 %v1616, 0.0
  %v1702 = vmax.f32 %v1619, 0.0
  %v1703 = vmax.f32 %v1622, 0.0
  %v1704 = vmax.f32 %v1625, 0.0
  %v1705 = vmax.f32 %v1628, 0.0
  %v1706 = vmax.f32 %v1631, 0.0
  %v1707 = vmax.f32 %v1634, 0.0
  %v1708 = vmax.f32 %v1637, 0.0
  %v1709 = vmax.f32 %v1640, 0.0
  %v1710 = vmax.f32 %v1643, 0.0
  %v1711 = vmax.f32 %v1646, 0.0
  %1712 = vst.msk [vmem:[%s3] sm:$0xff] %vm410, %v1648
  %1713 = vst.msk [vmem:[%s3 + $0x8] sm:$0xff] %vm410, %v1649
  %1714 = vst.msk [vmem:[%s3 + $0x10] sm:$0xff] %vm410, %v1650
  %1715 = vst.msk [vmem:[%s3 + $0x18] sm:$0xff] %vm410, %v1651
  %1716 = vst.msk [vmem:[%s3 + $0x20] sm:$0xff] %vm410, %v1652
  %1717 = vst.msk [vmem:[%s3 + $0x28] sm:$0xff] %vm410, %v1653
  %1718 = vst.msk [vmem:[%s3 + $0x30] sm:$0xff] %vm410, %v1654
  %1719 = vst.msk [vmem:[%s3 + $0x38] sm:$0xff] %vm410, %v1655
  %1720 = vst.msk [vmem:[%s3 + $0x40] sm:$0xff] %vm410, %v1656
  %1721 = vst.msk [vmem:[%s3 + $0x48] sm:$0xff] %vm410, %v1657
  %1722 = vst.msk [vmem:[%s3 + $0x50] sm:$0xff] %vm410, %v1658
  %1723 = vst.msk [vmem:[%s3 + $0x58] sm:$0xff] %vm410, %v1659
  %1724 = vst.msk [vmem:[%s3 + $0x60] sm:$0xff] %vm410, %v1660
  %1725 = vst.msk [vmem:[%s3 + $0x68] sm:$0xff] %vm410, %v1661
  %1726 = vst.msk [vmem:[%s3 + $0x70] sm:$0xff] %vm410, %v1662
  %1727 = vst.msk [vmem:[%s3 + $0x78] sm:$0xff] %vm410, %v1663
  %1728 = vst.msk [vmem:[%s3 + $0x80] sm:$0xff] %vm410, %v1664
  %1729 = vst.msk [vmem:[%s3 + $0x88] sm:$0xff] %vm410, %v1665
  %1730 = vst.msk [vmem:[%s3 + $0x90] sm:$0xff] %vm410, %v1666
  %1731 = vst.msk [vmem:[%s3 + $0x98] sm:$0xff] %vm410, %v1667
  %1732 = vst.msk [vmem:[%s3 + $0xa0] sm:$0xff] %vm410, %v1668
  %1733 = vst.msk [vmem:[%s3 + $0xa8] sm:$0xff] %vm410, %v1669
  %1734 = vst.msk [vmem:[%s3 + $0xb0] sm:$0xff] %vm410, %v1670
  %1735 = vst.msk [vmem:[%s3 + $0xb8] sm:$0xff] %vm410, %v1671
  %1736 = vst.msk [vmem:[%s3 + $0xc0] sm:$0xff] %vm410, %v1672
  %1737 = vst.msk [vmem:[%s3 + $0xc8] sm:$0xff] %vm410, %v1673
  %1738 = vst.msk [vmem:[%s3 + $0xd0] sm:$0xff] %vm410, %v1674
  %1739 = vst.msk [vmem:[%s3 + $0xd8] sm:$0xff] %vm410, %v1675
  %1740 = vst.msk [vmem:[%s3 + $0xe0] sm:$0xff] %vm410, %v1676
  %1741 = vst.msk [vmem:[%s3 + $0xe8] sm:$0xff] %vm410, %v1677
  %1742 = vst.msk [vmem:[%s3 + $0xf0] sm:$0xff] %vm410, %v1678
  %1743 = vst.msk [vmem:[%s3 + $0xf8] sm:$0xff] %vm410, %v1679
  %1744 = vst.msk [vmem:[%s3 + $0x100] sm:$0xff] %vm410, %v1680
  %1745 = vst.msk [vmem:[%s3 + $0x108] sm:$0xff] %vm410, %v1681
  %1746 = vst.msk [vmem:[%s3 + $0x110] sm:$0xff] %vm410, %v1682
  %1747 = vst.msk [vmem:[%s3 + $0x118] sm:$0xff] %vm410, %v1683
  %1748 = vst.msk [vmem:[%s3 + $0x120] sm:$0xff] %vm410, %v1684
  %1749 = vst.msk [vmem:[%s3 + $0x128] sm:$0xff] %vm410, %v1685
  %1750 = vst.msk [vmem:[%s3 + $0x130] sm:$0xff] %vm410, %v1686
  %1751 = vst.msk [vmem:[%s3 + $0x138] sm:$0xff] %vm410, %v1687
  %1752 = vst.msk [vmem:[%s3 + $0x140] sm:$0xff] %vm410, %v1688
  %1753 = vst.msk [vmem:[%s3 + $0x148] sm:$0xff] %vm410, %v1689
  %1754 = vst.msk [vmem:[%s3 + $0x150] sm:$0xff] %vm410, %v1690
  %1755 = vst.msk [vmem:[%s3 + $0x158] sm:$0xff] %vm410, %v1691
  %1756 = vst.msk [vmem:[%s3 + $0x160] sm:$0xff] %vm410, %v1692
  %1757 = vst.msk [vmem:[%s3 + $0x168] sm:$0xff] %vm410, %v1693
  %1758 = vst.msk [vmem:[%s3 + $0x170] sm:$0xff] %vm410, %v1694
  %1759 = vst.msk [vmem:[%s3 + $0x178] sm:$0xff] %vm410, %v1695
  %1760 = vst.msk [vmem:[%s3 + $0x180] sm:$0xff] %vm410, %v1696
  %1761 = vst.msk [vmem:[%s3 + $0x188] sm:$0xff] %vm410, %v1697
  %1762 = vst.msk [vmem:[%s3 + $0x190] sm:$0xff] %vm410, %v1698
  %1763 = vst.msk [vmem:[%s3 + $0x198] sm:$0xff] %vm410, %v1699
  %1764 = vst.msk [vmem:[%s3 + $0x1a0] sm:$0xff] %vm410, %v1700
  %1765 = vst.msk [vmem:[%s3 + $0x1a8] sm:$0xff] %vm410, %v1701
  %1766 = vst.msk [vmem:[%s3 + $0x1b0] sm:$0xff] %vm410, %v1702
  %1767 = vst.msk [vmem:[%s3 + $0x1b8] sm:$0xff] %vm410, %v1703
  %1768 = vst.msk [vmem:[%s3 + $0x1c0] sm:$0xff] %vm410, %v1704
  %1769 = vst.msk [vmem:[%s3 + $0x1c8] sm:$0xff] %vm410, %v1705
  %1770 = vst.msk [vmem:[%s3 + $0x1d0] sm:$0xff] %vm410, %v1706
  %1771 = vst.msk [vmem:[%s3 + $0x1d8] sm:$0xff] %vm410, %v1707
  %1772 = vst.msk [vmem:[%s3 + $0x1e0] sm:$0xff] %vm410, %v1708
  %1773 = vst.msk [vmem:[%s3 + $0x1e8] sm:$0xff] %vm410, %v1709
  %1774 = vst.msk [vmem:[%s3 + $0x1f0] sm:$0xff] %vm410, %v1710
  %1775 = vst.msk [vmem:[%s3 + $0x1f8] sm:$0xff] %vm410, %v1711
  // Predicated region
  $region14: #{trace_lstm_forward.22} parent=0 // pred_check
    _
  $region15: #{trace_lstm_forward.22} parent=0 // pred_check_branch
    %1777 = sbr.rel (0) target = $region17
  $region16: #{trace_lstm_forward.22} parent=0 // pred_region
    _
  $region17: #{trace_lstm_forward.22} parent=0 // pred_fallthru
    _
  // Predicated region
  $region18: #{trace_lstm_forward.22} parent=0 // pred_check
    _
  $region19: #{trace_lstm_forward.22} parent=0 // pred_check_branch
    %1779 = sbr.rel (0) target = $region21
  $region20: #{trace_lstm_forward.22} parent=0 // pred_region
    _
  $region21: #{trace_lstm_forward.22} parent=0 // pred_fallthru
    _

// kernel: trace_lstm_forward.23
$region0: #{trace_lstm_forward.23}
  #allocation0 [shape = 'u32[]', space=smem, size = 0x4, offset = 0x4, fixed_abs, tag = 'smem constant byte address 0x4 - core index']
  #allocation1 [shape = 'u32[72,128]{1,0:T(1,128)}', space=vmem, size = 0x9000, scoped, tag = 'internal scratch']
  %s0 = inlined_call_operand.vmem [shape: f32[128,576], index: 0, kind: input, shape index: {}]
  %s1 = inlined_call_operand.vmem [shape: f32[576,128], index: 1, kind: input, shape index: {}]
  %s2 = inlined_call_operand.vmem [shape: f32[1,128], index: 2, kind: input, shape index: {}]
  %s3 = inlined_call_operand.vmem [shape: f32[128,128], index: 3, kind: output, shape index: {}]
  %s4 = sld [smem:[#allocation0]]
  $region22: #{trace_lstm_forward.23} parent=0
    _
  %s6 = ssub.s32 1, %s4
  %s7 = scalar_select 0, %s6, %s4
  // Predicated region
  $region2: #{trace_lstm_forward.23} parent=0 // pred_check
    _
  $region3: #{trace_lstm_forward.23} parent=0 // pred_check_branch
    %9 = sbr.rel (0) target = $region5
  $region4: #{trace_lstm_forward.23} parent=0 // pred_region
    _
  $region5: #{trace_lstm_forward.23} parent=0 // pred_fallthru
    _
  // Predicated region
  $region6: #{trace_lstm_forward.23} parent=0 // pred_check
    _
  $region7: #{trace_lstm_forward.23} parent=0 // pred_check_branch
    %11 = sbr.rel (0) target = $region9
  $region8: #{trace_lstm_forward.23} parent=0 // pred_region
    _
  $region9: #{trace_lstm_forward.23} parent=0 // pred_fallthru
    _
  // Predicated region
  $region10: #{trace_lstm_forward.23} parent=0 // pred_check
    _
  $region11: #{trace_lstm_forward.23} parent=0 // pred_check_branch
    %13 = sbr.rel (0) target = $region13
  $region12: #{trace_lstm_forward.23} parent=0 // pred_region
    _
  $region13: #{trace_lstm_forward.23} parent=0 // pred_fallthru
    _
  %v14 = vld [vmem:[%s0] sm:$0xff]
  %v15 = vld [vmem:[%s0 + $0x8] sm:$0xff]
  %v16 = vld [vmem:[%s0 + $0x10] sm:$0xff]
  %v17 = vld [vmem:[%s0 + $0x18] sm:$0xff]
  %v18 = vld [vmem:[%s0 + $0x20] sm:$0xff]
  %v19 = vld [vmem:[%s0 + $0x28] sm:$0xff]
  %v20 = vld [vmem:[%s0 + $0x30] sm:$0xff]
  %v21 = vld [vmem:[%s0 + $0x38] sm:$0xff]
  %v22 = vld [vmem:[%s0 + $0x40] sm:$0xff]
  %v23 = vld [vmem:[%s0 + $0x48] sm:$0xff]
  %v24 = vld [vmem:[%s0 + $0x50] sm:$0xff]
  %v25 = vld [vmem:[%s0 + $0x58] sm:$0xff]
  %v26 = vld [vmem:[%s0 + $0x60] sm:$0xff]
  %v27 = vld [vmem:[%s0 + $0x68] sm:$0xff]
  %v28 = vld [vmem:[%s0 + $0x70] sm:$0xff]
  %v29 = vld [vmem:[%s0 + $0x78] sm:$0xff]
  %v30 = vld [vmem:[%s0 + $0x80] sm:$0xff]
  %v31 = vld [vmem:[%s0 + $0x88] sm:$0xff]
  %v32 = vld [vmem:[%s0 + $0x90] sm:$0xff]
  %v33 = vld [vmem:[%s0 + $0x98] sm:$0xff]
  %v34 = vld [vmem:[%s0 + $0xa0] sm:$0xff]
  %v35 = vld [vmem:[%s0 + $0xa8] sm:$0xff]
  %v36 = vld [vmem:[%s0 + $0xb0] sm:$0xff]
  %v37 = vld [vmem:[%s0 + $0xb8] sm:$0xff]
  %v38 = vld [vmem:[%s0 + $0xc0] sm:$0xff]
  %v39 = vld [vmem:[%s0 + $0xc8] sm:$0xff]
  %v40 = vld [vmem:[%s0 + $0xd0] sm:$0xff]
  %v41 = vld [vmem:[%s0 + $0xd8] sm:$0xff]
  %v42 = vld [vmem:[%s0 + $0xe0] sm:$0xff]
  %v43 = vld [vmem:[%s0 + $0xe8] sm:$0xff]
  %v44 = vld [vmem:[%s0 + $0xf0] sm:$0xff]
  %v45 = vld [vmem:[%s0 + $0xf8] sm:$0xff]
  %v46 = vld [vmem:[%s0 + $0x100] sm:$0xff]
  %v47 = vld [vmem:[%s0 + $0x108] sm:$0xff]
  %v48 = vld [vmem:[%s0 + $0x110] sm:$0xff]
  %v49 = vld [vmem:[%s0 + $0x118] sm:$0xff]
  %v50 = vld [vmem:[%s0 + $0x120] sm:$0xff]
  %v51 = vld [vmem:[%s0 + $0x128] sm:$0xff]
  %v52 = vld [vmem:[%s0 + $0x130] sm:$0xff]
  %v53 = vld [vmem:[%s0 + $0x138] sm:$0xff]
  %v54 = vld [vmem:[%s0 + $0x140] sm:$0xff]
  %v55 = vld [vmem:[%s0 + $0x148] sm:$0xff]
  %v56 = vld [vmem:[%s0 + $0x150] sm:$0xff]
  %v57 = vld [vmem:[%s0 + $0x158] sm:$0xff]
  %v58 = vld [vmem:[%s0 + $0x160] sm:$0xff]
  %v59 = vld [vmem:[%s0 + $0x168] sm:$0xff]
  %v60 = vld [vmem:[%s0 + $0x170] sm:$0xff]
  %v61 = vld [vmem:[%s0 + $0x178] sm:$0xff]
  %v62 = vld [vmem:[%s0 + $0x180] sm:$0xff]
  %v63 = vld [vmem:[%s0 + $0x188] sm:$0xff]
  %v64 = vld [vmem:[%s0 + $0x190] sm:$0xff]
  %v65 = vld [vmem:[%s0 + $0x198] sm:$0xff]
  %v66 = vld [vmem:[%s0 + $0x1a0] sm:$0xff]
  %v67 = vld [vmem:[%s0 + $0x1a8] sm:$0xff]
  %v68 = vld [vmem:[%s0 + $0x1b0] sm:$0xff]
  %v69 = vld [vmem:[%s0 + $0x1b8] sm:$0xff]
  %v70 = vld [vmem:[%s0 + $0x1c0] sm:$0xff]
  %v71 = vld [vmem:[%s0 + $0x1c8] sm:$0xff]
  %v72 = vld [vmem:[%s0 + $0x1d0] sm:$0xff]
  %v73 = vld [vmem:[%s0 + $0x1d8] sm:$0xff]
  %v74 = vld [vmem:[%s0 + $0x1e0] sm:$0xff]
  %v75 = vld [vmem:[%s0 + $0x1e8] sm:$0xff]
  %v76 = vld [vmem:[%s0 + $0x1f0] sm:$0xff]
  %v77 = vld [vmem:[%s0 + $0x1f8] sm:$0xff]
  %v78 = vld [vmem:[%s0 + $0x200] sm:$0xff]
  %v79 = vld [vmem:[%s0 + $0x208] sm:$0xff]
  %v80 = vld [vmem:[%s0 + $0x210] sm:$0xff]
  %v81 = vld [vmem:[%s0 + $0x218] sm:$0xff]
  %v82 = vld [vmem:[%s0 + $0x220] sm:$0xff]
  %v83 = vld [vmem:[%s0 + $0x228] sm:$0xff]
  %v84 = vld [vmem:[%s0 + $0x230] sm:$0xff]
  %v85 = vld [vmem:[%s0 + $0x238] sm:$0xff]
  %v86 = vld [vmem:[%s0 + $0x240] sm:$0xff]
  %v87 = vld [vmem:[%s0 + $0x248] sm:$0xff]
  %v88 = vld [vmem:[%s0 + $0x250] sm:$0xff]
  %v89 = vld [vmem:[%s0 + $0x258] sm:$0xff]
  %v90 = vld [vmem:[%s0 + $0x260] sm:$0xff]
  %v91 = vld [vmem:[%s0 + $0x268] sm:$0xff]
  %v92 = vld [vmem:[%s0 + $0x270] sm:$0xff]
  %v93 = vld [vmem:[%s0 + $0x278] sm:$0xff]
  %v94 = vld [vmem:[%s1] sm:$0xff]
  %v95 = vld [vmem:[%s1 + $0x8] sm:$0xff]
  %v96 = vld [vmem:[%s1 + $0x10] sm:$0xff]
  %v97 = vld [vmem:[%s1 + $0x18] sm:$0xff]
  %v98 = vld [vmem:[%s1 + $0x20] sm:$0xff]
  %v99 = vld [vmem:[%s1 + $0x28] sm:$0xff]
  %v100 = vld [vmem:[%s1 + $0x30] sm:$0xff]
  %v101 = vld [vmem:[%s1 + $0x38] sm:$0xff]
  %v102 = vld [vmem:[%s1 + $0x40] sm:$0xff]
  %v103 = vld [vmem:[%s1 + $0x48] sm:$0xff]
  %v104 = vld [vmem:[%s1 + $0x50] sm:$0xff]
  %v105 = vld [vmem:[%s1 + $0x58] sm:$0xff]
  %v106 = vld [vmem:[%s1 + $0x60] sm:$0xff]
  %v107 = vld [vmem:[%s1 + $0x68] sm:$0xff]
  %v108 = vld [vmem:[%s1 + $0x70] sm:$0xff]
  %v109 = vld [vmem:[%s1 + $0x78] sm:$0xff]
  %v110 = vld [vmem:[%s1 + $0x80] sm:$0xff]
  %v111 = vld [vmem:[%s1 + $0x88] sm:$0xff]
  %v112 = vld [vmem:[%s1 + $0x90] sm:$0xff]
  %v113 = vld [vmem:[%s1 + $0x98] sm:$0xff]
  %v114 = vld [vmem:[%s1 + $0xa0] sm:$0xff]
  %v115 = vld [vmem:[%s1 + $0xa8] sm:$0xff]
  %v116 = vld [vmem:[%s1 + $0xb0] sm:$0xff]
  %v117 = vld [vmem:[%s1 + $0xb8] sm:$0xff]
  %v118 = vld [vmem:[%s1 + $0xc0] sm:$0xff]
  %v119 = vld [vmem:[%s1 + $0xc8] sm:$0xff]
  %v120 = vld [vmem:[%s1 + $0xd0] sm:$0xff]
  %v121 = vld [vmem:[%s1 + $0xd8] sm:$0xff]
  %v122 = vld [vmem:[%s1 + $0xe0] sm:$0xff]
  %v123 = vld [vmem:[%s1 + $0xe8] sm:$0xff]
  %v124 = vld [vmem:[%s1 + $0xf0] sm:$0xff]
  %v125 = vld [vmem:[%s1 + $0xf8] sm:$0xff]
  %v126 = vld [vmem:[%s1 + $0x100] sm:$0xff]
  %v127 = vld [vmem:[%s1 + $0x108] sm:$0xff]
  %v128 = vld [vmem:[%s1 + $0x110] sm:$0xff]
  %v129 = vld [vmem:[%s1 + $0x118] sm:$0xff]
  %v130 = vld [vmem:[%s1 + $0x120] sm:$0xff]
  %v131 = vld [vmem:[%s1 + $0x128] sm:$0xff]
  %v132 = vld [vmem:[%s1 + $0x130] sm:$0xff]
  %v133 = vld [vmem:[%s1 + $0x138] sm:$0xff]
  %v134 = vld [vmem:[%s1 + $0x140] sm:$0xff]
  %v135 = vld [vmem:[%s1 + $0x148] sm:$0xff]
  %v136 = vld [vmem:[%s1 + $0x150] sm:$0xff]
  %v137 = vld [vmem:[%s1 + $0x158] sm:$0xff]
  %v138 = vld [vmem:[%s1 + $0x160] sm:$0xff]
  %v139 = vld [vmem:[%s1 + $0x168] sm:$0xff]
  %v140 = vld [vmem:[%s1 + $0x170] sm:$0xff]
  %v141 = vld [vmem:[%s1 + $0x178] sm:$0xff]
  %v142 = vld [vmem:[%s1 + $0x180] sm:$0xff]
  %v143 = vld [vmem:[%s1 + $0x188] sm:$0xff]
  %v144 = vld [vmem:[%s1 + $0x190] sm:$0xff]
  %v145 = vld [vmem:[%s1 + $0x198] sm:$0xff]
  %v146 = vld [vmem:[%s1 + $0x1a0] sm:$0xff]
  %v147 = vld [vmem:[%s1 + $0x1a8] sm:$0xff]
  %v148 = vld [vmem:[%s1 + $0x1b0] sm:$0xff]
  %v149 = vld [vmem:[%s1 + $0x1b8] sm:$0xff]
  %v150 = vld [vmem:[%s1 + $0x1c0] sm:$0xff]
  %v151 = vld [vmem:[%s1 + $0x1c8] sm:$0xff]
  %v152 = vld [vmem:[%s1 + $0x1d0] sm:$0xff]
  %v153 = vld [vmem:[%s1 + $0x1d8] sm:$0xff]
  %v154 = vld [vmem:[%s1 + $0x1e0] sm:$0xff]
  %v155 = vld [vmem:[%s1 + $0x1e8] sm:$0xff]
  %v156 = vld [vmem:[%s1 + $0x1f0] sm:$0xff]
  %v157 = vld [vmem:[%s1 + $0x1f8] sm:$0xff]
  %v158 = vld [vmem:[%s1 + $0x200] sm:$0xff]
  %v159 = vld [vmem:[%s1 + $0x208] sm:$0xff]
  %v160 = vld [vmem:[%s1 + $0x210] sm:$0xff]
  %v161 = vld [vmem:[%s1 + $0x218] sm:$0xff]
  %v162 = vld [vmem:[%s1 + $0x220] sm:$0xff]
  %v163 = vld [vmem:[%s1 + $0x228] sm:$0xff]
  %v164 = vld [vmem:[%s1 + $0x230] sm:$0xff]
  %v165 = vld [vmem:[%s1 + $0x238] sm:$0xff]
  %v166 = vld [vmem:[%s2] sm:$0x1]
  %v168 = vperm.slane %v166, 0
  %vm170 = vcmask 523264
  %v172 = vsel %vm170, %v18, 0
  %v175 = vsel %vm170, %v23, 0
  %v178 = vsel %vm170, %v28, 0
  %v181 = vsel %vm170, %v33, 0
  %v184 = vsel %vm170, %v38, 0
  %v187 = vsel %vm170, %v43, 0
  %v190 = vsel %vm170, %v48, 0
  %v193 = vsel %vm170, %v53, 0
  %v196 = vsel %vm170, %v58, 0
  %v199 = vsel %vm170, %v63, 0
  %v202 = vsel %vm170, %v68, 0
  %v205 = vsel %vm170, %v73, 0
  %v208 = vsel %vm170, %v78, 0
  %v211 = vsel %vm170, %v83, 0
  %v214 = vsel %vm170, %v88, 0
  %v217 = vsel %vm170, %v93, 0
  %219 = vmatpush.msra.mxu0 %v109
  %220 = vmatpush.msra.mxu0 %v108
  %221 = vmatpush.msra.mxu0 %v107
  %222 = vmatpush.msra.mxu0 %v106
  %223 = vmatpush.msra.mxu0 %v105
  %224 = vmatpush.msra.mxu0 %v104
  %225 = vmatpush.msra.mxu0 %v103
  %226 = vmatpush.msra.mxu0 %v102
  %227 = vmatpush.msra.mxu0 %v101
  %228 = vmatpush.msra.mxu0 %v100
  %229 = vmatpush.msra.mxu0 %v99
  %230 = vmatpush.msra.mxu0 %v98
  %231 = vmatpush.msra.mxu0 %v97
  %232 = vmatpush.msra.mxu0 %v96
  %233 = vmatpush.msra.mxu0 %v95
  %234 = vmatpush.msra.mxu0 %v94
  %235 = vmatmul.f32.gmra.mxu0 %v14
  %v236 = vpop.f32.mrf.mxu0
  %v237 = vadd.f32 %v168, %v236
  %238 = vmatmul.f32.gmra.mxu0 %v19
  %v239 = vpop.f32.mrf.mxu0
  %v240 = vadd.f32 %v168, %v239
  %241 = vmatmul.f32.gmra.mxu0 %v24
  %v242 = vpop.f32.mrf.mxu0
  %v243 = vadd.f32 %v168, %v242
  %244 = vmatmul.f32.gmra.mxu0 %v29
  %v245 = vpop.f32.mrf.mxu0
  %v246 = vadd.f32 %v168, %v245
  %247 = vmatmul.f32.gmra.mxu0 %v34
  %v248 = vpop.f32.mrf.mxu0
  %v249 = vadd.f32 %v168, %v248
  %250 = vmatmul.f32.gmra.mxu0 %v39
  %v251 = vpop.f32.mrf.mxu0
  %v252 = vadd.f32 %v168, %v251
  %253 = vmatmul.f32.gmra.mxu0 %v44
  %v254 = vpop.f32.mrf.mxu0
  %v255 = vadd.f32 %v168, %v254
  %256 = vmatmul.f32.gmra.mxu0 %v49
  %v257 = vpop.f32.mrf.mxu0
  %v258 = vadd.f32 %v168, %v257
  %259 = vmatmul.f32.gmra.mxu0 %v54
  %v260 = vpop.f32.mrf.mxu0
  %v261 = vadd.f32 %v168, %v260
  %262 = vmatmul.f32.gmra.mxu0 %v59
  %v263 = vpop.f32.mrf.mxu0
  %v264 = vadd.f32 %v168, %v263
  %265 = vmatmul.f32.gmra.mxu0 %v64
  %v266 = vpop.f32.mrf.mxu0
  %v267 = vadd.f32 %v168, %v266
  %268 = vmatmul.f32.gmra.mxu0 %v69
  %v269 = vpop.f32.mrf.mxu0
  %v270 = vadd.f32 %v168, %v269
  %271 = vmatmul.f32.gmra.mxu0 %v74
  %v272 = vpop.f32.mrf.mxu0
  %v273 = vadd.f32 %v168, %v272
  %274 = vmatmul.f32.gmra.mxu0 %v79
  %v275 = vpop.f32.mrf.mxu0
  %v276 = vadd.f32 %v168, %v275
  %277 = vmatmul.f32.gmra.mxu0 %v84
  %v278 = vpop.f32.mrf.mxu0
  %v279 = vadd.f32 %v168, %v278
  %280 = vmatmul.f32.gmra.mxu0 %v89
  %v281 = vpop.f32.mrf.mxu0
  %v282 = vadd.f32 %v168, %v281
  %283 = vdwg.mxu0
  %284 = vmatpush.msra.mxu0 %v125
  %285 = vmatpush.msra.mxu0 %v124
  %286 = vmatpush.msra.mxu0 %v123
  %287 = vmatpush.msra.mxu0 %v122
  %288 = vmatpush.msra.mxu0 %v121
  %289 = vmatpush.msra.mxu0 %v120
  %290 = vmatpush.msra.mxu0 %v119
  %291 = vmatpush.msra.mxu0 %v118
  %292 = vmatpush.msra.mxu0 %v117
  %293 = vmatpush.msra.mxu0 %v116
  %294 = vmatpush.msra.mxu0 %v115
  %295 = vmatpush.msra.mxu0 %v114
  %296 = vmatpush.msra.mxu0 %v113
  %297 = vmatpush.msra.mxu0 %v112
  %298 = vmatpush.msra.mxu0 %v111
  %299 = vmatpush.msra.mxu0 %v110
  %300 = vmatmul.f32.gmra.mxu0 %v15
  %v301 = vpop.f32.mrf.mxu0
  %v302 = vadd.f32 %v237, %v301
  %303 = vmatmul.f32.gmra.mxu0 %v20
  %v304 = vpop.f32.mrf.mxu0
  %v305 = vadd.f32 %v240, %v304
  %306 = vmatmul.f32.gmra.mxu0 %v25
  %v307 = vpop.f32.mrf.mxu0
  %v308 = vadd.f32 %v243, %v307
  %309 = vmatmul.f32.gmra.mxu0 %v30
  %v310 = vpop.f32.mrf.mxu0
  %v311 = vadd.f32 %v246, %v310
  %312 = vmatmul.f32.gmra.mxu0 %v35
  %v313 = vpop.f32.mrf.mxu0
  %v314 = vadd.f32 %v249, %v313
  %315 = vmatmul.f32.gmra.mxu0 %v40
  %v316 = vpop.f32.mrf.mxu0
  %v317 = vadd.f32 %v252, %v316
  %318 = vmatmul.f32.gmra.mxu0 %v45
  %v319 = vpop.f32.mrf.mxu0
  %v320 = vadd.f32 %v255, %v319
  %321 = vmatmul.f32.gmra.mxu0 %v50
  %v322 = vpop.f32.mrf.mxu0
  %v323 = vadd.f32 %v258, %v322
  %324 = vmatmul.f32.gmra.mxu0 %v55
  %v325 = vpop.f32.mrf.mxu0
  %v326 = vadd.f32 %v261, %v325
  %327 = vmatmul.f32.gmra.mxu0 %v60
  %v328 = vpop.f32.mrf.mxu0
  %v329 = vadd.f32 %v264, %v328
  %330 = vmatmul.f32.gmra.mxu0 %v65
  %v331 = vpop.f32.mrf.mxu0
  %v332 = vadd.f32 %v267, %v331
  %333 = vmatmul.f32.gmra.mxu0 %v70
  %v334 = vpop.f32.mrf.mxu0
  %v335 = vadd.f32 %v270, %v334
  %336 = vmatmul.f32.gmra.mxu0 %v75
  %v337 = vpop.f32.mrf.mxu0
  %v338 = vadd.f32 %v273, %v337
  %339 = vmatmul.f32.gmra.mxu0 %v80
  %v340 = vpop.f32.mrf.mxu0
  %v341 = vadd.f32 %v276, %v340
  %342 = vmatmul.f32.gmra.mxu0 %v85
  %v343 = vpop.f32.mrf.mxu0
  %v344 = vadd.f32 %v279, %v343
  %345 = vmatmul.f32.gmra.mxu0 %v90
  %v346 = vpop.f32.mrf.mxu0
  %v347 = vadd.f32 %v282, %v346
  %348 = vdwg.mxu0
  %349 = vmatpush.msra.mxu0 %v141
  %350 = vmatpush.msra.mxu0 %v140
  %351 = vmatpush.msra.mxu0 %v139
  %352 = vmatpush.msra.mxu0 %v138
  %353 = vmatpush.msra.mxu0 %v137
  %354 = vmatpush.msra.mxu0 %v136
  %355 = vmatpush.msra.mxu0 %v135
  %356 = vmatpush.msra.mxu0 %v134
  %357 = vmatpush.msra.mxu0 %v133
  %358 = vmatpush.msra.mxu0 %v132
  %359 = vmatpush.msra.mxu0 %v131
  %360 = vmatpush.msra.mxu0 %v130
  %361 = vmatpush.msra.mxu0 %v129
  %362 = vmatpush.msra.mxu0 %v128
  %363 = vmatpush.msra.mxu0 %v127
  %364 = vmatpush.msra.mxu0 %v126
  %365 = vmatmul.f32.gmra.mxu0 %v16
  %v366 = vpop.f32.mrf.mxu0
  %v367 = vadd.f32 %v302, %v366
  %368 = vmatmul.f32.gmra.mxu0 %v21
  %v369 = vpop.f32.mrf.mxu0
  %v370 = vadd.f32 %v305, %v369
  %371 = vmatmul.f32.gmra.mxu0 %v26
  %v372 = vpop.f32.mrf.mxu0
  %v373 = vadd.f32 %v308, %v372
  %374 = vmatmul.f32.gmra.mxu0 %v31
  %v375 = vpop.f32.mrf.mxu0
  %v376 = vadd.f32 %v311, %v375
  %377 = vmatmul.f32.gmra.mxu0 %v36
  %v378 = vpop.f32.mrf.mxu0
  %v379 = vadd.f32 %v314, %v378
  %380 = vmatmul.f32.gmra.mxu0 %v41
  %v381 = vpop.f32.mrf.mxu0
  %v382 = vadd.f32 %v317, %v381
  %383 = vmatmul.f32.gmra.mxu0 %v46
  %v384 = vpop.f32.mrf.mxu0
  %v385 = vadd.f32 %v320, %v384
  %386 = vmatmul.f32.gmra.mxu0 %v51
  %v387 = vpop.f32.mrf.mxu0
  %v388 = vadd.f32 %v323, %v387
  %389 = vmatmul.f32.gmra.mxu0 %v56
  %v390 = vpop.f32.mrf.mxu0
  %v391 = vadd.f32 %v326, %v390
  %392 = vmatmul.f32.gmra.mxu0 %v61
  %v393 = vpop.f32.mrf.mxu0
  %v394 = vadd.f32 %v329, %v393
  %395 = vmatmul.f32.gmra.mxu0 %v66
  %v396 = vpop.f32.mrf.mxu0
  %v397 = vadd.f32 %v332, %v396
  %398 = vmatmul.f32.gmra.mxu0 %v71
  %v399 = vpop.f32.mrf.mxu0
  %v400 = vadd.f32 %v335, %v399
  %401 = vmatmul.f32.gmra.mxu0 %v76
  %v402 = vpop.f32.mrf.mxu0
  %v403 = vadd.f32 %v338, %v402
  %404 = vmatmul.f32.gmra.mxu0 %v81
  %v405 = vpop.f32.mrf.mxu0
  %v406 = vadd.f32 %v341, %v405
  %407 = vmatmul.f32.gmra.mxu0 %v86
  %v408 = vpop.f32.mrf.mxu0
  %v409 = vadd.f32 %v344, %v408
  %410 = vmatmul.f32.gmra.mxu0 %v91
  %v411 = vpop.f32.mrf.mxu0
  %v412 = vadd.f32 %v347, %v411
  %413 = vdwg.mxu0
  %414 = vmatpush.msra.mxu0 %v157
  %415 = vmatpush.msra.mxu0 %v156
  %416 = vmatpush.msra.mxu0 %v155
  %417 = vmatpush.msra.mxu0 %v154
  %418 = vmatpush.msra.mxu0 %v153
  %419 = vmatpush.msra.mxu0 %v152
  %420 = vmatpush.msra.mxu0 %v151
  %421 = vmatpush.msra.mxu0 %v150
  %422 = vmatpush.msra.mxu0 %v149
  %423 = vmatpush.msra.mxu0 %v148
  %424 = vmatpush.msra.mxu0 %v147
  %425 = vmatpush.msra.mxu0 %v146
  %426 = vmatpush.msra.mxu0 %v145
  %427 = vmatpush.msra.mxu0 %v144
  %428 = vmatpush.msra.mxu0 %v143
  %429 = vmatpush.msra.mxu0 %v142
  %430 = vmatmul.f32.gmra.mxu0 %v17
  %v431 = vpop.f32.mrf.mxu0
  %v432 = vadd.f32 %v367, %v431
  %433 = vmatmul.f32.gmra.mxu0 %v22
  %v434 = vpop.f32.mrf.mxu0
  %v435 = vadd.f32 %v370, %v434
  %436 = vmatmul.f32.gmra.mxu0 %v27
  %v437 = vpop.f32.mrf.mxu0
  %v438 = vadd.f32 %v373, %v437
  %439 = vmatmul.f32.gmra.mxu0 %v32
  %v440 = vpop.f32.mrf.mxu0
  %v441 = vadd.f32 %v376, %v440
  %442 = vmatmul.f32.gmra.mxu0 %v37
  %v443 = vpop.f32.mrf.mxu0
  %v444 = vadd.f32 %v379, %v443
  %445 = vmatmul.f32.gmra.mxu0 %v42
  %v446 = vpop.f32.mrf.mxu0
  %v447 = vadd.f32 %v382, %v446
  %448 = vmatmul.f32.gmra.mxu0 %v47
  %v449 = vpop.f32.mrf.mxu0
  %v450 = vadd.f32 %v385, %v449
  %451 = vmatmul.f32.gmra.mxu0 %v52
  %v452 = vpop.f32.mrf.mxu0
  %v453 = vadd.f32 %v388, %v452
  %454 = vmatmul.f32.gmra.mxu0 %v57
  %v455 = vpop.f32.mrf.mxu0
  %v456 = vadd.f32 %v391, %v455
  %457 = vmatmul.f32.gmra.mxu0 %v62
  %v458 = vpop.f32.mrf.mxu0
  %v459 = vadd.f32 %v394, %v458
  %460 = vmatmul.f32.gmra.mxu0 %v67
  %v461 = vpop.f32.mrf.mxu0
  %v462 = vadd.f32 %v397, %v461
  %463 = vmatmul.f32.gmra.mxu0 %v72
  %v464 = vpop.f32.mrf.mxu0
  %v465 = vadd.f32 %v400, %v464
  %466 = vmatmul.f32.gmra.mxu0 %v77
  %v467 = vpop.f32.mrf.mxu0
  %v468 = vadd.f32 %v403, %v467
  %469 = vmatmul.f32.gmra.mxu0 %v82
  %v470 = vpop.f32.mrf.mxu0
  %v471 = vadd.f32 %v406, %v470
  %472 = vmatmul.f32.gmra.mxu0 %v87
  %v473 = vpop.f32.mrf.mxu0
  %v474 = vadd.f32 %v409, %v473
  %475 = vmatmul.f32.gmra.mxu0 %v92
  %v476 = vpop.f32.mrf.mxu0
  %v477 = vadd.f32 %v412, %v476
  %478 = vdwg.mxu0
  %479 = vmatpush.msra.mxu0 0.0
  %480 = vmatpush.msra.mxu0 0.0
  %481 = vmatpush.msra.mxu0 0.0
  %482 = vmatpush.msra.mxu0 0.0
  %483 = vmatpush.msra.mxu0 0.0
  %484 = vmatpush.msra.mxu0 0.0
  %485 = vmatpush.msra.mxu0 0.0
  %486 = vmatpush.msra.mxu0 0.0
  %487 = vmatpush.msra.mxu0 %v165
  %488 = vmatpush.msra.mxu0 %v164
  %489 = vmatpush.msra.mxu0 %v163
  %490 = vmatpush.msra.mxu0 %v162
  %491 = vmatpush.msra.mxu0 %v161
  %492 = vmatpush.msra.mxu0 %v160
  %493 = vmatpush.msra.mxu0 %v159
  %494 = vmatpush.msra.mxu0 %v158
  %495 = vmatmul.f32.gmra.mxu0 %v172
  %v496 = vpop.f32.mrf.mxu0
  %v497 = vadd.f32 %v432, %v496
  %498 = vmatmul.f32.gmra.mxu0 %v175
  %v499 = vpop.f32.mrf.mxu0
  %v500 = vadd.f32 %v435, %v499
  %501 = vmatmul.f32.gmra.mxu0 %v178
  %v502 = vpop.f32.mrf.mxu0
  %v503 = vadd.f32 %v438, %v502
  %504 = vmatmul.f32.gmra.mxu0 %v181
  %v505 = vpop.f32.mrf.mxu0
  %v506 = vadd.f32 %v441, %v505
  %507 = vmatmul.f32.gmra.mxu0 %v184
  %v508 = vpop.f32.mrf.mxu0
  %v509 = vadd.f32 %v444, %v508
  %510 = vmatmul.f32.gmra.mxu0 %v187
  %v511 = vpop.f32.mrf.mxu0
  %v512 = vadd.f32 %v447, %v511
  %513 = vmatmul.f32.gmra.mxu0 %v190
  %v514 = vpop.f32.mrf.mxu0
  %v515 = vadd.f32 %v450, %v514
  %516 = vmatmul.f32.gmra.mxu0 %v193
  %v517 = vpop.f32.mrf.mxu0
  %v518 = vadd.f32 %v453, %v517
  %519 = vmatmul.f32.gmra.mxu0 %v196
  %v520 = vpop.f32.mrf.mxu0
  %v521 = vadd.f32 %v456, %v520
  %522 = vmatmul.f32.gmra.mxu0 %v199
  %v523 = vpop.f32.mrf.mxu0
  %v524 = vadd.f32 %v459, %v523
  %525 = vmatmul.f32.gmra.mxu0 %v202
  %v526 = vpop.f32.mrf.mxu0
  %v527 = vadd.f32 %v462, %v526
  %528 = vmatmul.f32.gmra.mxu0 %v205
  %v529 = vpop.f32.mrf.mxu0
  %v530 = vadd.f32 %v465, %v529
  %531 = vmatmul.f32.gmra.mxu0 %v208
  %v532 = vpop.f32.mrf.mxu0
  %v533 = vadd.f32 %v468, %v532
  %534 = vmatmul.f32.gmra.mxu0 %v211
  %v535 = vpop.f32.mrf.mxu0
  %v536 = vadd.f32 %v471, %v535
  %537 = vmatmul.f32.gmra.mxu0 %v214
  %v538 = vpop.f32.mrf.mxu0
  %v539 = vadd.f32 %v474, %v538
  %540 = vmatmul.f32.gmra.mxu0 %v217
  %v541 = vpop.f32.mrf.mxu0
  %v542 = vadd.f32 %v477, %v541
  %543 = vdwg.mxu0
  %v544 = vmax.f32 %v497, 0.0
  %v545 = vmax.f32 %v500, 0.0
  %v546 = vmax.f32 %v503, 0.0
  %v547 = vmax.f32 %v506, 0.0
  %v548 = vmax.f32 %v509, 0.0
  %v549 = vmax.f32 %v512, 0.0
  %v550 = vmax.f32 %v515, 0.0
  %v551 = vmax.f32 %v518, 0.0
  %v552 = vmax.f32 %v521, 0.0
  %v553 = vmax.f32 %v524, 0.0
  %v554 = vmax.f32 %v527, 0.0
  %v555 = vmax.f32 %v530, 0.0
  %v556 = vmax.f32 %v533, 0.0
  %v557 = vmax.f32 %v536, 0.0
  %v558 = vmax.f32 %v539, 0.0
  %v559 = vmax.f32 %v542, 0.0
  %560 = vst [vmem:[%s3] sm:$0xff] %v544
  %561 = vst [vmem:[%s3 + $0x8] sm:$0xff] %v545
  %562 = vst [vmem:[%s3 + $0x10] sm:$0xff] %v546
  %563 = vst [vmem:[%s3 + $0x18] sm:$0xff] %v547
  %564 = vst [vmem:[%s3 + $0x20] sm:$0xff] %v548
  %565 = vst [vmem:[%s3 + $0x28] sm:$0xff] %v549
  %566 = vst [vmem:[%s3 + $0x30] sm:$0xff] %v550
  %567 = vst [vmem:[%s3 + $0x38] sm:$0xff] %v551
  %568 = vst [vmem:[%s3 + $0x40] sm:$0xff] %v552
  %569 = vst [vmem:[%s3 + $0x48] sm:$0xff] %v553
  %570 = vst [vmem:[%s3 + $0x50] sm:$0xff] %v554
  %571 = vst [vmem:[%s3 + $0x58] sm:$0xff] %v555
  %572 = vst [vmem:[%s3 + $0x60] sm:$0xff] %v556
  %573 = vst [vmem:[%s3 + $0x68] sm:$0xff] %v557
  %574 = vst [vmem:[%s3 + $0x70] sm:$0xff] %v558
  %575 = vst [vmem:[%s3 + $0x78] sm:$0xff] %v559
  // Predicated region
  $region14: #{trace_lstm_forward.23} parent=0 // pred_check
    _
  $region15: #{trace_lstm_forward.23} parent=0 // pred_check_branch
    %577 = sbr.rel (0) target = $region17
  $region16: #{trace_lstm_forward.23} parent=0 // pred_region
    _
  $region17: #{trace_lstm_forward.23} parent=0 // pred_fallthru
    _
  // Predicated region
  $region18: #{trace_lstm_forward.23} parent=0 // pred_check
    _
  $region19: #{trace_lstm_forward.23} parent=0 // pred_check_branch
    %579 = sbr.rel (0) target = $region21
  $region20: #{trace_lstm_forward.23} parent=0 // pred_region
    _
  $region21: #{trace_lstm_forward.23} parent=0 // pred_fallthru
    _

// kernel: trace_lstm_forward.25
$region0: #{trace_lstm_forward.25}
  #allocation0 [shape = 'u32[]', space=smem, size = 0x4, offset = 0x4, fixed_abs, tag = 'smem constant byte address 0x4 - core index']
  #allocation1 [shape = 'u32[72,128]{1,0:T(1,128)}', space=vmem, size = 0x9000, scoped, tag = 'internal scratch']
  %s0 = inlined_call_operand.vmem [shape: f32[8,128], index: 0, kind: input, shape index: {}]
  %s1 = inlined_call_operand.vmem [shape: f32[128,1024], index: 1, kind: input, shape index: {}]
  %s2 = inlined_call_operand.vmem [shape: f32[1,1024], index: 2, kind: input, shape index: {}]
  %s3 = inlined_call_operand.vmem [shape: f32[8,1024], index: 3, kind: output, shape index: {}]
  %s4 = sld [smem:[#allocation0]]
  $region22: #{trace_lstm_forward.25} parent=0
    _
  %s6 = ssub.s32 1, %s4
  %s7 = scalar_select 0, %s6, %s4
  // Predicated region
  $region2: #{trace_lstm_forward.25} parent=0 // pred_check
    _
  $region3: #{trace_lstm_forward.25} parent=0 // pred_check_branch
    %9 = sbr.rel (0) target = $region5
  $region4: #{trace_lstm_forward.25} parent=0 // pred_region
    _
  $region5: #{trace_lstm_forward.25} parent=0 // pred_fallthru
    _
  // Predicated region
  $region6: #{trace_lstm_forward.25} parent=0 // pred_check
    _
  $region7: #{trace_lstm_forward.25} parent=0 // pred_check_branch
    %11 = sbr.rel (0) target = $region9
  $region8: #{trace_lstm_forward.25} parent=0 // pred_region
    _
  $region9: #{trace_lstm_forward.25} parent=0 // pred_fallthru
    _
  // Predicated region
  $region10: #{trace_lstm_forward.25} parent=0 // pred_check
    _
  $region11: #{trace_lstm_forward.25} parent=0 // pred_check_branch
    %13 = sbr.rel (0) target = $region13
  $region12: #{trace_lstm_forward.25} parent=0 // pred_region
    _
  $region13: #{trace_lstm_forward.25} parent=0 // pred_fallthru
    _
  %v14 = vld [vmem:[%s0] sm:$0xff]
  %v15 = vld [vmem:[%s1] sm:$0xff]
  %v16 = vld [vmem:[%s1 + $0x8] sm:$0xff]
  %v17 = vld [vmem:[%s1 + $0x10] sm:$0xff]
  %v18 = vld [vmem:[%s1 + $0x18] sm:$0xff]
  %v19 = vld [vmem:[%s1 + $0x20] sm:$0xff]
  %v20 = vld [vmem:[%s1 + $0x28] sm:$0xff]
  %v21 = vld [vmem:[%s1 + $0x30] sm:$0xff]
  %v22 = vld [vmem:[%s1 + $0x38] sm:$0xff]
  %v23 = vld [vmem:[%s1 + $0x40] sm:$0xff]
  %v24 = vld [vmem:[%s1 + $0x48] sm:$0xff]
  %v25 = vld [vmem:[%s1 + $0x50] sm:$0xff]
  %v26 = vld [vmem:[%s1 + $0x58] sm:$0xff]
  %v27 = vld [vmem:[%s1 + $0x60] sm:$0xff]
  %v28 = vld [vmem:[%s1 + $0x68] sm:$0xff]
  %v29 = vld [vmem:[%s1 + $0x70] sm:$0xff]
  %v30 = vld [vmem:[%s1 + $0x78] sm:$0xff]
  %v31 = vld [vmem:[%s1 + $0x80] sm:$0xff]
  %v32 = vld [vmem:[%s1 + $0x88] sm:$0xff]
  %v33 = vld [vmem:[%s1 + $0x90] sm:$0xff]
  %v34 = vld [vmem:[%s1 + $0x98] sm:$0xff]
  %v35 = vld [vmem:[%s1 + $0xa0] sm:$0xff]
  %v36 = vld [vmem:[%s1 + $0xa8] sm:$0xff]
  %v37 = vld [vmem:[%s1 + $0xb0] sm:$0xff]
  %v38 = vld [vmem:[%s1 + $0xb8] sm:$0xff]
  %v39 = vld [vmem:[%s1 + $0xc0] sm:$0xff]
  %v40 = vld [vmem:[%s1 + $0xc8] sm:$0xff]
  %v41 = vld [vmem:[%s1 + $0xd0] sm:$0xff]
  %v42 = vld [vmem:[%s1 + $0xd8] sm:$0xff]
  %v43 = vld [vmem:[%s1 + $0xe0] sm:$0xff]
  %v44 = vld [vmem:[%s1 + $0xe8] sm:$0xff]
  %v45 = vld [vmem:[%s1 + $0xf0] sm:$0xff]
  %v46 = vld [vmem:[%s1 + $0xf8] sm:$0xff]
  %v47 = vld [vmem:[%s1 + $0x100] sm:$0xff]
  %v48 = vld [vmem:[%s1 + $0x108] sm:$0xff]
  %v49 = vld [vmem:[%s1 + $0x110] sm:$0xff]
  %v50 = vld [vmem:[%s1 + $0x118] sm:$0xff]
  %v51 = vld [vmem:[%s1 + $0x120] sm:$0xff]
  %v52 = vld [vmem:[%s1 + $0x128] sm:$0xff]
  %v53 = vld [vmem:[%s1 + $0x130] sm:$0xff]
  %v54 = vld [vmem:[%s1 + $0x138] sm:$0xff]
  %v55 = vld [vmem:[%s1 + $0x140] sm:$0xff]
  %v56 = vld [vmem:[%s1 + $0x148] sm:$0xff]
  %v57 = vld [vmem:[%s1 + $0x150] sm:$0xff]
  %v58 = vld [vmem:[%s1 + $0x158] sm:$0xff]
  %v59 = vld [vmem:[%s1 + $0x160] sm:$0xff]
  %v60 = vld [vmem:[%s1 + $0x168] sm:$0xff]
  %v61 = vld [vmem:[%s1 + $0x170] sm:$0xff]
  %v62 = vld [vmem:[%s1 + $0x178] sm:$0xff]
  %v63 = vld [vmem:[%s1 + $0x180] sm:$0xff]
  %v64 = vld [vmem:[%s1 + $0x188] sm:$0xff]
  %v65 = vld [vmem:[%s1 + $0x190] sm:$0xff]
  %v66 = vld [vmem:[%s1 + $0x198] sm:$0xff]
  %v67 = vld [vmem:[%s1 + $0x1a0] sm:$0xff]
  %v68 = vld [vmem:[%s1 + $0x1a8] sm:$0xff]
  %v69 = vld [vmem:[%s1 + $0x1b0] sm:$0xff]
  %v70 = vld [vmem:[%s1 + $0x1b8] sm:$0xff]
  %v71 = vld [vmem:[%s1 + $0x1c0] sm:$0xff]
  %v72 = vld [vmem:[%s1 + $0x1c8] sm:$0xff]
  %v73 = vld [vmem:[%s1 + $0x1d0] sm:$0xff]
  %v74 = vld [vmem:[%s1 + $0x1d8] sm:$0xff]
  %v75 = vld [vmem:[%s1 + $0x1e0] sm:$0xff]
  %v76 = vld [vmem:[%s1 + $0x1e8] sm:$0xff]
  %v77 = vld [vmem:[%s1 + $0x1f0] sm:$0xff]
  %v78 = vld [vmem:[%s1 + $0x1f8] sm:$0xff]
  %v79 = vld [vmem:[%s1 + $0x200] sm:$0xff]
  %v80 = vld [vmem:[%s1 + $0x208] sm:$0xff]
  %v81 = vld [vmem:[%s1 + $0x210] sm:$0xff]
  %v82 = vld [vmem:[%s1 + $0x218] sm:$0xff]
  %v83 = vld [vmem:[%s1 + $0x220] sm:$0xff]
  %v84 = vld [vmem:[%s1 + $0x228] sm:$0xff]
  %v85 = vld [vmem:[%s1 + $0x230] sm:$0xff]
  %v86 = vld [vmem:[%s1 + $0x238] sm:$0xff]
  %v87 = vld [vmem:[%s1 + $0x240] sm:$0xff]
  %v88 = vld [vmem:[%s1 + $0x248] sm:$0xff]
  %v89 = vld [vmem:[%s1 + $0x250] sm:$0xff]
  %v90 = vld [vmem:[%s1 + $0x258] sm:$0xff]
  %v91 = vld [vmem:[%s1 + $0x260] sm:$0xff]
  %v92 = vld [vmem:[%s1 + $0x268] sm:$0xff]
  %v93 = vld [vmem:[%s1 + $0x270] sm:$0xff]
  %v94 = vld [vmem:[%s1 + $0x278] sm:$0xff]
  %v95 = vld [vmem:[%s1 + $0x280] sm:$0xff]
  %v96 = vld [vmem:[%s1 + $0x288] sm:$0xff]
  %v97 = vld [vmem:[%s1 + $0x290] sm:$0xff]
  %v98 = vld [vmem:[%s1 + $0x298] sm:$0xff]
  %v99 = vld [vmem:[%s1 + $0x2a0] sm:$0xff]
  %v100 = vld [vmem:[%s1 + $0x2a8] sm:$0xff]
  %v101 = vld [vmem:[%s1 + $0x2b0] sm:$0xff]
  %v102 = vld [vmem:[%s1 + $0x2b8] sm:$0xff]
  %v103 = vld [vmem:[%s1 + $0x2c0] sm:$0xff]
  %v104 = vld [vmem:[%s1 + $0x2c8] sm:$0xff]
  %v105 = vld [vmem:[%s1 + $0x2d0] sm:$0xff]
  %v106 = vld [vmem:[%s1 + $0x2d8] sm:$0xff]
  %v107 = vld [vmem:[%s1 + $0x2e0] sm:$0xff]
  %v108 = vld [vmem:[%s1 + $0x2e8] sm:$0xff]
  %v109 = vld [vmem:[%s1 + $0x2f0] sm:$0xff]
  %v110 = vld [vmem:[%s1 + $0x2f8] sm:$0xff]
  %v111 = vld [vmem:[%s1 + $0x300] sm:$0xff]
  %v112 = vld [vmem:[%s1 + $0x308] sm:$0xff]
  %v113 = vld [vmem:[%s1 + $0x310] sm:$0xff]
  %v114 = vld [vmem:[%s1 + $0x318] sm:$0xff]
  %v115 = vld [vmem:[%s1 + $0x320] sm:$0xff]
  %v116 = vld [vmem:[%s1 + $0x328] sm:$0xff]
  %v117 = vld [vmem:[%s1 + $0x330] sm:$0xff]
  %v118 = vld [vmem:[%s1 + $0x338] sm:$0xff]
  %v119 = vld [vmem:[%s1 + $0x340] sm:$0xff]
  %v120 = vld [vmem:[%s1 + $0x348] sm:$0xff]
  %v121 = vld [vmem:[%s1 + $0x350] sm:$0xff]
  %v122 = vld [vmem:[%s1 + $0x358] sm:$0xff]
  %v123 = vld [vmem:[%s1 + $0x360] sm:$0xff]
  %v124 = vld [vmem:[%s1 + $0x368] sm:$0xff]
  %v125 = vld [vmem:[%s1 + $0x370] sm:$0xff]
  %v126 = vld [vmem:[%s1 + $0x378] sm:$0xff]
  %v127 = vld [vmem:[%s1 + $0x380] sm:$0xff]
  %v128 = vld [vmem:[%s1 + $0x388] sm:$0xff]
  %v129 = vld [vmem:[%s1 + $0x390] sm:$0xff]
  %v130 = vld [vmem:[%s1 + $0x398] sm:$0xff]
  %v131 = vld [vmem:[%s1 + $0x3a0] sm:$0xff]
  %v132 = vld [vmem:[%s1 + $0x3a8] sm:$0xff]
  %v133 = vld [vmem:[%s1 + $0x3b0] sm:$0xff]
  %v134 = vld [vmem:[%s1 + $0x3b8] sm:$0xff]
  %v135 = vld [vmem:[%s1 + $0x3c0] sm:$0xff]
  %v136 = vld [vmem:[%s1 + $0x3c8] sm:$0xff]
  %v137 = vld [vmem:[%s1 + $0x3d0] sm:$0xff]
  %v138 = vld [vmem:[%s1 + $0x3d8] sm:$0xff]
  %v139 = vld [vmem:[%s1 + $0x3e0] sm:$0xff]
  %v140 = vld [vmem:[%s1 + $0x3e8] sm:$0xff]
  %v141 = vld [vmem:[%s1 + $0x3f0] sm:$0xff]
  %v142 = vld [vmem:[%s1 + $0x3f8] sm:$0xff]
  %v143 = vld [vmem:[%s2] sm:$0xff]
  %v145 = vperm.slane %v143, 0
  %v146 = vperm.slane %v143, 1
  %v147 = vperm.slane %v143, 2
  %v148 = vperm.slane %v143, 3
  %v149 = vperm.slane %v143, 4
  %v150 = vperm.slane %v143, 5
  %v151 = vperm.slane %v143, 6
  %v152 = vperm.slane %v143, 7
  %161 = vmatpush.msra.mxu0 %v135
  %162 = vmatpush.msra.mxu0 %v127
  %163 = vmatpush.msra.mxu0 %v119
  %164 = vmatpush.msra.mxu0 %v111
  %165 = vmatpush.msra.mxu0 %v103
  %166 = vmatpush.msra.mxu0 %v95
  %167 = vmatpush.msra.mxu0 %v87
  %168 = vmatpush.msra.mxu0 %v79
  %169 = vmatpush.msra.mxu0 %v71
  %170 = vmatpush.msra.mxu0 %v63
  %171 = vmatpush.msra.mxu0 %v55
  %172 = vmatpush.msra.mxu0 %v47
  %173 = vmatpush.msra.mxu0 %v39
  %174 = vmatpush.msra.mxu0 %v31
  %175 = vmatpush.msra.mxu0 %v23
  %176 = vmatpush.msra.mxu0 %v15
  %177 = vmatmul.f32.gmra.mxu0 %v14
  %v178 = vpop.f32.mrf.mxu0
  %v179 = vadd.f32 %v145, %v178
  %180 = vdwg.mxu0
  %181 = vmatpush.msra.mxu0 %v136
  %182 = vmatpush.msra.mxu0 %v128
  %183 = vmatpush.msra.mxu0 %v120
  %184 = vmatpush.msra.mxu0 %v112
  %185 = vmatpush.msra.mxu0 %v104
  %186 = vmatpush.msra.mxu0 %v96
  %187 = vmatpush.msra.mxu0 %v88
  %188 = vmatpush.msra.mxu0 %v80
  %189 = vmatpush.msra.mxu0 %v72
  %190 = vmatpush.msra.mxu0 %v64
  %191 = vmatpush.msra.mxu0 %v56
  %192 = vmatpush.msra.mxu0 %v48
  %193 = vmatpush.msra.mxu0 %v40
  %194 = vmatpush.msra.mxu0 %v32
  %195 = vmatpush.msra.mxu0 %v24
  %196 = vmatpush.msra.mxu0 %v16
  %197 = vmatmul.f32.gmra.mxu0 %v14
  %v198 = vpop.f32.mrf.mxu0
  %v199 = vadd.f32 %v146, %v198
  %200 = vdwg.mxu0
  %201 = vmatpush.msra.mxu0 %v137
  %202 = vmatpush.msra.mxu0 %v129
  %203 = vmatpush.msra.mxu0 %v121
  %204 = vmatpush.msra.mxu0 %v113
  %205 = vmatpush.msra.mxu0 %v105
  %206 = vmatpush.msra.mxu0 %v97
  %207 = vmatpush.msra.mxu0 %v89
  %208 = vmatpush.msra.mxu0 %v81
  %209 = vmatpush.msra.mxu0 %v73
  %210 = vmatpush.msra.mxu0 %v65
  %211 = vmatpush.msra.mxu0 %v57
  %212 = vmatpush.msra.mxu0 %v49
  %213 = vmatpush.msra.mxu0 %v41
  %214 = vmatpush.msra.mxu0 %v33
  %215 = vmatpush.msra.mxu0 %v25
  %216 = vmatpush.msra.mxu0 %v17
  %217 = vmatmul.f32.gmra.mxu0 %v14
  %v218 = vpop.f32.mrf.mxu0
  %v219 = vadd.f32 %v147, %v218
  %220 = vdwg.mxu0
  %221 = vmatpush.msra.mxu0 %v138
  %222 = vmatpush.msra.mxu0 %v130
  %223 = vmatpush.msra.mxu0 %v122
  %224 = vmatpush.msra.mxu0 %v114
  %225 = vmatpush.msra.mxu0 %v106
  %226 = vmatpush.msra.mxu0 %v98
  %227 = vmatpush.msra.mxu0 %v90
  %228 = vmatpush.msra.mxu0 %v82
  %229 = vmatpush.msra.mxu0 %v74
  %230 = vmatpush.msra.mxu0 %v66
  %231 = vmatpush.msra.mxu0 %v58
  %232 = vmatpush.msra.mxu0 %v50
  %233 = vmatpush.msra.mxu0 %v42
  %234 = vmatpush.msra.mxu0 %v34
  %235 = vmatpush.msra.mxu0 %v26
  %236 = vmatpush.msra.mxu0 %v18
  %237 = vmatmul.f32.gmra.mxu0 %v14
  %v238 = vpop.f32.mrf.mxu0
  %v239 = vadd.f32 %v148, %v238
  %240 = vdwg.mxu0
  %241 = vmatpush.msra.mxu0 %v139
  %242 = vmatpush.msra.mxu0 %v131
  %243 = vmatpush.msra.mxu0 %v123
  %244 = vmatpush.msra.mxu0 %v115
  %245 = vmatpush.msra.mxu0 %v107
  %246 = vmatpush.msra.mxu0 %v99
  %247 = vmatpush.msra.mxu0 %v91
  %248 = vmatpush.msra.mxu0 %v83
  %249 = vmatpush.msra.mxu0 %v75
  %250 = vmatpush.msra.mxu0 %v67
  %251 = vmatpush.msra.mxu0 %v59
  %252 = vmatpush.msra.mxu0 %v51
  %253 = vmatpush.msra.mxu0 %v43
  %254 = vmatpush.msra.mxu0 %v35
  %255 = vmatpush.msra.mxu0 %v27
  %256 = vmatpush.msra.mxu0 %v19
  %257 = vmatmul.f32.gmra.mxu0 %v14
  %v258 = vpop.f32.mrf.mxu0
  %v259 = vadd.f32 %v149, %v258
  %260 = vdwg.mxu0
  %261 = vmatpush.msra.mxu0 %v140
  %262 = vmatpush.msra.mxu0 %v132
  %263 = vmatpush.msra.mxu0 %v124
  %264 = vmatpush.msra.mxu0 %v116
  %265 = vmatpush.msra.mxu0 %v108
  %266 = vmatpush.msra.mxu0 %v100
  %267 = vmatpush.msra.mxu0 %v92
  %268 = vmatpush.msra.mxu0 %v84
  %269 = vmatpush.msra.mxu0 %v76
  %270 = vmatpush.msra.mxu0 %v68
  %271 = vmatpush.msra.mxu0 %v60
  %272 = vmatpush.msra.mxu0 %v52
  %273 = vmatpush.msra.mxu0 %v44
  %274 = vmatpush.msra.mxu0 %v36
  %275 = vmatpush.msra.mxu0 %v28
  %276 = vmatpush.msra.mxu0 %v20
  %277 = vmatmul.f32.gmra.mxu0 %v14
  %v278 = vpop.f32.mrf.mxu0
  %v279 = vadd.f32 %v150, %v278
  %280 = vdwg.mxu0
  %281 = vmatpush.msra.mxu0 %v141
  %282 = vmatpush.msra.mxu0 %v133
  %283 = vmatpush.msra.mxu0 %v125
  %284 = vmatpush.msra.mxu0 %v117
  %285 = vmatpush.msra.mxu0 %v109
  %286 = vmatpush.msra.mxu0 %v101
  %287 = vmatpush.msra.mxu0 %v93
  %288 = vmatpush.msra.mxu0 %v85
  %289 = vmatpush.msra.mxu0 %v77
  %290 = vmatpush.msra.mxu0 %v69
  %291 = vmatpush.msra.mxu0 %v61
  %292 = vmatpush.msra.mxu0 %v53
  %293 = vmatpush.msra.mxu0 %v45
  %294 = vmatpush.msra.mxu0 %v37
  %295 = vmatpush.msra.mxu0 %v29
  %296 = vmatpush.msra.mxu0 %v21
  %297 = vmatmul.f32.gmra.mxu0 %v14
  %v298 = vpop.f32.mrf.mxu0
  %v299 = vadd.f32 %v151, %v298
  %300 = vdwg.mxu0
  %301 = vmatpush.msra.mxu0 %v142
  %302 = vmatpush.msra.mxu0 %v134
  %303 = vmatpush.msra.mxu0 %v126
  %304 = vmatpush.msra.mxu0 %v118
  %305 = vmatpush.msra.mxu0 %v110
  %306 = vmatpush.msra.mxu0 %v102
  %307 = vmatpush.msra.mxu0 %v94
  %308 = vmatpush.msra.mxu0 %v86
  %309 = vmatpush.msra.mxu0 %v78
  %310 = vmatpush.msra.mxu0 %v70
  %311 = vmatpush.msra.mxu0 %v62
  %312 = vmatpush.msra.mxu0 %v54
  %313 = vmatpush.msra.mxu0 %v46
  %314 = vmatpush.msra.mxu0 %v38
  %315 = vmatpush.msra.mxu0 %v30
  %316 = vmatpush.msra.mxu0 %v22
  %317 = vmatmul.f32.gmra.mxu0 %v14
  %v318 = vpop.f32.mrf.mxu0
  %v319 = vadd.f32 %v152, %v318
  %320 = vdwg.mxu0
  %321 = vst [vmem:[%s3] sm:$0xff] %v179
  %322 = vst [vmem:[%s3 + $0x8] sm:$0xff] %v199
  %323 = vst [vmem:[%s3 + $0x10] sm:$0xff] %v219
  %324 = vst [vmem:[%s3 + $0x18] sm:$0xff] %v239
  %325 = vst [vmem:[%s3 + $0x20] sm:$0xff] %v259
  %326 = vst [vmem:[%s3 + $0x28] sm:$0xff] %v279
  %327 = vst [vmem:[%s3 + $0x30] sm:$0xff] %v299
  %328 = vst [vmem:[%s3 + $0x38] sm:$0xff] %v319
  // Predicated region
  $region14: #{trace_lstm_forward.25} parent=0 // pred_check
    _
  $region15: #{trace_lstm_forward.25} parent=0 // pred_check_branch
    %330 = sbr.rel (0) target = $region17
  $region16: #{trace_lstm_forward.25} parent=0 // pred_region
    _
  $region17: #{trace_lstm_forward.25} parent=0 // pred_fallthru
    _
  // Predicated region
  $region18: #{trace_lstm_forward.25} parent=0 // pred_check
    _
  $region19: #{trace_lstm_forward.25} parent=0 // pred_check_branch
    %332 = sbr.rel (0) target = $region21
  $region20: #{trace_lstm_forward.25} parent=0 // pred_region
    _
  $region21: #{trace_lstm_forward.25} parent=0 // pred_fallthru
    _

// kernel: trace_lstm_forward.26
$region0: #{trace_lstm_forward.26}
  #allocation0 [shape = 'u32[]', space=smem, size = 0x4, offset = 0x4, fixed_abs, tag = 'smem constant byte address 0x4 - core index']
  #allocation1 [shape = 'u32[72,128]{1,0:T(1,128)}', space=vmem, size = 0x9000, scoped, tag = 'internal scratch']
  #allocation2 [shape = 'f32[2,128]{1,0:T(2,128)}', space=vmem, size = 0x400, scoped, tag = 'scratch operand']
  #allocation3 [shape = 'f32[2,128]{1,0:T(2,128)}', space=vmem, size = 0x400, scoped, tag = 'scratch operand']
  %s0 = inlined_call_operand.vmem [shape: f32[4,2,512], index: 0, kind: input, shape index: {}]
  %s1 = inlined_call_operand.vmem [shape: f32[128,512], index: 1, kind: input, shape index: {}]
  %s2 = inlined_call_operand.vmem [shape: f32[4,2,128], index: 2, kind: output, shape index: {}]
  %s3 = sld [smem:[#allocation0]]
  $region45: #{trace_lstm_forward.26} parent=0
    _
  %s5 = ssub.s32 1, %s3
  %s6 = scalar_select 0, %s5, %s3
  loop: start=0, step=1, limit=6
  $region2: #{trace_lstm_forward.26} parent=0 // loop_pre_header
    _
  $region3: #{trace_lstm_forward.26} parent=0 // loop_header
    %s8 = sphi 0, %s12
    %p9 = scmp.ge.s32.totalorder %s8, 6
    %s18 = sphi 0, %s20
    %s21 = sphi 0, %s18
    %s22 = sphi 0, %s21
    %s38 = sphi 0, %s22
    %s42 = sphi 0, %s42
    %s44 = sphi 0, %s42
    %s45 = sphi 0, %s44
    %s59 = sphi 0, %s45
    %s65 = sphi 0, %s67
    %s68 = sphi 0, %s65
    %s69 = sphi 0, %s68
    %s85 = sphi 0, %s69
  $region4: #{trace_lstm_forward.26} parent=0 // loop_header_branch
    %11 = sbr.rel (%p9) target = $region8
  $region5: #{trace_lstm_forward.26} parent=0 // loop_body
    %s13 = ssub.s32 %s8, 1
    %s14 = ssub.s32 %s8, 2
    %s15 = sadd.s32 %s8, 1
    %s16 = ssub.s32 %s8, %s15
    %p17 = scmp.eq.s32.totalorder %s16, 0
    %s19 = sadd.s32 %s18, 1
    %s20 = scalar_select %p17, %s18, %s19
    %p23 = pneg %p17
    %p24 = scmp.eq.s32.totalorder %s8, 3
    %p25 = por %p23, %p24
    %p26 = scmp.ne.s32.totalorder %s18, %s21
    %p27 = scmp.eq.s32.totalorder %s8, 0
    %p28 = por %p26, %p27
    %p29 = scmp.ne.s32.totalorder %s18, %s21
    %p30 = scmp.eq.s32.totalorder %s13, 3
    %p31 = por %p29, %p30
    %p32 = scmp.ne.s32.totalorder %s21, %s22
    %p33 = scmp.eq.s32.totalorder %s13, 0
    %p34 = por %p32, %p33
    %p35 = scmp.ne.s32.totalorder %s21, %s22
    %p36 = scmp.eq.s32.totalorder %s14, 3
    %p37 = por %p35, %p36
    %p39 = scmp.ne.s32.totalorder %s22, %s38
    %p40 = scmp.eq.s32.totalorder %s14, 0
    %p41 = por %p39, %p40
    %s43 = sadd.s32 %s42, 1
    %p46 = scmp.eq.s32.totalorder %s8, 3
    %p47 = scmp.ne.s32.totalorder %s42, %s44
    %p48 = scmp.eq.s32.totalorder %s8, 0
    %p49 = por %p47, %p48
    %p50 = scmp.ne.s32.totalorder %s42, %s44
    %p51 = scmp.eq.s32.totalorder %s13, 3
    %p52 = por %p50, %p51
    %p53 = scmp.ne.s32.totalorder %s44, %s45
    %p54 = scmp.eq.s32.totalorder %s13, 0
    %p55 = por %p53, %p54
    %p56 = scmp.ne.s32.totalorder %s44, %s45
    %p57 = scmp.eq.s32.totalorder %s14, 3
    %p58 = por %p56, %p57
    %p60 = scmp.ne.s32.totalorder %s45, %s59
    %p61 = scmp.eq.s32.totalorder %s14, 0
    %p62 = por %p60, %p61
    %s63 = ssub.s32 %s8, %s15
    %p64 = scmp.eq.s32.totalorder %s63, 0
    %s66 = sadd.s32 %s65, 1
    %s67 = scalar_select %p64, %s65, %s66
    %p70 = pneg %p64
    %p71 = scmp.eq.s32.totalorder %s8, 3
    %p72 = por %p70, %p71
    %p73 = scmp.ne.s32.totalorder %s65, %s68
    %p74 = scmp.eq.s32.totalorder %s8, 0
    %p75 = por %p73, %p74
    %p76 = scmp.ne.s32.totalorder %s65, %s68
    %p77 = scmp.eq.s32.totalorder %s13, 3
    %p78 = por %p76, %p77
    %p79 = scmp.ne.s32.totalorder %s68, %s69
    %p80 = scmp.eq.s32.totalorder %s13, 0
    %p81 = por %p79, %p80
    %p82 = scmp.ne.s32.totalorder %s68, %s69
    %p83 = scmp.eq.s32.totalorder %s14, 3
    %p84 = por %p82, %p83
    %p86 = scmp.ne.s32.totalorder %s69, %s85
    %p87 = scmp.eq.s32.totalorder %s14, 0
    %p88 = por %p86, %p87
    %p89 = scmp.le.s32.totalorder 1, %s8
    %p90 = scmp.lt.s32.totalorder %s8, 5
    %p91 = pnand %p89, %p90
    %p92 = pneg %p91
    // Predicated region
    $region9: #{trace_lstm_forward.26} parent=5 // pred_check
      _
    $region10: #{trace_lstm_forward.26} parent=5 // pred_check_branch
      %94 = sbr.rel (%p91) target = $region12
    $region11: #{trace_lstm_forward.26} parent=5 // pred_region
      %s95 = ssub.s32 %s8, 1
      // Predicated region
      $region13: #{trace_lstm_forward.26} parent=11 // pred_check
        %p96 = pneg %p55
      $region14: #{trace_lstm_forward.26} parent=11 // pred_check_branch
        %98 = sbr.rel (%p96) target = $region16
      $region15: #{trace_lstm_forward.26} parent=11 // pred_region
        _
      $region16: #{trace_lstm_forward.26} parent=11 // pred_fallthru
        _
    $region12: #{trace_lstm_forward.26} parent=5 // pred_fallthru
      _
    %p99 = scmp.lt.s32.totalorder %s8, 4
    // Predicated region
    $region17: #{trace_lstm_forward.26} parent=5 // pred_check
      %p100 = pneg %p99
    $region18: #{trace_lstm_forward.26} parent=5 // pred_check_branch
      %102 = sbr.rel (%p100) target = $region20
    $region19: #{trace_lstm_forward.26} parent=5 // pred_region
      // Predicated region
      $region21: #{trace_lstm_forward.26} parent=19 // pred_check
        %p103 = pneg %p28
      $region22: #{trace_lstm_forward.26} parent=19 // pred_check_branch
        %105 = sbr.rel (%p103) target = $region24
      $region23: #{trace_lstm_forward.26} parent=19 // pred_region
        %p106 = scmp.lt.s32.totalorder %s8, 3
        %s107 = scalar_select %p106, %s8, 3
        %s108 = smul.addr %s107, 4
        %s109 = smul.addr %s108, 2
        %s110 = scalar_lea.vmem %s0, %s109
      $region24: #{trace_lstm_forward.26} parent=19 // pred_fallthru
        _
    $region20: #{trace_lstm_forward.26} parent=5 // pred_fallthru
      _
    %p111 = scmp.le.s32.totalorder 1, %s8
    %p112 = scmp.lt.s32.totalorder %s8, 5
    %p113 = pnand %p111, %p112
    %p114 = pneg %p113
    // Predicated region
    $region25: #{trace_lstm_forward.26} parent=5 // pred_check
      _
    $region26: #{trace_lstm_forward.26} parent=5 // pred_check_branch
      %116 = sbr.rel (%p113) target = $region28
    $region27: #{trace_lstm_forward.26} parent=5 // pred_region
      %s117 = ssub.s32 %s8, 1
      %p118 = scmp.lt.s32.totalorder %s13, 3
      %s119 = scalar_select %p118, %s13, 3
      %s120 = smul.addr %s119, 4
      %s121 = smul.addr %s120, 2
      %s122 = scalar_lea.vmem %s0, %s121
      %p123 = pneg %p34
      %p124 = pneg %p31
      %p125 = pneg %p55
      %p126 = pneg %p52
      %p127 = pneg %p81
      %p128 = pneg %p78
      %p129 = scmp.lt.s32.totalorder %s13, 3
      %s130 = scalar_select %p129, %s13, 3
      %s131 = smul.addr %s130, 2
      %s132 = scalar_lea.vmem %s2, %s131
      %p133 = scmp.lt.s32.totalorder %s13, 3
      %s134 = scalar_select %p133, %s13, 3
      %s135 = smul.addr %s134, 4
      %s136 = smul.addr %s135, 2
      %s137 = scalar_lea.vmem %s0, %s136
      %p138 = scmp.lt.s32.totalorder %s13, 3
      %s139 = scalar_select %p138, %s13, 3
      %s140 = smul.addr %s139, 2
      %s141 = scalar_lea.vmem %s2, %s140
      %p142 = scmp.eq.s32.totalorder %s13, 0
      // Predicated region
      $region29: #{trace_lstm_forward.26} parent=27 // pred_check
        %p143 = pneg %p142
      $region30: #{trace_lstm_forward.26} parent=27 // pred_check_branch
        %145 = sbr.rel (%p143) target = $region32
      $region31: #{trace_lstm_forward.26} parent=27 // pred_region
        %146 = vst [vmem:[#allocation2] sm:$0x3] 0.0
        %147 = vst [vmem:[#allocation3] sm:$0x3] 0.0
      $region32: #{trace_lstm_forward.26} parent=27 // pred_fallthru
        _
      %v148 = vld [vmem:[%s137] sm:$0xff]
      %v149 = vld [vmem:[#allocation2] sm:$0x3]
      %v150 = vld [vmem:[%s1] sm:$0xff]
      %v151 = vld [vmem:[%s1 + $0x8] sm:$0xff]
      %v152 = vld [vmem:[%s1 + $0x10] sm:$0xff]
      %v153 = vld [vmem:[%s1 + $0x18] sm:$0xff]
      %v154 = vld [vmem:[%s1 + $0x20] sm:$0xff]
      %v155 = vld [vmem:[%s1 + $0x28] sm:$0xff]
      %v156 = vld [vmem:[%s1 + $0x30] sm:$0xff]
      %v157 = vld [vmem:[%s1 + $0x38] sm:$0xff]
      %v158 = vld [vmem:[%s1 + $0x40] sm:$0xff]
      %v159 = vld [vmem:[%s1 + $0x48] sm:$0xff]
      %v160 = vld [vmem:[%s1 + $0x50] sm:$0xff]
      %v161 = vld [vmem:[%s1 + $0x58] sm:$0xff]
      %v162 = vld [vmem:[%s1 + $0x60] sm:$0xff]
      %v163 = vld [vmem:[%s1 + $0x68] sm:$0xff]
      %v164 = vld [vmem:[%s1 + $0x70] sm:$0xff]
      %v165 = vld [vmem:[%s1 + $0x78] sm:$0xff]
      %v166 = vld [vmem:[%s1 + $0x80] sm:$0xff]
      %v167 = vld [vmem:[%s1 + $0x88] sm:$0xff]
      %v168 = vld [vmem:[%s1 + $0x90] sm:$0xff]
      %v169 = vld [vmem:[%s1 + $0x98] sm:$0xff]
      %v170 = vld [vmem:[%s1 + $0xa0] sm:$0xff]
      %v171 = vld [vmem:[%s1 + $0xa8] sm:$0xff]
      %v172 = vld [vmem:[%s1 + $0xb0] sm:$0xff]
      %v173 = vld [vmem:[%s1 + $0xb8] sm:$0xff]
      %v174 = vld [vmem:[%s1 + $0xc0] sm:$0xff]
      %v175 = vld [vmem:[%s1 + $0xc8] sm:$0xff]
      %v176 = vld [vmem:[%s1 + $0xd0] sm:$0xff]
      %v177 = vld [vmem:[%s1 + $0xd8] sm:$0xff]
      %v178 = vld [vmem:[%s1 + $0xe0] sm:$0xff]
      %v179 = vld [vmem:[%s1 + $0xe8] sm:$0xff]
      %v180 = vld [vmem:[%s1 + $0xf0] sm:$0xff]
      %v181 = vld [vmem:[%s1 + $0xf8] sm:$0xff]
      %v182 = vld [vmem:[%s1 + $0x100] sm:$0xff]
      %v183 = vld [vmem:[%s1 + $0x108] sm:$0xff]
      %v184 = vld [vmem:[%s1 + $0x110] sm:$0xff]
      %v185 = vld [vmem:[%s1 + $0x118] sm:$0xff]
      %v186 = vld [vmem:[%s1 + $0x120] sm:$0xff]
      %v187 = vld [vmem:[%s1 + $0x128] sm:$0xff]
      %v188 = vld [vmem:[%s1 + $0x130] sm:$0xff]
      %v189 = vld [vmem:[%s1 + $0x138] sm:$0xff]
      %v190 = vld [vmem:[%s1 + $0x140] sm:$0xff]
      %v191 = vld [vmem:[%s1 + $0x148] sm:$0xff]
      %v192 = vld [vmem:[%s1 + $0x150] sm:$0xff]
      %v193 = vld [vmem:[%s1 + $0x158] sm:$0xff]
      %v194 = vld [vmem:[%s1 + $0x160] sm:$0xff]
      %v195 = vld [vmem:[%s1 + $0x168] sm:$0xff]
      %v196 = vld [vmem:[%s1 + $0x170] sm:$0xff]
      %v197 = vld [vmem:[%s1 + $0x178] sm:$0xff]
      %v198 = vld [vmem:[%s1 + $0x180] sm:$0xff]
      %v199 = vld [vmem:[%s1 + $0x188] sm:$0xff]
      %v200 = vld [vmem:[%s1 + $0x190] sm:$0xff]
      %v201 = vld [vmem:[%s1 + $0x198] sm:$0xff]
      %v202 = vld [vmem:[%s1 + $0x1a0] sm:$0xff]
      %v203 = vld [vmem:[%s1 + $0x1a8] sm:$0xff]
      %v204 = vld [vmem:[%s1 + $0x1b0] sm:$0xff]
      %v205 = vld [vmem:[%s1 + $0x1b8] sm:$0xff]
      %v206 = vld [vmem:[%s1 + $0x1c0] sm:$0xff]
      %v207 = vld [vmem:[%s1 + $0x1c8] sm:$0xff]
      %v208 = vld [vmem:[%s1 + $0x1d0] sm:$0xff]
      %v209 = vld [vmem:[%s1 + $0x1d8] sm:$0xff]
      %v210 = vld [vmem:[%s1 + $0x1e0] sm:$0xff]
      %v211 = vld [vmem:[%s1 + $0x1e8] sm:$0xff]
      %v212 = vld [vmem:[%s1 + $0x1f0] sm:$0xff]
      %v213 = vld [vmem:[%s1 + $0x1f8] sm:$0xff]
      %214 = vmatpush.msra.mxu0 %v210
      %215 = vmatpush.msra.mxu0 %v206
      %216 = vmatpush.msra.mxu0 %v202
      %217 = vmatpush.msra.mxu0 %v198
      %218 = vmatpush.msra.mxu0 %v194
      %219 = vmatpush.msra.mxu0 %v190
      %220 = vmatpush.msra.mxu0 %v186
      %221 = vmatpush.msra.mxu0 %v182
      %222 = vmatpush.msra.mxu0 %v178
      %223 = vmatpush.msra.mxu0 %v174
      %224 = vmatpush.msra.mxu0 %v170
      %225 = vmatpush.msra.mxu0 %v166
      %226 = vmatpush.msra.mxu0 %v162
      %227 = vmatpush.msra.mxu0 %v158
      %228 = vmatpush.msra.mxu0 %v154
      %229 = vmatpush.msra.mxu0 %v150
      %230 = vmatmul.f32.gmra.mxu0 %v149
      %v231 = vpop.f32.mrf.mxu0
      %v232 = vadd.f32 0.0, %v231
      %233 = vdwg.mxu0
      %234 = vmatpush.msra.mxu0 %v211
      %235 = vmatpush.msra.mxu0 %v207
      %236 = vmatpush.msra.mxu0 %v203
      %237 = vmatpush.msra.mxu0 %v199
      %238 = vmatpush.msra.mxu0 %v195
      %239 = vmatpush.msra.mxu0 %v191
      %240 = vmatpush.msra.mxu0 %v187
      %241 = vmatpush.msra.mxu0 %v183
      %242 = vmatpush.msra.mxu0 %v179
      %243 = vmatpush.msra.mxu0 %v175
      %244 = vmatpush.msra.mxu0 %v171
      %245 = vmatpush.msra.mxu0 %v167
      %246 = vmatpush.msra.mxu0 %v163
      %247 = vmatpush.msra.mxu0 %v159
      %248 = vmatpush.msra.mxu0 %v155
      %249 = vmatpush.msra.mxu0 %v151
      %250 = vmatmul.f32.gmra.mxu0 %v149
      %v251 = vpop.f32.mrf.mxu0
      %v252 = vadd.f32 0.0, %v251
      %253 = vdwg.mxu0
      %254 = vmatpush.msra.mxu0 %v212
      %255 = vmatpush.msra.mxu0 %v208
      %256 = vmatpush.msra.mxu0 %v204
      %257 = vmatpush.msra.mxu0 %v200
      %258 = vmatpush.msra.mxu0 %v196
      %259 = vmatpush.msra.mxu0 %v192
      %260 = vmatpush.msra.mxu0 %v188
      %261 = vmatpush.msra.mxu0 %v184
      %262 = vmatpush.msra.mxu0 %v180
      %263 = vmatpush.msra.mxu0 %v176
      %264 = vmatpush.msra.mxu0 %v172
      %265 = vmatpush.msra.mxu0 %v168
      %266 = vmatpush.msra.mxu0 %v164
      %267 = vmatpush.msra.mxu0 %v160
      %268 = vmatpush.msra.mxu0 %v156
      %269 = vmatpush.msra.mxu0 %v152
      %270 = vmatmul.f32.gmra.mxu0 %v149
      %v271 = vpop.f32.mrf.mxu0
      %v272 = vadd.f32 0.0, %v271
      %273 = vdwg.mxu0
      %274 = vmatpush.msra.mxu0 %v213
      %275 = vmatpush.msra.mxu0 %v209
      %276 = vmatpush.msra.mxu0 %v205
      %277 = vmatpush.msra.mxu0 %v201
      %278 = vmatpush.msra.mxu0 %v197
      %279 = vmatpush.msra.mxu0 %v193
      %280 = vmatpush.msra.mxu0 %v189
      %281 = vmatpush.msra.mxu0 %v185
      %282 = vmatpush.msra.mxu0 %v181
      %283 = vmatpush.msra.mxu0 %v177
      %284 = vmatpush.msra.mxu0 %v173
      %285 = vmatpush.msra.mxu0 %v169
      %286 = vmatpush.msra.mxu0 %v165
      %287 = vmatpush.msra.mxu0 %v161
      %288 = vmatpush.msra.mxu0 %v157
      %289 = vmatpush.msra.mxu0 %v153
      %290 = vmatmul.f32.gmra.mxu0 %v149
      %v291 = vpop.f32.mrf.mxu0
      %v292 = vadd.f32 0.0, %v291
      %293 = vdwg.mxu0
      %v298 = vrot.slane %v252, 6
      %v299 = vrot.slane %v272, 4
      %v300 = vrot.slane %v292, 2
      %vm301 = vcmask 1041408
      %v302 = vsel %vm301, %v232, %v298
      %vm303 = vcmask 1045508
      %v304 = vsel %vm303, %v299, %v300
      %vm305 = vcmask 1043456
      %v306 = vsel %vm305, %v302, %v304
      %v308 = vadd.f32 %v148, %v306
      %v309 = vxor.u32 %v308, 2147483648
      %v310 = vmul.f32 %v309, 1.442695
      %v311 = vpow.pop %v310
      %v312 = vadd.f32 %v311, 1.0
      %v313 = vrcp.pop %v312
      %v314 = vmul.f32 %v312, %v313
      %v315 = vsub.f32 1.0, %v314
      %v316 = vmul.f32 %v313, %v315
      %v317 = vadd.f32 %v313, %v316
      %vm318 = vweird.f32 %v312
      %vm319 = vweird.f32 %v313
      %vm320 = vmor %vm318, %vm319
      %v321 = vsel %vm320, %v313, %v317
      %v322 = vand.u32 2147483647, %v312
      %vm323 = vcmp.eq.f32.partialorder %v322, 8.507059e+37
      %v324 = vand.u32 %v312, 2147483648
      %v325 = vor.u32 1.1754944e-38, %v324
      %v326 = vsel %vm323, %v325, %v321
      %v327 = vmul.f32 1.0, %v326
      %v329 = vrot.slane %v308, 2
      %v331 = vxor.u32 %v329, 2147483648
      %v332 = vmul.f32 %v331, 1.442695
      %v333 = vpow.pop %v332
      %v334 = vadd.f32 %v333, 1.0
      %v335 = vrcp.pop %v334
      %v336 = vmul.f32 %v334, %v335
      %v337 = vsub.f32 1.0, %v336
      %v338 = vmul.f32 %v335, %v337
      %v339 = vadd.f32 %v335, %v338
      %vm340 = vweird.f32 %v334
      %vm341 = vweird.f32 %v335
      %vm342 = vmor %vm340, %vm341
      %v343 = vsel %vm342, %v335, %v339
      %v344 = vand.u32 2147483647, %v334
      %vm345 = vcmp.eq.f32.partialorder %v344, 8.507059e+37
      %v346 = vand.u32 %v334, 2147483648
      %v347 = vor.u32 1.1754944e-38, %v346
      %v348 = vsel %vm345, %v347, %v343
      %v349 = vmul.f32 1.0, %v348
      %v350 = vrot.slane %v308, 4
      %v352 = vtanh.pop %v350
      %v353 = vrot.slane %v308, 6
      %v355 = vxor.u32 %v353, 2147483648
      %v356 = vmul.f32 %v355, 1.442695
      %v357 = vpow.pop %v356
      %v358 = vadd.f32 %v357, 1.0
      %v359 = vrcp.pop %v358
      %v360 = vmul.f32 %v358, %v359
      %v361 = vsub.f32 1.0, %v360
      %v362 = vmul.f32 %v359, %v361
      %v363 = vadd.f32 %v359, %v362
      %vm364 = vweird.f32 %v358
      %vm365 = vweird.f32 %v359
      %vm366 = vmor %vm364, %vm365
      %v367 = vsel %vm366, %v359, %v363
      %v368 = vand.u32 2147483647, %v358
      %vm369 = vcmp.eq.f32.partialorder %v368, 8.507059e+37
      %v370 = vand.u32 %v358, 2147483648
      %v371 = vor.u32 1.1754944e-38, %v370
      %v372 = vsel %vm369, %v371, %v367
      %v373 = vmul.f32 1.0, %v372
      %v374 = vld [vmem:[#allocation3] sm:$0x3]
      %v375 = vmul.f32 %v349, %v374
      %v376 = vmul.f32 %v327, %v352
      %v377 = vadd.f32 %v375, %v376
      %v378 = vtanh.pop %v377
      %v379 = vmul.f32 %v373, %v378
      %380 = vst [vmem:[#allocation2] sm:$0x3] %v379
      %381 = vst [vmem:[#allocation3] sm:$0x3] %v377
      %382 = vst [vmem:[%s141] sm:$0x3] %v379
      %p383 = scmp.lt.s32.totalorder %s13, 3
      %s384 = scalar_select %p383, %s13, 3
      %s385 = smul.addr %s384, 2
      %s386 = scalar_lea.vmem %s2, %s385
      // Predicated region
      $region33: #{trace_lstm_forward.26} parent=27 // pred_check
        %p387 = pneg %p78
      $region34: #{trace_lstm_forward.26} parent=27 // pred_check_branch
        %389 = sbr.rel (%p387) target = $region36
      $region35: #{trace_lstm_forward.26} parent=27 // pred_region
        _
      $region36: #{trace_lstm_forward.26} parent=27 // pred_fallthru
        _
    $region28: #{trace_lstm_forward.26} parent=5 // pred_fallthru
      _
    %p390 = scmp.le.s32.totalorder 2, %s8
    // Predicated region
    $region37: #{trace_lstm_forward.26} parent=5 // pred_check
      %p391 = pneg %p390
    $region38: #{trace_lstm_forward.26} parent=5 // pred_check_branch
      %393 = sbr.rel (%p391) target = $region40
    $region39: #{trace_lstm_forward.26} parent=5 // pred_region
      %s394 = ssub.s32 %s8, 2
      // Predicated region
      $region41: #{trace_lstm_forward.26} parent=39 // pred_check
        %p395 = pneg %p84
      $region42: #{trace_lstm_forward.26} parent=39 // pred_check_branch
        %397 = sbr.rel (%p395) target = $region44
      $region43: #{trace_lstm_forward.26} parent=39 // pred_region
        %p398 = scmp.lt.s32.totalorder %s14, 3
        %s399 = scalar_select %p398, %s14, 3
        %s400 = smul.addr %s399, 2
        %s401 = scalar_lea.vmem %s2, %s400
      $region44: #{trace_lstm_forward.26} parent=39 // pred_fallthru
        _
    $region40: #{trace_lstm_forward.26} parent=5 // pred_fallthru
      _
  $region6: #{trace_lstm_forward.26} parent=0 // loop_footer
    %s12 = sadd.s32 1, %s8
  $region7: #{trace_lstm_forward.26} parent=0 // loop_footer_branch
    %7 = sbr.rel target = $region3
  $region8: #{trace_lstm_forward.26} parent=0 // loop_exit
    _

// kernel: trace_lstm_forward.27
$region0: #{trace_lstm_forward.27}
  #allocation0 [shape = 'u32[]', space=smem, size = 0x4, offset = 0x4, fixed_abs, tag = 'smem constant byte address 0x4 - core index']
  #allocation1 [shape = 'u32[72,128]{1,0:T(1,128)}', space=vmem, size = 0x9000, scoped, tag = 'internal scratch']
  #allocation2 [shape = 'f32[2,128]{1,0:T(2,128)}', space=vmem, size = 0x400, scoped, tag = 'scratch operand']
  #allocation3 [shape = 'f32[2,128]{1,0:T(2,128)}', space=vmem, size = 0x400, scoped, tag = 'scratch operand']
  %s0 = inlined_call_operand.vmem [shape: f32[4,2,512], index: 0, kind: input, shape index: {}]
  %s1 = inlined_call_operand.vmem [shape: f32[128,512], index: 1, kind: input, shape index: {}]
  %s2 = inlined_call_operand.vmem [shape: f32[4,2,128], index: 2, kind: output, shape index: {}]
  %s3 = sld [smem:[#allocation0]]
  $region45: #{trace_lstm_forward.27} parent=0
    _
  %s5 = ssub.s32 1, %s3
  %s6 = scalar_select 0, %s5, %s3
  loop: start=0, step=1, limit=6
  $region2: #{trace_lstm_forward.27} parent=0 // loop_pre_header
    _
  $region3: #{trace_lstm_forward.27} parent=0 // loop_header
    %s8 = sphi 0, %s12
    %p9 = scmp.ge.s32.totalorder %s8, 6
    %s20 = sphi 0, %s22
    %s23 = sphi 0, %s20
    %s24 = sphi 0, %s23
    %s40 = sphi 0, %s24
    %s44 = sphi 0, %s44
    %s46 = sphi 0, %s44
    %s47 = sphi 0, %s46
    %s61 = sphi 0, %s47
    %s69 = sphi 0, %s71
    %s72 = sphi 0, %s69
    %s73 = sphi 0, %s72
    %s89 = sphi 0, %s73
  $region4: #{trace_lstm_forward.27} parent=0 // loop_header_branch
    %11 = sbr.rel (%p9) target = $region8
  $region5: #{trace_lstm_forward.27} parent=0 // loop_body
    %s13 = ssub.s32 %s8, 1
    %s14 = ssub.s32 %s8, 2
    %s15 = sadd.s32 %s8, 1
    %s16 = ssub.s32 3, %s8
    %s17 = ssub.s32 3, %s15
    %s18 = ssub.s32 %s16, %s17
    %p19 = scmp.eq.s32.totalorder %s18, 0
    %s21 = sadd.s32 %s20, 1
    %s22 = scalar_select %p19, %s20, %s21
    %p25 = pneg %p19
    %p26 = scmp.eq.s32.totalorder %s8, 3
    %p27 = por %p25, %p26
    %p28 = scmp.ne.s32.totalorder %s20, %s23
    %p29 = scmp.eq.s32.totalorder %s8, 0
    %p30 = por %p28, %p29
    %p31 = scmp.ne.s32.totalorder %s20, %s23
    %p32 = scmp.eq.s32.totalorder %s13, 3
    %p33 = por %p31, %p32
    %p34 = scmp.ne.s32.totalorder %s23, %s24
    %p35 = scmp.eq.s32.totalorder %s13, 0
    %p36 = por %p34, %p35
    %p37 = scmp.ne.s32.totalorder %s23, %s24
    %p38 = scmp.eq.s32.totalorder %s14, 3
    %p39 = por %p37, %p38
    %p41 = scmp.ne.s32.totalorder %s24, %s40
    %p42 = scmp.eq.s32.totalorder %s14, 0
    %p43 = por %p41, %p42
    %s45 = sadd.s32 %s44, 1
    %p48 = scmp.eq.s32.totalorder %s8, 3
    %p49 = scmp.ne.s32.totalorder %s44, %s46
    %p50 = scmp.eq.s32.totalorder %s8, 0
    %p51 = por %p49, %p50
    %p52 = scmp.ne.s32.totalorder %s44, %s46
    %p53 = scmp.eq.s32.totalorder %s13, 3
    %p54 = por %p52, %p53
    %p55 = scmp.ne.s32.totalorder %s46, %s47
    %p56 = scmp.eq.s32.totalorder %s13, 0
    %p57 = por %p55, %p56
    %p58 = scmp.ne.s32.totalorder %s46, %s47
    %p59 = scmp.eq.s32.totalorder %s14, 3
    %p60 = por %p58, %p59
    %p62 = scmp.ne.s32.totalorder %s47, %s61
    %p63 = scmp.eq.s32.totalorder %s14, 0
    %p64 = por %p62, %p63
    %s65 = ssub.s32 3, %s8
    %s66 = ssub.s32 3, %s15
    %s67 = ssub.s32 %s65, %s66
    %p68 = scmp.eq.s32.totalorder %s67, 0
    %s70 = sadd.s32 %s69, 1
    %s71 = scalar_select %p68, %s69, %s70
    %p74 = pneg %p68
    %p75 = scmp.eq.s32.totalorder %s8, 3
    %p76 = por %p74, %p75
    %p77 = scmp.ne.s32.totalorder %s69, %s72
    %p78 = scmp.eq.s32.totalorder %s8, 0
    %p79 = por %p77, %p78
    %p80 = scmp.ne.s32.totalorder %s69, %s72
    %p81 = scmp.eq.s32.totalorder %s13, 3
    %p82 = por %p80, %p81
    %p83 = scmp.ne.s32.totalorder %s72, %s73
    %p84 = scmp.eq.s32.totalorder %s13, 0
    %p85 = por %p83, %p84
    %p86 = scmp.ne.s32.totalorder %s72, %s73
    %p87 = scmp.eq.s32.totalorder %s14, 3
    %p88 = por %p86, %p87
    %p90 = scmp.ne.s32.totalorder %s73, %s89
    %p91 = scmp.eq.s32.totalorder %s14, 0
    %p92 = por %p90, %p91
    %p93 = scmp.le.s32.totalorder 1, %s8
    %p94 = scmp.lt.s32.totalorder %s8, 5
    %p95 = pnand %p93, %p94
    %p96 = pneg %p95
    // Predicated region
    $region9: #{trace_lstm_forward.27} parent=5 // pred_check
      _
    $region10: #{trace_lstm_forward.27} parent=5 // pred_check_branch
      %98 = sbr.rel (%p95) target = $region12
    $region11: #{trace_lstm_forward.27} parent=5 // pred_region
      %s99 = ssub.s32 %s8, 1
      // Predicated region
      $region13: #{trace_lstm_forward.27} parent=11 // pred_check
        %p100 = pneg %p57
      $region14: #{trace_lstm_forward.27} parent=11 // pred_check_branch
        %102 = sbr.rel (%p100) target = $region16
      $region15: #{trace_lstm_forward.27} parent=11 // pred_region
        _
      $region16: #{trace_lstm_forward.27} parent=11 // pred_fallthru
        _
    $region12: #{trace_lstm_forward.27} parent=5 // pred_fallthru
      _
    %p103 = scmp.lt.s32.totalorder %s8, 4
    // Predicated region
    $region17: #{trace_lstm_forward.27} parent=5 // pred_check
      %p104 = pneg %p103
    $region18: #{trace_lstm_forward.27} parent=5 // pred_check_branch
      %106 = sbr.rel (%p104) target = $region20
    $region19: #{trace_lstm_forward.27} parent=5 // pred_region
      // Predicated region
      $region21: #{trace_lstm_forward.27} parent=19 // pred_check
        %p107 = pneg %p30
      $region22: #{trace_lstm_forward.27} parent=19 // pred_check_branch
        %109 = sbr.rel (%p107) target = $region24
      $region23: #{trace_lstm_forward.27} parent=19 // pred_region
        %s110 = ssub.s32 3, %s8
        %p111 = scmp.lt.s32.totalorder %s110, 3
        %s112 = scalar_select %p111, %s110, 3
        %s113 = smul.addr %s112, 4
        %s114 = smul.addr %s113, 2
        %s115 = scalar_lea.vmem %s0, %s114
        %s116 = ssub.s32 3, %s8
      $region24: #{trace_lstm_forward.27} parent=19 // pred_fallthru
        _
    $region20: #{trace_lstm_forward.27} parent=5 // pred_fallthru
      _
    %p117 = scmp.le.s32.totalorder 1, %s8
    %p118 = scmp.lt.s32.totalorder %s8, 5
    %p119 = pnand %p117, %p118
    %p120 = pneg %p119
    // Predicated region
    $region25: #{trace_lstm_forward.27} parent=5 // pred_check
      _
    $region26: #{trace_lstm_forward.27} parent=5 // pred_check_branch
      %122 = sbr.rel (%p119) target = $region28
    $region27: #{trace_lstm_forward.27} parent=5 // pred_region
      %s123 = ssub.s32 %s8, 1
      %s124 = ssub.s32 3, %s13
      %p125 = scmp.lt.s32.totalorder %s124, 3
      %s126 = scalar_select %p125, %s124, 3
      %s127 = smul.addr %s126, 4
      %s128 = smul.addr %s127, 2
      %s129 = scalar_lea.vmem %s0, %s128
      %p130 = pneg %p36
      %p131 = pneg %p33
      %p132 = pneg %p57
      %p133 = pneg %p54
      %p134 = pneg %p85
      %p135 = pneg %p82
      %s136 = ssub.s32 3, %s13
      %p137 = scmp.lt.s32.totalorder %s136, 3
      %s138 = scalar_select %p137, %s136, 3
      %s139 = smul.addr %s138, 2
      %s140 = scalar_lea.vmem %s2, %s139
      %s141 = ssub.s32 3, %s13
      %p142 = scmp.lt.s32.totalorder %s141, 3
      %s143 = scalar_select %p142, %s141, 3
      %s144 = smul.addr %s143, 4
      %s145 = smul.addr %s144, 2
      %s146 = scalar_lea.vmem %s0, %s145
      %s147 = ssub.s32 3, %s13
      %s148 = ssub.s32 3, %s13
      %p149 = scmp.lt.s32.totalorder %s148, 3
      %s150 = scalar_select %p149, %s148, 3
      %s151 = smul.addr %s150, 2
      %s152 = scalar_lea.vmem %s2, %s151
      %s153 = ssub.s32 3, %s13
      %p154 = scmp.eq.s32.totalorder %s13, 0
      // Predicated region
      $region29: #{trace_lstm_forward.27} parent=27 // pred_check
        %p155 = pneg %p154
      $region30: #{trace_lstm_forward.27} parent=27 // pred_check_branch
        %157 = sbr.rel (%p155) target = $region32
      $region31: #{trace_lstm_forward.27} parent=27 // pred_region
        %158 = vst [vmem:[#allocation2] sm:$0x3] 0.0
        %159 = vst [vmem:[#allocation3] sm:$0x3] 0.0
      $region32: #{trace_lstm_forward.27} parent=27 // pred_fallthru
        _
      %v160 = vld [vmem:[%s146] sm:$0xff]
      %v161 = vld [vmem:[#allocation2] sm:$0x3]
      %v162 = vld [vmem:[%s1] sm:$0xff]
      %v163 = vld [vmem:[%s1 + $0x8] sm:$0xff]
      %v164 = vld [vmem:[%s1 + $0x10] sm:$0xff]
      %v165 = vld [vmem:[%s1 + $0x18] sm:$0xff]
      %v166 = vld [vmem:[%s1 + $0x20] sm:$0xff]
      %v167 = vld [vmem:[%s1 + $0x28] sm:$0xff]
      %v168 = vld [vmem:[%s1 + $0x30] sm:$0xff]
      %v169 = vld [vmem:[%s1 + $0x38] sm:$0xff]
      %v170 = vld [vmem:[%s1 + $0x40] sm:$0xff]
      %v171 = vld [vmem:[%s1 + $0x48] sm:$0xff]
      %v172 = vld [vmem:[%s1 + $0x50] sm:$0xff]
      %v173 = vld [vmem:[%s1 + $0x58] sm:$0xff]
      %v174 = vld [vmem:[%s1 + $0x60] sm:$0xff]
      %v175 = vld [vmem:[%s1 + $0x68] sm:$0xff]
      %v176 = vld [vmem:[%s1 + $0x70] sm:$0xff]
      %v177 = vld [vmem:[%s1 + $0x78] sm:$0xff]
      %v178 = vld [vmem:[%s1 + $0x80] sm:$0xff]
      %v179 = vld [vmem:[%s1 + $0x88] sm:$0xff]
      %v180 = vld [vmem:[%s1 + $0x90] sm:$0xff]
      %v181 = vld [vmem:[%s1 + $0x98] sm:$0xff]
      %v182 = vld [vmem:[%s1 + $0xa0] sm:$0xff]
      %v183 = vld [vmem:[%s1 + $0xa8] sm:$0xff]
      %v184 = vld [vmem:[%s1 + $0xb0] sm:$0xff]
      %v185 = vld [vmem:[%s1 + $0xb8] sm:$0xff]
      %v186 = vld [vmem:[%s1 + $0xc0] sm:$0xff]
      %v187 = vld [vmem:[%s1 + $0xc8] sm:$0xff]
      %v188 = vld [vmem:[%s1 + $0xd0] sm:$0xff]
      %v189 = vld [vmem:[%s1 + $0xd8] sm:$0xff]
      %v190 = vld [vmem:[%s1 + $0xe0] sm:$0xff]
      %v191 = vld [vmem:[%s1 + $0xe8] sm:$0xff]
      %v192 = vld [vmem:[%s1 + $0xf0] sm:$0xff]
      %v193 = vld [vmem:[%s1 + $0xf8] sm:$0xff]
      %v194 = vld [vmem:[%s1 + $0x100] sm:$0xff]
      %v195 = vld [vmem:[%s1 + $0x108] sm:$0xff]
      %v196 = vld [vmem:[%s1 + $0x110] sm:$0xff]
      %v197 = vld [vmem:[%s1 + $0x118] sm:$0xff]
      %v198 = vld [vmem:[%s1 + $0x120] sm:$0xff]
      %v199 = vld [vmem:[%s1 + $0x128] sm:$0xff]
      %v200 = vld [vmem:[%s1 + $0x130] sm:$0xff]
      %v201 = vld [vmem:[%s1 + $0x138] sm:$0xff]
      %v202 = vld [vmem:[%s1 + $0x140] sm:$0xff]
      %v203 = vld [vmem:[%s1 + $0x148] sm:$0xff]
      %v204 = vld [vmem:[%s1 + $0x150] sm:$0xff]
      %v205 = vld [vmem:[%s1 + $0x158] sm:$0xff]
      %v206 = vld [vmem:[%s1 + $0x160] sm:$0xff]
      %v207 = vld [vmem:[%s1 + $0x168] sm:$0xff]
      %v208 = vld [vmem:[%s1 + $0x170] sm:$0xff]
      %v209 = vld [vmem:[%s1 + $0x178] sm:$0xff]
      %v210 = vld [vmem:[%s1 + $0x180] sm:$0xff]
      %v211 = vld [vmem:[%s1 + $0x188] sm:$0xff]
      %v212 = vld [vmem:[%s1 + $0x190] sm:$0xff]
      %v213 = vld [vmem:[%s1 + $0x198] sm:$0xff]
      %v214 = vld [vmem:[%s1 + $0x1a0] sm:$0xff]
      %v215 = vld [vmem:[%s1 + $0x1a8] sm:$0xff]
      %v216 = vld [vmem:[%s1 + $0x1b0] sm:$0xff]
      %v217 = vld [vmem:[%s1 + $0x1b8] sm:$0xff]
      %v218 = vld [vmem:[%s1 + $0x1c0] sm:$0xff]
      %v219 = vld [vmem:[%s1 + $0x1c8] sm:$0xff]
      %v220 = vld [vmem:[%s1 + $0x1d0] sm:$0xff]
      %v221 = vld [vmem:[%s1 + $0x1d8] sm:$0xff]
      %v222 = vld [vmem:[%s1 + $0x1e0] sm:$0xff]
      %v223 = vld [vmem:[%s1 + $0x1e8] sm:$0xff]
      %v224 = vld [vmem:[%s1 + $0x1f0] sm:$0xff]
      %v225 = vld [vmem:[%s1 + $0x1f8] sm:$0xff]
      %226 = vmatpush.msra.mxu0 %v222
      %227 = vmatpush.msra.mxu0 %v218
      %228 = vmatpush.msra.mxu0 %v214
      %229 = vmatpush.msra.mxu0 %v210
      %230 = vmatpush.msra.mxu0 %v206
      %231 = vmatpush.msra.mxu0 %v202
      %232 = vmatpush.msra.mxu0 %v198
      %233 = vmatpush.msra.mxu0 %v194
      %234 = vmatpush.msra.mxu0 %v190
      %235 = vmatpush.msra.mxu0 %v186
      %236 = vmatpush.msra.mxu0 %v182
      %237 = vmatpush.msra.mxu0 %v178
      %238 = vmatpush.msra.mxu0 %v174
      %239 = vmatpush.msra.mxu0 %v170
      %240 = vmatpush.msra.mxu0 %v166
      %241 = vmatpush.msra.mxu0 %v162
      %242 = vmatmul.f32.gmra.mxu0 %v161
      %v243 = vpop.f32.mrf.mxu0
      %v244 = vadd.f32 0.0, %v243
      %245 = vdwg.mxu0
      %246 = vmatpush.msra.mxu0 %v223
      %247 = vmatpush.msra.mxu0 %v219
      %248 = vmatpush.msra.mxu0 %v215
      %249 = vmatpush.msra.mxu0 %v211
      %250 = vmatpush.msra.mxu0 %v207
      %251 = vmatpush.msra.mxu0 %v203
      %252 = vmatpush.msra.mxu0 %v199
      %253 = vmatpush.msra.mxu0 %v195
      %254 = vmatpush.msra.mxu0 %v191
      %255 = vmatpush.msra.mxu0 %v187
      %256 = vmatpush.msra.mxu0 %v183
      %257 = vmatpush.msra.mxu0 %v179
      %258 = vmatpush.msra.mxu0 %v175
      %259 = vmatpush.msra.mxu0 %v171
      %260 = vmatpush.msra.mxu0 %v167
      %261 = vmatpush.msra.mxu0 %v163
      %262 = vmatmul.f32.gmra.mxu0 %v161
      %v263 = vpop.f32.mrf.mxu0
      %v264 = vadd.f32 0.0, %v263
      %265 = vdwg.mxu0
      %266 = vmatpush.msra.mxu0 %v224
      %267 = vmatpush.msra.mxu0 %v220
      %268 = vmatpush.msra.mxu0 %v216
      %269 = vmatpush.msra.mxu0 %v212
      %270 = vmatpush.msra.mxu0 %v208
      %271 = vmatpush.msra.mxu0 %v204
      %272 = vmatpush.msra.mxu0 %v200
      %273 = vmatpush.msra.mxu0 %v196
      %274 = vmatpush.msra.mxu0 %v192
      %275 = vmatpush.msra.mxu0 %v188
      %276 = vmatpush.msra.mxu0 %v184
      %277 = vmatpush.msra.mxu0 %v180
      %278 = vmatpush.msra.mxu0 %v176
      %279 = vmatpush.msra.mxu0 %v172
      %280 = vmatpush.msra.mxu0 %v168
      %281 = vmatpush.msra.mxu0 %v164
      %282 = vmatmul.f32.gmra.mxu0 %v161
      %v283 = vpop.f32.mrf.mxu0
      %v284 = vadd.f32 0.0, %v283
      %285 = vdwg.mxu0
      %286 = vmatpush.msra.mxu0 %v225
      %287 = vmatpush.msra.mxu0 %v221
      %288 = vmatpush.msra.mxu0 %v217
      %289 = vmatpush.msra.mxu0 %v213
      %290 = vmatpush.msra.mxu0 %v209
      %291 = vmatpush.msra.mxu0 %v205
      %292 = vmatpush.msra.mxu0 %v201
      %293 = vmatpush.msra.mxu0 %v197
      %294 = vmatpush.msra.mxu0 %v193
      %295 = vmatpush.msra.mxu0 %v189
      %296 = vmatpush.msra.mxu0 %v185
      %297 = vmatpush.msra.mxu0 %v181
      %298 = vmatpush.msra.mxu0 %v177
      %299 = vmatpush.msra.mxu0 %v173
      %300 = vmatpush.msra.mxu0 %v169
      %301 = vmatpush.msra.mxu0 %v165
      %302 = vmatmul.f32.gmra.mxu0 %v161
      %v303 = vpop.f32.mrf.mxu0
      %v304 = vadd.f32 0.0, %v303
      %305 = vdwg.mxu0
      %v310 = vrot.slane %v264, 6
      %v311 = vrot.slane %v284, 4
      %v312 = vrot.slane %v304, 2
      %vm313 = vcmask 1041408
      %v314 = vsel %vm313, %v244, %v310
      %vm315 = vcmask 1045508
      %v316 = vsel %vm315, %v311, %v312
      %vm317 = vcmask 1043456
      %v318 = vsel %vm317, %v314, %v316
      %v320 = vadd.f32 %v160, %v318
      %v321 = vxor.u32 %v320, 2147483648
      %v322 = vmul.f32 %v321, 1.442695
      %v323 = vpow.pop %v322
      %v324 = vadd.f32 %v323, 1.0
      %v325 = vrcp.pop %v324
      %v326 = vmul.f32 %v324, %v325
      %v327 = vsub.f32 1.0, %v326
      %v328 = vmul.f32 %v325, %v327
      %v329 = vadd.f32 %v325, %v328
      %vm330 = vweird.f32 %v324
      %vm331 = vweird.f32 %v325
      %vm332 = vmor %vm330, %vm331
      %v333 = vsel %vm332, %v325, %v329
      %v334 = vand.u32 2147483647, %v324
      %vm335 = vcmp.eq.f32.partialorder %v334, 8.507059e+37
      %v336 = vand.u32 %v324, 2147483648
      %v337 = vor.u32 1.1754944e-38, %v336
      %v338 = vsel %vm335, %v337, %v333
      %v339 = vmul.f32 1.0, %v338
      %v341 = vrot.slane %v320, 2
      %v343 = vxor.u32 %v341, 2147483648
      %v344 = vmul.f32 %v343, 1.442695
      %v345 = vpow.pop %v344
      %v346 = vadd.f32 %v345, 1.0
      %v347 = vrcp.pop %v346
      %v348 = vmul.f32 %v346, %v347
      %v349 = vsub.f32 1.0, %v348
      %v350 = vmul.f32 %v347, %v349
      %v351 = vadd.f32 %v347, %v350
      %vm352 = vweird.f32 %v346
      %vm353 = vweird.f32 %v347
      %vm354 = vmor %vm352, %vm353
      %v355 = vsel %vm354, %v347, %v351
      %v356 = vand.u32 2147483647, %v346
      %vm357 = vcmp.eq.f32.partialorder %v356, 8.507059e+37
      %v358 = vand.u32 %v346, 2147483648
      %v359 = vor.u32 1.1754944e-38, %v358
      %v360 = vsel %vm357, %v359, %v355
      %v361 = vmul.f32 1.0, %v360
      %v362 = vrot.slane %v320, 4
      %v364 = vtanh.pop %v362
      %v365 = vrot.slane %v320, 6
      %v367 = vxor.u32 %v365, 2147483648
      %v368 = vmul.f32 %v367, 1.442695
      %v369 = vpow.pop %v368
      %v370 = vadd.f32 %v369, 1.0
      %v371 = vrcp.pop %v370
      %v372 = vmul.f32 %v370, %v371
      %v373 = vsub.f32 1.0, %v372
      %v374 = vmul.f32 %v371, %v373
      %v375 = vadd.f32 %v371, %v374
      %vm376 = vweird.f32 %v370
      %vm377 = vweird.f32 %v371
      %vm378 = vmor %vm376, %vm377
      %v379 = vsel %vm378, %v371, %v375
      %v380 = vand.u32 2147483647, %v370
      %vm381 = vcmp.eq.f32.partialorder %v380, 8.507059e+37
      %v382 = vand.u32 %v370, 2147483648
      %v383 = vor.u32 1.1754944e-38, %v382
      %v384 = vsel %vm381, %v383, %v379
      %v385 = vmul.f32 1.0, %v384
      %v386 = vld [vmem:[#allocation3] sm:$0x3]
      %v387 = vmul.f32 %v361, %v386
      %v388 = vmul.f32 %v339, %v364
      %v389 = vadd.f32 %v387, %v388
      %v390 = vtanh.pop %v389
      %v391 = vmul.f32 %v385, %v390
      %392 = vst [vmem:[#allocation2] sm:$0x3] %v391
      %393 = vst [vmem:[#allocation3] sm:$0x3] %v389
      %394 = vst [vmem:[%s152] sm:$0x3] %v391
      %s395 = ssub.s32 3, %s13
      %p396 = scmp.lt.s32.totalorder %s395, 3
      %s397 = scalar_select %p396, %s395, 3
      %s398 = smul.addr %s397, 2
      %s399 = scalar_lea.vmem %s2, %s398
      // Predicated region
      $region33: #{trace_lstm_forward.27} parent=27 // pred_check
        %p400 = pneg %p82
      $region34: #{trace_lstm_forward.27} parent=27 // pred_check_branch
        %402 = sbr.rel (%p400) target = $region36
      $region35: #{trace_lstm_forward.27} parent=27 // pred_region
        %s403 = ssub.s32 3, %s13
      $region36: #{trace_lstm_forward.27} parent=27 // pred_fallthru
        _
    $region28: #{trace_lstm_forward.27} parent=5 // pred_fallthru
      _
    %p404 = scmp.le.s32.totalorder 2, %s8
    // Predicated region
    $region37: #{trace_lstm_forward.27} parent=5 // pred_check
      %p405 = pneg %p404
    $region38: #{trace_lstm_forward.27} parent=5 // pred_check_branch
      %407 = sbr.rel (%p405) target = $region40
    $region39: #{trace_lstm_forward.27} parent=5 // pred_region
      %s408 = ssub.s32 %s8, 2
      // Predicated region
      $region41: #{trace_lstm_forward.27} parent=39 // pred_check
        %p409 = pneg %p88
      $region42: #{trace_lstm_forward.27} parent=39 // pred_check_branch
        %411 = sbr.rel (%p409) target = $region44
      $region43: #{trace_lstm_forward.27} parent=39 // pred_region
        %s412 = ssub.s32 3, %s14
        %p413 = scmp.lt.s32.totalorder %s412, 3
        %s414 = scalar_select %p413, %s412, 3
        %s415 = smul.addr %s414, 2
        %s416 = scalar_lea.vmem %s2, %s415
      $region44: #{trace_lstm_forward.27} parent=39 // pred_fallthru
        _
    $region40: #{trace_lstm_forward.27} parent=5 // pred_fallthru
      _
  $region6: #{trace_lstm_forward.27} parent=0 // loop_footer
    %s12 = sadd.s32 1, %s8
  $region7: #{trace_lstm_forward.27} parent=0 // loop_footer_branch
    %7 = sbr.rel target = $region3
  $region8: #{trace_lstm_forward.27} parent=0 // loop_exit
    _

// kernel: trace_lstm_forward.24
$region0: #{trace_lstm_forward.24}
  #allocation0 [shape = 'u32[]', space=smem, size = 0x4, offset = 0x4, fixed_abs, tag = 'smem constant byte address 0x4 - core index']
  #allocation1 [shape = 'u32[72,128]{1,0:T(1,128)}', space=vmem, size = 0x9000, scoped, tag = 'internal scratch']
  %s0 = inlined_call_operand.vmem [shape: f32[32,1152], index: 0, kind: input, shape index: {}]
  %s1 = inlined_call_operand.vmem [shape: f32[1152,128], index: 1, kind: input, shape index: {}]
  %s2 = inlined_call_operand.vmem [shape: f32[1,128], index: 2, kind: input, shape index: {}]
  %s3 = inlined_call_operand.vmem [shape: f32[32,128], index: 3, kind: output, shape index: {}]
  %s4 = sld [smem:[#allocation0]]
  $region22: #{trace_lstm_forward.24} parent=0
    _
  %s6 = ssub.s32 1, %s4
  %s7 = scalar_select 0, %s6, %s4
  // Predicated region
  $region2: #{trace_lstm_forward.24} parent=0 // pred_check
    _
  $region3: #{trace_lstm_forward.24} parent=0 // pred_check_branch
    %9 = sbr.rel (0) target = $region5
  $region4: #{trace_lstm_forward.24} parent=0 // pred_region
    _
  $region5: #{trace_lstm_forward.24} parent=0 // pred_fallthru
    _
  // Predicated region
  $region6: #{trace_lstm_forward.24} parent=0 // pred_check
    _
  $region7: #{trace_lstm_forward.24} parent=0 // pred_check_branch
    %11 = sbr.rel (0) target = $region9
  $region8: #{trace_lstm_forward.24} parent=0 // pred_region
    _
  $region9: #{trace_lstm_forward.24} parent=0 // pred_fallthru
    _
  // Predicated region
  $region10: #{trace_lstm_forward.24} parent=0 // pred_check
    _
  $region11: #{trace_lstm_forward.24} parent=0 // pred_check_branch
    %13 = sbr.rel (0) target = $region13
  $region12: #{trace_lstm_forward.24} parent=0 // pred_region
    _
  $region13: #{trace_lstm_forward.24} parent=0 // pred_fallthru
    _
  %v14 = vld [vmem:[%s0] sm:$0xff]
  %v15 = vld [vmem:[%s0 + $0x8] sm:$0xff]
  %v16 = vld [vmem:[%s0 + $0x10] sm:$0xff]
  %v17 = vld [vmem:[%s0 + $0x18] sm:$0xff]
  %v18 = vld [vmem:[%s0 + $0x20] sm:$0xff]
  %v19 = vld [vmem:[%s0 + $0x28] sm:$0xff]
  %v20 = vld [vmem:[%s0 + $0x30] sm:$0xff]
  %v21 = vld [vmem:[%s0 + $0x38] sm:$0xff]
  %v22 = vld [vmem:[%s0 + $0x40] sm:$0xff]
  %v23 = vld [vmem:[%s0 + $0x48] sm:$0xff]
  %v24 = vld [vmem:[%s0 + $0x50] sm:$0xff]
  %v25 = vld [vmem:[%s0 + $0x58] sm:$0xff]
  %v26 = vld [vmem:[%s0 + $0x60] sm:$0xff]
  %v27 = vld [vmem:[%s0 + $0x68] sm:$0xff]
  %v28 = vld [vmem:[%s0 + $0x70] sm:$0xff]
  %v29 = vld [vmem:[%s0 + $0x78] sm:$0xff]
  %v30 = vld [vmem:[%s0 + $0x80] sm:$0xff]
  %v31 = vld [vmem:[%s0 + $0x88] sm:$0xff]
  %v32 = vld [vmem:[%s0 + $0x90] sm:$0xff]
  %v33 = vld [vmem:[%s0 + $0x98] sm:$0xff]
  %v34 = vld [vmem:[%s0 + $0xa0] sm:$0xff]
  %v35 = vld [vmem:[%s0 + $0xa8] sm:$0xff]
  %v36 = vld [vmem:[%s0 + $0xb0] sm:$0xff]
  %v37 = vld [vmem:[%s0 + $0xb8] sm:$0xff]
  %v38 = vld [vmem:[%s0 + $0xc0] sm:$0xff]
  %v39 = vld [vmem:[%s0 + $0xc8] sm:$0xff]
  %v40 = vld [vmem:[%s0 + $0xd0] sm:$0xff]
  %v41 = vld [vmem:[%s0 + $0xd8] sm:$0xff]
  %v42 = vld [vmem:[%s0 + $0xe0] sm:$0xff]
  %v43 = vld [vmem:[%s0 + $0xe8] sm:$0xff]
  %v44 = vld [vmem:[%s0 + $0xf0] sm:$0xff]
  %v45 = vld [vmem:[%s0 + $0xf8] sm:$0xff]
  %v46 = vld [vmem:[%s0 + $0x100] sm:$0xff]
  %v47 = vld [vmem:[%s0 + $0x108] sm:$0xff]
  %v48 = vld [vmem:[%s0 + $0x110] sm:$0xff]
  %v49 = vld [vmem:[%s0 + $0x118] sm:$0xff]
  %v50 = vld [vmem:[%s1] sm:$0xff]
  %v51 = vld [vmem:[%s1 + $0x8] sm:$0xff]
  %v52 = vld [vmem:[%s1 + $0x10] sm:$0xff]
  %v53 = vld [vmem:[%s1 + $0x18] sm:$0xff]
  %v54 = vld [vmem:[%s1 + $0x20] sm:$0xff]
  %v55 = vld [vmem:[%s1 + $0x28] sm:$0xff]
  %v56 = vld [vmem:[%s1 + $0x30] sm:$0xff]
  %v57 = vld [vmem:[%s1 + $0x38] sm:$0xff]
  %v58 = vld [vmem:[%s1 + $0x40] sm:$0xff]
  %v59 = vld [vmem:[%s1 + $0x48] sm:$0xff]
  %v60 = vld [vmem:[%s1 + $0x50] sm:$0xff]
  %v61 = vld [vmem:[%s1 + $0x58] sm:$0xff]
  %v62 = vld [vmem:[%s1 + $0x60] sm:$0xff]
  %v63 = vld [vmem:[%s1 + $0x68] sm:$0xff]
  %v64 = vld [vmem:[%s1 + $0x70] sm:$0xff]
  %v65 = vld [vmem:[%s1 + $0x78] sm:$0xff]
  %v66 = vld [vmem:[%s1 + $0x80] sm:$0xff]
  %v67 = vld [vmem:[%s1 + $0x88] sm:$0xff]
  %v68 = vld [vmem:[%s1 + $0x90] sm:$0xff]
  %v69 = vld [vmem:[%s1 + $0x98] sm:$0xff]
  %v70 = vld [vmem:[%s1 + $0xa0] sm:$0xff]
  %v71 = vld [vmem:[%s1 + $0xa8] sm:$0xff]
  %v72 = vld [vmem:[%s1 + $0xb0] sm:$0xff]
  %v73 = vld [vmem:[%s1 + $0xb8] sm:$0xff]
  %v74 = vld [vmem:[%s1 + $0xc0] sm:$0xff]
  %v75 = vld [vmem:[%s1 + $0xc8] sm:$0xff]
  %v76 = vld [vmem:[%s1 + $0xd0] sm:$0xff]
  %v77 = vld [vmem:[%s1 + $0xd8] sm:$0xff]
  %v78 = vld [vmem:[%s1 + $0xe0] sm:$0xff]
  %v79 = vld [vmem:[%s1 + $0xe8] sm:$0xff]
  %v80 = vld [vmem:[%s1 + $0xf0] sm:$0xff]
  %v81 = vld [vmem:[%s1 + $0xf8] sm:$0xff]
  %v82 = vld [vmem:[%s1 + $0x100] sm:$0xff]
  %v83 = vld [vmem:[%s1 + $0x108] sm:$0xff]
  %v84 = vld [vmem:[%s1 + $0x110] sm:$0xff]
  %v85 = vld [vmem:[%s1 + $0x118] sm:$0xff]
  %v86 = vld [vmem:[%s1 + $0x120] sm:$0xff]
  %v87 = vld [vmem:[%s1 + $0x128] sm:$0xff]
  %v88 = vld [vmem:[%s1 + $0x130] sm:$0xff]
  %v89 = vld [vmem:[%s1 + $0x138] sm:$0xff]
  %v90 = vld [vmem:[%s1 + $0x140] sm:$0xff]
  %v91 = vld [vmem:[%s1 + $0x148] sm:$0xff]
  %v92 = vld [vmem:[%s1 + $0x150] sm:$0xff]
  %v93 = vld [vmem:[%s1 + $0x158] sm:$0xff]
  %v94 = vld [vmem:[%s1 + $0x160] sm:$0xff]
  %v95 = vld [vmem:[%s1 + $0x168] sm:$0xff]
  %v96 = vld [vmem:[%s1 + $0x170] sm:$0xff]
  %v97 = vld [vmem:[%s1 + $0x178] sm:$0xff]
  %v98 = vld [vmem:[%s1 + $0x180] sm:$0xff]
  %v99 = vld [vmem:[%s1 + $0x188] sm:$0xff]
  %v100 = vld [vmem:[%s1 + $0x190] sm:$0xff]
  %v101 = vld [vmem:[%s1 + $0x198] sm:$0xff]
  %v102 = vld [vmem:[%s1 + $0x1a0] sm:$0xff]
  %v103 = vld [vmem:[%s1 + $0x1a8] sm:$0xff]
  %v104 = vld [vmem:[%s1 + $0x1b0] sm:$0xff]
  %v105 = vld [vmem:[%s1 + $0x1b8] sm:$0xff]
  %v106 = vld [vmem:[%s1 + $0x1c0] sm:$0xff]
  %v107 = vld [vmem:[%s1 + $0x1c8] sm:$0xff]
  %v108 = vld [vmem:[%s1 + $0x1d0] sm:$0xff]
  %v109 = vld [vmem:[%s1 + $0x1d8] sm:$0xff]
  %v110 = vld [vmem:[%s1 + $0x1e0] sm:$0xff]
  %v111 = vld [vmem:[%s1 + $0x1e8] sm:$0xff]
  %v112 = vld [vmem:[%s1 + $0x1f0] sm:$0xff]
  %v113 = vld [vmem:[%s1 + $0x1f8] sm:$0xff]
  %v114 = vld [vmem:[%s1 + $0x200] sm:$0xff]
  %v115 = vld [vmem:[%s1 + $0x208] sm:$0xff]
  %v116 = vld [vmem:[%s1 + $0x210] sm:$0xff]
  %v117 = vld [vmem:[%s1 + $0x218] sm:$0xff]
  %v118 = vld [vmem:[%s1 + $0x220] sm:$0xff]
  %v119 = vld [vmem:[%s1 + $0x228] sm:$0xff]
  %v120 = vld [vmem:[%s1 + $0x230] sm:$0xff]
  %v121 = vld [vmem:[%s1 + $0x238] sm:$0xff]
  %v122 = vld [vmem:[%s1 + $0x240] sm:$0xff]
  %v123 = vld [vmem:[%s1 + $0x248] sm:$0xff]
  %v124 = vld [vmem:[%s1 + $0x250] sm:$0xff]
  %v125 = vld [vmem:[%s1 + $0x258] sm:$0xff]
  %v126 = vld [vmem:[%s1 + $0x260] sm:$0xff]
  %v127 = vld [vmem:[%s1 + $0x268] sm:$0xff]
  %v128 = vld [vmem:[%s1 + $0x270] sm:$0xff]
  %v129 = vld [vmem:[%s1 + $0x278] sm:$0xff]
  %v130 = vld [vmem:[%s1 + $0x280] sm:$0xff]
  %v131 = vld [vmem:[%s1 + $0x288] sm:$0xff]
  %v132 = vld [vmem:[%s1 + $0x290] sm:$0xff]
  %v133 = vld [vmem:[%s1 + $0x298] sm:$0xff]
  %v134 = vld [vmem:[%s1 + $0x2a0] sm:$0xff]
  %v135 = vld [vmem:[%s1 + $0x2a8] sm:$0xff]
  %v136 = vld [vmem:[%s1 + $0x2b0] sm:$0xff]
  %v137 = vld [vmem:[%s1 + $0x2b8] sm:$0xff]
  %v138 = vld [vmem:[%s1 + $0x2c0] sm:$0xff]
  %v139 = vld [vmem:[%s1 + $0x2c8] sm:$0xff]
  %v140 = vld [vmem:[%s1 + $0x2d0] sm:$0xff]
  %v141 = vld [vmem:[%s1 + $0x2d8] sm:$0xff]
  %v142 = vld [vmem:[%s1 + $0x2e0] sm:$0xff]
  %v143 = vld [vmem:[%s1 + $0x2e8] sm:$0xff]
  %v144 = vld [vmem:[%s1 + $0x2f0] sm:$0xff]
  %v145 = vld [vmem:[%s1 + $0x2f8] sm:$0xff]
  %v146 = vld [vmem:[%s1 + $0x300] sm:$0xff]
  %v147 = vld [vmem:[%s1 + $0x308] sm:$0xff]
  %v148 = vld [vmem:[%s1 + $0x310] sm:$0xff]
  %v149 = vld [vmem:[%s1 + $0x318] sm:$0xff]
  %v150 = vld [vmem:[%s1 + $0x320] sm:$0xff]
  %v151 = vld [vmem:[%s1 + $0x328] sm:$0xff]
  %v152 = vld [vmem:[%s1 + $0x330] sm:$0xff]
  %v153 = vld [vmem:[%s1 + $0x338] sm:$0xff]
  %v154 = vld [vmem:[%s1 + $0x340] sm:$0xff]
  %v155 = vld [vmem:[%s1 + $0x348] sm:$0xff]
  %v156 = vld [vmem:[%s1 + $0x350] sm:$0xff]
  %v157 = vld [vmem:[%s1 + $0x358] sm:$0xff]
  %v158 = vld [vmem:[%s1 + $0x360] sm:$0xff]
  %v159 = vld [vmem:[%s1 + $0x368] sm:$0xff]
  %v160 = vld [vmem:[%s1 + $0x370] sm:$0xff]
  %v161 = vld [vmem:[%s1 + $0x378] sm:$0xff]
  %v162 = vld [vmem:[%s1 + $0x380] sm:$0xff]
  %v163 = vld [vmem:[%s1 + $0x388] sm:$0xff]
  %v164 = vld [vmem:[%s1 + $0x390] sm:$0xff]
  %v165 = vld [vmem:[%s1 + $0x398] sm:$0xff]
  %v166 = vld [vmem:[%s1 + $0x3a0] sm:$0xff]
  %v167 = vld [vmem:[%s1 + $0x3a8] sm:$0xff]
  %v168 = vld [vmem:[%s1 + $0x3b0] sm:$0xff]
  %v169 = vld [vmem:[%s1 + $0x3b8] sm:$0xff]
  %v170 = vld [vmem:[%s1 + $0x3c0] sm:$0xff]
  %v171 = vld [vmem:[%s1 + $0x3c8] sm:$0xff]
  %v172 = vld [vmem:[%s1 + $0x3d0] sm:$0xff]
  %v173 = vld [vmem:[%s1 + $0x3d8] sm:$0xff]
  %v174 = vld [vmem:[%s1 + $0x3e0] sm:$0xff]
  %v175 = vld [vmem:[%s1 + $0x3e8] sm:$0xff]
  %v176 = vld [vmem:[%s1 + $0x3f0] sm:$0xff]
  %v177 = vld [vmem:[%s1 + $0x3f8] sm:$0xff]
  %v178 = vld [vmem:[%s1 + $0x400] sm:$0xff]
  %v179 = vld [vmem:[%s1 + $0x408] sm:$0xff]
  %v180 = vld [vmem:[%s1 + $0x410] sm:$0xff]
  %v181 = vld [vmem:[%s1 + $0x418] sm:$0xff]
  %v182 = vld [vmem:[%s1 + $0x420] sm:$0xff]
  %v183 = vld [vmem:[%s1 + $0x428] sm:$0xff]
  %v184 = vld [vmem:[%s1 + $0x430] sm:$0xff]
  %v185 = vld [vmem:[%s1 + $0x438] sm:$0xff]
  %v186 = vld [vmem:[%s1 + $0x440] sm:$0xff]
  %v187 = vld [vmem:[%s1 + $0x448] sm:$0xff]
  %v188 = vld [vmem:[%s1 + $0x450] sm:$0xff]
  %v189 = vld [vmem:[%s1 + $0x458] sm:$0xff]
  %v190 = vld [vmem:[%s1 + $0x460] sm:$0xff]
  %v191 = vld [vmem:[%s1 + $0x468] sm:$0xff]
  %v192 = vld [vmem:[%s1 + $0x470] sm:$0xff]
  %v193 = vld [vmem:[%s1 + $0x478] sm:$0xff]
  %v194 = vld [vmem:[%s2] sm:$0x1]
  %v196 = vperm.slane %v194, 0
  %198 = vmatpush.msra.mxu0 %v65
  %199 = vmatpush.msra.mxu0 %v64
  %200 = vmatpush.msra.mxu0 %v63
  %201 = vmatpush.msra.mxu0 %v62
  %202 = vmatpush.msra.mxu0 %v61
  %203 = vmatpush.msra.mxu0 %v60
  %204 = vmatpush.msra.mxu0 %v59
  %205 = vmatpush.msra.mxu0 %v58
  %206 = vmatpush.msra.mxu0 %v57
  %207 = vmatpush.msra.mxu0 %v56
  %208 = vmatpush.msra.mxu0 %v55
  %209 = vmatpush.msra.mxu0 %v54
  %210 = vmatpush.msra.mxu0 %v53
  %211 = vmatpush.msra.mxu0 %v52
  %212 = vmatpush.msra.mxu0 %v51
  %213 = vmatpush.msra.mxu0 %v50
  %214 = vmatmul.f32.gmra.mxu0 %v14
  %v215 = vpop.f32.mrf.mxu0
  %v216 = vadd.f32 %v196, %v215
  %217 = vmatmul.f32.gmra.mxu0 %v23
  %v218 = vpop.f32.mrf.mxu0
  %v219 = vadd.f32 %v196, %v218
  %220 = vmatmul.f32.gmra.mxu0 %v32
  %v221 = vpop.f32.mrf.mxu0
  %v222 = vadd.f32 %v196, %v221
  %223 = vmatmul.f32.gmra.mxu0 %v41
  %v224 = vpop.f32.mrf.mxu0
  %v225 = vadd.f32 %v196, %v224
  %226 = vdwg.mxu0
  %227 = vmatpush.msra.mxu0 %v81
  %228 = vmatpush.msra.mxu0 %v80
  %229 = vmatpush.msra.mxu0 %v79
  %230 = vmatpush.msra.mxu0 %v78
  %231 = vmatpush.msra.mxu0 %v77
  %232 = vmatpush.msra.mxu0 %v76
  %233 = vmatpush.msra.mxu0 %v75
  %234 = vmatpush.msra.mxu0 %v74
  %235 = vmatpush.msra.mxu0 %v73
  %236 = vmatpush.msra.mxu0 %v72
  %237 = vmatpush.msra.mxu0 %v71
  %238 = vmatpush.msra.mxu0 %v70
  %239 = vmatpush.msra.mxu0 %v69
  %240 = vmatpush.msra.mxu0 %v68
  %241 = vmatpush.msra.mxu0 %v67
  %242 = vmatpush.msra.mxu0 %v66
  %243 = vmatmul.f32.gmra.mxu0 %v15
  %v244 = vpop.f32.mrf.mxu0
  %v245 = vadd.f32 %v216, %v244
  %246 = vmatmul.f32.gmra.mxu0 %v24
  %v247 = vpop.f32.mrf.mxu0
  %v248 = vadd.f32 %v219, %v247
  %249 = vmatmul.f32.gmra.mxu0 %v33
  %v250 = vpop.f32.mrf.mxu0
  %v251 = vadd.f32 %v222, %v250
  %252 = vmatmul.f32.gmra.mxu0 %v42
  %v253 = vpop.f32.mrf.mxu0
  %v254 = vadd.f32 %v225, %v253
  %255 = vdwg.mxu0
  %256 = vmatpush.msra.mxu0 %v97
  %257 = vmatpush.msra.mxu0 %v96
  %258 = vmatpush.msra.mxu0 %v95
  %259 = vmatpush.msra.mxu0 %v94
  %260 = vmatpush.msra.mxu0 %v93
  %261 = vmatpush.msra.mxu0 %v92
  %262 = vmatpush.msra.mxu0 %v91
  %263 = vmatpush.msra.mxu0 %v90
  %264 = vmatpush.msra.mxu0 %v89
  %265 = vmatpush.msra.mxu0 %v88
  %266 = vmatpush.msra.mxu0 %v87
  %267 = vmatpush.msra.mxu0 %v86
  %268 = vmatpush.msra.mxu0 %v85
  %269 = vmatpush.msra.mxu0 %v84
  %270 = vmatpush.msra.mxu0 %v83
  %271 = vmatpush.msra.mxu0 %v82
  %272 = vmatmul.f32.gmra.mxu0 %v16
  %v273 = vpop.f32.mrf.mxu0
  %v274 = vadd.f32 %v245, %v273
  %275 = vmatmul.f32.gmra.mxu0 %v25
  %v276 = vpop.f32.mrf.mxu0
  %v277 = vadd.f32 %v248, %v276
  %278 = vmatmul.f32.gmra.mxu0 %v34
  %v279 = vpop.f32.mrf.mxu0
  %v280 = vadd.f32 %v251, %v279
  %281 = vmatmul.f32.gmra.mxu0 %v43
  %v282 = vpop.f32.mrf.mxu0
  %v283 = vadd.f32 %v254, %v282
  %284 = vdwg.mxu0
  %285 = vmatpush.msra.mxu0 %v113
  %286 = vmatpush.msra.mxu0 %v112
  %287 = vmatpush.msra.mxu0 %v111
  %288 = vmatpush.msra.mxu0 %v110
  %289 = vmatpush.msra.mxu0 %v109
  %290 = vmatpush.msra.mxu0 %v108
  %291 = vmatpush.msra.mxu0 %v107
  %292 = vmatpush.msra.mxu0 %v106
  %293 = vmatpush.msra.mxu0 %v105
  %294 = vmatpush.msra.mxu0 %v104
  %295 = vmatpush.msra.mxu0 %v103
  %296 = vmatpush.msra.mxu0 %v102
  %297 = vmatpush.msra.mxu0 %v101
  %298 = vmatpush.msra.mxu0 %v100
  %299 = vmatpush.msra.mxu0 %v99
  %300 = vmatpush.msra.mxu0 %v98
  %301 = vmatmul.f32.gmra.mxu0 %v17
  %v302 = vpop.f32.mrf.mxu0
  %v303 = vadd.f32 %v274, %v302
  %304 = vmatmul.f32.gmra.mxu0 %v26
  %v305 = vpop.f32.mrf.mxu0
  %v306 = vadd.f32 %v277, %v305
  %307 = vmatmul.f32.gmra.mxu0 %v35
  %v308 = vpop.f32.mrf.mxu0
  %v309 = vadd.f32 %v280, %v308
  %310 = vmatmul.f32.gmra.mxu0 %v44
  %v311 = vpop.f32.mrf.mxu0
  %v312 = vadd.f32 %v283, %v311
  %313 = vdwg.mxu0
  %314 = vmatpush.msra.mxu0 %v129
  %315 = vmatpush.msra.mxu0 %v128
  %316 = vmatpush.msra.mxu0 %v127
  %317 = vmatpush.msra.mxu0 %v126
  %318 = vmatpush.msra.mxu0 %v125
  %319 = vmatpush.msra.mxu0 %v124
  %320 = vmatpush.msra.mxu0 %v123
  %321 = vmatpush.msra.mxu0 %v122
  %322 = vmatpush.msra.mxu0 %v121
  %323 = vmatpush.msra.mxu0 %v120
  %324 = vmatpush.msra.mxu0 %v119
  %325 = vmatpush.msra.mxu0 %v118
  %326 = vmatpush.msra.mxu0 %v117
  %327 = vmatpush.msra.mxu0 %v116
  %328 = vmatpush.msra.mxu0 %v115
  %329 = vmatpush.msra.mxu0 %v114
  %330 = vmatmul.f32.gmra.mxu0 %v18
  %v331 = vpop.f32.mrf.mxu0
  %v332 = vadd.f32 %v303, %v331
  %333 = vmatmul.f32.gmra.mxu0 %v27
  %v334 = vpop.f32.mrf.mxu0
  %v335 = vadd.f32 %v306, %v334
  %336 = vmatmul.f32.gmra.mxu0 %v36
  %v337 = vpop.f32.mrf.mxu0
  %v338 = vadd.f32 %v309, %v337
  %339 = vmatmul.f32.gmra.mxu0 %v45
  %v340 = vpop.f32.mrf.mxu0
  %v341 = vadd.f32 %v312, %v340
  %342 = vdwg.mxu0
  %343 = vmatpush.msra.mxu0 %v145
  %344 = vmatpush.msra.mxu0 %v144
  %345 = vmatpush.msra.mxu0 %v143
  %346 = vmatpush.msra.mxu0 %v142
  %347 = vmatpush.msra.mxu0 %v141
  %348 = vmatpush.msra.mxu0 %v140
  %349 = vmatpush.msra.mxu0 %v139
  %350 = vmatpush.msra.mxu0 %v138
  %351 = vmatpush.msra.mxu0 %v137
  %352 = vmatpush.msra.mxu0 %v136
  %353 = vmatpush.msra.mxu0 %v135
  %354 = vmatpush.msra.mxu0 %v134
  %355 = vmatpush.msra.mxu0 %v133
  %356 = vmatpush.msra.mxu0 %v132
  %357 = vmatpush.msra.mxu0 %v131
  %358 = vmatpush.msra.mxu0 %v130
  %359 = vmatmul.f32.gmra.mxu0 %v19
  %v360 = vpop.f32.mrf.mxu0
  %v361 = vadd.f32 %v332, %v360
  %362 = vmatmul.f32.gmra.mxu0 %v28
  %v363 = vpop.f32.mrf.mxu0
  %v364 = vadd.f32 %v335, %v363
  %365 = vmatmul.f32.gmra.mxu0 %v37
  %v366 = vpop.f32.mrf.mxu0
  %v367 = vadd.f32 %v338, %v366
  %368 = vmatmul.f32.gmra.mxu0 %v46
  %v369 = vpop.f32.mrf.mxu0
  %v370 = vadd.f32 %v341, %v369
  %371 = vdwg.mxu0
  %372 = vmatpush.msra.mxu0 %v161
  %373 = vmatpush.msra.mxu0 %v160
  %374 = vmatpush.msra.mxu0 %v159
  %375 = vmatpush.msra.mxu0 %v158
  %376 = vmatpush.msra.mxu0 %v157
  %377 = vmatpush.msra.mxu0 %v156
  %378 = vmatpush.msra.mxu0 %v155
  %379 = vmatpush.msra.mxu0 %v154
  %380 = vmatpush.msra.mxu0 %v153
  %381 = vmatpush.msra.mxu0 %v152
  %382 = vmatpush.msra.mxu0 %v151
  %383 = vmatpush.msra.mxu0 %v150
  %384 = vmatpush.msra.mxu0 %v149
  %385 = vmatpush.msra.mxu0 %v148
  %386 = vmatpush.msra.mxu0 %v147
  %387 = vmatpush.msra.mxu0 %v146
  %388 = vmatmul.f32.gmra.mxu0 %v20
  %v389 = vpop.f32.mrf.mxu0
  %v390 = vadd.f32 %v361, %v389
  %391 = vmatmul.f32.gmra.mxu0 %v29
  %v392 = vpop.f32.mrf.mxu0
  %v393 = vadd.f32 %v364, %v392
  %394 = vmatmul.f32.gmra.mxu0 %v38
  %v395 = vpop.f32.mrf.mxu0
  %v396 = vadd.f32 %v367, %v395
  %397 = vmatmul.f32.gmra.mxu0 %v47
  %v398 = vpop.f32.mrf.mxu0
  %v399 = vadd.f32 %v370, %v398
  %400 = vdwg.mxu0
  %401 = vmatpush.msra.mxu0 %v177
  %402 = vmatpush.msra.mxu0 %v176
  %403 = vmatpush.msra.mxu0 %v175
  %404 = vmatpush.msra.mxu0 %v174
  %405 = vmatpush.msra.mxu0 %v173
  %406 = vmatpush.msra.mxu0 %v172
  %407 = vmatpush.msra.mxu0 %v171
  %408 = vmatpush.msra.mxu0 %v170
  %409 = vmatpush.msra.mxu0 %v169
  %410 = vmatpush.msra.mxu0 %v168
  %411 = vmatpush.msra.mxu0 %v167
  %412 = vmatpush.msra.mxu0 %v166
  %413 = vmatpush.msra.mxu0 %v165
  %414 = vmatpush.msra.mxu0 %v164
  %415 = vmatpush.msra.mxu0 %v163
  %416 = vmatpush.msra.mxu0 %v162
  %417 = vmatmul.f32.gmra.mxu0 %v21
  %v418 = vpop.f32.mrf.mxu0
  %v419 = vadd.f32 %v390, %v418
  %420 = vmatmul.f32.gmra.mxu0 %v30
  %v421 = vpop.f32.mrf.mxu0
  %v422 = vadd.f32 %v393, %v421
  %423 = vmatmul.f32.gmra.mxu0 %v39
  %v424 = vpop.f32.mrf.mxu0
  %v425 = vadd.f32 %v396, %v424
  %426 = vmatmul.f32.gmra.mxu0 %v48
  %v427 = vpop.f32.mrf.mxu0
  %v428 = vadd.f32 %v399, %v427
  %429 = vdwg.mxu0
  %430 = vmatpush.msra.mxu0 %v193
  %431 = vmatpush.msra.mxu0 %v192
  %432 = vmatpush.msra.mxu0 %v191
  %433 = vmatpush.msra.mxu0 %v190
  %434 = vmatpush.msra.mxu0 %v189
  %435 = vmatpush.msra.mxu0 %v188
  %436 = vmatpush.msra.mxu0 %v187
  %437 = vmatpush.msra.mxu0 %v186
  %438 = vmatpush.msra.mxu0 %v185
  %439 = vmatpush.msra.mxu0 %v184
  %440 = vmatpush.msra.mxu0 %v183
  %441 = vmatpush.msra.mxu0 %v182
  %442 = vmatpush.msra.mxu0 %v181
  %443 = vmatpush.msra.mxu0 %v180
  %444 = vmatpush.msra.mxu0 %v179
  %445 = vmatpush.msra.mxu0 %v178
  %446 = vmatmul.f32.gmra.mxu0 %v22
  %v447 = vpop.f32.mrf.mxu0
  %v448 = vadd.f32 %v419, %v447
  %449 = vmatmul.f32.gmra.mxu0 %v31
  %v450 = vpop.f32.mrf.mxu0
  %v451 = vadd.f32 %v422, %v450
  %452 = vmatmul.f32.gmra.mxu0 %v40
  %v453 = vpop.f32.mrf.mxu0
  %v454 = vadd.f32 %v425, %v453
  %455 = vmatmul.f32.gmra.mxu0 %v49
  %v456 = vpop.f32.mrf.mxu0
  %v457 = vadd.f32 %v428, %v456
  %458 = vdwg.mxu0
  %v459 = vmax.f32 %v448, 0.0
  %v460 = vmax.f32 %v451, 0.0
  %v461 = vmax.f32 %v454, 0.0
  %v462 = vmax.f32 %v457, 0.0
  %463 = vst [vmem:[%s3] sm:$0xff] %v459
  %464 = vst [vmem:[%s3 + $0x8] sm:$0xff] %v460
  %465 = vst [vmem:[%s3 + $0x10] sm:$0xff] %v461
  %466 = vst [vmem:[%s3 + $0x18] sm:$0xff] %v462
  // Predicated region
  $region14: #{trace_lstm_forward.24} parent=0 // pred_check
    _
  $region15: #{trace_lstm_forward.24} parent=0 // pred_check_branch
    %468 = sbr.rel (0) target = $region17
  $region16: #{trace_lstm_forward.24} parent=0 // pred_region
    _
  $region17: #{trace_lstm_forward.24} parent=0 // pred_fallthru
    _
  // Predicated region
  $region18: #{trace_lstm_forward.24} parent=0 // pred_check
    _
  $region19: #{trace_lstm_forward.24} parent=0 // pred_check_branch
    %470 = sbr.rel (0) target = $region21
  $region20: #{trace_lstm_forward.24} parent=0 // pred_region
    _
  $region21: #{trace_lstm_forward.24} parent=0 // pred_fallthru
    _

// kernel: trace_lstm_forward.37
$region0: #{trace_lstm_forward.37}
  #allocation0 [shape = 'u32[]', space=smem, size = 0x4, offset = 0x4, fixed_abs, tag = 'smem constant byte address 0x4 - core index']
  #allocation1 [shape = 'u32[72,128]{1,0:T(1,128)}', space=vmem, size = 0x9000, scoped, tag = 'internal scratch']
  %s0 = inlined_call_operand.vmem [shape: f32[8,256], index: 0, kind: input, shape index: {}]
  %s1 = inlined_call_operand.vmem [shape: f32[256,2], index: 1, kind: input, shape index: {}]
  %s2 = inlined_call_operand.vmem [shape: f32[1,2], index: 2, kind: input, shape index: {}]
  %s3 = inlined_call_operand.vmem [shape: f32[8,2], index: 3, kind: output, shape index: {}]
  %s4 = sld [smem:[#allocation0]]
  $region22: #{trace_lstm_forward.37} parent=0
    _
  %s6 = ssub.s32 1, %s4
  %s7 = scalar_select 0, %s6, %s4
  // Predicated region
  $region2: #{trace_lstm_forward.37} parent=0 // pred_check
    _
  $region3: #{trace_lstm_forward.37} parent=0 // pred_check_branch
    %9 = sbr.rel (0) target = $region5
  $region4: #{trace_lstm_forward.37} parent=0 // pred_region
    _
  $region5: #{trace_lstm_forward.37} parent=0 // pred_fallthru
    _
  // Predicated region
  $region6: #{trace_lstm_forward.37} parent=0 // pred_check
    _
  $region7: #{trace_lstm_forward.37} parent=0 // pred_check_branch
    %11 = sbr.rel (0) target = $region9
  $region8: #{trace_lstm_forward.37} parent=0 // pred_region
    _
  $region9: #{trace_lstm_forward.37} parent=0 // pred_fallthru
    _
  // Predicated region
  $region10: #{trace_lstm_forward.37} parent=0 // pred_check
    _
  $region11: #{trace_lstm_forward.37} parent=0 // pred_check_branch
    %13 = sbr.rel (0) target = $region13
  $region12: #{trace_lstm_forward.37} parent=0 // pred_region
    _
  $region13: #{trace_lstm_forward.37} parent=0 // pred_fallthru
    _
  %v14 = vld [vmem:[%s0] sm:$0xff]
  %v15 = vld [vmem:[%s0 + $0x8] sm:$0xff]
  %v16 = vld [vmem:[%s1] sm:$0xff]
  %v17 = vld [vmem:[%s1 + $0x8] sm:$0xff]
  %v18 = vld [vmem:[%s1 + $0x10] sm:$0xff]
  %v19 = vld [vmem:[%s1 + $0x18] sm:$0xff]
  %v20 = vld [vmem:[%s1 + $0x20] sm:$0xff]
  %v21 = vld [vmem:[%s1 + $0x28] sm:$0xff]
  %v22 = vld [vmem:[%s1 + $0x30] sm:$0xff]
  %v23 = vld [vmem:[%s1 + $0x38] sm:$0xff]
  %v24 = vld [vmem:[%s1 + $0x40] sm:$0xff]
  %v25 = vld [vmem:[%s1 + $0x48] sm:$0xff]
  %v26 = vld [vmem:[%s1 + $0x50] sm:$0xff]
  %v27 = vld [vmem:[%s1 + $0x58] sm:$0xff]
  %v28 = vld [vmem:[%s1 + $0x60] sm:$0xff]
  %v29 = vld [vmem:[%s1 + $0x68] sm:$0xff]
  %v30 = vld [vmem:[%s1 + $0x70] sm:$0xff]
  %v31 = vld [vmem:[%s1 + $0x78] sm:$0xff]
  %v32 = vld [vmem:[%s1 + $0x80] sm:$0xff]
  %v33 = vld [vmem:[%s1 + $0x88] sm:$0xff]
  %v34 = vld [vmem:[%s1 + $0x90] sm:$0xff]
  %v35 = vld [vmem:[%s1 + $0x98] sm:$0xff]
  %v36 = vld [vmem:[%s1 + $0xa0] sm:$0xff]
  %v37 = vld [vmem:[%s1 + $0xa8] sm:$0xff]
  %v38 = vld [vmem:[%s1 + $0xb0] sm:$0xff]
  %v39 = vld [vmem:[%s1 + $0xb8] sm:$0xff]
  %v40 = vld [vmem:[%s1 + $0xc0] sm:$0xff]
  %v41 = vld [vmem:[%s1 + $0xc8] sm:$0xff]
  %v42 = vld [vmem:[%s1 + $0xd0] sm:$0xff]
  %v43 = vld [vmem:[%s1 + $0xd8] sm:$0xff]
  %v44 = vld [vmem:[%s1 + $0xe0] sm:$0xff]
  %v45 = vld [vmem:[%s1 + $0xe8] sm:$0xff]
  %v46 = vld [vmem:[%s1 + $0xf0] sm:$0xff]
  %v47 = vld [vmem:[%s1 + $0xf8] sm:$0xff]
  %v48 = vld [vmem:[%s2] sm:$0x1]
  %v50 = vperm.slane %v48, 0
  %52 = vmatpush.msra.mxu0 %v31
  %53 = vmatpush.msra.mxu0 %v30
  %54 = vmatpush.msra.mxu0 %v29
  %55 = vmatpush.msra.mxu0 %v28
  %56 = vmatpush.msra.mxu0 %v27
  %57 = vmatpush.msra.mxu0 %v26
  %58 = vmatpush.msra.mxu0 %v25
  %59 = vmatpush.msra.mxu0 %v24
  %60 = vmatpush.msra.mxu0 %v23
  %61 = vmatpush.msra.mxu0 %v22
  %62 = vmatpush.msra.mxu0 %v21
  %63 = vmatpush.msra.mxu0 %v20
  %64 = vmatpush.msra.mxu0 %v19
  %65 = vmatpush.msra.mxu0 %v18
  %66 = vmatpush.msra.mxu0 %v17
  %67 = vmatpush.msra.mxu0 %v16
  %68 = vmatmul.f32.gmra.mxu0 %v14
  %v69 = vpop.f32.mrf.mxu0
  %v70 = vadd.f32 %v50, %v69
  %71 = vdwg.mxu0
  %72 = vmatpush.msra.mxu0 %v47
  %73 = vmatpush.msra.mxu0 %v46
  %74 = vmatpush.msra.mxu0 %v45
  %75 = vmatpush.msra.mxu0 %v44
  %76 = vmatpush.msra.mxu0 %v43
  %77 = vmatpush.msra.mxu0 %v42
  %78 = vmatpush.msra.mxu0 %v41
  %79 = vmatpush.msra.mxu0 %v40
  %80 = vmatpush.msra.mxu0 %v39
  %81 = vmatpush.msra.mxu0 %v38
  %82 = vmatpush.msra.mxu0 %v37
  %83 = vmatpush.msra.mxu0 %v36
  %84 = vmatpush.msra.mxu0 %v35
  %85 = vmatpush.msra.mxu0 %v34
  %86 = vmatpush.msra.mxu0 %v33
  %87 = vmatpush.msra.mxu0 %v32
  %88 = vmatmul.f32.gmra.mxu0 %v15
  %v89 = vpop.f32.mrf.mxu0
  %v90 = vadd.f32 %v70, %v89
  %91 = vdwg.mxu0
  %v92 = vxor.u32 %v90, 2147483648
  %v93 = vmul.f32 %v92, 1.442695
  %v94 = vpow.pop %v93
  %v95 = vadd.f32 %v94, 1.0
  %v96 = vrcp.pop %v95
  %v97 = vmul.f32 %v95, %v96
  %v98 = vsub.f32 1.0, %v97
  %v99 = vmul.f32 %v96, %v98
  %v100 = vadd.f32 %v96, %v99
  %vm101 = vweird.f32 %v95
  %vm102 = vweird.f32 %v96
  %vm103 = vmor %vm101, %vm102
  %v104 = vsel %vm103, %v96, %v100
  %v105 = vand.u32 2147483647, %v95
  %vm106 = vcmp.eq.f32.partialorder %v105, 8.507059e+37
  %v107 = vand.u32 %v95, 2147483648
  %v108 = vor.u32 1.1754944e-38, %v107
  %v109 = vsel %vm106, %v108, %v104
  %v110 = vmul.f32 1.0, %v109
  %vm111 = vcmask 15360
  %112 = vst.msk [vmem:[%s3] sm:$0xff] %vm111, %v110
  // Predicated region
  $region14: #{trace_lstm_forward.37} parent=0 // pred_check
    _
  $region15: #{trace_lstm_forward.37} parent=0 // pred_check_branch
    %114 = sbr.rel (0) target = $region17
  $region16: #{trace_lstm_forward.37} parent=0 // pred_region
    _
  $region17: #{trace_lstm_forward.37} parent=0 // pred_fallthru
    _
  // Predicated region
  $region18: #{trace_lstm_forward.37} parent=0 // pred_check
    _
  $region19: #{trace_lstm_forward.37} parent=0 // pred_check_branch
    %116 = sbr.rel (0) target = $region21
  $region20: #{trace_lstm_forward.37} parent=0 // pred_region
    _
  $region21: #{trace_lstm_forward.37} parent=0 // pred_fallthru
    _

// kernel: trace_lstm_forward.28
$region0: #{trace_lstm_forward.28}
  #allocation0 [shape = 'u32[]', space=smem, size = 0x4, offset = 0x4, fixed_abs, tag = 'smem constant byte address 0x4 - core index']
  #allocation1 [shape = 'u32[72,128]{1,0:T(1,128)}', space=vmem, size = 0x9000, scoped, tag = 'internal scratch']
  %s0 = inlined_call_operand.vmem [shape: f32[8,256], index: 0, kind: input, shape index: {}]
  %s1 = inlined_call_operand.vmem [shape: f32[256,1024], index: 1, kind: input, shape index: {}]
  %s2 = inlined_call_operand.vmem [shape: f32[1,1024], index: 2, kind: input, shape index: {}]
  %s3 = inlined_call_operand.vmem [shape: f32[8,1024], index: 3, kind: output, shape index: {}]
  %s4 = sld [smem:[#allocation0]]
  $region22: #{trace_lstm_forward.28} parent=0
    _
  %s6 = ssub.s32 1, %s4
  %s7 = scalar_select 0, %s6, %s4
  // Predicated region
  $region2: #{trace_lstm_forward.28} parent=0 // pred_check
    _
  $region3: #{trace_lstm_forward.28} parent=0 // pred_check_branch
    %9 = sbr.rel (0) target = $region5
  $region4: #{trace_lstm_forward.28} parent=0 // pred_region
    _
  $region5: #{trace_lstm_forward.28} parent=0 // pred_fallthru
    _
  // Predicated region
  $region6: #{trace_lstm_forward.28} parent=0 // pred_check
    _
  $region7: #{trace_lstm_forward.28} parent=0 // pred_check_branch
    %11 = sbr.rel (0) target = $region9
  $region8: #{trace_lstm_forward.28} parent=0 // pred_region
    _
  $region9: #{trace_lstm_forward.28} parent=0 // pred_fallthru
    _
  // Predicated region
  $region10: #{trace_lstm_forward.28} parent=0 // pred_check
    _
  $region11: #{trace_lstm_forward.28} parent=0 // pred_check_branch
    %13 = sbr.rel (0) target = $region13
  $region12: #{trace_lstm_forward.28} parent=0 // pred_region
    _
  $region13: #{trace_lstm_forward.28} parent=0 // pred_fallthru
    _
  %v14 = vld [vmem:[%s0] sm:$0xff]
  %v15 = vld [vmem:[%s0 + $0x8] sm:$0xff]
  %v16 = vld [vmem:[%s1] sm:$0xff]
  %v17 = vld [vmem:[%s1 + $0x8] sm:$0xff]
  %v18 = vld [vmem:[%s1 + $0x10] sm:$0xff]
  %v19 = vld [vmem:[%s1 + $0x18] sm:$0xff]
  %v20 = vld [vmem:[%s1 + $0x20] sm:$0xff]
  %v21 = vld [vmem:[%s1 + $0x28] sm:$0xff]
  %v22 = vld [vmem:[%s1 + $0x30] sm:$0xff]
  %v23 = vld [vmem:[%s1 + $0x38] sm:$0xff]
  %v24 = vld [vmem:[%s1 + $0x40] sm:$0xff]
  %v25 = vld [vmem:[%s1 + $0x48] sm:$0xff]
  %v26 = vld [vmem:[%s1 + $0x50] sm:$0xff]
  %v27 = vld [vmem:[%s1 + $0x58] sm:$0xff]
  %v28 = vld [vmem:[%s1 + $0x60] sm:$0xff]
  %v29 = vld [vmem:[%s1 + $0x68] sm:$0xff]
  %v30 = vld [vmem:[%s1 + $0x70] sm:$0xff]
  %v31 = vld [vmem:[%s1 + $0x78] sm:$0xff]
  %v32 = vld [vmem:[%s1 + $0x80] sm:$0xff]
  %v33 = vld [vmem:[%s1 + $0x88] sm:$0xff]
  %v34 = vld [vmem:[%s1 + $0x90] sm:$0xff]
  %v35 = vld [vmem:[%s1 + $0x98] sm:$0xff]
  %v36 = vld [vmem:[%s1 + $0xa0] sm:$0xff]
  %v37 = vld [vmem:[%s1 + $0xa8] sm:$0xff]
  %v38 = vld [vmem:[%s1 + $0xb0] sm:$0xff]
  %v39 = vld [vmem:[%s1 + $0xb8] sm:$0xff]
  %v40 = vld [vmem:[%s1 + $0xc0] sm:$0xff]
  %v41 = vld [vmem:[%s1 + $0xc8] sm:$0xff]
  %v42 = vld [vmem:[%s1 + $0xd0] sm:$0xff]
  %v43 = vld [vmem:[%s1 + $0xd8] sm:$0xff]
  %v44 = vld [vmem:[%s1 + $0xe0] sm:$0xff]
  %v45 = vld [vmem:[%s1 + $0xe8] sm:$0xff]
  %v46 = vld [vmem:[%s1 + $0xf0] sm:$0xff]
  %v47 = vld [vmem:[%s1 + $0xf8] sm:$0xff]
  %v48 = vld [vmem:[%s1 + $0x100] sm:$0xff]
  %v49 = vld [vmem:[%s1 + $0x108] sm:$0xff]
  %v50 = vld [vmem:[%s1 + $0x110] sm:$0xff]
  %v51 = vld [vmem:[%s1 + $0x118] sm:$0xff]
  %v52 = vld [vmem:[%s1 + $0x120] sm:$0xff]
  %v53 = vld [vmem:[%s1 + $0x128] sm:$0xff]
  %v54 = vld [vmem:[%s1 + $0x130] sm:$0xff]
  %v55 = vld [vmem:[%s1 + $0x138] sm:$0xff]
  %v56 = vld [vmem:[%s1 + $0x140] sm:$0xff]
  %v57 = vld [vmem:[%s1 + $0x148] sm:$0xff]
  %v58 = vld [vmem:[%s1 + $0x150] sm:$0xff]
  %v59 = vld [vmem:[%s1 + $0x158] sm:$0xff]
  %v60 = vld [vmem:[%s1 + $0x160] sm:$0xff]
  %v61 = vld [vmem:[%s1 + $0x168] sm:$0xff]
  %v62 = vld [vmem:[%s1 + $0x170] sm:$0xff]
  %v63 = vld [vmem:[%s1 + $0x178] sm:$0xff]
  %v64 = vld [vmem:[%s1 + $0x180] sm:$0xff]
  %v65 = vld [vmem:[%s1 + $0x188] sm:$0xff]
  %v66 = vld [vmem:[%s1 + $0x190] sm:$0xff]
  %v67 = vld [vmem:[%s1 + $0x198] sm:$0xff]
  %v68 = vld [vmem:[%s1 + $0x1a0] sm:$0xff]
  %v69 = vld [vmem:[%s1 + $0x1a8] sm:$0xff]
  %v70 = vld [vmem:[%s1 + $0x1b0] sm:$0xff]
  %v71 = vld [vmem:[%s1 + $0x1b8] sm:$0xff]
  %v72 = vld [vmem:[%s1 + $0x1c0] sm:$0xff]
  %v73 = vld [vmem:[%s1 + $0x1c8] sm:$0xff]
  %v74 = vld [vmem:[%s1 + $0x1d0] sm:$0xff]
  %v75 = vld [vmem:[%s1 + $0x1d8] sm:$0xff]
  %v76 = vld [vmem:[%s1 + $0x1e0] sm:$0xff]
  %v77 = vld [vmem:[%s1 + $0x1e8] sm:$0xff]
  %v78 = vld [vmem:[%s1 + $0x1f0] sm:$0xff]
  %v79 = vld [vmem:[%s1 + $0x1f8] sm:$0xff]
  %v80 = vld [vmem:[%s1 + $0x200] sm:$0xff]
  %v81 = vld [vmem:[%s1 + $0x208] sm:$0xff]
  %v82 = vld [vmem:[%s1 + $0x210] sm:$0xff]
  %v83 = vld [vmem:[%s1 + $0x218] sm:$0xff]
  %v84 = vld [vmem:[%s1 + $0x220] sm:$0xff]
  %v85 = vld [vmem:[%s1 + $0x228] sm:$0xff]
  %v86 = vld [vmem:[%s1 + $0x230] sm:$0xff]
  %v87 = vld [vmem:[%s1 + $0x238] sm:$0xff]
  %v88 = vld [vmem:[%s1 + $0x240] sm:$0xff]
  %v89 = vld [vmem:[%s1 + $0x248] sm:$0xff]
  %v90 = vld [vmem:[%s1 + $0x250] sm:$0xff]
  %v91 = vld [vmem:[%s1 + $0x258] sm:$0xff]
  %v92 = vld [vmem:[%s1 + $0x260] sm:$0xff]
  %v93 = vld [vmem:[%s1 + $0x268] sm:$0xff]
  %v94 = vld [vmem:[%s1 + $0x270] sm:$0xff]
  %v95 = vld [vmem:[%s1 + $0x278] sm:$0xff]
  %v96 = vld [vmem:[%s1 + $0x280] sm:$0xff]
  %v97 = vld [vmem:[%s1 + $0x288] sm:$0xff]
  %v98 = vld [vmem:[%s1 + $0x290] sm:$0xff]
  %v99 = vld [vmem:[%s1 + $0x298] sm:$0xff]
  %v100 = vld [vmem:[%s1 + $0x2a0] sm:$0xff]
  %v101 = vld [vmem:[%s1 + $0x2a8] sm:$0xff]
  %v102 = vld [vmem:[%s1 + $0x2b0] sm:$0xff]
  %v103 = vld [vmem:[%s1 + $0x2b8] sm:$0xff]
  %v104 = vld [vmem:[%s1 + $0x2c0] sm:$0xff]
  %v105 = vld [vmem:[%s1 + $0x2c8] sm:$0xff]
  %v106 = vld [vmem:[%s1 + $0x2d0] sm:$0xff]
  %v107 = vld [vmem:[%s1 + $0x2d8] sm:$0xff]
  %v108 = vld [vmem:[%s1 + $0x2e0] sm:$0xff]
  %v109 = vld [vmem:[%s1 + $0x2e8] sm:$0xff]
  %v110 = vld [vmem:[%s1 + $0x2f0] sm:$0xff]
  %v111 = vld [vmem:[%s1 + $0x2f8] sm:$0xff]
  %v112 = vld [vmem:[%s1 + $0x300] sm:$0xff]
  %v113 = vld [vmem:[%s1 + $0x308] sm:$0xff]
  %v114 = vld [vmem:[%s1 + $0x310] sm:$0xff]
  %v115 = vld [vmem:[%s1 + $0x318] sm:$0xff]
  %v116 = vld [vmem:[%s1 + $0x320] sm:$0xff]
  %v117 = vld [vmem:[%s1 + $0x328] sm:$0xff]
  %v118 = vld [vmem:[%s1 + $0x330] sm:$0xff]
  %v119 = vld [vmem:[%s1 + $0x338] sm:$0xff]
  %v120 = vld [vmem:[%s1 + $0x340] sm:$0xff]
  %v121 = vld [vmem:[%s1 + $0x348] sm:$0xff]
  %v122 = vld [vmem:[%s1 + $0x350] sm:$0xff]
  %v123 = vld [vmem:[%s1 + $0x358] sm:$0xff]
  %v124 = vld [vmem:[%s1 + $0x360] sm:$0xff]
  %v125 = vld [vmem:[%s1 + $0x368] sm:$0xff]
  %v126 = vld [vmem:[%s1 + $0x370] sm:$0xff]
  %v127 = vld [vmem:[%s1 + $0x378] sm:$0xff]
  %v128 = vld [vmem:[%s1 + $0x380] sm:$0xff]
  %v129 = vld [vmem:[%s1 + $0x388] sm:$0xff]
  %v130 = vld [vmem:[%s1 + $0x390] sm:$0xff]
  %v131 = vld [vmem:[%s1 + $0x398] sm:$0xff]
  %v132 = vld [vmem:[%s1 + $0x3a0] sm:$0xff]
  %v133 = vld [vmem:[%s1 + $0x3a8] sm:$0xff]
  %v134 = vld [vmem:[%s1 + $0x3b0] sm:$0xff]
  %v135 = vld [vmem:[%s1 + $0x3b8] sm:$0xff]
  %v136 = vld [vmem:[%s1 + $0x3c0] sm:$0xff]
  %v137 = vld [vmem:[%s1 + $0x3c8] sm:$0xff]
  %v138 = vld [vmem:[%s1 + $0x3d0] sm:$0xff]
  %v139 = vld [vmem:[%s1 + $0x3d8] sm:$0xff]
  %v140 = vld [vmem:[%s1 + $0x3e0] sm:$0xff]
  %v141 = vld [vmem:[%s1 + $0x3e8] sm:$0xff]
  %v142 = vld [vmem:[%s1 + $0x3f0] sm:$0xff]
  %v143 = vld [vmem:[%s1 + $0x3f8] sm:$0xff]
  %v144 = vld [vmem:[%s1 + $0x400] sm:$0xff]
  %v145 = vld [vmem:[%s1 + $0x408] sm:$0xff]
  %v146 = vld [vmem:[%s1 + $0x410] sm:$0xff]
  %v147 = vld [vmem:[%s1 + $0x418] sm:$0xff]
  %v148 = vld [vmem:[%s1 + $0x420] sm:$0xff]
  %v149 = vld [vmem:[%s1 + $0x428] sm:$0xff]
  %v150 = vld [vmem:[%s1 + $0x430] sm:$0xff]
  %v151 = vld [vmem:[%s1 + $0x438] sm:$0xff]
  %v152 = vld [vmem:[%s1 + $0x440] sm:$0xff]
  %v153 = vld [vmem:[%s1 + $0x448] sm:$0xff]
  %v154 = vld [vmem:[%s1 + $0x450] sm:$0xff]
  %v155 = vld [vmem:[%s1 + $0x458] sm:$0xff]
  %v156 = vld [vmem:[%s1 + $0x460] sm:$0xff]
  %v157 = vld [vmem:[%s1 + $0x468] sm:$0xff]
  %v158 = vld [vmem:[%s1 + $0x470] sm:$0xff]
  %v159 = vld [vmem:[%s1 + $0x478] sm:$0xff]
  %v160 = vld [vmem:[%s1 + $0x480] sm:$0xff]
  %v161 = vld [vmem:[%s1 + $0x488] sm:$0xff]
  %v162 = vld [vmem:[%s1 + $0x490] sm:$0xff]
  %v163 = vld [vmem:[%s1 + $0x498] sm:$0xff]
  %v164 = vld [vmem:[%s1 + $0x4a0] sm:$0xff]
  %v165 = vld [vmem:[%s1 + $0x4a8] sm:$0xff]
  %v166 = vld [vmem:[%s1 + $0x4b0] sm:$0xff]
  %v167 = vld [vmem:[%s1 + $0x4b8] sm:$0xff]
  %v168 = vld [vmem:[%s1 + $0x4c0] sm:$0xff]
  %v169 = vld [vmem:[%s1 + $0x4c8] sm:$0xff]
  %v170 = vld [vmem:[%s1 + $0x4d0] sm:$0xff]
  %v171 = vld [vmem:[%s1 + $0x4d8] sm:$0xff]
  %v172 = vld [vmem:[%s1 + $0x4e0] sm:$0xff]
  %v173 = vld [vmem:[%s1 + $0x4e8] sm:$0xff]
  %v174 = vld [vmem:[%s1 + $0x4f0] sm:$0xff]
  %v175 = vld [vmem:[%s1 + $0x4f8] sm:$0xff]
  %v176 = vld [vmem:[%s1 + $0x500] sm:$0xff]
  %v177 = vld [vmem:[%s1 + $0x508] sm:$0xff]
  %v178 = vld [vmem:[%s1 + $0x510] sm:$0xff]
  %v179 = vld [vmem:[%s1 + $0x518] sm:$0xff]
  %v180 = vld [vmem:[%s1 + $0x520] sm:$0xff]
  %v181 = vld [vmem:[%s1 + $0x528] sm:$0xff]
  %v182 = vld [vmem:[%s1 + $0x530] sm:$0xff]
  %v183 = vld [vmem:[%s1 + $0x538] sm:$0xff]
  %v184 = vld [vmem:[%s1 + $0x540] sm:$0xff]
  %v185 = vld [vmem:[%s1 + $0x548] sm:$0xff]
  %v186 = vld [vmem:[%s1 + $0x550] sm:$0xff]
  %v187 = vld [vmem:[%s1 + $0x558] sm:$0xff]
  %v188 = vld [vmem:[%s1 + $0x560] sm:$0xff]
  %v189 = vld [vmem:[%s1 + $0x568] sm:$0xff]
  %v190 = vld [vmem:[%s1 + $0x570] sm:$0xff]
  %v191 = vld [vmem:[%s1 + $0x578] sm:$0xff]
  %v192 = vld [vmem:[%s1 + $0x580] sm:$0xff]
  %v193 = vld [vmem:[%s1 + $0x588] sm:$0xff]
  %v194 = vld [vmem:[%s1 + $0x590] sm:$0xff]
  %v195 = vld [vmem:[%s1 + $0x598] sm:$0xff]
  %v196 = vld [vmem:[%s1 + $0x5a0] sm:$0xff]
  %v197 = vld [vmem:[%s1 + $0x5a8] sm:$0xff]
  %v198 = vld [vmem:[%s1 + $0x5b0] sm:$0xff]
  %v199 = vld [vmem:[%s1 + $0x5b8] sm:$0xff]
  %v200 = vld [vmem:[%s1 + $0x5c0] sm:$0xff]
  %v201 = vld [vmem:[%s1 + $0x5c8] sm:$0xff]
  %v202 = vld [vmem:[%s1 + $0x5d0] sm:$0xff]
  %v203 = vld [vmem:[%s1 + $0x5d8] sm:$0xff]
  %v204 = vld [vmem:[%s1 + $0x5e0] sm:$0xff]
  %v205 = vld [vmem:[%s1 + $0x5e8] sm:$0xff]
  %v206 = vld [vmem:[%s1 + $0x5f0] sm:$0xff]
  %v207 = vld [vmem:[%s1 + $0x5f8] sm:$0xff]
  %v208 = vld [vmem:[%s1 + $0x600] sm:$0xff]
  %v209 = vld [vmem:[%s1 + $0x608] sm:$0xff]
  %v210 = vld [vmem:[%s1 + $0x610] sm:$0xff]
  %v211 = vld [vmem:[%s1 + $0x618] sm:$0xff]
  %v212 = vld [vmem:[%s1 + $0x620] sm:$0xff]
  %v213 = vld [vmem:[%s1 + $0x628] sm:$0xff]
  %v214 = vld [vmem:[%s1 + $0x630] sm:$0xff]
  %v215 = vld [vmem:[%s1 + $0x638] sm:$0xff]
  %v216 = vld [vmem:[%s1 + $0x640] sm:$0xff]
  %v217 = vld [vmem:[%s1 + $0x648] sm:$0xff]
  %v218 = vld [vmem:[%s1 + $0x650] sm:$0xff]
  %v219 = vld [vmem:[%s1 + $0x658] sm:$0xff]
  %v220 = vld [vmem:[%s1 + $0x660] sm:$0xff]
  %v221 = vld [vmem:[%s1 + $0x668] sm:$0xff]
  %v222 = vld [vmem:[%s1 + $0x670] sm:$0xff]
  %v223 = vld [vmem:[%s1 + $0x678] sm:$0xff]
  %v224 = vld [vmem:[%s1 + $0x680] sm:$0xff]
  %v225 = vld [vmem:[%s1 + $0x688] sm:$0xff]
  %v226 = vld [vmem:[%s1 + $0x690] sm:$0xff]
  %v227 = vld [vmem:[%s1 + $0x698] sm:$0xff]
  %v228 = vld [vmem:[%s1 + $0x6a0] sm:$0xff]
  %v229 = vld [vmem:[%s1 + $0x6a8] sm:$0xff]
  %v230 = vld [vmem:[%s1 + $0x6b0] sm:$0xff]
  %v231 = vld [vmem:[%s1 + $0x6b8] sm:$0xff]
  %v232 = vld [vmem:[%s1 + $0x6c0] sm:$0xff]
  %v233 = vld [vmem:[%s1 + $0x6c8] sm:$0xff]
  %v234 = vld [vmem:[%s1 + $0x6d0] sm:$0xff]
  %v235 = vld [vmem:[%s1 + $0x6d8] sm:$0xff]
  %v236 = vld [vmem:[%s1 + $0x6e0] sm:$0xff]
  %v237 = vld [vmem:[%s1 + $0x6e8] sm:$0xff]
  %v238 = vld [vmem:[%s1 + $0x6f0] sm:$0xff]
  %v239 = vld [vmem:[%s1 + $0x6f8] sm:$0xff]
  %v240 = vld [vmem:[%s1 + $0x700] sm:$0xff]
  %v241 = vld [vmem:[%s1 + $0x708] sm:$0xff]
  %v242 = vld [vmem:[%s1 + $0x710] sm:$0xff]
  %v243 = vld [vmem:[%s1 + $0x718] sm:$0xff]
  %v244 = vld [vmem:[%s1 + $0x720] sm:$0xff]
  %v245 = vld [vmem:[%s1 + $0x728] sm:$0xff]
  %v246 = vld [vmem:[%s1 + $0x730] sm:$0xff]
  %v247 = vld [vmem:[%s1 + $0x738] sm:$0xff]
  %v248 = vld [vmem:[%s1 + $0x740] sm:$0xff]
  %v249 = vld [vmem:[%s1 + $0x748] sm:$0xff]
  %v250 = vld [vmem:[%s1 + $0x750] sm:$0xff]
  %v251 = vld [vmem:[%s1 + $0x758] sm:$0xff]
  %v252 = vld [vmem:[%s1 + $0x760] sm:$0xff]
  %v253 = vld [vmem:[%s1 + $0x768] sm:$0xff]
  %v254 = vld [vmem:[%s1 + $0x770] sm:$0xff]
  %v255 = vld [vmem:[%s1 + $0x778] sm:$0xff]
  %v256 = vld [vmem:[%s1 + $0x780] sm:$0xff]
  %v257 = vld [vmem:[%s1 + $0x788] sm:$0xff]
  %v258 = vld [vmem:[%s1 + $0x790] sm:$0xff]
  %v259 = vld [vmem:[%s1 + $0x798] sm:$0xff]
  %v260 = vld [vmem:[%s1 + $0x7a0] sm:$0xff]
  %v261 = vld [vmem:[%s1 + $0x7a8] sm:$0xff]
  %v262 = vld [vmem:[%s1 + $0x7b0] sm:$0xff]
  %v263 = vld [vmem:[%s1 + $0x7b8] sm:$0xff]
  %v264 = vld [vmem:[%s1 + $0x7c0] sm:$0xff]
  %v265 = vld [vmem:[%s1 + $0x7c8] sm:$0xff]
  %v266 = vld [vmem:[%s1 + $0x7d0] sm:$0xff]
  %v267 = vld [vmem:[%s1 + $0x7d8] sm:$0xff]
  %v268 = vld [vmem:[%s1 + $0x7e0] sm:$0xff]
  %v269 = vld [vmem:[%s1 + $0x7e8] sm:$0xff]
  %v270 = vld [vmem:[%s1 + $0x7f0] sm:$0xff]
  %v271 = vld [vmem:[%s1 + $0x7f8] sm:$0xff]
  %v272 = vld [vmem:[%s2] sm:$0xff]
  %v274 = vperm.slane %v272, 0
  %v275 = vperm.slane %v272, 1
  %v276 = vperm.slane %v272, 2
  %v277 = vperm.slane %v272, 3
  %v278 = vperm.slane %v272, 4
  %v279 = vperm.slane %v272, 5
  %v280 = vperm.slane %v272, 6
  %v281 = vperm.slane %v272, 7
  %290 = vmatpush.msra.mxu0 %v136
  %291 = vmatpush.msra.mxu0 %v128
  %292 = vmatpush.msra.mxu0 %v120
  %293 = vmatpush.msra.mxu0 %v112
  %294 = vmatpush.msra.mxu0 %v104
  %295 = vmatpush.msra.mxu0 %v96
  %296 = vmatpush.msra.mxu0 %v88
  %297 = vmatpush.msra.mxu0 %v80
  %298 = vmatpush.msra.mxu0 %v72
  %299 = vmatpush.msra.mxu0 %v64
  %300 = vmatpush.msra.mxu0 %v56
  %301 = vmatpush.msra.mxu0 %v48
  %302 = vmatpush.msra.mxu0 %v40
  %303 = vmatpush.msra.mxu0 %v32
  %304 = vmatpush.msra.mxu0 %v24
  %305 = vmatpush.msra.mxu0 %v16
  %306 = vmatmul.f32.gmra.mxu0 %v14
  %v307 = vpop.f32.mrf.mxu0
  %v308 = vadd.f32 %v274, %v307
  %309 = vdwg.mxu0
  %310 = vmatpush.msra.mxu0 %v264
  %311 = vmatpush.msra.mxu0 %v256
  %312 = vmatpush.msra.mxu0 %v248
  %313 = vmatpush.msra.mxu0 %v240
  %314 = vmatpush.msra.mxu0 %v232
  %315 = vmatpush.msra.mxu0 %v224
  %316 = vmatpush.msra.mxu0 %v216
  %317 = vmatpush.msra.mxu0 %v208
  %318 = vmatpush.msra.mxu0 %v200
  %319 = vmatpush.msra.mxu0 %v192
  %320 = vmatpush.msra.mxu0 %v184
  %321 = vmatpush.msra.mxu0 %v176
  %322 = vmatpush.msra.mxu0 %v168
  %323 = vmatpush.msra.mxu0 %v160
  %324 = vmatpush.msra.mxu0 %v152
  %325 = vmatpush.msra.mxu0 %v144
  %326 = vmatmul.f32.gmra.mxu0 %v15
  %v327 = vpop.f32.mrf.mxu0
  %v328 = vadd.f32 %v308, %v327
  %329 = vdwg.mxu0
  %330 = vmatpush.msra.mxu0 %v137
  %331 = vmatpush.msra.mxu0 %v129
  %332 = vmatpush.msra.mxu0 %v121
  %333 = vmatpush.msra.mxu0 %v113
  %334 = vmatpush.msra.mxu0 %v105
  %335 = vmatpush.msra.mxu0 %v97
  %336 = vmatpush.msra.mxu0 %v89
  %337 = vmatpush.msra.mxu0 %v81
  %338 = vmatpush.msra.mxu0 %v73
  %339 = vmatpush.msra.mxu0 %v65
  %340 = vmatpush.msra.mxu0 %v57
  %341 = vmatpush.msra.mxu0 %v49
  %342 = vmatpush.msra.mxu0 %v41
  %343 = vmatpush.msra.mxu0 %v33
  %344 = vmatpush.msra.mxu0 %v25
  %345 = vmatpush.msra.mxu0 %v17
  %346 = vmatmul.f32.gmra.mxu0 %v14
  %v347 = vpop.f32.mrf.mxu0
  %v348 = vadd.f32 %v275, %v347
  %349 = vdwg.mxu0
  %350 = vmatpush.msra.mxu0 %v265
  %351 = vmatpush.msra.mxu0 %v257
  %352 = vmatpush.msra.mxu0 %v249
  %353 = vmatpush.msra.mxu0 %v241
  %354 = vmatpush.msra.mxu0 %v233
  %355 = vmatpush.msra.mxu0 %v225
  %356 = vmatpush.msra.mxu0 %v217
  %357 = vmatpush.msra.mxu0 %v209
  %358 = vmatpush.msra.mxu0 %v201
  %359 = vmatpush.msra.mxu0 %v193
  %360 = vmatpush.msra.mxu0 %v185
  %361 = vmatpush.msra.mxu0 %v177
  %362 = vmatpush.msra.mxu0 %v169
  %363 = vmatpush.msra.mxu0 %v161
  %364 = vmatpush.msra.mxu0 %v153
  %365 = vmatpush.msra.mxu0 %v145
  %366 = vmatmul.f32.gmra.mxu0 %v15
  %v367 = vpop.f32.mrf.mxu0
  %v368 = vadd.f32 %v348, %v367
  %369 = vdwg.mxu0
  %370 = vmatpush.msra.mxu0 %v138
  %371 = vmatpush.msra.mxu0 %v130
  %372 = vmatpush.msra.mxu0 %v122
  %373 = vmatpush.msra.mxu0 %v114
  %374 = vmatpush.msra.mxu0 %v106
  %375 = vmatpush.msra.mxu0 %v98
  %376 = vmatpush.msra.mxu0 %v90
  %377 = vmatpush.msra.mxu0 %v82
  %378 = vmatpush.msra.mxu0 %v74
  %379 = vmatpush.msra.mxu0 %v66
  %380 = vmatpush.msra.mxu0 %v58
  %381 = vmatpush.msra.mxu0 %v50
  %382 = vmatpush.msra.mxu0 %v42
  %383 = vmatpush.msra.mxu0 %v34
  %384 = vmatpush.msra.mxu0 %v26
  %385 = vmatpush.msra.mxu0 %v18
  %386 = vmatmul.f32.gmra.mxu0 %v14
  %v387 = vpop.f32.mrf.mxu0
  %v388 = vadd.f32 %v276, %v387
  %389 = vdwg.mxu0
  %390 = vmatpush.msra.mxu0 %v266
  %391 = vmatpush.msra.mxu0 %v258
  %392 = vmatpush.msra.mxu0 %v250
  %393 = vmatpush.msra.mxu0 %v242
  %394 = vmatpush.msra.mxu0 %v234
  %395 = vmatpush.msra.mxu0 %v226
  %396 = vmatpush.msra.mxu0 %v218
  %397 = vmatpush.msra.mxu0 %v210
  %398 = vmatpush.msra.mxu0 %v202
  %399 = vmatpush.msra.mxu0 %v194
  %400 = vmatpush.msra.mxu0 %v186
  %401 = vmatpush.msra.mxu0 %v178
  %402 = vmatpush.msra.mxu0 %v170
  %403 = vmatpush.msra.mxu0 %v162
  %404 = vmatpush.msra.mxu0 %v154
  %405 = vmatpush.msra.mxu0 %v146
  %406 = vmatmul.f32.gmra.mxu0 %v15
  %v407 = vpop.f32.mrf.mxu0
  %v408 = vadd.f32 %v388, %v407
  %409 = vdwg.mxu0
  %410 = vmatpush.msra.mxu0 %v139
  %411 = vmatpush.msra.mxu0 %v131
  %412 = vmatpush.msra.mxu0 %v123
  %413 = vmatpush.msra.mxu0 %v115
  %414 = vmatpush.msra.mxu0 %v107
  %415 = vmatpush.msra.mxu0 %v99
  %416 = vmatpush.msra.mxu0 %v91
  %417 = vmatpush.msra.mxu0 %v83
  %418 = vmatpush.msra.mxu0 %v75
  %419 = vmatpush.msra.mxu0 %v67
  %420 = vmatpush.msra.mxu0 %v59
  %421 = vmatpush.msra.mxu0 %v51
  %422 = vmatpush.msra.mxu0 %v43
  %423 = vmatpush.msra.mxu0 %v35
  %424 = vmatpush.msra.mxu0 %v27
  %425 = vmatpush.msra.mxu0 %v19
  %426 = vmatmul.f32.gmra.mxu0 %v14
  %v427 = vpop.f32.mrf.mxu0
  %v428 = vadd.f32 %v277, %v427
  %429 = vdwg.mxu0
  %430 = vmatpush.msra.mxu0 %v267
  %431 = vmatpush.msra.mxu0 %v259
  %432 = vmatpush.msra.mxu0 %v251
  %433 = vmatpush.msra.mxu0 %v243
  %434 = vmatpush.msra.mxu0 %v235
  %435 = vmatpush.msra.mxu0 %v227
  %436 = vmatpush.msra.mxu0 %v219
  %437 = vmatpush.msra.mxu0 %v211
  %438 = vmatpush.msra.mxu0 %v203
  %439 = vmatpush.msra.mxu0 %v195
  %440 = vmatpush.msra.mxu0 %v187
  %441 = vmatpush.msra.mxu0 %v179
  %442 = vmatpush.msra.mxu0 %v171
  %443 = vmatpush.msra.mxu0 %v163
  %444 = vmatpush.msra.mxu0 %v155
  %445 = vmatpush.msra.mxu0 %v147
  %446 = vmatmul.f32.gmra.mxu0 %v15
  %v447 = vpop.f32.mrf.mxu0
  %v448 = vadd.f32 %v428, %v447
  %449 = vdwg.mxu0
  %450 = vmatpush.msra.mxu0 %v140
  %451 = vmatpush.msra.mxu0 %v132
  %452 = vmatpush.msra.mxu0 %v124
  %453 = vmatpush.msra.mxu0 %v116
  %454 = vmatpush.msra.mxu0 %v108
  %455 = vmatpush.msra.mxu0 %v100
  %456 = vmatpush.msra.mxu0 %v92
  %457 = vmatpush.msra.mxu0 %v84
  %458 = vmatpush.msra.mxu0 %v76
  %459 = vmatpush.msra.mxu0 %v68
  %460 = vmatpush.msra.mxu0 %v60
  %461 = vmatpush.msra.mxu0 %v52
  %462 = vmatpush.msra.mxu0 %v44
  %463 = vmatpush.msra.mxu0 %v36
  %464 = vmatpush.msra.mxu0 %v28
  %465 = vmatpush.msra.mxu0 %v20
  %466 = vmatmul.f32.gmra.mxu0 %v14
  %v467 = vpop.f32.mrf.mxu0
  %v468 = vadd.f32 %v278, %v467
  %469 = vdwg.mxu0
  %470 = vmatpush.msra.mxu0 %v268
  %471 = vmatpush.msra.mxu0 %v260
  %472 = vmatpush.msra.mxu0 %v252
  %473 = vmatpush.msra.mxu0 %v244
  %474 = vmatpush.msra.mxu0 %v236
  %475 = vmatpush.msra.mxu0 %v228
  %476 = vmatpush.msra.mxu0 %v220
  %477 = vmatpush.msra.mxu0 %v212
  %478 = vmatpush.msra.mxu0 %v204
  %479 = vmatpush.msra.mxu0 %v196
  %480 = vmatpush.msra.mxu0 %v188
  %481 = vmatpush.msra.mxu0 %v180
  %482 = vmatpush.msra.mxu0 %v172
  %483 = vmatpush.msra.mxu0 %v164
  %484 = vmatpush.msra.mxu0 %v156
  %485 = vmatpush.msra.mxu0 %v148
  %486 = vmatmul.f32.gmra.mxu0 %v15
  %v487 = vpop.f32.mrf.mxu0
  %v488 = vadd.f32 %v468, %v487
  %489 = vdwg.mxu0
  %490 = vmatpush.msra.mxu0 %v141
  %491 = vmatpush.msra.mxu0 %v133
  %492 = vmatpush.msra.mxu0 %v125
  %493 = vmatpush.msra.mxu0 %v117
  %494 = vmatpush.msra.mxu0 %v109
  %495 = vmatpush.msra.mxu0 %v101
  %496 = vmatpush.msra.mxu0 %v93
  %497 = vmatpush.msra.mxu0 %v85
  %498 = vmatpush.msra.mxu0 %v77
  %499 = vmatpush.msra.mxu0 %v69
  %500 = vmatpush.msra.mxu0 %v61
  %501 = vmatpush.msra.mxu0 %v53
  %502 = vmatpush.msra.mxu0 %v45
  %503 = vmatpush.msra.mxu0 %v37
  %504 = vmatpush.msra.mxu0 %v29
  %505 = vmatpush.msra.mxu0 %v21
  %506 = vmatmul.f32.gmra.mxu0 %v14
  %v507 = vpop.f32.mrf.mxu0
  %v508 = vadd.f32 %v279, %v507
  %509 = vdwg.mxu0
  %510 = vmatpush.msra.mxu0 %v269
  %511 = vmatpush.msra.mxu0 %v261
  %512 = vmatpush.msra.mxu0 %v253
  %513 = vmatpush.msra.mxu0 %v245
  %514 = vmatpush.msra.mxu0 %v237
  %515 = vmatpush.msra.mxu0 %v229
  %516 = vmatpush.msra.mxu0 %v221
  %517 = vmatpush.msra.mxu0 %v213
  %518 = vmatpush.msra.mxu0 %v205
  %519 = vmatpush.msra.mxu0 %v197
  %520 = vmatpush.msra.mxu0 %v189
  %521 = vmatpush.msra.mxu0 %v181
  %522 = vmatpush.msra.mxu0 %v173
  %523 = vmatpush.msra.mxu0 %v165
  %524 = vmatpush.msra.mxu0 %v157
  %525 = vmatpush.msra.mxu0 %v149
  %526 = vmatmul.f32.gmra.mxu0 %v15
  %v527 = vpop.f32.mrf.mxu0
  %v528 = vadd.f32 %v508, %v527
  %529 = vdwg.mxu0
  %530 = vmatpush.msra.mxu0 %v142
  %531 = vmatpush.msra.mxu0 %v134
  %532 = vmatpush.msra.mxu0 %v126
  %533 = vmatpush.msra.mxu0 %v118
  %534 = vmatpush.msra.mxu0 %v110
  %535 = vmatpush.msra.mxu0 %v102
  %536 = vmatpush.msra.mxu0 %v94
  %537 = vmatpush.msra.mxu0 %v86
  %538 = vmatpush.msra.mxu0 %v78
  %539 = vmatpush.msra.mxu0 %v70
  %540 = vmatpush.msra.mxu0 %v62
  %541 = vmatpush.msra.mxu0 %v54
  %542 = vmatpush.msra.mxu0 %v46
  %543 = vmatpush.msra.mxu0 %v38
  %544 = vmatpush.msra.mxu0 %v30
  %545 = vmatpush.msra.mxu0 %v22
  %546 = vmatmul.f32.gmra.mxu0 %v14
  %v547 = vpop.f32.mrf.mxu0
  %v548 = vadd.f32 %v280, %v547
  %549 = vdwg.mxu0
  %550 = vmatpush.msra.mxu0 %v270
  %551 = vmatpush.msra.mxu0 %v262
  %552 = vmatpush.msra.mxu0 %v254
  %553 = vmatpush.msra.mxu0 %v246
  %554 = vmatpush.msra.mxu0 %v238
  %555 = vmatpush.msra.mxu0 %v230
  %556 = vmatpush.msra.mxu0 %v222
  %557 = vmatpush.msra.mxu0 %v214
  %558 = vmatpush.msra.mxu0 %v206
  %559 = vmatpush.msra.mxu0 %v198
  %560 = vmatpush.msra.mxu0 %v190
  %561 = vmatpush.msra.mxu0 %v182
  %562 = vmatpush.msra.mxu0 %v174
  %563 = vmatpush.msra.mxu0 %v166
  %564 = vmatpush.msra.mxu0 %v158
  %565 = vmatpush.msra.mxu0 %v150
  %566 = vmatmul.f32.gmra.mxu0 %v15
  %v567 = vpop.f32.mrf.mxu0
  %v568 = vadd.f32 %v548, %v567
  %569 = vdwg.mxu0
  %570 = vmatpush.msra.mxu0 %v143
  %571 = vmatpush.msra.mxu0 %v135
  %572 = vmatpush.msra.mxu0 %v127
  %573 = vmatpush.msra.mxu0 %v119
  %574 = vmatpush.msra.mxu0 %v111
  %575 = vmatpush.msra.mxu0 %v103
  %576 = vmatpush.msra.mxu0 %v95
  %577 = vmatpush.msra.mxu0 %v87
  %578 = vmatpush.msra.mxu0 %v79
  %579 = vmatpush.msra.mxu0 %v71
  %580 = vmatpush.msra.mxu0 %v63
  %581 = vmatpush.msra.mxu0 %v55
  %582 = vmatpush.msra.mxu0 %v47
  %583 = vmatpush.msra.mxu0 %v39
  %584 = vmatpush.msra.mxu0 %v31
  %585 = vmatpush.msra.mxu0 %v23
  %586 = vmatmul.f32.gmra.mxu0 %v14
  %v587 = vpop.f32.mrf.mxu0
  %v588 = vadd.f32 %v281, %v587
  %589 = vdwg.mxu0
  %590 = vmatpush.msra.mxu0 %v271
  %591 = vmatpush.msra.mxu0 %v263
  %592 = vmatpush.msra.mxu0 %v255
  %593 = vmatpush.msra.mxu0 %v247
  %594 = vmatpush.msra.mxu0 %v239
  %595 = vmatpush.msra.mxu0 %v231
  %596 = vmatpush.msra.mxu0 %v223
  %597 = vmatpush.msra.mxu0 %v215
  %598 = vmatpush.msra.mxu0 %v207
  %599 = vmatpush.msra.mxu0 %v199
  %600 = vmatpush.msra.mxu0 %v191
  %601 = vmatpush.msra.mxu0 %v183
  %602 = vmatpush.msra.mxu0 %v175
  %603 = vmatpush.msra.mxu0 %v167
  %604 = vmatpush.msra.mxu0 %v159
  %605 = vmatpush.msra.mxu0 %v151
  %606 = vmatmul.f32.gmra.mxu0 %v15
  %v607 = vpop.f32.mrf.mxu0
  %v608 = vadd.f32 %v588, %v607
  %609 = vdwg.mxu0
  %610 = vst [vmem:[%s3] sm:$0xff] %v328
  %611 = vst [vmem:[%s3 + $0x8] sm:$0xff] %v368
  %612 = vst [vmem:[%s3 + $0x10] sm:$0xff] %v408
  %613 = vst [vmem:[%s3 + $0x18] sm:$0xff] %v448
  %614 = vst [vmem:[%s3 + $0x20] sm:$0xff] %v488
  %615 = vst [vmem:[%s3 + $0x28] sm:$0xff] %v528
  %616 = vst [vmem:[%s3 + $0x30] sm:$0xff] %v568
  %617 = vst [vmem:[%s3 + $0x38] sm:$0xff] %v608
  // Predicated region
  $region14: #{trace_lstm_forward.28} parent=0 // pred_check
    _
  $region15: #{trace_lstm_forward.28} parent=0 // pred_check_branch
    %619 = sbr.rel (0) target = $region17
  $region16: #{trace_lstm_forward.28} parent=0 // pred_region
    _
  $region17: #{trace_lstm_forward.28} parent=0 // pred_fallthru
    _
  // Predicated region
  $region18: #{trace_lstm_forward.28} parent=0 // pred_check
    _
  $region19: #{trace_lstm_forward.28} parent=0 // pred_check_branch
    %621 = sbr.rel (0) target = $region21
  $region20: #{trace_lstm_forward.28} parent=0 // pred_region
    _
  $region21: #{trace_lstm_forward.28} parent=0 // pred_fallthru
    _

</llo_original>
